<compile_context>
chip_gen: v6e
topology: v6e:2x2x1
jax: 0.10.0
libtpu: 0.0.40
codegen_flags: <defaults>
</compile_context>

<pallas_src>
import math
import functools

import jax
import jax.numpy as jnp
from jax.experimental import pallas as pl
from jax.experimental.pallas import tpu as pltpu


# ----------------------------------------------------------------------------
# VMEM budget (generation aware)
# ----------------------------------------------------------------------------

@functools.lru_cache(maxsize=None)
def _vmem_limit_bytes():
    cap = None
    try:
        cap = pltpu.get_tpu_info().vmem_capacity_bytes
    except Exception:
        cap = None
    if not cap:
        # Safe everywhere (v7x has only 64 MiB physical per TensorCore).
        return 48 * 1024 * 1024
    headroom = 12 * 1024 * 1024        # Mosaic internal scratch + pipeline buffers
    return int(min(cap - headroom, 110 * 1024 * 1024))


# ----------------------------------------------------------------------------
# In-kernel helpers (traced inside the fused layer kernel)
# ----------------------------------------------------------------------------

def _attention(xq_b, xkv_b, wq, bq, wk, bk, wv, bv, wo, bo, num_head, causal):
    """Multi-head attention on one batch element.

    xq_b: (Sq, D) bf16, xkv_b: (Skv, D) bf16 (both pre-cast exactly once).
    wq/wk/wv/wo: (D, D) bf16 pre-transposed (in, out); the 1/sqrt(head_dim)
    scale is already folded into wq/bq.  Biases: (1, D) f32.
    Returns (Sq, D) f32.
    """
    sq, d_model = xq_b.shape
    skv = xkv_b.shape[0]
    hd = d_model // num_head

    # Full-width (K = D) projections — one MXU matmul each.
    q = jnp.dot(xq_b, wq, preferred_element_type=jnp.float32) + bq    # (Sq, D)
    k = jnp.dot(xkv_b, wk, preferred_element_type=jnp.float32) + bk   # (Skv, D)
    v = jnp.dot(xkv_b, wv, preferred_element_type=jnp.float32) + bv   # (Skv, D)

    # (S, D) -> (H, S, hd): one relayout per projection instead of H lane slices.
    qh = pltpu.einshape("mhd->hmd", q.reshape(sq, num_head, hd).astype(jnp.bfloat16))
    kh = pltpu.einshape("mhd->hmd", k.reshape(skv, num_head, hd).astype(jnp.bfloat16))
    vh = pltpu.einshape("mhd->hmd", v.reshape(skv, num_head, hd).astype(jnp.bfloat16))

    # Batched-over-heads score / softmax / PV (f32 softmax math).
    s = jnp.einsum('hqd,hkd->hqk', qh, kh, preferred_element_type=jnp.float32)
    if causal:
        row = jax.lax.broadcasted_iota(jnp.int32, (sq, skv), 0)
        col = jax.lax.broadcasted_iota(jnp.int32, (sq, skv), 1)
        s = jnp.where((row >= col)[None], s, -jnp.inf)   # select, no mask tensor
    s = s - jnp.max(s, axis=-1, keepdims=True)
    p = jnp.exp(s)
    p = p * pl.reciprocal(jnp.sum(p, axis=-1, keepdims=True), approx=True)

    o = jnp.einsum('hqk,hkd->hqd', p.astype(jnp.bfloat16), vh,
                   preferred_element_type=jnp.float32)               # (H, Sq, hd)
    o = pltpu.einshape("hmd->mhd", o).reshape(sq, d_model)           # (Sq, D)

    # Single full-K output projection for all heads (no per-head accumulation).
    return jnp.dot(o.astype(jnp.bfloat16), wo,
                   preferred_element_type=jnp.float32) + bo


def _add_layernorm(x, y, gamma, beta, eps):
    """LayerNorm(x + y) over the last dim, PyTorch semantics (f32 math)."""
    z = x + y
    mean = jnp.mean(z, axis=-1, keepdims=True)
    var = jnp.mean(jnp.square(z - mean), axis=-1, keepdims=True)   # biased var
    zn = (z - mean) * jax.lax.rsqrt(var + eps)
    return zn * gamma + beta


def _ffn(x, w1, b1, w2, b2):
    """Linear2(ReLU(Linear1(x))); weights (in, out) bf16, biases f32."""
    h = jnp.dot(x.astype(jnp.bfloat16), w1,
                preferred_element_type=jnp.float32) + b1
    h = jnp.maximum(h, 0.0)
    return jnp.dot(h.astype(jnp.bfloat16), w2,
                   preferred_element_type=jnp.float32) + b2


# ----------------------------------------------------------------------------
# Fused decoder-layer kernel (one grid step = one batch element)
# ----------------------------------------------------------------------------

def _decoder_layer_kernel(
        x_ref, kv_ref,
        s_wq, s_bq, s_wk, s_bk, s_wv, s_bv, s_wo, s_bo,     # masked self-attn
        c_wq, c_bq, c_wk, c_bk, c_wv, c_bv, c_wo, c_bo,     # cross-attn
        f_w1, f_b1, f_w2, f_b2,                             # FFN
        g1, be1, g2, be2, g3, be3,                          # LayerNorms
        out_ref, *, num_head, masked, eps):
    """One full decoder layer on a (S, D) activation block (batch squeezed)."""
    x = x_ref[...]                               # (S, D) f32
    kv_b = kv_ref[...].astype(jnp.bfloat16)      # (Skv, D) bf16, cast once

    # masked self-attention + residual + LayerNorm (single bf16 cast of x)
    x_b = x.astype(jnp.bfloat16)
    y = _attention(x_b, x_b, s_wq[...], s_bq[...], s_wk[...], s_bk[...],
                   s_wv[...], s_bv[...], s_wo[...], s_bo[...],
                   num_head, causal=masked)
    x = _add_layernorm(x, y, g1[...], be1[...], eps)

    # cross-attention over kv + residual + LayerNorm (no mask)
    x_b = x.astype(jnp.bfloat16)
    y = _attention(x_b, kv_b, c_wq[...], c_bq[...], c_wk[...], c_bk[...],
                   c_wv[...], c_bv[...], c_wo[...], c_bo[...],
                   num_head, causal=False)
    x = _add_layernorm(x, y, g2[...], be2[...], eps)

    # position-wise FFN + residual + LayerNorm
    y = _ffn(x, f_w1[...], f_b1[...], f_w2[...], f_b2[...])
    x = _add_layernorm(x, y, g3[...], be3[...], eps)

    out_ref[...] = x


def decoder_layer(x, kv, layer, n_head, masked=True, eps=1e-5):
    """One pallas_call per decoder layer: grid over batch, weights resident."""
    B, S, D = x.shape
    S_kv = kv.shape[1]
    args = (x, kv,
            *layer['masked_mha'], *layer['mha'], *layer['ffn'],
            *layer['norm1'], *layer['norm2'], *layer['norm3'])

    def resident(a):
        nd = a.ndim
        # Constant index_map -> DMA'd once, stays VMEM-resident across batch steps.
        return pl.BlockSpec(a.shape, lambda b, _nd=nd: (0,) * _nd)

    in_specs = [
        pl.BlockSpec((None, S, D), lambda b: (b, 0, 0)),      # x: one batch row
        pl.BlockSpec((None, S_kv, D), lambda b: (b, 0, 0)),   # kv: one batch row
    ] + [resident(a) for a in args[2:]]

    kernel = functools.partial(_decoder_layer_kernel, num_head=n_head,
                               masked=masked, eps=eps)
    # TODO(synk): for realistic S, additionally tile the query/row dimension
    #             and stream FFN weights over a K-tiled grid axis (v7x VMEM).
    return pl.pallas_call(
        kernel,
        grid=(B,),
        out_shape=jax.ShapeDtypeStruct((B, S, D), jnp.float32),
        in_specs=in_specs,
        out_specs=pl.BlockSpec((None, S, D), lambda b: (b, 0, 0)),
        compiler_params=pltpu.CompilerParams(
            dimension_semantics=("parallel",),
            vmem_limit_bytes=_vmem_limit_bytes()),
    )(*args)


# ----------------------------------------------------------------------------
# Model (parameter init + forward), matching TransformerDecoder.forward
# ----------------------------------------------------------------------------

def position_encoding_table(sql_len, d_model):
    # table[pos, i] = pos / 10000**(2*i/d_model)   (as in the PyTorch module)
    pos = jnp.arange(sql_len, dtype=jnp.float32)[:, None]
    i = jnp.arange(d_model, dtype=jnp.float32)[None, :]
    return pos / jnp.power(10000.0, 2.0 * i / d_model)


def init_params(key, n_layers, d_model, d_ffn, n_head):
    """Weights stored pre-transposed (in, out) in bf16 for the MXU; biases and
    LayerNorm params stay f32.  The 1/sqrt(head_dim) softmax scale is folded
    into the query projection weights/bias (zero in-kernel cost)."""
    head_dim = d_model // n_head
    scale = 1.0 / math.sqrt(head_dim)

    def linear(k, in_f, out_f):
        k1, k2 = jax.random.split(k)
        bound = 1.0 / math.sqrt(in_f)
        w = jax.random.uniform(k1, (in_f, out_f), jnp.float32, -bound, bound)
        b = jax.random.uniform(k2, (1, out_f), jnp.float32, -bound, bound)
        return w, b

    def attn_block(k):
        ks = jax.random.split(k, 4)
        wq, bq = linear(ks[0], d_model, d_model)
        wk, bk = linear(ks[1], d_model, d_model)
        wv, bv = linear(ks[2], d_model, d_model)
        wo, bo = linear(ks[3], d_model, d_model)
        wq, bq = wq * scale, bq * scale            # fold softmax scale
        return (wq.astype(jnp.bfloat16), bq, wk.astype(jnp.bfloat16), bk,
                wv.astype(jnp.bfloat16), bv, wo.astype(jnp.bfloat16), bo)

    layers = []
    for lk in jax.random.split(key, n_layers):
        ks = jax.random.split(lk, 4)
        w1, b1 = linear(ks[2], d_model, d_ffn)
        w2, b2 = linear(ks[3], d_ffn, d_model)
        ones = jnp.ones((1, d_model), jnp.float32)
        zeros = jnp.zeros((1, d_model), jnp.float32)
        layers.append(dict(
            masked_mha=attn_block(ks[0]),
            mha=attn_block(ks[1]),
            ffn=(w1.astype(jnp.bfloat16), b1, w2.astype(jnp.bfloat16), b2),
            norm1=(ones, zeros),
            norm2=(ones, zeros),
            norm3=(ones, zeros),
        ))
    return layers


def transformer_decoder_forward(kv, x, layers, pos_enc, n_head):
    B, S, D = x.shape
    x = x + pos_enc[:S]            # positional encoding (dropout = id in eval)
    for layer in layers:
        x = decoder_layer(x, kv, layer, n_head)
    return x


# ----------------------------------------------------------------------------
# Main
# ----------------------------------------------------------------------------

if __name__ == "__main__":
    # Small shapes consistent with the module's forward; d_model / d_ffn are
    # multiples of 128 so every vector op and the output store are lane-dense.
    B, S, S_KV = 2, 8, 8
    D_MODEL, N_HEAD, D_FFN = 128, 4, 256
    N_LAYERS, SQL_LEN = 2, 16

    key = jax.random.PRNGKey(0)
    k_x, k_kv, k_p = jax.random.split(key, 3)

    x = jax.random.normal(k_x, (B, S, D_MODEL), jnp.float32)
    kv = jax.random.normal(k_kv, (B, S_KV, D_MODEL), jnp.float32)

    layers = init_params(k_p, N_LAYERS, D_MODEL, D_FFN, N_HEAD)
    pos_enc = position_encoding_table(SQL_LEN, D_MODEL)

    fwd = jax.jit(functools.partial(transformer_decoder_forward, n_head=N_HEAD))
    out = jax.block_until_ready(fwd(kv, x, layers, pos_enc))

    assert out.shape == (B, S, D_MODEL)
    assert bool(jnp.all(jnp.isfinite(out)))
    print("KERNEL_OK")
</pallas_src>

<mosaic_0001>
module attributes {stable_mosaic.version = 11 : i64} {
  func.func @_decoder_layer_kernel(%arg0: i32, %arg1: memref<1x8x128xf32, #tpu.memory_space<vmem>>, %arg2: memref<1x8x128xf32, #tpu.memory_space<vmem>>, %arg3: memref<128x128xbf16, #tpu.memory_space<vmem>>, %arg4: memref<1x128xf32, #tpu.memory_space<vmem>>, %arg5: memref<128x128xbf16, #tpu.memory_space<vmem>>, %arg6: memref<1x128xf32, #tpu.memory_space<vmem>>, %arg7: memref<128x128xbf16, #tpu.memory_space<vmem>>, %arg8: memref<1x128xf32, #tpu.memory_space<vmem>>, %arg9: memref<128x128xbf16, #tpu.memory_space<vmem>>, %arg10: memref<1x128xf32, #tpu.memory_space<vmem>>, %arg11: memref<128x128xbf16, #tpu.memory_space<vmem>>, %arg12: memref<1x128xf32, #tpu.memory_space<vmem>>, %arg13: memref<128x128xbf16, #tpu.memory_space<vmem>>, %arg14: memref<1x128xf32, #tpu.memory_space<vmem>>, %arg15: memref<128x128xbf16, #tpu.memory_space<vmem>>, %arg16: memref<1x128xf32, #tpu.memory_space<vmem>>, %arg17: memref<128x128xbf16, #tpu.memory_space<vmem>>, %arg18: memref<1x128xf32, #tpu.memory_space<vmem>>, %arg19: memref<128x256xbf16, #tpu.memory_space<vmem>>, %arg20: memref<1x256xf32, #tpu.memory_space<vmem>>, %arg21: memref<256x128xbf16, #tpu.memory_space<vmem>>, %arg22: memref<1x128xf32, #tpu.memory_space<vmem>>, %arg23: memref<1x128xf32, #tpu.memory_space<vmem>>, %arg24: memref<1x128xf32, #tpu.memory_space<vmem>>, %arg25: memref<1x128xf32, #tpu.memory_space<vmem>>, %arg26: memref<1x128xf32, #tpu.memory_space<vmem>>, %arg27: memref<1x128xf32, #tpu.memory_space<vmem>>, %arg28: memref<1x128xf32, #tpu.memory_space<vmem>>, %arg29: memref<1x8x128xf32, #tpu.memory_space<vmem>>) attributes {dimension_semantics = [#tpu.dimension_semantics<parallel>], iteration_bounds = array<i64: 2>, scalar_prefetch = 0 : i64, scratch_operands = 0 : i64, tpu.core_type = #tpu.core_type<tc>, window_params = [{transform_indices = @transform_0, window_bounds = array<i64: 1, 8, 128>}, {transform_indices = @transform_1, window_bounds = array<i64: 1, 8, 128>}, {pipeline_mode = #tpu.pipeline_mode<synchronous>, transform_indices = @transform_2, window_bounds = array<i64: 128, 128>}, {pipeline_mode = #tpu.pipeline_mode<synchronous>, transform_indices = @transform_3, window_bounds = array<i64: 1, 128>}, {pipeline_mode = #tpu.pipeline_mode<synchronous>, transform_indices = @transform_4, window_bounds = array<i64: 128, 128>}, {pipeline_mode = #tpu.pipeline_mode<synchronous>, transform_indices = @transform_5, window_bounds = array<i64: 1, 128>}, {pipeline_mode = #tpu.pipeline_mode<synchronous>, transform_indices = @transform_6, window_bounds = array<i64: 128, 128>}, {pipeline_mode = #tpu.pipeline_mode<synchronous>, transform_indices = @transform_7, window_bounds = array<i64: 1, 128>}, {pipeline_mode = #tpu.pipeline_mode<synchronous>, transform_indices = @transform_8, window_bounds = array<i64: 128, 128>}, {pipeline_mode = #tpu.pipeline_mode<synchronous>, transform_indices = @transform_9, window_bounds = array<i64: 1, 128>}, {pipeline_mode = #tpu.pipeline_mode<synchronous>, transform_indices = @transform_10, window_bounds = array<i64: 128, 128>}, {pipeline_mode = #tpu.pipeline_mode<synchronous>, transform_indices = @transform_11, window_bounds = array<i64: 1, 128>}, {pipeline_mode = #tpu.pipeline_mode<synchronous>, transform_indices = @transform_12, window_bounds = array<i64: 128, 128>}, {pipeline_mode = #tpu.pipeline_mode<synchronous>, transform_indices = @transform_13, window_bounds = array<i64: 1, 128>}, {pipeline_mode = #tpu.pipeline_mode<synchronous>, transform_indices = @transform_14, window_bounds = array<i64: 128, 128>}, {pipeline_mode = #tpu.pipeline_mode<synchronous>, transform_indices = @transform_15, window_bounds = array<i64: 1, 128>}, {pipeline_mode = #tpu.pipeline_mode<synchronous>, transform_indices = @transform_16, window_bounds = array<i64: 128, 128>}, {pipeline_mode = #tpu.pipeline_mode<synchronous>, transform_indices = @transform_17, window_bounds = array<i64: 1, 128>}, {pipeline_mode = #tpu.pipeline_mode<synchronous>, transform_indices = @transform_18, window_bounds = array<i64: 128, 256>}, {pipeline_mode = #tpu.pipeline_mode<synchronous>, transform_indices = @transform_19, window_bounds = array<i64: 1, 256>}, {pipeline_mode = #tpu.pipeline_mode<synchronous>, transform_indices = @transform_20, window_bounds = array<i64: 256, 128>}, {pipeline_mode = #tpu.pipeline_mode<synchronous>, transform_indices = @transform_21, window_bounds = array<i64: 1, 128>}, {pipeline_mode = #tpu.pipeline_mode<synchronous>, transform_indices = @transform_22, window_bounds = array<i64: 1, 128>}, {pipeline_mode = #tpu.pipeline_mode<synchronous>, transform_indices = @transform_23, window_bounds = array<i64: 1, 128>}, {pipeline_mode = #tpu.pipeline_mode<synchronous>, transform_indices = @transform_24, window_bounds = array<i64: 1, 128>}, {pipeline_mode = #tpu.pipeline_mode<synchronous>, transform_indices = @transform_25, window_bounds = array<i64: 1, 128>}, {pipeline_mode = #tpu.pipeline_mode<synchronous>, transform_indices = @transform_26, window_bounds = array<i64: 1, 128>}, {pipeline_mode = #tpu.pipeline_mode<synchronous>, transform_indices = @transform_27, window_bounds = array<i64: 1, 128>}, {transform_indices = @transform_28, window_bounds = array<i64: 1, 8, 128>}]} {
    %c0 = arith.constant 0 : index
    %c0_0 = arith.constant 0 : index
    %c0_1 = arith.constant 0 : index
    %0 = vector.load %arg1[%c0, %c0_0, %c0_1] : memref<1x8x128xf32, #tpu.memory_space<vmem>>, vector<1x8x128xf32>
    %1 = vector.shape_cast %0 : vector<1x8x128xf32> to vector<8x128xf32>
    %c0_2 = arith.constant 0 : index
    %c0_3 = arith.constant 0 : index
    %c0_4 = arith.constant 0 : index
    %2 = vector.load %arg2[%c0_2, %c0_3, %c0_4] : memref<1x8x128xf32, #tpu.memory_space<vmem>>, vector<1x8x128xf32>
    %3 = vector.shape_cast %2 : vector<1x8x128xf32> to vector<8x128xf32>
    %4 = arith.truncf %3 : vector<8x128xf32> to vector<8x128xbf16>
    %5 = arith.truncf %1 : vector<8x128xf32> to vector<8x128xbf16>
    %c0_5 = arith.constant 0 : index
    %c0_6 = arith.constant 0 : index
    %6 = vector.load %arg3[%c0_5, %c0_6] : memref<128x128xbf16, #tpu.memory_space<vmem>>, vector<128x128xbf16>
    %c0_7 = arith.constant 0 : index
    %c0_8 = arith.constant 0 : index
    %7 = vector.load %arg4[%c0_7, %c0_8] : memref<1x128xf32, #tpu.memory_space<vmem>>, vector<1x128xf32>
    %c0_9 = arith.constant 0 : index
    %c0_10 = arith.constant 0 : index
    %8 = vector.load %arg5[%c0_9, %c0_10] : memref<128x128xbf16, #tpu.memory_space<vmem>>, vector<128x128xbf16>
    %c0_11 = arith.constant 0 : index
    %c0_12 = arith.constant 0 : index
    %9 = vector.load %arg6[%c0_11, %c0_12] : memref<1x128xf32, #tpu.memory_space<vmem>>, vector<1x128xf32>
    %c0_13 = arith.constant 0 : index
    %c0_14 = arith.constant 0 : index
    %10 = vector.load %arg7[%c0_13, %c0_14] : memref<128x128xbf16, #tpu.memory_space<vmem>>, vector<128x128xbf16>
    %c0_15 = arith.constant 0 : index
    %c0_16 = arith.constant 0 : index
    %11 = vector.load %arg8[%c0_15, %c0_16] : memref<1x128xf32, #tpu.memory_space<vmem>>, vector<1x128xf32>
    %c0_17 = arith.constant 0 : index
    %c0_18 = arith.constant 0 : index
    %12 = vector.load %arg9[%c0_17, %c0_18] : memref<128x128xbf16, #tpu.memory_space<vmem>>, vector<128x128xbf16>
    %c0_19 = arith.constant 0 : index
    %c0_20 = arith.constant 0 : index
    %13 = vector.load %arg10[%c0_19, %c0_20] : memref<1x128xf32, #tpu.memory_space<vmem>>, vector<1x128xf32>
    %cst = arith.constant dense<0.000000e+00> : vector<8x128xf32>
    %14 = tpu.matmul %5, %6, %cst {dimension_numbers = #tpu.dot_dimension_numbers<[1], [0], [0], [1], [0, 0, 1, 1], [], []>} : vector<8x128xbf16>, vector<128x128xbf16>, vector<8x128xf32> -> vector<8x128xf32>
    %15 = vector.broadcast %7 : vector<1x128xf32> to vector<8x128xf32>
    %16 = arith.addf %14, %15 : vector<8x128xf32>
    %cst_21 = arith.constant dense<0.000000e+00> : vector<8x128xf32>
    %17 = tpu.matmul %5, %8, %cst_21 {dimension_numbers = #tpu.dot_dimension_numbers<[1], [0], [0], [1], [0, 0, 1, 1], [], []>} : vector<8x128xbf16>, vector<128x128xbf16>, vector<8x128xf32> -> vector<8x128xf32>
    %18 = vector.broadcast %9 : vector<1x128xf32> to vector<8x128xf32>
    %19 = arith.addf %17, %18 : vector<8x128xf32>
    %cst_22 = arith.constant dense<0.000000e+00> : vector<8x128xf32>
    %20 = tpu.matmul %5, %10, %cst_22 {dimension_numbers = #tpu.dot_dimension_numbers<[1], [0], [0], [1], [0, 0, 1, 1], [], []>} : vector<8x128xbf16>, vector<128x128xbf16>, vector<8x128xf32> -> vector<8x128xf32>
    %21 = vector.broadcast %11 : vector<1x128xf32> to vector<8x128xf32>
    %22 = arith.addf %20, %21 : vector<8x128xf32>
    %23 = vector.shape_cast %16 : vector<8x128xf32> to vector<8x4x32xf32>
    %24 = arith.truncf %23 : vector<8x4x32xf32> to vector<8x4x32xbf16>
    %25 = tpu.transpose %24, [1, 0, 2] : vector<8x4x32xbf16> -> vector<4x8x32xbf16>
    %26 = vector.shape_cast %19 : vector<8x128xf32> to vector<8x4x32xf32>
    %27 = arith.truncf %26 : vector<8x4x32xf32> to vector<8x4x32xbf16>
    %28 = tpu.transpose %27, [1, 0, 2] : vector<8x4x32xbf16> -> vector<4x8x32xbf16>
    %29 = vector.shape_cast %22 : vector<8x128xf32> to vector<8x4x32xf32>
    %30 = arith.truncf %29 : vector<8x4x32xf32> to vector<8x4x32xbf16>
    %31 = tpu.transpose %30, [1, 0, 2] : vector<8x4x32xbf16> -> vector<4x8x32xbf16>
    "tpu.trace_start"() <{level = 10 : i32, message = "hqd,hkd->hqk"}> : () -> ()
    %cst_23 = arith.constant dense<0.000000e+00> : vector<4x8x8xf32>
    %32 = tpu.matmul %25, %28, %cst_23 {dimension_numbers = #tpu.dot_dimension_numbers<[2], [2], [1], [1], [0, 0, 0, 1, 1, 1], [0], [0]>} : vector<4x8x32xbf16>, vector<4x8x32xbf16>, vector<4x8x8xf32> -> vector<4x8x8xf32>
    "tpu.trace_stop"() : () -> ()
    %33 = tpu.iota {dimensions = array<i32: 0>} : vector<8x8xi32>
    %34 = tpu.iota {dimensions = array<i32: 1>} : vector<8x8xi32>
    %35 = arith.cmpi sge, %33, %34 : vector<8x8xi32>
    %36 = vector.shape_cast %35 : vector<8x8xi1> to vector<1x8x8xi1>
    %cst_24 = arith.constant 0xFF800000 : f32
    %37 = vector.shape_cast %36 : vector<1x8x8xi1> to vector<1x8x8xi1>
    %38 = vector.broadcast %37 : vector<1x8x8xi1> to vector<4x8x8xi1>
    %39 = vector.broadcast %cst_24 : f32 to vector<4x8x8xf32>
    %40 = arith.select %38, %32, %39 : vector<4x8x8xi1>, vector<4x8x8xf32>
    %cst_25 = arith.constant dense<0xFF800000> : vector<4x8xf32>
    %41 = vector.multi_reduction <maximumf>, %40, %cst_25 [2] : vector<4x8x8xf32> to vector<4x8xf32>
    %42 = vector.shape_cast %41 : vector<4x8xf32> to vector<4x8x1xf32>
    %43 = vector.broadcast %42 : vector<4x8x1xf32> to vector<4x8x8xf32>
    %44 = arith.subf %40, %43 : vector<4x8x8xf32>
    %45 = math.exp %44 : vector<4x8x8xf32>
    %cst_26 = arith.constant dense<0.000000e+00> : vector<4x8xf32>
    %46 = vector.multi_reduction <add>, %45, %cst_26 [2] : vector<4x8x8xf32> to vector<4x8xf32>
    %47 = vector.shape_cast %46 : vector<4x8xf32> to vector<4x8x1xf32>
    %48 = tpu.reciprocal %47 {approx = true} : vector<4x8x1xf32> -> vector<4x8x1xf32>
    %49 = vector.broadcast %48 : vector<4x8x1xf32> to vector<4x8x8xf32>
    %50 = arith.mulf %45, %49 : vector<4x8x8xf32>
    %51 = arith.truncf %50 : vector<4x8x8xf32> to vector<4x8x8xbf16>
    "tpu.trace_start"() <{level = 10 : i32, message = "hqk,hkd->hqd"}> : () -> ()
    %cst_27 = arith.constant dense<0.000000e+00> : vector<4x8x32xf32>
    %52 = tpu.matmul %51, %31, %cst_27 {dimension_numbers = #tpu.dot_dimension_numbers<[2], [1], [1], [2], [0, 0, 0, 1, 1, 2], [0], [0]>} : vector<4x8x8xbf16>, vector<4x8x32xbf16>, vector<4x8x32xf32> -> vector<4x8x32xf32>
    "tpu.trace_stop"() : () -> ()
    %53 = tpu.transpose %52, [1, 0, 2] : vector<4x8x32xf32> -> vector<8x4x32xf32>
    %54 = vector.shape_cast %53 : vector<8x4x32xf32> to vector<8x128xf32>
    %55 = arith.truncf %54 : vector<8x128xf32> to vector<8x128xbf16>
    %cst_28 = arith.constant dense<0.000000e+00> : vector<8x128xf32>
    %56 = tpu.matmul %55, %12, %cst_28 {dimension_numbers = #tpu.dot_dimension_numbers<[1], [0], [0], [1], [0, 0, 1, 1], [], []>} : vector<8x128xbf16>, vector<128x128xbf16>, vector<8x128xf32> -> vector<8x128xf32>
    %57 = vector.broadcast %13 : vector<1x128xf32> to vector<8x128xf32>
    %58 = arith.addf %56, %57 : vector<8x128xf32>
    %c0_29 = arith.constant 0 : index
    %c0_30 = arith.constant 0 : index
    %59 = vector.load %arg23[%c0_29, %c0_30] : memref<1x128xf32, #tpu.memory_space<vmem>>, vector<1x128xf32>
    %c0_31 = arith.constant 0 : index
    %c0_32 = arith.constant 0 : index
    %60 = vector.load %arg24[%c0_31, %c0_32] : memref<1x128xf32, #tpu.memory_space<vmem>>, vector<1x128xf32>
    %61 = arith.addf %1, %58 : vector<8x128xf32>
    %cst_33 = arith.constant dense<0.000000e+00> : vector<8xf32>
    %62 = vector.multi_reduction <add>, %61, %cst_33 [1] : vector<8x128xf32> to vector<8xf32>
    %63 = vector.shape_cast %62 : vector<8xf32> to vector<8x1xf32>
    %cst_34 = arith.constant 1.280000e+02 : f32
    %64 = vector.broadcast %cst_34 : f32 to vector<8x1xf32>
    %65 = arith.divf %63, %64 : vector<8x1xf32>
    %66 = vector.broadcast %65 : vector<8x1xf32> to vector<8x128xf32>
    %67 = arith.subf %61, %66 : vector<8x128xf32>
    %68 = arith.mulf %67, %67 : vector<8x128xf32>
    %cst_35 = arith.constant dense<0.000000e+00> : vector<8xf32>
    %69 = vector.multi_reduction <add>, %68, %cst_35 [1] : vector<8x128xf32> to vector<8xf32>
    %70 = vector.shape_cast %69 : vector<8xf32> to vector<8x1xf32>
    %cst_36 = arith.constant 1.280000e+02 : f32
    %71 = vector.broadcast %cst_36 : f32 to vector<8x1xf32>
    %72 = arith.divf %70, %71 : vector<8x1xf32>
    %73 = vector.broadcast %65 : vector<8x1xf32> to vector<8x128xf32>
    %74 = arith.subf %61, %73 : vector<8x128xf32>
    %cst_37 = arith.constant 9.99999974E-6 : f32
    %75 = vector.broadcast %cst_37 : f32 to vector<8x1xf32>
    %76 = arith.addf %72, %75 : vector<8x1xf32>
    %77 = math.rsqrt %76 : vector<8x1xf32>
    %78 = vector.broadcast %77 : vector<8x1xf32> to vector<8x128xf32>
    %79 = arith.mulf %74, %78 : vector<8x128xf32>
    %80 = vector.broadcast %59 : vector<1x128xf32> to vector<8x128xf32>
    %81 = arith.mulf %79, %80 : vector<8x128xf32>
    %82 = vector.broadcast %60 : vector<1x128xf32> to vector<8x128xf32>
    %83 = arith.addf %81, %82 : vector<8x128xf32>
    %84 = arith.truncf %83 : vector<8x128xf32> to vector<8x128xbf16>
    %c0_38 = arith.constant 0 : index
    %c0_39 = arith.constant 0 : index
    %85 = vector.load %arg11[%c0_38, %c0_39] : memref<128x128xbf16, #tpu.memory_space<vmem>>, vector<128x128xbf16>
    %c0_40 = arith.constant 0 : index
    %c0_41 = arith.constant 0 : index
    %86 = vector.load %arg12[%c0_40, %c0_41] : memref<1x128xf32, #tpu.memory_space<vmem>>, vector<1x128xf32>
    %c0_42 = arith.constant 0 : index
    %c0_43 = arith.constant 0 : index
    %87 = vector.load %arg13[%c0_42, %c0_43] : memref<128x128xbf16, #tpu.memory_space<vmem>>, vector<128x128xbf16>
    %c0_44 = arith.constant 0 : index
    %c0_45 = arith.constant 0 : index
    %88 = vector.load %arg14[%c0_44, %c0_45] : memref<1x128xf32, #tpu.memory_space<vmem>>, vector<1x128xf32>
    %c0_46 = arith.constant 0 : index
    %c0_47 = arith.constant 0 : index
    %89 = vector.load %arg15[%c0_46, %c0_47] : memref<128x128xbf16, #tpu.memory_space<vmem>>, vector<128x128xbf16>
    %c0_48 = arith.constant 0 : index
    %c0_49 = arith.constant 0 : index
    %90 = vector.load %arg16[%c0_48, %c0_49] : memref<1x128xf32, #tpu.memory_space<vmem>>, vector<1x128xf32>
    %c0_50 = arith.constant 0 : index
    %c0_51 = arith.constant 0 : index
    %91 = vector.load %arg17[%c0_50, %c0_51] : memref<128x128xbf16, #tpu.memory_space<vmem>>, vector<128x128xbf16>
    %c0_52 = arith.constant 0 : index
    %c0_53 = arith.constant 0 : index
    %92 = vector.load %arg18[%c0_52, %c0_53] : memref<1x128xf32, #tpu.memory_space<vmem>>, vector<1x128xf32>
    %cst_54 = arith.constant dense<0.000000e+00> : vector<8x128xf32>
    %93 = tpu.matmul %84, %85, %cst_54 {dimension_numbers = #tpu.dot_dimension_numbers<[1], [0], [0], [1], [0, 0, 1, 1], [], []>} : vector<8x128xbf16>, vector<128x128xbf16>, vector<8x128xf32> -> vector<8x128xf32>
    %94 = vector.broadcast %86 : vector<1x128xf32> to vector<8x128xf32>
    %95 = arith.addf %93, %94 : vector<8x128xf32>
    %cst_55 = arith.constant dense<0.000000e+00> : vector<8x128xf32>
    %96 = tpu.matmul %4, %87, %cst_55 {dimension_numbers = #tpu.dot_dimension_numbers<[1], [0], [0], [1], [0, 0, 1, 1], [], []>} : vector<8x128xbf16>, vector<128x128xbf16>, vector<8x128xf32> -> vector<8x128xf32>
    %97 = vector.broadcast %88 : vector<1x128xf32> to vector<8x128xf32>
    %98 = arith.addf %96, %97 : vector<8x128xf32>
    %cst_56 = arith.constant dense<0.000000e+00> : vector<8x128xf32>
    %99 = tpu.matmul %4, %89, %cst_56 {dimension_numbers = #tpu.dot_dimension_numbers<[1], [0], [0], [1], [0, 0, 1, 1], [], []>} : vector<8x128xbf16>, vector<128x128xbf16>, vector<8x128xf32> -> vector<8x128xf32>
    %100 = vector.broadcast %90 : vector<1x128xf32> to vector<8x128xf32>
    %101 = arith.addf %99, %100 : vector<8x128xf32>
    %102 = vector.shape_cast %95 : vector<8x128xf32> to vector<8x4x32xf32>
    %103 = arith.truncf %102 : vector<8x4x32xf32> to vector<8x4x32xbf16>
    %104 = tpu.transpose %103, [1, 0, 2] : vector<8x4x32xbf16> -> vector<4x8x32xbf16>
    %105 = vector.shape_cast %98 : vector<8x128xf32> to vector<8x4x32xf32>
    %106 = arith.truncf %105 : vector<8x4x32xf32> to vector<8x4x32xbf16>
    %107 = tpu.transpose %106, [1, 0, 2] : vector<8x4x32xbf16> -> vector<4x8x32xbf16>
    %108 = vector.shape_cast %101 : vector<8x128xf32> to vector<8x4x32xf32>
    %109 = arith.truncf %108 : vector<8x4x32xf32> to vector<8x4x32xbf16>
    %110 = tpu.transpose %109, [1, 0, 2] : vector<8x4x32xbf16> -> vector<4x8x32xbf16>
    "tpu.trace_start"() <{level = 10 : i32, message = "hqd,hkd->hqk"}> : () -> ()
    %cst_57 = arith.constant dense<0.000000e+00> : vector<4x8x8xf32>
    %111 = tpu.matmul %104, %107, %cst_57 {dimension_numbers = #tpu.dot_dimension_numbers<[2], [2], [1], [1], [0, 0, 0, 1, 1, 1], [0], [0]>} : vector<4x8x32xbf16>, vector<4x8x32xbf16>, vector<4x8x8xf32> -> vector<4x8x8xf32>
    "tpu.trace_stop"() : () -> ()
    %cst_58 = arith.constant dense<0xFF800000> : vector<4x8xf32>
    %112 = vector.multi_reduction <maximumf>, %111, %cst_58 [2] : vector<4x8x8xf32> to vector<4x8xf32>
    %113 = vector.shape_cast %112 : vector<4x8xf32> to vector<4x8x1xf32>
    %114 = vector.broadcast %113 : vector<4x8x1xf32> to vector<4x8x8xf32>
    %115 = arith.subf %111, %114 : vector<4x8x8xf32>
    %116 = math.exp %115 : vector<4x8x8xf32>
    %cst_59 = arith.constant dense<0.000000e+00> : vector<4x8xf32>
    %117 = vector.multi_reduction <add>, %116, %cst_59 [2] : vector<4x8x8xf32> to vector<4x8xf32>
    %118 = vector.shape_cast %117 : vector<4x8xf32> to vector<4x8x1xf32>
    %119 = tpu.reciprocal %118 {approx = true} : vector<4x8x1xf32> -> vector<4x8x1xf32>
    %120 = vector.broadcast %119 : vector<4x8x1xf32> to vector<4x8x8xf32>
    %121 = arith.mulf %116, %120 : vector<4x8x8xf32>
    %122 = arith.truncf %121 : vector<4x8x8xf32> to vector<4x8x8xbf16>
    "tpu.trace_start"() <{level = 10 : i32, message = "hqk,hkd->hqd"}> : () -> ()
    %cst_60 = arith.constant dense<0.000000e+00> : vector<4x8x32xf32>
    %123 = tpu.matmul %122, %110, %cst_60 {dimension_numbers = #tpu.dot_dimension_numbers<[2], [1], [1], [2], [0, 0, 0, 1, 1, 2], [0], [0]>} : vector<4x8x8xbf16>, vector<4x8x32xbf16>, vector<4x8x32xf32> -> vector<4x8x32xf32>
    "tpu.trace_stop"() : () -> ()
    %124 = tpu.transpose %123, [1, 0, 2] : vector<4x8x32xf32> -> vector<8x4x32xf32>
    %125 = vector.shape_cast %124 : vector<8x4x32xf32> to vector<8x128xf32>
    %126 = arith.truncf %125 : vector<8x128xf32> to vector<8x128xbf16>
    %cst_61 = arith.constant dense<0.000000e+00> : vector<8x128xf32>
    %127 = tpu.matmul %126, %91, %cst_61 {dimension_numbers = #tpu.dot_dimension_numbers<[1], [0], [0], [1], [0, 0, 1, 1], [], []>} : vector<8x128xbf16>, vector<128x128xbf16>, vector<8x128xf32> -> vector<8x128xf32>
    %128 = vector.broadcast %92 : vector<1x128xf32> to vector<8x128xf32>
    %129 = arith.addf %127, %128 : vector<8x128xf32>
    %c0_62 = arith.constant 0 : index
    %c0_63 = arith.constant 0 : index
    %130 = vector.load %arg25[%c0_62, %c0_63] : memref<1x128xf32, #tpu.memory_space<vmem>>, vector<1x128xf32>
    %c0_64 = arith.constant 0 : index
    %c0_65 = arith.constant 0 : index
    %131 = vector.load %arg26[%c0_64, %c0_65] : memref<1x128xf32, #tpu.memory_space<vmem>>, vector<1x128xf32>
    %132 = arith.addf %83, %129 : vector<8x128xf32>
    %cst_66 = arith.constant dense<0.000000e+00> : vector<8xf32>
    %133 = vector.multi_reduction <add>, %132, %cst_66 [1] : vector<8x128xf32> to vector<8xf32>
    %134 = vector.shape_cast %133 : vector<8xf32> to vector<8x1xf32>
    %cst_67 = arith.constant 1.280000e+02 : f32
    %135 = vector.broadcast %cst_67 : f32 to vector<8x1xf32>
    %136 = arith.divf %134, %135 : vector<8x1xf32>
    %137 = vector.broadcast %136 : vector<8x1xf32> to vector<8x128xf32>
    %138 = arith.subf %132, %137 : vector<8x128xf32>
    %139 = arith.mulf %138, %138 : vector<8x128xf32>
    %cst_68 = arith.constant dense<0.000000e+00> : vector<8xf32>
    %140 = vector.multi_reduction <add>, %139, %cst_68 [1] : vector<8x128xf32> to vector<8xf32>
    %141 = vector.shape_cast %140 : vector<8xf32> to vector<8x1xf32>
    %cst_69 = arith.constant 1.280000e+02 : f32
    %142 = vector.broadcast %cst_69 : f32 to vector<8x1xf32>
    %143 = arith.divf %141, %142 : vector<8x1xf32>
    %144 = vector.broadcast %136 : vector<8x1xf32> to vector<8x128xf32>
    %145 = arith.subf %132, %144 : vector<8x128xf32>
    %cst_70 = arith.constant 9.99999974E-6 : f32
    %146 = vector.broadcast %cst_70 : f32 to vector<8x1xf32>
    %147 = arith.addf %143, %146 : vector<8x1xf32>
    %148 = math.rsqrt %147 : vector<8x1xf32>
    %149 = vector.broadcast %148 : vector<8x1xf32> to vector<8x128xf32>
    %150 = arith.mulf %145, %149 : vector<8x128xf32>
    %151 = vector.broadcast %130 : vector<1x128xf32> to vector<8x128xf32>
    %152 = arith.mulf %150, %151 : vector<8x128xf32>
    %153 = vector.broadcast %131 : vector<1x128xf32> to vector<8x128xf32>
    %154 = arith.addf %152, %153 : vector<8x128xf32>
    %c0_71 = arith.constant 0 : index
    %c0_72 = arith.constant 0 : index
    %155 = vector.load %arg19[%c0_71, %c0_72] : memref<128x256xbf16, #tpu.memory_space<vmem>>, vector<128x256xbf16>
    %c0_73 = arith.constant 0 : index
    %c0_74 = arith.constant 0 : index
    %156 = vector.load %arg20[%c0_73, %c0_74] : memref<1x256xf32, #tpu.memory_space<vmem>>, vector<1x256xf32>
    %c0_75 = arith.constant 0 : index
    %c0_76 = arith.constant 0 : index
    %157 = vector.load %arg21[%c0_75, %c0_76] : memref<256x128xbf16, #tpu.memory_space<vmem>>, vector<256x128xbf16>
    %c0_77 = arith.constant 0 : index
    %c0_78 = arith.constant 0 : index
    %158 = vector.load %arg22[%c0_77, %c0_78] : memref<1x128xf32, #tpu.memory_space<vmem>>, vector<1x128xf32>
    %159 = arith.truncf %154 : vector<8x128xf32> to vector<8x128xbf16>
    %cst_79 = arith.constant dense<0.000000e+00> : vector<8x256xf32>
    %160 = tpu.matmul %159, %155, %cst_79 {dimension_numbers = #tpu.dot_dimension_numbers<[1], [0], [0], [1], [0, 0, 1, 1], [], []>} : vector<8x128xbf16>, vector<128x256xbf16>, vector<8x256xf32> -> vector<8x256xf32>
    %161 = vector.broadcast %156 : vector<1x256xf32> to vector<8x256xf32>
    %162 = arith.addf %160, %161 : vector<8x256xf32>
    %cst_80 = arith.constant 0.000000e+00 : f32
    %163 = vector.broadcast %cst_80 : f32 to vector<8x256xf32>
    %164 = arith.maximumf %162, %163 : vector<8x256xf32>
    %165 = arith.truncf %164 : vector<8x256xf32> to vector<8x256xbf16>
    %cst_81 = arith.constant dense<0.000000e+00> : vector<8x128xf32>
    %166 = tpu.matmul %165, %157, %cst_81 {dimension_numbers = #tpu.dot_dimension_numbers<[1], [0], [0], [1], [0, 0, 1, 1], [], []>} : vector<8x256xbf16>, vector<256x128xbf16>, vector<8x128xf32> -> vector<8x128xf32>
    %167 = vector.broadcast %158 : vector<1x128xf32> to vector<8x128xf32>
    %168 = arith.addf %166, %167 : vector<8x128xf32>
    %c0_82 = arith.constant 0 : index
    %c0_83 = arith.constant 0 : index
    %169 = vector.load %arg27[%c0_82, %c0_83] : memref<1x128xf32, #tpu.memory_space<vmem>>, vector<1x128xf32>
    %c0_84 = arith.constant 0 : index
    %c0_85 = arith.constant 0 : index
    %170 = vector.load %arg28[%c0_84, %c0_85] : memref<1x128xf32, #tpu.memory_space<vmem>>, vector<1x128xf32>
    %171 = arith.addf %154, %168 : vector<8x128xf32>
    %cst_86 = arith.constant dense<0.000000e+00> : vector<8xf32>
    %172 = vector.multi_reduction <add>, %171, %cst_86 [1] : vector<8x128xf32> to vector<8xf32>
    %173 = vector.shape_cast %172 : vector<8xf32> to vector<8x1xf32>
    %cst_87 = arith.constant 1.280000e+02 : f32
    %174 = vector.broadcast %cst_87 : f32 to vector<8x1xf32>
    %175 = arith.divf %173, %174 : vector<8x1xf32>
    %176 = vector.broadcast %175 : vector<8x1xf32> to vector<8x128xf32>
    %177 = arith.subf %171, %176 : vector<8x128xf32>
    %178 = arith.mulf %177, %177 : vector<8x128xf32>
    %cst_88 = arith.constant dense<0.000000e+00> : vector<8xf32>
    %179 = vector.multi_reduction <add>, %178, %cst_88 [1] : vector<8x128xf32> to vector<8xf32>
    %180 = vector.shape_cast %179 : vector<8xf32> to vector<8x1xf32>
    %cst_89 = arith.constant 1.280000e+02 : f32
    %181 = vector.broadcast %cst_89 : f32 to vector<8x1xf32>
    %182 = arith.divf %180, %181 : vector<8x1xf32>
    %183 = vector.broadcast %175 : vector<8x1xf32> to vector<8x128xf32>
    %184 = arith.subf %171, %183 : vector<8x128xf32>
    %cst_90 = arith.constant 9.99999974E-6 : f32
    %185 = vector.broadcast %cst_90 : f32 to vector<8x1xf32>
    %186 = arith.addf %182, %185 : vector<8x1xf32>
    %187 = math.rsqrt %186 : vector<8x1xf32>
    %188 = vector.broadcast %187 : vector<8x1xf32> to vector<8x128xf32>
    %189 = arith.mulf %184, %188 : vector<8x128xf32>
    %190 = vector.broadcast %169 : vector<1x128xf32> to vector<8x128xf32>
    %191 = arith.mulf %189, %190 : vector<8x128xf32>
    %192 = vector.broadcast %170 : vector<1x128xf32> to vector<8x128xf32>
    %193 = arith.addf %191, %192 : vector<8x128xf32>
    %c0_91 = arith.constant 0 : index
    %c0_92 = arith.constant 0 : index
    %c0_93 = arith.constant 0 : index
    %194 = vector.load %arg29[%c0_91, %c0_92, %c0_93] : memref<1x8x128xf32, #tpu.memory_space<vmem>>, vector<1x8x128xf32>
    %195 = vector.shape_cast %194 : vector<1x8x128xf32> to vector<8x128xf32>
    %196 = vector.shape_cast %193 : vector<8x128xf32> to vector<1x8x128xf32>
    tpu.vector_store %arg29[%c0_91, %c0_92, %c0_93], %196 {strides = array<i32>} : memref<1x8x128xf32, #tpu.memory_space<vmem>>, vector<1x8x128xf32>,
    return
  }
  func.func @transform_0(%arg0: i32) -> (i32, i32, i32) {
    %c0_i32 = arith.constant 0 : i32
    %c0_i32_0 = arith.constant 0 : i32
    %c0_i32_1 = arith.constant 0 : i32
    return %arg0, %c0_i32, %c0_i32_0 : i32, i32, i32
  }
  func.func @transform_1(%arg0: i32) -> (i32, i32, i32) {
    %c0_i32 = arith.constant 0 : i32
    %c0_i32_0 = arith.constant 0 : i32
    %c0_i32_1 = arith.constant 0 : i32
    return %arg0, %c0_i32, %c0_i32_0 : i32, i32, i32
  }
  func.func @transform_2(%arg0: i32) -> (i32, i32) {
    %c0_i32 = arith.constant 0 : i32
    %c0_i32_0 = arith.constant 0 : i32
    %c0_i32_1 = arith.constant 0 : i32
    return %c0_i32, %c0_i32_0 : i32, i32
  }
  func.func @transform_3(%arg0: i32) -> (i32, i32) {
    %c0_i32 = arith.constant 0 : i32
    %c0_i32_0 = arith.constant 0 : i32
    %c0_i32_1 = arith.constant 0 : i32
    return %c0_i32, %c0_i32_0 : i32, i32
  }
  func.func @transform_4(%arg0: i32) -> (i32, i32) {
    %c0_i32 = arith.constant 0 : i32
    %c0_i32_0 = arith.constant 0 : i32
    %c0_i32_1 = arith.constant 0 : i32
    return %c0_i32, %c0_i32_0 : i32, i32
  }
  func.func @transform_5(%arg0: i32) -> (i32, i32) {
    %c0_i32 = arith.constant 0 : i32
    %c0_i32_0 = arith.constant 0 : i32
    %c0_i32_1 = arith.constant 0 : i32
    return %c0_i32, %c0_i32_0 : i32, i32
  }
  func.func @transform_6(%arg0: i32) -> (i32, i32) {
    %c0_i32 = arith.constant 0 : i32
    %c0_i32_0 = arith.constant 0 : i32
    %c0_i32_1 = arith.constant 0 : i32
    return %c0_i32, %c0_i32_0 : i32, i32
  }
  func.func @transform_7(%arg0: i32) -> (i32, i32) {
    %c0_i32 = arith.constant 0 : i32
    %c0_i32_0 = arith.constant 0 : i32
    %c0_i32_1 = arith.constant 0 : i32
    return %c0_i32, %c0_i32_0 : i32, i32
  }
  func.func @transform_8(%arg0: i32) -> (i32, i32) {
    %c0_i32 = arith.constant 0 : i32
    %c0_i32_0 = arith.constant 0 : i32
    %c0_i32_1 = arith.constant 0 : i32
    return %c0_i32, %c0_i32_0 : i32, i32
  }
  func.func @transform_9(%arg0: i32) -> (i32, i32) {
    %c0_i32 = arith.constant 0 : i32
    %c0_i32_0 = arith.constant 0 : i32
    %c0_i32_1 = arith.constant 0 : i32
    return %c0_i32, %c0_i32_0 : i32, i32
  }
  func.func @transform_10(%arg0: i32) -> (i32, i32) {
    %c0_i32 = arith.constant 0 : i32
    %c0_i32_0 = arith.constant 0 : i32
    %c0_i32_1 = arith.constant 0 : i32
    return %c0_i32, %c0_i32_0 : i32, i32
  }
  func.func @transform_11(%arg0: i32) -> (i32, i32) {
    %c0_i32 = arith.constant 0 : i32
    %c0_i32_0 = arith.constant 0 : i32
    %c0_i32_1 = arith.constant 0 : i32
    return %c0_i32, %c0_i32_0 : i32, i32
  }
  func.func @transform_12(%arg0: i32) -> (i32, i32) {
    %c0_i32 = arith.constant 0 : i32
    %c0_i32_0 = arith.constant 0 : i32
    %c0_i32_1 = arith.constant 0 : i32
    return %c0_i32, %c0_i32_0 : i32, i32
  }
  func.func @transform_13(%arg0: i32) -> (i32, i32) {
    %c0_i32 = arith.constant 0 : i32
    %c0_i32_0 = arith.constant 0 : i32
    %c0_i32_1 = arith.constant 0 : i32
    return %c0_i32, %c0_i32_0 : i32, i32
  }
  func.func @transform_14(%arg0: i32) -> (i32, i32) {
    %c0_i32 = arith.constant 0 : i32
    %c0_i32_0 = arith.constant 0 : i32
    %c0_i32_1 = arith.constant 0 : i32
    return %c0_i32, %c0_i32_0 : i32, i32
  }
  func.func @transform_15(%arg0: i32) -> (i32, i32) {
    %c0_i32 = arith.constant 0 : i32
    %c0_i32_0 = arith.constant 0 : i32
    %c0_i32_1 = arith.constant 0 : i32
    return %c0_i32, %c0_i32_0 : i32, i32
  }
  func.func @transform_16(%arg0: i32) -> (i32, i32) {
    %c0_i32 = arith.constant 0 : i32
    %c0_i32_0 = arith.constant 0 : i32
    %c0_i32_1 = arith.constant 0 : i32
    return %c0_i32, %c0_i32_0 : i32, i32
  }
  func.func @transform_17(%arg0: i32) -> (i32, i32) {
    %c0_i32 = arith.constant 0 : i32
    %c0_i32_0 = arith.constant 0 : i32
    %c0_i32_1 = arith.constant 0 : i32
    return %c0_i32, %c0_i32_0 : i32, i32
  }
  func.func @transform_18(%arg0: i32) -> (i32, i32) {
    %c0_i32 = arith.constant 0 : i32
    %c0_i32_0 = arith.constant 0 : i32
    %c0_i32_1 = arith.constant 0 : i32
    return %c0_i32, %c0_i32_0 : i32, i32
  }
  func.func @transform_19(%arg0: i32) -> (i32, i32) {
    %c0_i32 = arith.constant 0 : i32
    %c0_i32_0 = arith.constant 0 : i32
    %c0_i32_1 = arith.constant 0 : i32
    return %c0_i32, %c0_i32_0 : i32, i32
  }
  func.func @transform_20(%arg0: i32) -> (i32, i32) {
    %c0_i32 = arith.constant 0 : i32
    %c0_i32_0 = arith.constant 0 : i32
    %c0_i32_1 = arith.constant 0 : i32
    return %c0_i32, %c0_i32_0 : i32, i32
  }
  func.func @transform_21(%arg0: i32) -> (i32, i32) {
    %c0_i32 = arith.constant 0 : i32
    %c0_i32_0 = arith.constant 0 : i32
    %c0_i32_1 = arith.constant 0 : i32
    return %c0_i32, %c0_i32_0 : i32, i32
  }
  func.func @transform_22(%arg0: i32) -> (i32, i32) {
    %c0_i32 = arith.constant 0 : i32
    %c0_i32_0 = arith.constant 0 : i32
    %c0_i32_1 = arith.constant 0 : i32
    return %c0_i32, %c0_i32_0 : i32, i32
  }
  func.func @transform_23(%arg0: i32) -> (i32, i32) {
    %c0_i32 = arith.constant 0 : i32
    %c0_i32_0 = arith.constant 0 : i32
    %c0_i32_1 = arith.constant 0 : i32
    return %c0_i32, %c0_i32_0 : i32, i32
  }
  func.func @transform_24(%arg0: i32) -> (i32, i32) {
    %c0_i32 = arith.constant 0 : i32
    %c0_i32_0 = arith.constant 0 : i32
    %c0_i32_1 = arith.constant 0 : i32
    return %c0_i32, %c0_i32_0 : i32, i32
  }
  func.func @transform_25(%arg0: i32) -> (i32, i32) {
    %c0_i32 = arith.constant 0 : i32
    %c0_i32_0 = arith.constant 0 : i32
    %c0_i32_1 = arith.constant 0 : i32
    return %c0_i32, %c0_i32_0 : i32, i32
  }
  func.func @transform_26(%arg0: i32) -> (i32, i32) {
    %c0_i32 = arith.constant 0 : i32
    %c0_i32_0 = arith.constant 0 : i32
    %c0_i32_1 = arith.constant 0 : i32
    return %c0_i32, %c0_i32_0 : i32, i32
  }
  func.func @transform_27(%arg0: i32) -> (i32, i32) {
    %c0_i32 = arith.constant 0 : i32
    %c0_i32_0 = arith.constant 0 : i32
    %c0_i32_1 = arith.constant 0 : i32
    return %c0_i32, %c0_i32_0 : i32, i32
  }
  func.func @transform_28(%arg0: i32) -> (i32, i32, i32) {
    %c0_i32 = arith.constant 0 : i32
    %c0_i32_0 = arith.constant 0 : i32
    %c0_i32_1 = arith.constant 0 : i32
    return %arg0, %c0_i32, %c0_i32_0 : i32, i32, i32
  }
}

module attributes {stable_mosaic.version = 11 : i64} {
  func.func @_decoder_layer_kernel(%arg0: i32, %arg1: memref<1x8x128xf32, #tpu.memory_space<vmem>>, %arg2: memref<1x8x128xf32, #tpu.memory_space<vmem>>, %arg3: memref<128x128xbf16, #tpu.memory_space<vmem>>, %arg4: memref<1x128xf32, #tpu.memory_space<vmem>>, %arg5: memref<128x128xbf16, #tpu.memory_space<vmem>>, %arg6: memref<1x128xf32, #tpu.memory_space<vmem>>, %arg7: memref<128x128xbf16, #tpu.memory_space<vmem>>, %arg8: memref<1x128xf32, #tpu.memory_space<vmem>>, %arg9: memref<128x128xbf16, #tpu.memory_space<vmem>>, %arg10: memref<1x128xf32, #tpu.memory_space<vmem>>, %arg11: memref<128x128xbf16, #tpu.memory_space<vmem>>, %arg12: memref<1x128xf32, #tpu.memory_space<vmem>>, %arg13: memref<128x128xbf16, #tpu.memory_space<vmem>>, %arg14: memref<1x128xf32, #tpu.memory_space<vmem>>, %arg15: memref<128x128xbf16, #tpu.memory_space<vmem>>, %arg16: memref<1x128xf32, #tpu.memory_space<vmem>>, %arg17: memref<128x128xbf16, #tpu.memory_space<vmem>>, %arg18: memref<1x128xf32, #tpu.memory_space<vmem>>, %arg19: memref<128x256xbf16, #tpu.memory_space<vmem>>, %arg20: memref<1x256xf32, #tpu.memory_space<vmem>>, %arg21: memref<256x128xbf16, #tpu.memory_space<vmem>>, %arg22: memref<1x128xf32, #tpu.memory_space<vmem>>, %arg23: memref<1x128xf32, #tpu.memory_space<vmem>>, %arg24: memref<1x128xf32, #tpu.memory_space<vmem>>, %arg25: memref<1x128xf32, #tpu.memory_space<vmem>>, %arg26: memref<1x128xf32, #tpu.memory_space<vmem>>, %arg27: memref<1x128xf32, #tpu.memory_space<vmem>>, %arg28: memref<1x128xf32, #tpu.memory_space<vmem>>, %arg29: memref<1x8x128xf32, #tpu.memory_space<vmem>>) attributes {dimension_semantics = [#tpu.dimension_semantics<parallel>], iteration_bounds = array<i64: 2>, scalar_prefetch = 0 : i64, scratch_operands = 0 : i64, tpu.core_type = #tpu.core_type<tc>, window_params = [{transform_indices = @transform_0, window_bounds = array<i64: 1, 8, 128>}, {transform_indices = @transform_1, window_bounds = array<i64: 1, 8, 128>}, {pipeline_mode = #tpu.pipeline_mode<synchronous>, transform_indices = @transform_2, window_bounds = array<i64: 128, 128>}, {pipeline_mode = #tpu.pipeline_mode<synchronous>, transform_indices = @transform_3, window_bounds = array<i64: 1, 128>}, {pipeline_mode = #tpu.pipeline_mode<synchronous>, transform_indices = @transform_4, window_bounds = array<i64: 128, 128>}, {pipeline_mode = #tpu.pipeline_mode<synchronous>, transform_indices = @transform_5, window_bounds = array<i64: 1, 128>}, {pipeline_mode = #tpu.pipeline_mode<synchronous>, transform_indices = @transform_6, window_bounds = array<i64: 128, 128>}, {pipeline_mode = #tpu.pipeline_mode<synchronous>, transform_indices = @transform_7, window_bounds = array<i64: 1, 128>}, {pipeline_mode = #tpu.pipeline_mode<synchronous>, transform_indices = @transform_8, window_bounds = array<i64: 128, 128>}, {pipeline_mode = #tpu.pipeline_mode<synchronous>, transform_indices = @transform_9, window_bounds = array<i64: 1, 128>}, {pipeline_mode = #tpu.pipeline_mode<synchronous>, transform_indices = @transform_10, window_bounds = array<i64: 128, 128>}, {pipeline_mode = #tpu.pipeline_mode<synchronous>, transform_indices = @transform_11, window_bounds = array<i64: 1, 128>}, {pipeline_mode = #tpu.pipeline_mode<synchronous>, transform_indices = @transform_12, window_bounds = array<i64: 128, 128>}, {pipeline_mode = #tpu.pipeline_mode<synchronous>, transform_indices = @transform_13, window_bounds = array<i64: 1, 128>}, {pipeline_mode = #tpu.pipeline_mode<synchronous>, transform_indices = @transform_14, window_bounds = array<i64: 128, 128>}, {pipeline_mode = #tpu.pipeline_mode<synchronous>, transform_indices = @transform_15, window_bounds = array<i64: 1, 128>}, {pipeline_mode = #tpu.pipeline_mode<synchronous>, transform_indices = @transform_16, window_bounds = array<i64: 128, 128>}, {pipeline_mode = #tpu.pipeline_mode<synchronous>, transform_indices = @transform_17, window_bounds = array<i64: 1, 128>}, {pipeline_mode = #tpu.pipeline_mode<synchronous>, transform_indices = @transform_18, window_bounds = array<i64: 128, 256>}, {pipeline_mode = #tpu.pipeline_mode<synchronous>, transform_indices = @transform_19, window_bounds = array<i64: 1, 256>}, {pipeline_mode = #tpu.pipeline_mode<synchronous>, transform_indices = @transform_20, window_bounds = array<i64: 256, 128>}, {pipeline_mode = #tpu.pipeline_mode<synchronous>, transform_indices = @transform_21, window_bounds = array<i64: 1, 128>}, {pipeline_mode = #tpu.pipeline_mode<synchronous>, transform_indices = @transform_22, window_bounds = array<i64: 1, 128>}, {pipeline_mode = #tpu.pipeline_mode<synchronous>, transform_indices = @transform_23, window_bounds = array<i64: 1, 128>}, {pipeline_mode = #tpu.pipeline_mode<synchronous>, transform_indices = @transform_24, window_bounds = array<i64: 1, 128>}, {pipeline_mode = #tpu.pipeline_mode<synchronous>, transform_indices = @transform_25, window_bounds = array<i64: 1, 128>}, {pipeline_mode = #tpu.pipeline_mode<synchronous>, transform_indices = @transform_26, window_bounds = array<i64: 1, 128>}, {pipeline_mode = #tpu.pipeline_mode<synchronous>, transform_indices = @transform_27, window_bounds = array<i64: 1, 128>}, {transform_indices = @transform_28, window_bounds = array<i64: 1, 8, 128>}]} {
    %c0 = arith.constant 0 : index
    %c0_0 = arith.constant 0 : index
    %c0_1 = arith.constant 0 : index
    %0 = vector.load %arg1[%c0, %c0_0, %c0_1] : memref<1x8x128xf32, #tpu.memory_space<vmem>>, vector<1x8x128xf32>
    %1 = vector.shape_cast %0 : vector<1x8x128xf32> to vector<8x128xf32>
    %c0_2 = arith.constant 0 : index
    %c0_3 = arith.constant 0 : index
    %c0_4 = arith.constant 0 : index
    %2 = vector.load %arg2[%c0_2, %c0_3, %c0_4] : memref<1x8x128xf32, #tpu.memory_space<vmem>>, vector<1x8x128xf32>
    %3 = vector.shape_cast %2 : vector<1x8x128xf32> to vector<8x128xf32>
    %4 = arith.truncf %3 : vector<8x128xf32> to vector<8x128xbf16>
    %5 = arith.truncf %1 : vector<8x128xf32> to vector<8x128xbf16>
    %c0_5 = arith.constant 0 : index
    %c0_6 = arith.constant 0 : index
    %6 = vector.load %arg3[%c0_5, %c0_6] : memref<128x128xbf16, #tpu.memory_space<vmem>>, vector<128x128xbf16>
    %c0_7 = arith.constant 0 : index
    %c0_8 = arith.constant 0 : index
    %7 = vector.load %arg4[%c0_7, %c0_8] : memref<1x128xf32, #tpu.memory_space<vmem>>, vector<1x128xf32>
    %c0_9 = arith.constant 0 : index
    %c0_10 = arith.constant 0 : index
    %8 = vector.load %arg5[%c0_9, %c0_10] : memref<128x128xbf16, #tpu.memory_space<vmem>>, vector<128x128xbf16>
    %c0_11 = arith.constant 0 : index
    %c0_12 = arith.constant 0 : index
    %9 = vector.load %arg6[%c0_11, %c0_12] : memref<1x128xf32, #tpu.memory_space<vmem>>, vector<1x128xf32>
    %c0_13 = arith.constant 0 : index
    %c0_14 = arith.constant 0 : index
    %10 = vector.load %arg7[%c0_13, %c0_14] : memref<128x128xbf16, #tpu.memory_space<vmem>>, vector<128x128xbf16>
    %c0_15 = arith.constant 0 : index
    %c0_16 = arith.constant 0 : index
    %11 = vector.load %arg8[%c0_15, %c0_16] : memref<1x128xf32, #tpu.memory_space<vmem>>, vector<1x128xf32>
    %c0_17 = arith.constant 0 : index
    %c0_18 = arith.constant 0 : index
    %12 = vector.load %arg9[%c0_17, %c0_18] : memref<128x128xbf16, #tpu.memory_space<vmem>>, vector<128x128xbf16>
    %c0_19 = arith.constant 0 : index
    %c0_20 = arith.constant 0 : index
    %13 = vector.load %arg10[%c0_19, %c0_20] : memref<1x128xf32, #tpu.memory_space<vmem>>, vector<1x128xf32>
    %cst = arith.constant dense<0.000000e+00> : vector<8x128xf32>
    %14 = tpu.matmul %5, %6, %cst {dimension_numbers = #tpu.dot_dimension_numbers<[1], [0], [0], [1], [0, 0, 1, 1], [], []>} : vector<8x128xbf16>, vector<128x128xbf16>, vector<8x128xf32> -> vector<8x128xf32>
    %15 = vector.broadcast %7 : vector<1x128xf32> to vector<8x128xf32>
    %16 = arith.addf %14, %15 : vector<8x128xf32>
    %cst_21 = arith.constant dense<0.000000e+00> : vector<8x128xf32>
    %17 = tpu.matmul %5, %8, %cst_21 {dimension_numbers = #tpu.dot_dimension_numbers<[1], [0], [0], [1], [0, 0, 1, 1], [], []>} : vector<8x128xbf16>, vector<128x128xbf16>, vector<8x128xf32> -> vector<8x128xf32>
    %18 = vector.broadcast %9 : vector<1x128xf32> to vector<8x128xf32>
    %19 = arith.addf %17, %18 : vector<8x128xf32>
    %cst_22 = arith.constant dense<0.000000e+00> : vector<8x128xf32>
    %20 = tpu.matmul %5, %10, %cst_22 {dimension_numbers = #tpu.dot_dimension_numbers<[1], [0], [0], [1], [0, 0, 1, 1], [], []>} : vector<8x128xbf16>, vector<128x128xbf16>, vector<8x128xf32> -> vector<8x128xf32>
    %21 = vector.broadcast %11 : vector<1x128xf32> to vector<8x128xf32>
    %22 = arith.addf %20, %21 : vector<8x128xf32>
    %23 = vector.shape_cast %16 : vector<8x128xf32> to vector<8x4x32xf32>
    %24 = arith.truncf %23 : vector<8x4x32xf32> to vector<8x4x32xbf16>
    %25 = tpu.transpose %24, [1, 0, 2] : vector<8x4x32xbf16> -> vector<4x8x32xbf16>
    %26 = vector.shape_cast %19 : vector<8x128xf32> to vector<8x4x32xf32>
    %27 = arith.truncf %26 : vector<8x4x32xf32> to vector<8x4x32xbf16>
    %28 = tpu.transpose %27, [1, 0, 2] : vector<8x4x32xbf16> -> vector<4x8x32xbf16>
    %29 = vector.shape_cast %22 : vector<8x128xf32> to vector<8x4x32xf32>
    %30 = arith.truncf %29 : vector<8x4x32xf32> to vector<8x4x32xbf16>
    %31 = tpu.transpose %30, [1, 0, 2] : vector<8x4x32xbf16> -> vector<4x8x32xbf16>
    "tpu.trace_start"() <{level = 10 : i32, message = "hqd,hkd->hqk"}> : () -> ()
    %cst_23 = arith.constant dense<0.000000e+00> : vector<4x8x8xf32>
    %32 = tpu.matmul %25, %28, %cst_23 {dimension_numbers = #tpu.dot_dimension_numbers<[2], [2], [1], [1], [0, 0, 0, 1, 1, 1], [0], [0]>} : vector<4x8x32xbf16>, vector<4x8x32xbf16>, vector<4x8x8xf32> -> vector<4x8x8xf32>
    "tpu.trace_stop"() : () -> ()
    %33 = tpu.iota {dimensions = array<i32: 0>} : vector<8x8xi32>
    %34 = tpu.iota {dimensions = array<i32: 1>} : vector<8x8xi32>
    %35 = arith.cmpi sge, %33, %34 : vector<8x8xi32>
    %36 = vector.shape_cast %35 : vector<8x8xi1> to vector<1x8x8xi1>
    %cst_24 = arith.constant 0xFF800000 : f32
    %37 = vector.shape_cast %36 : vector<1x8x8xi1> to vector<1x8x8xi1>
    %38 = vector.broadcast %37 : vector<1x8x8xi1> to vector<4x8x8xi1>
    %39 = vector.broadcast %cst_24 : f32 to vector<4x8x8xf32>
    %40 = arith.select %38, %32, %39 : vector<4x8x8xi1>, vector<4x8x8xf32>
    %cst_25 = arith.constant dense<0xFF800000> : vector<4x8xf32>
    %41 = vector.multi_reduction <maximumf>, %40, %cst_25 [2] : vector<4x8x8xf32> to vector<4x8xf32>
    %42 = vector.shape_cast %41 : vector<4x8xf32> to vector<4x8x1xf32>
    %43 = vector.broadcast %42 : vector<4x8x1xf32> to vector<4x8x8xf32>
    %44 = arith.subf %40, %43 : vector<4x8x8xf32>
    %45 = math.exp %44 : vector<4x8x8xf32>
    %cst_26 = arith.constant dense<0.000000e+00> : vector<4x8xf32>
    %46 = vector.multi_reduction <add>, %45, %cst_26 [2] : vector<4x8x8xf32> to vector<4x8xf32>
    %47 = vector.shape_cast %46 : vector<4x8xf32> to vector<4x8x1xf32>
    %48 = tpu.reciprocal %47 {approx = true} : vector<4x8x1xf32> -> vector<4x8x1xf32>
    %49 = vector.broadcast %48 : vector<4x8x1xf32> to vector<4x8x8xf32>
    %50 = arith.mulf %45, %49 : vector<4x8x8xf32>
    %51 = arith.truncf %50 : vector<4x8x8xf32> to vector<4x8x8xbf16>
    "tpu.trace_start"() <{level = 10 : i32, message = "hqk,hkd->hqd"}> : () -> ()
    %cst_27 = arith.constant dense<0.000000e+00> : vector<4x8x32xf32>
    %52 = tpu.matmul %51, %31, %cst_27 {dimension_numbers = #tpu.dot_dimension_numbers<[2], [1], [1], [2], [0, 0, 0, 1, 1, 2], [0], [0]>} : vector<4x8x8xbf16>, vector<4x8x32xbf16>, vector<4x8x32xf32> -> vector<4x8x32xf32>
    "tpu.trace_stop"() : () -> ()
    %53 = tpu.transpose %52, [1, 0, 2] : vector<4x8x32xf32> -> vector<8x4x32xf32>
    %54 = vector.shape_cast %53 : vector<8x4x32xf32> to vector<8x128xf32>
    %55 = arith.truncf %54 : vector<8x128xf32> to vector<8x128xbf16>
    %cst_28 = arith.constant dense<0.000000e+00> : vector<8x128xf32>
    %56 = tpu.matmul %55, %12, %cst_28 {dimension_numbers = #tpu.dot_dimension_numbers<[1], [0], [0], [1], [0, 0, 1, 1], [], []>} : vector<8x128xbf16>, vector<128x128xbf16>, vector<8x128xf32> -> vector<8x128xf32>
    %57 = vector.broadcast %13 : vector<1x128xf32> to vector<8x128xf32>
    %58 = arith.addf %56, %57 : vector<8x128xf32>
    %c0_29 = arith.constant 0 : index
    %c0_30 = arith.constant 0 : index
    %59 = vector.load %arg23[%c0_29, %c0_30] : memref<1x128xf32, #tpu.memory_space<vmem>>, vector<1x128xf32>
    %c0_31 = arith.constant 0 : index
    %c0_32 = arith.constant 0 : index
    %60 = vector.load %arg24[%c0_31, %c0_32] : memref<1x128xf32, #tpu.memory_space<vmem>>, vector<1x128xf32>
    %61 = arith.addf %1, %58 : vector<8x128xf32>
    %cst_33 = arith.constant dense<0.000000e+00> : vector<8xf32>
    %62 = vector.multi_reduction <add>, %61, %cst_33 [1] : vector<8x128xf32> to vector<8xf32>
    %63 = vector.shape_cast %62 : vector<8xf32> to vector<8x1xf32>
    %cst_34 = arith.constant 1.280000e+02 : f32
    %64 = vector.broadcast %cst_34 : f32 to vector<8x1xf32>
    %65 = arith.divf %63, %64 : vector<8x1xf32>
    %66 = vector.broadcast %65 : vector<8x1xf32> to vector<8x128xf32>
    %67 = arith.subf %61, %66 : vector<8x128xf32>
    %68 = arith.mulf %67, %67 : vector<8x128xf32>
    %cst_35 = arith.constant dense<0.000000e+00> : vector<8xf32>
    %69 = vector.multi_reduction <add>, %68, %cst_35 [1] : vector<8x128xf32> to vector<8xf32>
    %70 = vector.shape_cast %69 : vector<8xf32> to vector<8x1xf32>
    %cst_36 = arith.constant 1.280000e+02 : f32
    %71 = vector.broadcast %cst_36 : f32 to vector<8x1xf32>
    %72 = arith.divf %70, %71 : vector<8x1xf32>
    %73 = vector.broadcast %65 : vector<8x1xf32> to vector<8x128xf32>
    %74 = arith.subf %61, %73 : vector<8x128xf32>
    %cst_37 = arith.constant 9.99999974E-6 : f32
    %75 = vector.broadcast %cst_37 : f32 to vector<8x1xf32>
    %76 = arith.addf %72, %75 : vector<8x1xf32>
    %77 = math.rsqrt %76 : vector<8x1xf32>
    %78 = vector.broadcast %77 : vector<8x1xf32> to vector<8x128xf32>
    %79 = arith.mulf %74, %78 : vector<8x128xf32>
    %80 = vector.broadcast %59 : vector<1x128xf32> to vector<8x128xf32>
    %81 = arith.mulf %79, %80 : vector<8x128xf32>
    %82 = vector.broadcast %60 : vector<1x128xf32> to vector<8x128xf32>
    %83 = arith.addf %81, %82 : vector<8x128xf32>
    %84 = arith.truncf %83 : vector<8x128xf32> to vector<8x128xbf16>
    %c0_38 = arith.constant 0 : index
    %c0_39 = arith.constant 0 : index
    %85 = vector.load %arg11[%c0_38, %c0_39] : memref<128x128xbf16, #tpu.memory_space<vmem>>, vector<128x128xbf16>
    %c0_40 = arith.constant 0 : index
    %c0_41 = arith.constant 0 : index
    %86 = vector.load %arg12[%c0_40, %c0_41] : memref<1x128xf32, #tpu.memory_space<vmem>>, vector<1x128xf32>
    %c0_42 = arith.constant 0 : index
    %c0_43 = arith.constant 0 : index
    %87 = vector.load %arg13[%c0_42, %c0_43] : memref<128x128xbf16, #tpu.memory_space<vmem>>, vector<128x128xbf16>
    %c0_44 = arith.constant 0 : index
    %c0_45 = arith.constant 0 : index
    %88 = vector.load %arg14[%c0_44, %c0_45] : memref<1x128xf32, #tpu.memory_space<vmem>>, vector<1x128xf32>
    %c0_46 = arith.constant 0 : index
    %c0_47 = arith.constant 0 : index
    %89 = vector.load %arg15[%c0_46, %c0_47] : memref<128x128xbf16, #tpu.memory_space<vmem>>, vector<128x128xbf16>
    %c0_48 = arith.constant 0 : index
    %c0_49 = arith.constant 0 : index
    %90 = vector.load %arg16[%c0_48, %c0_49] : memref<1x128xf32, #tpu.memory_space<vmem>>, vector<1x128xf32>
    %c0_50 = arith.constant 0 : index
    %c0_51 = arith.constant 0 : index
    %91 = vector.load %arg17[%c0_50, %c0_51] : memref<128x128xbf16, #tpu.memory_space<vmem>>, vector<128x128xbf16>
    %c0_52 = arith.constant 0 : index
    %c0_53 = arith.constant 0 : index
    %92 = vector.load %arg18[%c0_52, %c0_53] : memref<1x128xf32, #tpu.memory_space<vmem>>, vector<1x128xf32>
    %cst_54 = arith.constant dense<0.000000e+00> : vector<8x128xf32>
    %93 = tpu.matmul %84, %85, %cst_54 {dimension_numbers = #tpu.dot_dimension_numbers<[1], [0], [0], [1], [0, 0, 1, 1], [], []>} : vector<8x128xbf16>, vector<128x128xbf16>, vector<8x128xf32> -> vector<8x128xf32>
    %94 = vector.broadcast %86 : vector<1x128xf32> to vector<8x128xf32>
    %95 = arith.addf %93, %94 : vector<8x128xf32>
    %cst_55 = arith.constant dense<0.000000e+00> : vector<8x128xf32>
    %96 = tpu.matmul %4, %87, %cst_55 {dimension_numbers = #tpu.dot_dimension_numbers<[1], [0], [0], [1], [0, 0, 1, 1], [], []>} : vector<8x128xbf16>, vector<128x128xbf16>, vector<8x128xf32> -> vector<8x128xf32>
    %97 = vector.broadcast %88 : vector<1x128xf32> to vector<8x128xf32>
    %98 = arith.addf %96, %97 : vector<8x128xf32>
    %cst_56 = arith.constant dense<0.000000e+00> : vector<8x128xf32>
    %99 = tpu.matmul %4, %89, %cst_56 {dimension_numbers = #tpu.dot_dimension_numbers<[1], [0], [0], [1], [0, 0, 1, 1], [], []>} : vector<8x128xbf16>, vector<128x128xbf16>, vector<8x128xf32> -> vector<8x128xf32>
    %100 = vector.broadcast %90 : vector<1x128xf32> to vector<8x128xf32>
    %101 = arith.addf %99, %100 : vector<8x128xf32>
    %102 = vector.shape_cast %95 : vector<8x128xf32> to vector<8x4x32xf32>
    %103 = arith.truncf %102 : vector<8x4x32xf32> to vector<8x4x32xbf16>
    %104 = tpu.transpose %103, [1, 0, 2] : vector<8x4x32xbf16> -> vector<4x8x32xbf16>
    %105 = vector.shape_cast %98 : vector<8x128xf32> to vector<8x4x32xf32>
    %106 = arith.truncf %105 : vector<8x4x32xf32> to vector<8x4x32xbf16>
    %107 = tpu.transpose %106, [1, 0, 2] : vector<8x4x32xbf16> -> vector<4x8x32xbf16>
    %108 = vector.shape_cast %101 : vector<8x128xf32> to vector<8x4x32xf32>
    %109 = arith.truncf %108 : vector<8x4x32xf32> to vector<8x4x32xbf16>
    %110 = tpu.transpose %109, [1, 0, 2] : vector<8x4x32xbf16> -> vector<4x8x32xbf16>
    "tpu.trace_start"() <{level = 10 : i32, message = "hqd,hkd->hqk"}> : () -> ()
    %cst_57 = arith.constant dense<0.000000e+00> : vector<4x8x8xf32>
    %111 = tpu.matmul %104, %107, %cst_57 {dimension_numbers = #tpu.dot_dimension_numbers<[2], [2], [1], [1], [0, 0, 0, 1, 1, 1], [0], [0]>} : vector<4x8x32xbf16>, vector<4x8x32xbf16>, vector<4x8x8xf32> -> vector<4x8x8xf32>
    "tpu.trace_stop"() : () -> ()
    %cst_58 = arith.constant dense<0xFF800000> : vector<4x8xf32>
    %112 = vector.multi_reduction <maximumf>, %111, %cst_58 [2] : vector<4x8x8xf32> to vector<4x8xf32>
    %113 = vector.shape_cast %112 : vector<4x8xf32> to vector<4x8x1xf32>
    %114 = vector.broadcast %113 : vector<4x8x1xf32> to vector<4x8x8xf32>
    %115 = arith.subf %111, %114 : vector<4x8x8xf32>
    %116 = math.exp %115 : vector<4x8x8xf32>
    %cst_59 = arith.constant dense<0.000000e+00> : vector<4x8xf32>
    %117 = vector.multi_reduction <add>, %116, %cst_59 [2] : vector<4x8x8xf32> to vector<4x8xf32>
    %118 = vector.shape_cast %117 : vector<4x8xf32> to vector<4x8x1xf32>
    %119 = tpu.reciprocal %118 {approx = true} : vector<4x8x1xf32> -> vector<4x8x1xf32>
    %120 = vector.broadcast %119 : vector<4x8x1xf32> to vector<4x8x8xf32>
    %121 = arith.mulf %116, %120 : vector<4x8x8xf32>
    %122 = arith.truncf %121 : vector<4x8x8xf32> to vector<4x8x8xbf16>
    "tpu.trace_start"() <{level = 10 : i32, message = "hqk,hkd->hqd"}> : () -> ()
    %cst_60 = arith.constant dense<0.000000e+00> : vector<4x8x32xf32>
    %123 = tpu.matmul %122, %110, %cst_60 {dimension_numbers = #tpu.dot_dimension_numbers<[2], [1], [1], [2], [0, 0, 0, 1, 1, 2], [0], [0]>} : vector<4x8x8xbf16>, vector<4x8x32xbf16>, vector<4x8x32xf32> -> vector<4x8x32xf32>
    "tpu.trace_stop"() : () -> ()
    %124 = tpu.transpose %123, [1, 0, 2] : vector<4x8x32xf32> -> vector<8x4x32xf32>
    %125 = vector.shape_cast %124 : vector<8x4x32xf32> to vector<8x128xf32>
    %126 = arith.truncf %125 : vector<8x128xf32> to vector<8x128xbf16>
    %cst_61 = arith.constant dense<0.000000e+00> : vector<8x128xf32>
    %127 = tpu.matmul %126, %91, %cst_61 {dimension_numbers = #tpu.dot_dimension_numbers<[1], [0], [0], [1], [0, 0, 1, 1], [], []>} : vector<8x128xbf16>, vector<128x128xbf16>, vector<8x128xf32> -> vector<8x128xf32>
    %128 = vector.broadcast %92 : vector<1x128xf32> to vector<8x128xf32>
    %129 = arith.addf %127, %128 : vector<8x128xf32>
    %c0_62 = arith.constant 0 : index
    %c0_63 = arith.constant 0 : index
    %130 = vector.load %arg25[%c0_62, %c0_63] : memref<1x128xf32, #tpu.memory_space<vmem>>, vector<1x128xf32>
    %c0_64 = arith.constant 0 : index
    %c0_65 = arith.constant 0 : index
    %131 = vector.load %arg26[%c0_64, %c0_65] : memref<1x128xf32, #tpu.memory_space<vmem>>, vector<1x128xf32>
    %132 = arith.addf %83, %129 : vector<8x128xf32>
    %cst_66 = arith.constant dense<0.000000e+00> : vector<8xf32>
    %133 = vector.multi_reduction <add>, %132, %cst_66 [1] : vector<8x128xf32> to vector<8xf32>
    %134 = vector.shape_cast %133 : vector<8xf32> to vector<8x1xf32>
    %cst_67 = arith.constant 1.280000e+02 : f32
    %135 = vector.broadcast %cst_67 : f32 to vector<8x1xf32>
    %136 = arith.divf %134, %135 : vector<8x1xf32>
    %137 = vector.broadcast %136 : vector<8x1xf32> to vector<8x128xf32>
    %138 = arith.subf %132, %137 : vector<8x128xf32>
    %139 = arith.mulf %138, %138 : vector<8x128xf32>
    %cst_68 = arith.constant dense<0.000000e+00> : vector<8xf32>
    %140 = vector.multi_reduction <add>, %139, %cst_68 [1] : vector<8x128xf32> to vector<8xf32>
    %141 = vector.shape_cast %140 : vector<8xf32> to vector<8x1xf32>
    %cst_69 = arith.constant 1.280000e+02 : f32
    %142 = vector.broadcast %cst_69 : f32 to vector<8x1xf32>
    %143 = arith.divf %141, %142 : vector<8x1xf32>
    %144 = vector.broadcast %136 : vector<8x1xf32> to vector<8x128xf32>
    %145 = arith.subf %132, %144 : vector<8x128xf32>
    %cst_70 = arith.constant 9.99999974E-6 : f32
    %146 = vector.broadcast %cst_70 : f32 to vector<8x1xf32>
    %147 = arith.addf %143, %146 : vector<8x1xf32>
    %148 = math.rsqrt %147 : vector<8x1xf32>
    %149 = vector.broadcast %148 : vector<8x1xf32> to vector<8x128xf32>
    %150 = arith.mulf %145, %149 : vector<8x128xf32>
    %151 = vector.broadcast %130 : vector<1x128xf32> to vector<8x128xf32>
    %152 = arith.mulf %150, %151 : vector<8x128xf32>
    %153 = vector.broadcast %131 : vector<1x128xf32> to vector<8x128xf32>
    %154 = arith.addf %152, %153 : vector<8x128xf32>
    %c0_71 = arith.constant 0 : index
    %c0_72 = arith.constant 0 : index
    %155 = vector.load %arg19[%c0_71, %c0_72] : memref<128x256xbf16, #tpu.memory_space<vmem>>, vector<128x256xbf16>
    %c0_73 = arith.constant 0 : index
    %c0_74 = arith.constant 0 : index
    %156 = vector.load %arg20[%c0_73, %c0_74] : memref<1x256xf32, #tpu.memory_space<vmem>>, vector<1x256xf32>
    %c0_75 = arith.constant 0 : index
    %c0_76 = arith.constant 0 : index
    %157 = vector.load %arg21[%c0_75, %c0_76] : memref<256x128xbf16, #tpu.memory_space<vmem>>, vector<256x128xbf16>
    %c0_77 = arith.constant 0 : index
    %c0_78 = arith.constant 0 : index
    %158 = vector.load %arg22[%c0_77, %c0_78] : memref<1x128xf32, #tpu.memory_space<vmem>>, vector<1x128xf32>
    %159 = arith.truncf %154 : vector<8x128xf32> to vector<8x128xbf16>
    %cst_79 = arith.constant dense<0.000000e+00> : vector<8x256xf32>
    %160 = tpu.matmul %159, %155, %cst_79 {dimension_numbers = #tpu.dot_dimension_numbers<[1], [0], [0], [1], [0, 0, 1, 1], [], []>} : vector<8x128xbf16>, vector<128x256xbf16>, vector<8x256xf32> -> vector<8x256xf32>
    %161 = vector.broadcast %156 : vector<1x256xf32> to vector<8x256xf32>
    %162 = arith.addf %160, %161 : vector<8x256xf32>
    %cst_80 = arith.constant 0.000000e+00 : f32
    %163 = vector.broadcast %cst_80 : f32 to vector<8x256xf32>
    %164 = arith.maximumf %162, %163 : vector<8x256xf32>
    %165 = arith.truncf %164 : vector<8x256xf32> to vector<8x256xbf16>
    %cst_81 = arith.constant dense<0.000000e+00> : vector<8x128xf32>
    %166 = tpu.matmul %165, %157, %cst_81 {dimension_numbers = #tpu.dot_dimension_numbers<[1], [0], [0], [1], [0, 0, 1, 1], [], []>} : vector<8x256xbf16>, vector<256x128xbf16>, vector<8x128xf32> -> vector<8x128xf32>
    %167 = vector.broadcast %158 : vector<1x128xf32> to vector<8x128xf32>
    %168 = arith.addf %166, %167 : vector<8x128xf32>
    %c0_82 = arith.constant 0 : index
    %c0_83 = arith.constant 0 : index
    %169 = vector.load %arg27[%c0_82, %c0_83] : memref<1x128xf32, #tpu.memory_space<vmem>>, vector<1x128xf32>
    %c0_84 = arith.constant 0 : index
    %c0_85 = arith.constant 0 : index
    %170 = vector.load %arg28[%c0_84, %c0_85] : memref<1x128xf32, #tpu.memory_space<vmem>>, vector<1x128xf32>
    %171 = arith.addf %154, %168 : vector<8x128xf32>
    %cst_86 = arith.constant dense<0.000000e+00> : vector<8xf32>
    %172 = vector.multi_reduction <add>, %171, %cst_86 [1] : vector<8x128xf32> to vector<8xf32>
    %173 = vector.shape_cast %172 : vector<8xf32> to vector<8x1xf32>
    %cst_87 = arith.constant 1.280000e+02 : f32
    %174 = vector.broadcast %cst_87 : f32 to vector<8x1xf32>
    %175 = arith.divf %173, %174 : vector<8x1xf32>
    %176 = vector.broadcast %175 : vector<8x1xf32> to vector<8x128xf32>
    %177 = arith.subf %171, %176 : vector<8x128xf32>
    %178 = arith.mulf %177, %177 : vector<8x128xf32>
    %cst_88 = arith.constant dense<0.000000e+00> : vector<8xf32>
    %179 = vector.multi_reduction <add>, %178, %cst_88 [1] : vector<8x128xf32> to vector<8xf32>
    %180 = vector.shape_cast %179 : vector<8xf32> to vector<8x1xf32>
    %cst_89 = arith.constant 1.280000e+02 : f32
    %181 = vector.broadcast %cst_89 : f32 to vector<8x1xf32>
    %182 = arith.divf %180, %181 : vector<8x1xf32>
    %183 = vector.broadcast %175 : vector<8x1xf32> to vector<8x128xf32>
    %184 = arith.subf %171, %183 : vector<8x128xf32>
    %cst_90 = arith.constant 9.99999974E-6 : f32
    %185 = vector.broadcast %cst_90 : f32 to vector<8x1xf32>
    %186 = arith.addf %182, %185 : vector<8x1xf32>
    %187 = math.rsqrt %186 : vector<8x1xf32>
    %188 = vector.broadcast %187 : vector<8x1xf32> to vector<8x128xf32>
    %189 = arith.mulf %184, %188 : vector<8x128xf32>
    %190 = vector.broadcast %169 : vector<1x128xf32> to vector<8x128xf32>
    %191 = arith.mulf %189, %190 : vector<8x128xf32>
    %192 = vector.broadcast %170 : vector<1x128xf32> to vector<8x128xf32>
    %193 = arith.addf %191, %192 : vector<8x128xf32>
    %c0_91 = arith.constant 0 : index
    %c0_92 = arith.constant 0 : index
    %c0_93 = arith.constant 0 : index
    %194 = vector.load %arg29[%c0_91, %c0_92, %c0_93] : memref<1x8x128xf32, #tpu.memory_space<vmem>>, vector<1x8x128xf32>
    %195 = vector.shape_cast %194 : vector<1x8x128xf32> to vector<8x128xf32>
    %196 = vector.shape_cast %193 : vector<8x128xf32> to vector<1x8x128xf32>
    tpu.vector_store %arg29[%c0_91, %c0_92, %c0_93], %196 {strides = array<i32>} : memref<1x8x128xf32, #tpu.memory_space<vmem>>, vector<1x8x128xf32>,
    return
  }
  func.func @transform_0(%arg0: i32) -> (i32, i32, i32) {
    %c0_i32 = arith.constant 0 : i32
    %c0_i32_0 = arith.constant 0 : i32
    %c0_i32_1 = arith.constant 0 : i32
    return %arg0, %c0_i32, %c0_i32_0 : i32, i32, i32
  }
  func.func @transform_1(%arg0: i32) -> (i32, i32, i32) {
    %c0_i32 = arith.constant 0 : i32
    %c0_i32_0 = arith.constant 0 : i32
    %c0_i32_1 = arith.constant 0 : i32
    return %arg0, %c0_i32, %c0_i32_0 : i32, i32, i32
  }
  func.func @transform_2(%arg0: i32) -> (i32, i32) {
    %c0_i32 = arith.constant 0 : i32
    %c0_i32_0 = arith.constant 0 : i32
    %c0_i32_1 = arith.constant 0 : i32
    return %c0_i32, %c0_i32_0 : i32, i32
  }
  func.func @transform_3(%arg0: i32) -> (i32, i32) {
    %c0_i32 = arith.constant 0 : i32
    %c0_i32_0 = arith.constant 0 : i32
    %c0_i32_1 = arith.constant 0 : i32
    return %c0_i32, %c0_i32_0 : i32, i32
  }
  func.func @transform_4(%arg0: i32) -> (i32, i32) {
    %c0_i32 = arith.constant 0 : i32
    %c0_i32_0 = arith.constant 0 : i32
    %c0_i32_1 = arith.constant 0 : i32
    return %c0_i32, %c0_i32_0 : i32, i32
  }
  func.func @transform_5(%arg0: i32) -> (i32, i32) {
    %c0_i32 = arith.constant 0 : i32
    %c0_i32_0 = arith.constant 0 : i32
    %c0_i32_1 = arith.constant 0 : i32
    return %c0_i32, %c0_i32_0 : i32, i32
  }
  func.func @transform_6(%arg0: i32) -> (i32, i32) {
    %c0_i32 = arith.constant 0 : i32
    %c0_i32_0 = arith.constant 0 : i32
    %c0_i32_1 = arith.constant 0 : i32
    return %c0_i32, %c0_i32_0 : i32, i32
  }
  func.func @transform_7(%arg0: i32) -> (i32, i32) {
    %c0_i32 = arith.constant 0 : i32
    %c0_i32_0 = arith.constant 0 : i32
    %c0_i32_1 = arith.constant 0 : i32
    return %c0_i32, %c0_i32_0 : i32, i32
  }
  func.func @transform_8(%arg0: i32) -> (i32, i32) {
    %c0_i32 = arith.constant 0 : i32
    %c0_i32_0 = arith.constant 0 : i32
    %c0_i32_1 = arith.constant 0 : i32
    return %c0_i32, %c0_i32_0 : i32, i32
  }
  func.func @transform_9(%arg0: i32) -> (i32, i32) {
    %c0_i32 = arith.constant 0 : i32
    %c0_i32_0 = arith.constant 0 : i32
    %c0_i32_1 = arith.constant 0 : i32
    return %c0_i32, %c0_i32_0 : i32, i32
  }
  func.func @transform_10(%arg0: i32) -> (i32, i32) {
    %c0_i32 = arith.constant 0 : i32
    %c0_i32_0 = arith.constant 0 : i32
    %c0_i32_1 = arith.constant 0 : i32
    return %c0_i32, %c0_i32_0 : i32, i32
  }
  func.func @transform_11(%arg0: i32) -> (i32, i32) {
    %c0_i32 = arith.constant 0 : i32
    %c0_i32_0 = arith.constant 0 : i32
    %c0_i32_1 = arith.constant 0 : i32
    return %c0_i32, %c0_i32_0 : i32, i32
  }
  func.func @transform_12(%arg0: i32) -> (i32, i32) {
    %c0_i32 = arith.constant 0 : i32
    %c0_i32_0 = arith.constant 0 : i32
    %c0_i32_1 = arith.constant 0 : i32
    return %c0_i32, %c0_i32_0 : i32, i32
  }
  func.func @transform_13(%arg0: i32) -> (i32, i32) {
    %c0_i32 = arith.constant 0 : i32
    %c0_i32_0 = arith.constant 0 : i32
    %c0_i32_1 = arith.constant 0 : i32
    return %c0_i32, %c0_i32_0 : i32, i32
  }
  func.func @transform_14(%arg0: i32) -> (i32, i32) {
    %c0_i32 = arith.constant 0 : i32
    %c0_i32_0 = arith.constant 0 : i32
    %c0_i32_1 = arith.constant 0 : i32
    return %c0_i32, %c0_i32_0 : i32, i32
  }
  func.func @transform_15(%arg0: i32) -> (i32, i32) {
    %c0_i32 = arith.constant 0 : i32
    %c0_i32_0 = arith.constant 0 : i32
    %c0_i32_1 = arith.constant 0 : i32
    return %c0_i32, %c0_i32_0 : i32, i32
  }
  func.func @transform_16(%arg0: i32) -> (i32, i32) {
    %c0_i32 = arith.constant 0 : i32
    %c0_i32_0 = arith.constant 0 : i32
    %c0_i32_1 = arith.constant 0 : i32
    return %c0_i32, %c0_i32_0 : i32, i32
  }
  func.func @transform_17(%arg0: i32) -> (i32, i32) {
    %c0_i32 = arith.constant 0 : i32
    %c0_i32_0 = arith.constant 0 : i32
    %c0_i32_1 = arith.constant 0 : i32
    return %c0_i32, %c0_i32_0 : i32, i32
  }
  func.func @transform_18(%arg0: i32) -> (i32, i32) {
    %c0_i32 = arith.constant 0 : i32
    %c0_i32_0 = arith.constant 0 : i32
    %c0_i32_1 = arith.constant 0 : i32
    return %c0_i32, %c0_i32_0 : i32, i32
  }
  func.func @transform_19(%arg0: i32) -> (i32, i32) {
    %c0_i32 = arith.constant 0 : i32
    %c0_i32_0 = arith.constant 0 : i32
    %c0_i32_1 = arith.constant 0 : i32
    return %c0_i32, %c0_i32_0 : i32, i32
  }
  func.func @transform_20(%arg0: i32) -> (i32, i32) {
    %c0_i32 = arith.constant 0 : i32
    %c0_i32_0 = arith.constant 0 : i32
    %c0_i32_1 = arith.constant 0 : i32
    return %c0_i32, %c0_i32_0 : i32, i32
  }
  func.func @transform_21(%arg0: i32) -> (i32, i32) {
    %c0_i32 = arith.constant 0 : i32
    %c0_i32_0 = arith.constant 0 : i32
    %c0_i32_1 = arith.constant 0 : i32
    return %c0_i32, %c0_i32_0 : i32, i32
  }
  func.func @transform_22(%arg0: i32) -> (i32, i32) {
    %c0_i32 = arith.constant 0 : i32
    %c0_i32_0 = arith.constant 0 : i32
    %c0_i32_1 = arith.constant 0 : i32
    return %c0_i32, %c0_i32_0 : i32, i32
  }
  func.func @transform_23(%arg0: i32) -> (i32, i32) {
    %c0_i32 = arith.constant 0 : i32
    %c0_i32_0 = arith.constant 0 : i32
    %c0_i32_1 = arith.constant 0 : i32
    return %c0_i32, %c0_i32_0 : i32, i32
  }
  func.func @transform_24(%arg0: i32) -> (i32, i32) {
    %c0_i32 = arith.constant 0 : i32
    %c0_i32_0 = arith.constant 0 : i32
    %c0_i32_1 = arith.constant 0 : i32
    return %c0_i32, %c0_i32_0 : i32, i32
  }
  func.func @transform_25(%arg0: i32) -> (i32, i32) {
    %c0_i32 = arith.constant 0 : i32
    %c0_i32_0 = arith.constant 0 : i32
    %c0_i32_1 = arith.constant 0 : i32
    return %c0_i32, %c0_i32_0 : i32, i32
  }
  func.func @transform_26(%arg0: i32) -> (i32, i32) {
    %c0_i32 = arith.constant 0 : i32
    %c0_i32_0 = arith.constant 0 : i32
    %c0_i32_1 = arith.constant 0 : i32
    return %c0_i32, %c0_i32_0 : i32, i32
  }
  func.func @transform_27(%arg0: i32) -> (i32, i32) {
    %c0_i32 = arith.constant 0 : i32
    %c0_i32_0 = arith.constant 0 : i32
    %c0_i32_1 = arith.constant 0 : i32
    return %c0_i32, %c0_i32_0 : i32, i32
  }
  func.func @transform_28(%arg0: i32) -> (i32, i32, i32) {
    %c0_i32 = arith.constant 0 : i32
    %c0_i32_0 = arith.constant 0 : i32
    %c0_i32_1 = arith.constant 0 : i32
    return %arg0, %c0_i32, %c0_i32_0 : i32, i32, i32
  }
}

</mosaic_0001>

<llo_original>
// kernel: transformer_decoder_forward.3
$region0: #{transformer_decoder_forward.3}
  #allocation0 [shape = 'u32[]', space=smem, size = 0x4, offset = 0x4, fixed_abs, tag = 'smem constant byte address 0x4 - core index']
  #allocation1 [shape = 'u32[144,128]{1,0:T(1,128)}', space=vmem, size = 0x12000, scoped, tag = 'internal scratch']
  %s0 = inlined_call_operand.vmem [shape: f32[2,8,128], index: 0, kind: input, shape index: {}]
  %s1 = inlined_call_operand.vmem [shape: f32[2,8,128], index: 1, kind: input, shape index: {}]
  %s2 = inlined_call_operand.vmem [shape: bf16[128,128], index: 2, kind: input, shape index: {}]
  %s3 = inlined_call_operand.vmem [shape: f32[1,128], index: 3, kind: input, shape index: {}]
  %s4 = inlined_call_operand.vmem [shape: bf16[128,128], index: 4, kind: input, shape index: {}]
  %s5 = inlined_call_operand.vmem [shape: f32[1,128], index: 5, kind: input, shape index: {}]
  %s6 = inlined_call_operand.vmem [shape: bf16[128,128], index: 6, kind: input, shape index: {}]
  %s7 = inlined_call_operand.vmem [shape: f32[1,128], index: 7, kind: input, shape index: {}]
  %s8 = inlined_call_operand.vmem [shape: bf16[128,128], index: 8, kind: input, shape index: {}]
  %s9 = inlined_call_operand.vmem [shape: f32[1,128], index: 9, kind: input, shape index: {}]
  %s10 = inlined_call_operand.vmem [shape: bf16[128,128], index: 10, kind: input, shape index: {}]
  %s11 = inlined_call_operand.vmem [shape: f32[1,128], index: 11, kind: input, shape index: {}]
  %s12 = inlined_call_operand.vmem [shape: bf16[128,128], index: 12, kind: input, shape index: {}]
  %s13 = inlined_call_operand.vmem [shape: f32[1,128], index: 13, kind: input, shape index: {}]
  %s14 = inlined_call_operand.vmem [shape: bf16[128,128], index: 14, kind: input, shape index: {}]
  %s15 = inlined_call_operand.vmem [shape: f32[1,128], index: 15, kind: input, shape index: {}]
  %s16 = inlined_call_operand.vmem [shape: bf16[128,128], index: 16, kind: input, shape index: {}]
  %s17 = inlined_call_operand.vmem [shape: f32[1,128], index: 17, kind: input, shape index: {}]
  %s18 = inlined_call_operand.vmem [shape: bf16[128,256], index: 18, kind: input, shape index: {}]
  %s19 = inlined_call_operand.vmem [shape: f32[1,256], index: 19, kind: input, shape index: {}]
  %s20 = inlined_call_operand.vmem [shape: bf16[256,128], index: 20, kind: input, shape index: {}]
  %s21 = inlined_call_operand.vmem [shape: f32[1,128], index: 21, kind: input, shape index: {}]
  %s22 = inlined_call_operand.vmem [shape: f32[1,128], index: 22, kind: input, shape index: {}]
  %s23 = inlined_call_operand.vmem [shape: f32[1,128], index: 23, kind: input, shape index: {}]
  %s24 = inlined_call_operand.vmem [shape: f32[1,128], index: 24, kind: input, shape index: {}]
  %s25 = inlined_call_operand.vmem [shape: f32[1,128], index: 25, kind: input, shape index: {}]
  %s26 = inlined_call_operand.vmem [shape: f32[1,128], index: 26, kind: input, shape index: {}]
  %s27 = inlined_call_operand.vmem [shape: f32[1,128], index: 27, kind: input, shape index: {}]
  %s28 = inlined_call_operand.hbm [shape: f32[2,8,128], index: 28, kind: output, shape index: {}]
  %s29 = sld [smem:[#allocation0]]
  $region145: #{transformer_decoder_forward.3} parent=0
    _
  %s31 = ssub.s32 1, %s29
  %s32 = scalar_select 0, %s31, %s29
  $region1: #{transformer_decoder_forward.3} parent=0
    #allocation2 [shape = 'u8[8192]{0}', space=vmem, size = 0x2000, scoped, tag = 'output window, operand 0']
    #allocation3 [shape = 's32[2]{0}', space=sflag, size = 0x8, scoped, tag = 'scoped memory for transformer_decoder_forward.3']
    %33 = vsyncpa [#allocation3], 0
    %s34 = scalar_lea.sflag [#allocation3], 1
    %35 = vsyncpa %s34, 0
    loop: start=0, step=1, limit=4
    $region2: #{transformer_decoder_forward.3} parent=1 // loop_pre_header
      _
    $region3: #{transformer_decoder_forward.3} parent=1 // loop_header
      %s37 = sphi 0, %s41
      %p38 = scmp.ge.s32.totalorder %s37, 4
      %s47 = sphi 0, %s49
      %s50 = sphi 0, %s47
      %s51 = sphi 0, %s50
      %s67 = sphi 0, %s51
      %s73 = sphi 0, %s75
      %s76 = sphi 0, %s73
      %s77 = sphi 0, %s76
      %s93 = sphi 0, %s77
      %s97 = sphi 0, %s97
      %s99 = sphi 0, %s97
      %s100 = sphi 0, %s99
      %s114 = sphi 0, %s100
      %s118 = sphi 0, %s118
      %s120 = sphi 0, %s118
      %s121 = sphi 0, %s120
      %s135 = sphi 0, %s121
      %s139 = sphi 0, %s139
      %s141 = sphi 0, %s139
      %s142 = sphi 0, %s141
      %s156 = sphi 0, %s142
      %s160 = sphi 0, %s160
      %s162 = sphi 0, %s160
      %s163 = sphi 0, %s162
      %s177 = sphi 0, %s163
      %s181 = sphi 0, %s181
      %s183 = sphi 0, %s181
      %s184 = sphi 0, %s183
      %s198 = sphi 0, %s184
      %s202 = sphi 0, %s202
      %s204 = sphi 0, %s202
      %s205 = sphi 0, %s204
      %s219 = sphi 0, %s205
      %s223 = sphi 0, %s223
      %s225 = sphi 0, %s223
      %s226 = sphi 0, %s225
      %s240 = sphi 0, %s226
      %s244 = sphi 0, %s244
      %s246 = sphi 0, %s244
      %s247 = sphi 0, %s246
      %s261 = sphi 0, %s247
      %s265 = sphi 0, %s265
      %s267 = sphi 0, %s265
      %s268 = sphi 0, %s267
      %s282 = sphi 0, %s268
      %s286 = sphi 0, %s286
      %s288 = sphi 0, %s286
      %s289 = sphi 0, %s288
      %s303 = sphi 0, %s289
      %s307 = sphi 0, %s307
      %s309 = sphi 0, %s307
      %s310 = sphi 0, %s309
      %s324 = sphi 0, %s310
      %s328 = sphi 0, %s328
      %s330 = sphi 0, %s328
      %s331 = sphi 0, %s330
      %s345 = sphi 0, %s331
      %s349 = sphi 0, %s349
      %s351 = sphi 0, %s349
      %s352 = sphi 0, %s351
      %s366 = sphi 0, %s352
      %s370 = sphi 0, %s370
      %s372 = sphi 0, %s370
      %s373 = sphi 0, %s372
      %s387 = sphi 0, %s373
      %s391 = sphi 0, %s391
      %s393 = sphi 0, %s391
      %s394 = sphi 0, %s393
      %s408 = sphi 0, %s394
      %s412 = sphi 0, %s412
      %s414 = sphi 0, %s412
      %s415 = sphi 0, %s414
      %s429 = sphi 0, %s415
      %s433 = sphi 0, %s433
      %s435 = sphi 0, %s433
      %s436 = sphi 0, %s435
      %s450 = sphi 0, %s436
      %s454 = sphi 0, %s454
      %s456 = sphi 0, %s454
      %s457 = sphi 0, %s456
      %s471 = sphi 0, %s457
      %s475 = sphi 0, %s475
      %s477 = sphi 0, %s475
      %s478 = sphi 0, %s477
      %s492 = sphi 0, %s478
      %s496 = sphi 0, %s496
      %s498 = sphi 0, %s496
      %s499 = sphi 0, %s498
      %s513 = sphi 0, %s499
      %s517 = sphi 0, %s517
      %s519 = sphi 0, %s517
      %s520 = sphi 0, %s519
      %s534 = sphi 0, %s520
      %s538 = sphi 0, %s538
      %s540 = sphi 0, %s538
      %s541 = sphi 0, %s540
      %s555 = sphi 0, %s541
      %s559 = sphi 0, %s559
      %s561 = sphi 0, %s559
      %s562 = sphi 0, %s561
      %s576 = sphi 0, %s562
      %s580 = sphi 0, %s580
      %s582 = sphi 0, %s580
      %s583 = sphi 0, %s582
      %s597 = sphi 0, %s583
      %s601 = sphi 0, %s601
      %s603 = sphi 0, %s601
      %s604 = sphi 0, %s603
      %s618 = sphi 0, %s604
      %s622 = sphi 0, %s622
      %s624 = sphi 0, %s622
      %s625 = sphi 0, %s624
      %s639 = sphi 0, %s625
      %s645 = sphi 0, %s647
      %s648 = sphi 0, %s645
      %s649 = sphi 0, %s648
      %s665 = sphi 0, %s649
    $region4: #{transformer_decoder_forward.3} parent=1 // loop_header_branch
      %40 = sbr.rel (%p38) target = $region8
    $region5: #{transformer_decoder_forward.3} parent=1 // loop_body
      %s42 = ssub.s32 %s37, 1
      %s43 = ssub.s32 %s37, 2
      %s44 = sadd.s32 %s37, 1
      %s45 = ssub.s32 %s37, %s44
      %p46 = scmp.eq.s32.totalorder %s45, 0
      %s48 = sadd.s32 %s47, 1
      %s49 = scalar_select %p46, %s47, %s48
      %p52 = pneg %p46
      %p53 = scmp.eq.s32.totalorder %s37, 1
      %p54 = por %p52, %p53
      %p55 = scmp.ne.s32.totalorder %s47, %s50
      %p56 = scmp.eq.s32.totalorder %s37, 0
      %p57 = por %p55, %p56
      %p58 = scmp.ne.s32.totalorder %s47, %s50
      %p59 = scmp.eq.s32.totalorder %s42, 1
      %p60 = por %p58, %p59
      %p61 = scmp.ne.s32.totalorder %s50, %s51
      %p62 = scmp.eq.s32.totalorder %s42, 0
      %p63 = por %p61, %p62
      %p64 = scmp.ne.s32.totalorder %s50, %s51
      %p65 = scmp.eq.s32.totalorder %s43, 1
      %p66 = por %p64, %p65
      %p68 = scmp.ne.s32.totalorder %s51, %s67
      %p69 = scmp.eq.s32.totalorder %s43, 0
      %p70 = por %p68, %p69
      %s71 = ssub.s32 %s37, %s44
      %p72 = scmp.eq.s32.totalorder %s71, 0
      %s74 = sadd.s32 %s73, 1
      %s75 = scalar_select %p72, %s73, %s74
      %p78 = pneg %p72
      %p79 = scmp.eq.s32.totalorder %s37, 1
      %p80 = por %p78, %p79
      %p81 = scmp.ne.s32.totalorder %s73, %s76
      %p82 = scmp.eq.s32.totalorder %s37, 0
      %p83 = por %p81, %p82
      %p84 = scmp.ne.s32.totalorder %s73, %s76
      %p85 = scmp.eq.s32.totalorder %s42, 1
      %p86 = por %p84, %p85
      %p87 = scmp.ne.s32.totalorder %s76, %s77
      %p88 = scmp.eq.s32.totalorder %s42, 0
      %p89 = por %p87, %p88
      %p90 = scmp.ne.s32.totalorder %s76, %s77
      %p91 = scmp.eq.s32.totalorder %s43, 1
      %p92 = por %p90, %p91
      %p94 = scmp.ne.s32.totalorder %s77, %s93
      %p95 = scmp.eq.s32.totalorder %s43, 0
      %p96 = por %p94, %p95
      %s98 = sadd.s32 %s97, 1
      %p101 = scmp.eq.s32.totalorder %s37, 1
      %p102 = scmp.ne.s32.totalorder %s97, %s99
      %p103 = scmp.eq.s32.totalorder %s37, 0
      %p104 = por %p102, %p103
      %p105 = scmp.ne.s32.totalorder %s97, %s99
      %p106 = scmp.eq.s32.totalorder %s42, 1
      %p107 = por %p105, %p106
      %p108 = scmp.ne.s32.totalorder %s99, %s100
      %p109 = scmp.eq.s32.totalorder %s42, 0
      %p110 = por %p108, %p109
      %p111 = scmp.ne.s32.totalorder %s99, %s100
      %p112 = scmp.eq.s32.totalorder %s43, 1
      %p113 = por %p111, %p112
      %p115 = scmp.ne.s32.totalorder %s100, %s114
      %p116 = scmp.eq.s32.totalorder %s43, 0
      %p117 = por %p115, %p116
      %s119 = sadd.s32 %s118, 1
      %p122 = scmp.eq.s32.totalorder %s37, 1
      %p123 = scmp.ne.s32.totalorder %s118, %s120
      %p124 = scmp.eq.s32.totalorder %s37, 0
      %p125 = por %p123, %p124
      %p126 = scmp.ne.s32.totalorder %s118, %s120
      %p127 = scmp.eq.s32.totalorder %s42, 1
      %p128 = por %p126, %p127
      %p129 = scmp.ne.s32.totalorder %s120, %s121
      %p130 = scmp.eq.s32.totalorder %s42, 0
      %p131 = por %p129, %p130
      %p132 = scmp.ne.s32.totalorder %s120, %s121
      %p133 = scmp.eq.s32.totalorder %s43, 1
      %p134 = por %p132, %p133
      %p136 = scmp.ne.s32.totalorder %s121, %s135
      %p137 = scmp.eq.s32.totalorder %s43, 0
      %p138 = por %p136, %p137
      %s140 = sadd.s32 %s139, 1
      %p143 = scmp.eq.s32.totalorder %s37, 1
      %p144 = scmp.ne.s32.totalorder %s139, %s141
      %p145 = scmp.eq.s32.totalorder %s37, 0
      %p146 = por %p144, %p145
      %p147 = scmp.ne.s32.totalorder %s139, %s141
      %p148 = scmp.eq.s32.totalorder %s42, 1
      %p149 = por %p147, %p148
      %p150 = scmp.ne.s32.totalorder %s141, %s142
      %p151 = scmp.eq.s32.totalorder %s42, 0
      %p152 = por %p150, %p151
      %p153 = scmp.ne.s32.totalorder %s141, %s142
      %p154 = scmp.eq.s32.totalorder %s43, 1
      %p155 = por %p153, %p154
      %p157 = scmp.ne.s32.totalorder %s142, %s156
      %p158 = scmp.eq.s32.totalorder %s43, 0
      %p159 = por %p157, %p158
      %s161 = sadd.s32 %s160, 1
      %p164 = scmp.eq.s32.totalorder %s37, 1
      %p165 = scmp.ne.s32.totalorder %s160, %s162
      %p166 = scmp.eq.s32.totalorder %s37, 0
      %p167 = por %p165, %p166
      %p168 = scmp.ne.s32.totalorder %s160, %s162
      %p169 = scmp.eq.s32.totalorder %s42, 1
      %p170 = por %p168, %p169
      %p171 = scmp.ne.s32.totalorder %s162, %s163
      %p172 = scmp.eq.s32.totalorder %s42, 0
      %p173 = por %p171, %p172
      %p174 = scmp.ne.s32.totalorder %s162, %s163
      %p175 = scmp.eq.s32.totalorder %s43, 1
      %p176 = por %p174, %p175
      %p178 = scmp.ne.s32.totalorder %s163, %s177
      %p179 = scmp.eq.s32.totalorder %s43, 0
      %p180 = por %p178, %p179
      %s182 = sadd.s32 %s181, 1
      %p185 = scmp.eq.s32.totalorder %s37, 1
      %p186 = scmp.ne.s32.totalorder %s181, %s183
      %p187 = scmp.eq.s32.totalorder %s37, 0
      %p188 = por %p186, %p187
      %p189 = scmp.ne.s32.totalorder %s181, %s183
      %p190 = scmp.eq.s32.totalorder %s42, 1
      %p191 = por %p189, %p190
      %p192 = scmp.ne.s32.totalorder %s183, %s184
      %p193 = scmp.eq.s32.totalorder %s42, 0
      %p194 = por %p192, %p193
      %p195 = scmp.ne.s32.totalorder %s183, %s184
      %p196 = scmp.eq.s32.totalorder %s43, 1
      %p197 = por %p195, %p196
      %p199 = scmp.ne.s32.totalorder %s184, %s198
      %p200 = scmp.eq.s32.totalorder %s43, 0
      %p201 = por %p199, %p200
      %s203 = sadd.s32 %s202, 1
      %p206 = scmp.eq.s32.totalorder %s37, 1
      %p207 = scmp.ne.s32.totalorder %s202, %s204
      %p208 = scmp.eq.s32.totalorder %s37, 0
      %p209 = por %p207, %p208
      %p210 = scmp.ne.s32.totalorder %s202, %s204
      %p211 = scmp.eq.s32.totalorder %s42, 1
      %p212 = por %p210, %p211
      %p213 = scmp.ne.s32.totalorder %s204, %s205
      %p214 = scmp.eq.s32.totalorder %s42, 0
      %p215 = por %p213, %p214
      %p216 = scmp.ne.s32.totalorder %s204, %s205
      %p217 = scmp.eq.s32.totalorder %s43, 1
      %p218 = por %p216, %p217
      %p220 = scmp.ne.s32.totalorder %s205, %s219
      %p221 = scmp.eq.s32.totalorder %s43, 0
      %p222 = por %p220, %p221
      %s224 = sadd.s32 %s223, 1
      %p227 = scmp.eq.s32.totalorder %s37, 1
      %p228 = scmp.ne.s32.totalorder %s223, %s225
      %p229 = scmp.eq.s32.totalorder %s37, 0
      %p230 = por %p228, %p229
      %p231 = scmp.ne.s32.totalorder %s223, %s225
      %p232 = scmp.eq.s32.totalorder %s42, 1
      %p233 = por %p231, %p232
      %p234 = scmp.ne.s32.totalorder %s225, %s226
      %p235 = scmp.eq.s32.totalorder %s42, 0
      %p236 = por %p234, %p235
      %p237 = scmp.ne.s32.totalorder %s225, %s226
      %p238 = scmp.eq.s32.totalorder %s43, 1
      %p239 = por %p237, %p238
      %p241 = scmp.ne.s32.totalorder %s226, %s240
      %p242 = scmp.eq.s32.totalorder %s43, 0
      %p243 = por %p241, %p242
      %s245 = sadd.s32 %s244, 1
      %p248 = scmp.eq.s32.totalorder %s37, 1
      %p249 = scmp.ne.s32.totalorder %s244, %s246
      %p250 = scmp.eq.s32.totalorder %s37, 0
      %p251 = por %p249, %p250
      %p252 = scmp.ne.s32.totalorder %s244, %s246
      %p253 = scmp.eq.s32.totalorder %s42, 1
      %p254 = por %p252, %p253
      %p255 = scmp.ne.s32.totalorder %s246, %s247
      %p256 = scmp.eq.s32.totalorder %s42, 0
      %p257 = por %p255, %p256
      %p258 = scmp.ne.s32.totalorder %s246, %s247
      %p259 = scmp.eq.s32.totalorder %s43, 1
      %p260 = por %p258, %p259
      %p262 = scmp.ne.s32.totalorder %s247, %s261
      %p263 = scmp.eq.s32.totalorder %s43, 0
      %p264 = por %p262, %p263
      %s266 = sadd.s32 %s265, 1
      %p269 = scmp.eq.s32.totalorder %s37, 1
      %p270 = scmp.ne.s32.totalorder %s265, %s267
      %p271 = scmp.eq.s32.totalorder %s37, 0
      %p272 = por %p270, %p271
      %p273 = scmp.ne.s32.totalorder %s265, %s267
      %p274 = scmp.eq.s32.totalorder %s42, 1
      %p275 = por %p273, %p274
      %p276 = scmp.ne.s32.totalorder %s267, %s268
      %p277 = scmp.eq.s32.totalorder %s42, 0
      %p278 = por %p276, %p277
      %p279 = scmp.ne.s32.totalorder %s267, %s268
      %p280 = scmp.eq.s32.totalorder %s43, 1
      %p281 = por %p279, %p280
      %p283 = scmp.ne.s32.totalorder %s268, %s282
      %p284 = scmp.eq.s32.totalorder %s43, 0
      %p285 = por %p283, %p284
      %s287 = sadd.s32 %s286, 1
      %p290 = scmp.eq.s32.totalorder %s37, 1
      %p291 = scmp.ne.s32.totalorder %s286, %s288
      %p292 = scmp.eq.s32.totalorder %s37, 0
      %p293 = por %p291, %p292
      %p294 = scmp.ne.s32.totalorder %s286, %s288
      %p295 = scmp.eq.s32.totalorder %s42, 1
      %p296 = por %p294, %p295
      %p297 = scmp.ne.s32.totalorder %s288, %s289
      %p298 = scmp.eq.s32.totalorder %s42, 0
      %p299 = por %p297, %p298
      %p300 = scmp.ne.s32.totalorder %s288, %s289
      %p301 = scmp.eq.s32.totalorder %s43, 1
      %p302 = por %p300, %p301
      %p304 = scmp.ne.s32.totalorder %s289, %s303
      %p305 = scmp.eq.s32.totalorder %s43, 0
      %p306 = por %p304, %p305
      %s308 = sadd.s32 %s307, 1
      %p311 = scmp.eq.s32.totalorder %s37, 1
      %p312 = scmp.ne.s32.totalorder %s307, %s309
      %p313 = scmp.eq.s32.totalorder %s37, 0
      %p314 = por %p312, %p313
      %p315 = scmp.ne.s32.totalorder %s307, %s309
      %p316 = scmp.eq.s32.totalorder %s42, 1
      %p317 = por %p315, %p316
      %p318 = scmp.ne.s32.totalorder %s309, %s310
      %p319 = scmp.eq.s32.totalorder %s42, 0
      %p320 = por %p318, %p319
      %p321 = scmp.ne.s32.totalorder %s309, %s310
      %p322 = scmp.eq.s32.totalorder %s43, 1
      %p323 = por %p321, %p322
      %p325 = scmp.ne.s32.totalorder %s310, %s324
      %p326 = scmp.eq.s32.totalorder %s43, 0
      %p327 = por %p325, %p326
      %s329 = sadd.s32 %s328, 1
      %p332 = scmp.eq.s32.totalorder %s37, 1
      %p333 = scmp.ne.s32.totalorder %s328, %s330
      %p334 = scmp.eq.s32.totalorder %s37, 0
      %p335 = por %p333, %p334
      %p336 = scmp.ne.s32.totalorder %s328, %s330
      %p337 = scmp.eq.s32.totalorder %s42, 1
      %p338 = por %p336, %p337
      %p339 = scmp.ne.s32.totalorder %s330, %s331
      %p340 = scmp.eq.s32.totalorder %s42, 0
      %p341 = por %p339, %p340
      %p342 = scmp.ne.s32.totalorder %s330, %s331
      %p343 = scmp.eq.s32.totalorder %s43, 1
      %p344 = por %p342, %p343
      %p346 = scmp.ne.s32.totalorder %s331, %s345
      %p347 = scmp.eq.s32.totalorder %s43, 0
      %p348 = por %p346, %p347
      %s350 = sadd.s32 %s349, 1
      %p353 = scmp.eq.s32.totalorder %s37, 1
      %p354 = scmp.ne.s32.totalorder %s349, %s351
      %p355 = scmp.eq.s32.totalorder %s37, 0
      %p356 = por %p354, %p355
      %p357 = scmp.ne.s32.totalorder %s349, %s351
      %p358 = scmp.eq.s32.totalorder %s42, 1
      %p359 = por %p357, %p358
      %p360 = scmp.ne.s32.totalorder %s351, %s352
      %p361 = scmp.eq.s32.totalorder %s42, 0
      %p362 = por %p360, %p361
      %p363 = scmp.ne.s32.totalorder %s351, %s352
      %p364 = scmp.eq.s32.totalorder %s43, 1
      %p365 = por %p363, %p364
      %p367 = scmp.ne.s32.totalorder %s352, %s366
      %p368 = scmp.eq.s32.totalorder %s43, 0
      %p369 = por %p367, %p368
      %s371 = sadd.s32 %s370, 1
      %p374 = scmp.eq.s32.totalorder %s37, 1
      %p375 = scmp.ne.s32.totalorder %s370, %s372
      %p376 = scmp.eq.s32.totalorder %s37, 0
      %p377 = por %p375, %p376
      %p378 = scmp.ne.s32.totalorder %s370, %s372
      %p379 = scmp.eq.s32.totalorder %s42, 1
      %p380 = por %p378, %p379
      %p381 = scmp.ne.s32.totalorder %s372, %s373
      %p382 = scmp.eq.s32.totalorder %s42, 0
      %p383 = por %p381, %p382
      %p384 = scmp.ne.s32.totalorder %s372, %s373
      %p385 = scmp.eq.s32.totalorder %s43, 1
      %p386 = por %p384, %p385
      %p388 = scmp.ne.s32.totalorder %s373, %s387
      %p389 = scmp.eq.s32.totalorder %s43, 0
      %p390 = por %p388, %p389
      %s392 = sadd.s32 %s391, 1
      %p395 = scmp.eq.s32.totalorder %s37, 1
      %p396 = scmp.ne.s32.totalorder %s391, %s393
      %p397 = scmp.eq.s32.totalorder %s37, 0
      %p398 = por %p396, %p397
      %p399 = scmp.ne.s32.totalorder %s391, %s393
      %p400 = scmp.eq.s32.totalorder %s42, 1
      %p401 = por %p399, %p400
      %p402 = scmp.ne.s32.totalorder %s393, %s394
      %p403 = scmp.eq.s32.totalorder %s42, 0
      %p404 = por %p402, %p403
      %p405 = scmp.ne.s32.totalorder %s393, %s394
      %p406 = scmp.eq.s32.totalorder %s43, 1
      %p407 = por %p405, %p406
      %p409 = scmp.ne.s32.totalorder %s394, %s408
      %p410 = scmp.eq.s32.totalorder %s43, 0
      %p411 = por %p409, %p410
      %s413 = sadd.s32 %s412, 1
      %p416 = scmp.eq.s32.totalorder %s37, 1
      %p417 = scmp.ne.s32.totalorder %s412, %s414
      %p418 = scmp.eq.s32.totalorder %s37, 0
      %p419 = por %p417, %p418
      %p420 = scmp.ne.s32.totalorder %s412, %s414
      %p421 = scmp.eq.s32.totalorder %s42, 1
      %p422 = por %p420, %p421
      %p423 = scmp.ne.s32.totalorder %s414, %s415
      %p424 = scmp.eq.s32.totalorder %s42, 0
      %p425 = por %p423, %p424
      %p426 = scmp.ne.s32.totalorder %s414, %s415
      %p427 = scmp.eq.s32.totalorder %s43, 1
      %p428 = por %p426, %p427
      %p430 = scmp.ne.s32.totalorder %s415, %s429
      %p431 = scmp.eq.s32.totalorder %s43, 0
      %p432 = por %p430, %p431
      %s434 = sadd.s32 %s433, 1
      %p437 = scmp.eq.s32.totalorder %s37, 1
      %p438 = scmp.ne.s32.totalorder %s433, %s435
      %p439 = scmp.eq.s32.totalorder %s37, 0
      %p440 = por %p438, %p439
      %p441 = scmp.ne.s32.totalorder %s433, %s435
      %p442 = scmp.eq.s32.totalorder %s42, 1
      %p443 = por %p441, %p442
      %p444 = scmp.ne.s32.totalorder %s435, %s436
      %p445 = scmp.eq.s32.totalorder %s42, 0
      %p446 = por %p444, %p445
      %p447 = scmp.ne.s32.totalorder %s435, %s436
      %p448 = scmp.eq.s32.totalorder %s43, 1
      %p449 = por %p447, %p448
      %p451 = scmp.ne.s32.totalorder %s436, %s450
      %p452 = scmp.eq.s32.totalorder %s43, 0
      %p453 = por %p451, %p452
      %s455 = sadd.s32 %s454, 1
      %p458 = scmp.eq.s32.totalorder %s37, 1
      %p459 = scmp.ne.s32.totalorder %s454, %s456
      %p460 = scmp.eq.s32.totalorder %s37, 0
      %p461 = por %p459, %p460
      %p462 = scmp.ne.s32.totalorder %s454, %s456
      %p463 = scmp.eq.s32.totalorder %s42, 1
      %p464 = por %p462, %p463
      %p465 = scmp.ne.s32.totalorder %s456, %s457
      %p466 = scmp.eq.s32.totalorder %s42, 0
      %p467 = por %p465, %p466
      %p468 = scmp.ne.s32.totalorder %s456, %s457
      %p469 = scmp.eq.s32.totalorder %s43, 1
      %p470 = por %p468, %p469
      %p472 = scmp.ne.s32.totalorder %s457, %s471
      %p473 = scmp.eq.s32.totalorder %s43, 0
      %p474 = por %p472, %p473
      %s476 = sadd.s32 %s475, 1
      %p479 = scmp.eq.s32.totalorder %s37, 1
      %p480 = scmp.ne.s32.totalorder %s475, %s477
      %p481 = scmp.eq.s32.totalorder %s37, 0
      %p482 = por %p480, %p481
      %p483 = scmp.ne.s32.totalorder %s475, %s477
      %p484 = scmp.eq.s32.totalorder %s42, 1
      %p485 = por %p483, %p484
      %p486 = scmp.ne.s32.totalorder %s477, %s478
      %p487 = scmp.eq.s32.totalorder %s42, 0
      %p488 = por %p486, %p487
      %p489 = scmp.ne.s32.totalorder %s477, %s478
      %p490 = scmp.eq.s32.totalorder %s43, 1
      %p491 = por %p489, %p490
      %p493 = scmp.ne.s32.totalorder %s478, %s492
      %p494 = scmp.eq.s32.totalorder %s43, 0
      %p495 = por %p493, %p494
      %s497 = sadd.s32 %s496, 1
      %p500 = scmp.eq.s32.totalorder %s37, 1
      %p501 = scmp.ne.s32.totalorder %s496, %s498
      %p502 = scmp.eq.s32.totalorder %s37, 0
      %p503 = por %p501, %p502
      %p504 = scmp.ne.s32.totalorder %s496, %s498
      %p505 = scmp.eq.s32.totalorder %s42, 1
      %p506 = por %p504, %p505
      %p507 = scmp.ne.s32.totalorder %s498, %s499
      %p508 = scmp.eq.s32.totalorder %s42, 0
      %p509 = por %p507, %p508
      %p510 = scmp.ne.s32.totalorder %s498, %s499
      %p511 = scmp.eq.s32.totalorder %s43, 1
      %p512 = por %p510, %p511
      %p514 = scmp.ne.s32.totalorder %s499, %s513
      %p515 = scmp.eq.s32.totalorder %s43, 0
      %p516 = por %p514, %p515
      %s518 = sadd.s32 %s517, 1
      %p521 = scmp.eq.s32.totalorder %s37, 1
      %p522 = scmp.ne.s32.totalorder %s517, %s519
      %p523 = scmp.eq.s32.totalorder %s37, 0
      %p524 = por %p522, %p523
      %p525 = scmp.ne.s32.totalorder %s517, %s519
      %p526 = scmp.eq.s32.totalorder %s42, 1
      %p527 = por %p525, %p526
      %p528 = scmp.ne.s32.totalorder %s519, %s520
      %p529 = scmp.eq.s32.totalorder %s42, 0
      %p530 = por %p528, %p529
      %p531 = scmp.ne.s32.totalorder %s519, %s520
      %p532 = scmp.eq.s32.totalorder %s43, 1
      %p533 = por %p531, %p532
      %p535 = scmp.ne.s32.totalorder %s520, %s534
      %p536 = scmp.eq.s32.totalorder %s43, 0
      %p537 = por %p535, %p536
      %s539 = sadd.s32 %s538, 1
      %p542 = scmp.eq.s32.totalorder %s37, 1
      %p543 = scmp.ne.s32.totalorder %s538, %s540
      %p544 = scmp.eq.s32.totalorder %s37, 0
      %p545 = por %p543, %p544
      %p546 = scmp.ne.s32.totalorder %s538, %s540
      %p547 = scmp.eq.s32.totalorder %s42, 1
      %p548 = por %p546, %p547
      %p549 = scmp.ne.s32.totalorder %s540, %s541
      %p550 = scmp.eq.s32.totalorder %s42, 0
      %p551 = por %p549, %p550
      %p552 = scmp.ne.s32.totalorder %s540, %s541
      %p553 = scmp.eq.s32.totalorder %s43, 1
      %p554 = por %p552, %p553
      %p556 = scmp.ne.s32.totalorder %s541, %s555
      %p557 = scmp.eq.s32.totalorder %s43, 0
      %p558 = por %p556, %p557
      %s560 = sadd.s32 %s559, 1
      %p563 = scmp.eq.s32.totalorder %s37, 1
      %p564 = scmp.ne.s32.totalorder %s559, %s561
      %p565 = scmp.eq.s32.totalorder %s37, 0
      %p566 = por %p564, %p565
      %p567 = scmp.ne.s32.totalorder %s559, %s561
      %p568 = scmp.eq.s32.totalorder %s42, 1
      %p569 = por %p567, %p568
      %p570 = scmp.ne.s32.totalorder %s561, %s562
      %p571 = scmp.eq.s32.totalorder %s42, 0
      %p572 = por %p570, %p571
      %p573 = scmp.ne.s32.totalorder %s561, %s562
      %p574 = scmp.eq.s32.totalorder %s43, 1
      %p575 = por %p573, %p574
      %p577 = scmp.ne.s32.totalorder %s562, %s576
      %p578 = scmp.eq.s32.totalorder %s43, 0
      %p579 = por %p577, %p578
      %s581 = sadd.s32 %s580, 1
      %p584 = scmp.eq.s32.totalorder %s37, 1
      %p585 = scmp.ne.s32.totalorder %s580, %s582
      %p586 = scmp.eq.s32.totalorder %s37, 0
      %p587 = por %p585, %p586
      %p588 = scmp.ne.s32.totalorder %s580, %s582
      %p589 = scmp.eq.s32.totalorder %s42, 1
      %p590 = por %p588, %p589
      %p591 = scmp.ne.s32.totalorder %s582, %s583
      %p592 = scmp.eq.s32.totalorder %s42, 0
      %p593 = por %p591, %p592
      %p594 = scmp.ne.s32.totalorder %s582, %s583
      %p595 = scmp.eq.s32.totalorder %s43, 1
      %p596 = por %p594, %p595
      %p598 = scmp.ne.s32.totalorder %s583, %s597
      %p599 = scmp.eq.s32.totalorder %s43, 0
      %p600 = por %p598, %p599
      %s602 = sadd.s32 %s601, 1
      %p605 = scmp.eq.s32.totalorder %s37, 1
      %p606 = scmp.ne.s32.totalorder %s601, %s603
      %p607 = scmp.eq.s32.totalorder %s37, 0
      %p608 = por %p606, %p607
      %p609 = scmp.ne.s32.totalorder %s601, %s603
      %p610 = scmp.eq.s32.totalorder %s42, 1
      %p611 = por %p609, %p610
      %p612 = scmp.ne.s32.totalorder %s603, %s604
      %p613 = scmp.eq.s32.totalorder %s42, 0
      %p614 = por %p612, %p613
      %p615 = scmp.ne.s32.totalorder %s603, %s604
      %p616 = scmp.eq.s32.totalorder %s43, 1
      %p617 = por %p615, %p616
      %p619 = scmp.ne.s32.totalorder %s604, %s618
      %p620 = scmp.eq.s32.totalorder %s43, 0
      %p621 = por %p619, %p620
      %s623 = sadd.s32 %s622, 1
      %p626 = scmp.eq.s32.totalorder %s37, 1
      %p627 = scmp.ne.s32.totalorder %s622, %s624
      %p628 = scmp.eq.s32.totalorder %s37, 0
      %p629 = por %p627, %p628
      %p630 = scmp.ne.s32.totalorder %s622, %s624
      %p631 = scmp.eq.s32.totalorder %s42, 1
      %p632 = por %p630, %p631
      %p633 = scmp.ne.s32.totalorder %s624, %s625
      %p634 = scmp.eq.s32.totalorder %s42, 0
      %p635 = por %p633, %p634
      %p636 = scmp.ne.s32.totalorder %s624, %s625
      %p637 = scmp.eq.s32.totalorder %s43, 1
      %p638 = por %p636, %p637
      %p640 = scmp.ne.s32.totalorder %s625, %s639
      %p641 = scmp.eq.s32.totalorder %s43, 0
      %p642 = por %p640, %p641
      %s643 = ssub.s32 %s37, %s44
      %p644 = scmp.eq.s32.totalorder %s643, 0
      %s646 = sadd.s32 %s645, 1
      %s647 = scalar_select %p644, %s645, %s646
      %p650 = pneg %p644
      %p651 = scmp.eq.s32.totalorder %s37, 1
      %p652 = por %p650, %p651
      %p653 = scmp.ne.s32.totalorder %s645, %s648
      %p654 = scmp.eq.s32.totalorder %s37, 0
      %p655 = por %p653, %p654
      %p656 = scmp.ne.s32.totalorder %s645, %s648
      %p657 = scmp.eq.s32.totalorder %s42, 1
      %p658 = por %p656, %p657
      %p659 = scmp.ne.s32.totalorder %s648, %s649
      %p660 = scmp.eq.s32.totalorder %s42, 0
      %p661 = por %p659, %p660
      %p662 = scmp.ne.s32.totalorder %s648, %s649
      %p663 = scmp.eq.s32.totalorder %s43, 1
      %p664 = por %p662, %p663
      %p666 = scmp.ne.s32.totalorder %s649, %s665
      %p667 = scmp.eq.s32.totalorder %s43, 0
      %p668 = por %p666, %p667
      %p669 = scmp.le.s32.totalorder 1, %s37
      %p670 = scmp.lt.s32.totalorder %s37, 3
      %p671 = pnand %p669, %p670
      %p672 = pneg %p671
      // Predicated region
      $region9: #{transformer_decoder_forward.3} parent=5 // pred_check
        _
      $region10: #{transformer_decoder_forward.3} parent=5 // pred_check_branch
        %674 = sbr.rel (%p671) target = $region12
      $region11: #{transformer_decoder_forward.3} parent=5 // pred_region
        %s675 = ssub.s32 %s37, 1
        // Predicated region
        $region13: #{transformer_decoder_forward.3} parent=11 // pred_check
          %p676 = pneg %p110
        $region14: #{transformer_decoder_forward.3} parent=11 // pred_check_branch
          %678 = sbr.rel (%p676) target = $region16
        $region15: #{transformer_decoder_forward.3} parent=11 // pred_region
          _
        $region16: #{transformer_decoder_forward.3} parent=11 // pred_fallthru
          _
        // Predicated region
        $region17: #{transformer_decoder_forward.3} parent=11 // pred_check
          %p679 = pneg %p131
        $region18: #{transformer_decoder_forward.3} parent=11 // pred_check_branch
          %681 = sbr.rel (%p679) target = $region20
        $region19: #{transformer_decoder_forward.3} parent=11 // pred_region
          _
        $region20: #{transformer_decoder_forward.3} parent=11 // pred_fallthru
          _
        // Predicated region
        $region21: #{transformer_decoder_forward.3} parent=11 // pred_check
          %p682 = pneg %p152
        $region22: #{transformer_decoder_forward.3} parent=11 // pred_check_branch
          %684 = sbr.rel (%p682) target = $region24
        $region23: #{transformer_decoder_forward.3} parent=11 // pred_region
          _
        $region24: #{transformer_decoder_forward.3} parent=11 // pred_fallthru
          _
        // Predicated region
        $region25: #{transformer_decoder_forward.3} parent=11 // pred_check
          %p685 = pneg %p173
        $region26: #{transformer_decoder_forward.3} parent=11 // pred_check_branch
          %687 = sbr.rel (%p685) target = $region28
        $region27: #{transformer_decoder_forward.3} parent=11 // pred_region
          _
        $region28: #{transformer_decoder_forward.3} parent=11 // pred_fallthru
          _
        // Predicated region
        $region29: #{transformer_decoder_forward.3} parent=11 // pred_check
          %p688 = pneg %p194
        $region30: #{transformer_decoder_forward.3} parent=11 // pred_check_branch
          %690 = sbr.rel (%p688) target = $region32
        $region31: #{transformer_decoder_forward.3} parent=11 // pred_region
          _
        $region32: #{transformer_decoder_forward.3} parent=11 // pred_fallthru
          _
        // Predicated region
        $region33: #{transformer_decoder_forward.3} parent=11 // pred_check
          %p691 = pneg %p215
        $region34: #{transformer_decoder_forward.3} parent=11 // pred_check_branch
          %693 = sbr.rel (%p691) target = $region36
        $region35: #{transformer_decoder_forward.3} parent=11 // pred_region
          _
        $region36: #{transformer_decoder_forward.3} parent=11 // pred_fallthru
          _
        // Predicated region
        $region37: #{transformer_decoder_forward.3} parent=11 // pred_check
          %p694 = pneg %p236
        $region38: #{transformer_decoder_forward.3} parent=11 // pred_check_branch
          %696 = sbr.rel (%p694) target = $region40
        $region39: #{transformer_decoder_forward.3} parent=11 // pred_region
          _
        $region40: #{transformer_decoder_forward.3} parent=11 // pred_fallthru
          _
        // Predicated region
        $region41: #{transformer_decoder_forward.3} parent=11 // pred_check
          %p697 = pneg %p257
        $region42: #{transformer_decoder_forward.3} parent=11 // pred_check_branch
          %699 = sbr.rel (%p697) target = $region44
        $region43: #{transformer_decoder_forward.3} parent=11 // pred_region
          _
        $region44: #{transformer_decoder_forward.3} parent=11 // pred_fallthru
          _
        // Predicated region
        $region45: #{transformer_decoder_forward.3} parent=11 // pred_check
          %p700 = pneg %p278
        $region46: #{transformer_decoder_forward.3} parent=11 // pred_check_branch
          %702 = sbr.rel (%p700) target = $region48
        $region47: #{transformer_decoder_forward.3} parent=11 // pred_region
          _
        $region48: #{transformer_decoder_forward.3} parent=11 // pred_fallthru
          _
        // Predicated region
        $region49: #{transformer_decoder_forward.3} parent=11 // pred_check
          %p703 = pneg %p299
        $region50: #{transformer_decoder_forward.3} parent=11 // pred_check_branch
          %705 = sbr.rel (%p703) target = $region52
        $region51: #{transformer_decoder_forward.3} parent=11 // pred_region
          _
        $region52: #{transformer_decoder_forward.3} parent=11 // pred_fallthru
          _
        // Predicated region
        $region53: #{transformer_decoder_forward.3} parent=11 // pred_check
          %p706 = pneg %p320
        $region54: #{transformer_decoder_forward.3} parent=11 // pred_check_branch
          %708 = sbr.rel (%p706) target = $region56
        $region55: #{transformer_decoder_forward.3} parent=11 // pred_region
          _
        $region56: #{transformer_decoder_forward.3} parent=11 // pred_fallthru
          _
        // Predicated region
        $region57: #{transformer_decoder_forward.3} parent=11 // pred_check
          %p709 = pneg %p341
        $region58: #{transformer_decoder_forward.3} parent=11 // pred_check_branch
          %711 = sbr.rel (%p709) target = $region60
        $region59: #{transformer_decoder_forward.3} parent=11 // pred_region
          _
        $region60: #{transformer_decoder_forward.3} parent=11 // pred_fallthru
          _
        // Predicated region
        $region61: #{transformer_decoder_forward.3} parent=11 // pred_check
          %p712 = pneg %p362
        $region62: #{transformer_decoder_forward.3} parent=11 // pred_check_branch
          %714 = sbr.rel (%p712) target = $region64
        $region63: #{transformer_decoder_forward.3} parent=11 // pred_region
          _
        $region64: #{transformer_decoder_forward.3} parent=11 // pred_fallthru
          _
        // Predicated region
        $region65: #{transformer_decoder_forward.3} parent=11 // pred_check
          %p715 = pneg %p383
        $region66: #{transformer_decoder_forward.3} parent=11 // pred_check_branch
          %717 = sbr.rel (%p715) target = $region68
        $region67: #{transformer_decoder_forward.3} parent=11 // pred_region
          _
        $region68: #{transformer_decoder_forward.3} parent=11 // pred_fallthru
          _
        // Predicated region
        $region69: #{transformer_decoder_forward.3} parent=11 // pred_check
          %p718 = pneg %p404
        $region70: #{transformer_decoder_forward.3} parent=11 // pred_check_branch
          %720 = sbr.rel (%p718) target = $region72
        $region71: #{transformer_decoder_forward.3} parent=11 // pred_region
          _
        $region72: #{transformer_decoder_forward.3} parent=11 // pred_fallthru
          _
        // Predicated region
        $region73: #{transformer_decoder_forward.3} parent=11 // pred_check
          %p721 = pneg %p425
        $region74: #{transformer_decoder_forward.3} parent=11 // pred_check_branch
          %723 = sbr.rel (%p721) target = $region76
        $region75: #{transformer_decoder_forward.3} parent=11 // pred_region
          _
        $region76: #{transformer_decoder_forward.3} parent=11 // pred_fallthru
          _
        // Predicated region
        $region77: #{transformer_decoder_forward.3} parent=11 // pred_check
          %p724 = pneg %p446
        $region78: #{transformer_decoder_forward.3} parent=11 // pred_check_branch
          %726 = sbr.rel (%p724) target = $region80
        $region79: #{transformer_decoder_forward.3} parent=11 // pred_region
          _
        $region80: #{transformer_decoder_forward.3} parent=11 // pred_fallthru
          _
        // Predicated region
        $region81: #{transformer_decoder_forward.3} parent=11 // pred_check
          %p727 = pneg %p467
        $region82: #{transformer_decoder_forward.3} parent=11 // pred_check_branch
          %729 = sbr.rel (%p727) target = $region84
        $region83: #{transformer_decoder_forward.3} parent=11 // pred_region
          _
        $region84: #{transformer_decoder_forward.3} parent=11 // pred_fallthru
          _
        // Predicated region
        $region85: #{transformer_decoder_forward.3} parent=11 // pred_check
          %p730 = pneg %p488
        $region86: #{transformer_decoder_forward.3} parent=11 // pred_check_branch
          %732 = sbr.rel (%p730) target = $region88
        $region87: #{transformer_decoder_forward.3} parent=11 // pred_region
          _
        $region88: #{transformer_decoder_forward.3} parent=11 // pred_fallthru
          _
        // Predicated region
        $region89: #{transformer_decoder_forward.3} parent=11 // pred_check
          %p733 = pneg %p509
        $region90: #{transformer_decoder_forward.3} parent=11 // pred_check_branch
          %735 = sbr.rel (%p733) target = $region92
        $region91: #{transformer_decoder_forward.3} parent=11 // pred_region
          _
        $region92: #{transformer_decoder_forward.3} parent=11 // pred_fallthru
          _
        // Predicated region
        $region93: #{transformer_decoder_forward.3} parent=11 // pred_check
          %p736 = pneg %p530
        $region94: #{transformer_decoder_forward.3} parent=11 // pred_check_branch
          %738 = sbr.rel (%p736) target = $region96
        $region95: #{transformer_decoder_forward.3} parent=11 // pred_region
          _
        $region96: #{transformer_decoder_forward.3} parent=11 // pred_fallthru
          _
        // Predicated region
        $region97: #{transformer_decoder_forward.3} parent=11 // pred_check
          %p739 = pneg %p551
        $region98: #{transformer_decoder_forward.3} parent=11 // pred_check_branch
          %741 = sbr.rel (%p739) target = $region100
        $region99: #{transformer_decoder_forward.3} parent=11 // pred_region
          _
        $region100: #{transformer_decoder_forward.3} parent=11 // pred_fallthru
          _
        // Predicated region
        $region101: #{transformer_decoder_forward.3} parent=11 // pred_check
          %p742 = pneg %p572
        $region102: #{transformer_decoder_forward.3} parent=11 // pred_check_branch
          %744 = sbr.rel (%p742) target = $region104
        $region103: #{transformer_decoder_forward.3} parent=11 // pred_region
          _
        $region104: #{transformer_decoder_forward.3} parent=11 // pred_fallthru
          _
        // Predicated region
        $region105: #{transformer_decoder_forward.3} parent=11 // pred_check
          %p745 = pneg %p593
        $region106: #{transformer_decoder_forward.3} parent=11 // pred_check_branch
          %747 = sbr.rel (%p745) target = $region108
        $region107: #{transformer_decoder_forward.3} parent=11 // pred_region
          _
        $region108: #{transformer_decoder_forward.3} parent=11 // pred_fallthru
          _
        // Predicated region
        $region109: #{transformer_decoder_forward.3} parent=11 // pred_check
          %p748 = pneg %p614
        $region110: #{transformer_decoder_forward.3} parent=11 // pred_check_branch
          %750 = sbr.rel (%p748) target = $region112
        $region111: #{transformer_decoder_forward.3} parent=11 // pred_region
          _
        $region112: #{transformer_decoder_forward.3} parent=11 // pred_fallthru
          _
        // Predicated region
        $region113: #{transformer_decoder_forward.3} parent=11 // pred_check
          %p751 = pneg %p635
        $region114: #{transformer_decoder_forward.3} parent=11 // pred_check_branch
          %753 = sbr.rel (%p751) target = $region116
        $region115: #{transformer_decoder_forward.3} parent=11 // pred_region
          _
        $region116: #{transformer_decoder_forward.3} parent=11 // pred_fallthru
          _
      $region12: #{transformer_decoder_forward.3} parent=5 // pred_fallthru
        _
      %p754 = scmp.lt.s32.totalorder %s37, 2
      // Predicated region
      $region117: #{transformer_decoder_forward.3} parent=5 // pred_check
        %p755 = pneg %p754
      $region118: #{transformer_decoder_forward.3} parent=5 // pred_check_branch
        %757 = sbr.rel (%p755) target = $region120
      $region119: #{transformer_decoder_forward.3} parent=5 // pred_region
        // Predicated region
        $region121: #{transformer_decoder_forward.3} parent=119 // pred_check
          %p758 = pneg %p57
        $region122: #{transformer_decoder_forward.3} parent=119 // pred_check_branch
          %760 = sbr.rel (%p758) target = $region124
        $region123: #{transformer_decoder_forward.3} parent=119 // pred_region
          %p761 = scmp.lt.s32.totalorder %s37, 1
          %s762 = scalar_select %p761, %s37, 1
          %s763 = smul.addr %s762, 8
          %s764 = scalar_lea.vmem %s0, %s763
        $region124: #{transformer_decoder_forward.3} parent=119 // pred_fallthru
          _
        // Predicated region
        $region125: #{transformer_decoder_forward.3} parent=119 // pred_check
          %p765 = pneg %p83
        $region126: #{transformer_decoder_forward.3} parent=119 // pred_check_branch
          %767 = sbr.rel (%p765) target = $region128
        $region127: #{transformer_decoder_forward.3} parent=119 // pred_region
          %p768 = scmp.lt.s32.totalorder %s37, 1
          %s769 = scalar_select %p768, %s37, 1
          %s770 = smul.addr %s769, 8
          %s771 = scalar_lea.vmem %s1, %s770
        $region128: #{transformer_decoder_forward.3} parent=119 // pred_fallthru
          _
      $region120: #{transformer_decoder_forward.3} parent=5 // pred_fallthru
        _
      %p772 = scmp.le.s32.totalorder 1, %s37
      %p773 = scmp.lt.s32.totalorder %s37, 3
      %p774 = pnand %p772, %p773
      %p775 = pneg %p774
      // Predicated region
      $region129: #{transformer_decoder_forward.3} parent=5 // pred_check
        _
      $region130: #{transformer_decoder_forward.3} parent=5 // pred_check_branch
        %777 = sbr.rel (%p774) target = $region132
      $region131: #{transformer_decoder_forward.3} parent=5 // pred_region
        %s778 = ssub.s32 %s37, 1
        %p779 = scmp.lt.s32.totalorder %s42, 1
        %s780 = scalar_select %p779, %s42, 1
        %s781 = smul.addr %s780, 8
        %s782 = scalar_lea.vmem %s0, %s781
        %p783 = pneg %p63
        %p784 = pneg %p60
        %p785 = scmp.lt.s32.totalorder %s42, 1
        %s786 = scalar_select %p785, %s42, 1
        %s787 = smul.addr %s786, 8
        %s788 = scalar_lea.vmem %s1, %s787
        %p789 = pneg %p89
        %p790 = pneg %p86
        %p791 = pneg %p110
        %p792 = pneg %p107
        %p793 = pneg %p131
        %p794 = pneg %p128
        %p795 = pneg %p152
        %p796 = pneg %p149
        %p797 = pneg %p173
        %p798 = pneg %p170
        %p799 = pneg %p194
        %p800 = pneg %p191
        %p801 = pneg %p215
        %p802 = pneg %p212
        %p803 = pneg %p236
        %p804 = pneg %p233
        %p805 = pneg %p257
        %p806 = pneg %p254
        %p807 = pneg %p278
        %p808 = pneg %p275
        %p809 = pneg %p299
        %p810 = pneg %p296
        %p811 = pneg %p320
        %p812 = pneg %p317
        %p813 = pneg %p341
        %p814 = pneg %p338
        %p815 = pneg %p362
        %p816 = pneg %p359
        %p817 = pneg %p383
        %p818 = pneg %p380
        %p819 = pneg %p404
        %p820 = pneg %p401
        %p821 = pneg %p425
        %p822 = pneg %p422
        %p823 = pneg %p446
        %p824 = pneg %p443
        %p825 = pneg %p467
        %p826 = pneg %p464
        %p827 = pneg %p488
        %p828 = pneg %p485
        %p829 = pneg %p509
        %p830 = pneg %p506
        %p831 = pneg %p530
        %p832 = pneg %p527
        %p833 = pneg %p551
        %p834 = pneg %p548
        %p835 = pneg %p572
        %p836 = pneg %p569
        %p837 = pneg %p593
        %p838 = pneg %p590
        %p839 = pneg %p614
        %p840 = pneg %p611
        %p841 = pneg %p635
        %p842 = pneg %p632
        %p843 = pneg %p661
        %p844 = pneg %p658
        %s845 = sand.u32 %s648, 1
        %s846 = scalar_lea.sflag [#allocation3], %s845
        %s847 = sand.u32 %s648, 1
        %s848 = smul.addr %s847, 8
        %s849 = scalar_lea.vmem [#allocation2], %s848
        %p850 = scmp.lt.s32.totalorder %s42, 1
        %s851 = scalar_select %p850, %s42, 1
        %s852 = smul.addr %s851, 8
        %s853 = scalar_lea.vmem %s0, %s852
        %p854 = scmp.lt.s32.totalorder %s42, 1
        %s855 = scalar_select %p854, %s42, 1
        %s856 = smul.addr %s855, 8
        %s857 = scalar_lea.vmem %s1, %s856
        %v859 = vld [vmem:[%s853] sm:$0xff]
        %v860 = vld [vmem:[%s857] sm:$0xff]
        %v861 = vpack.c.bf16 %v860, %v860
        %v862 = vpack.c.bf16 %v859, %v859
        %v863 = vld [vmem:[%s2] sm:$0xf]
        %v864 = vld [vmem:[%s2 + $0x4] sm:$0xf]
        %v865 = vld [vmem:[%s2 + $0x8] sm:$0xf]
        %v866 = vld [vmem:[%s2 + $0xc] sm:$0xf]
        %v867 = vld [vmem:[%s2 + $0x10] sm:$0xf]
        %v868 = vld [vmem:[%s2 + $0x14] sm:$0xf]
        %v869 = vld [vmem:[%s2 + $0x18] sm:$0xf]
        %v870 = vld [vmem:[%s2 + $0x1c] sm:$0xf]
        %v871 = vld [vmem:[%s2 + $0x20] sm:$0xf]
        %v872 = vld [vmem:[%s2 + $0x24] sm:$0xf]
        %v873 = vld [vmem:[%s2 + $0x28] sm:$0xf]
        %v874 = vld [vmem:[%s2 + $0x2c] sm:$0xf]
        %v875 = vld [vmem:[%s2 + $0x30] sm:$0xf]
        %v876 = vld [vmem:[%s2 + $0x34] sm:$0xf]
        %v877 = vld [vmem:[%s2 + $0x38] sm:$0xf]
        %v878 = vld [vmem:[%s2 + $0x3c] sm:$0xf]
        %v879 = vld [vmem:[%s3] sm:$0x1]
        %v880 = vld [vmem:[%s4] sm:$0xf]
        %v881 = vld [vmem:[%s4 + $0x4] sm:$0xf]
        %v882 = vld [vmem:[%s4 + $0x8] sm:$0xf]
        %v883 = vld [vmem:[%s4 + $0xc] sm:$0xf]
        %v884 = vld [vmem:[%s4 + $0x10] sm:$0xf]
        %v885 = vld [vmem:[%s4 + $0x14] sm:$0xf]
        %v886 = vld [vmem:[%s4 + $0x18] sm:$0xf]
        %v887 = vld [vmem:[%s4 + $0x1c] sm:$0xf]
        %v888 = vld [vmem:[%s4 + $0x20] sm:$0xf]
        %v889 = vld [vmem:[%s4 + $0x24] sm:$0xf]
        %v890 = vld [vmem:[%s4 + $0x28] sm:$0xf]
        %v891 = vld [vmem:[%s4 + $0x2c] sm:$0xf]
        %v892 = vld [vmem:[%s4 + $0x30] sm:$0xf]
        %v893 = vld [vmem:[%s4 + $0x34] sm:$0xf]
        %v894 = vld [vmem:[%s4 + $0x38] sm:$0xf]
        %v895 = vld [vmem:[%s4 + $0x3c] sm:$0xf]
        %v896 = vld [vmem:[%s5] sm:$0x1]
        %v897 = vld [vmem:[%s6] sm:$0xf]
        %v898 = vld [vmem:[%s6 + $0x4] sm:$0xf]
        %v899 = vld [vmem:[%s6 + $0x8] sm:$0xf]
        %v900 = vld [vmem:[%s6 + $0xc] sm:$0xf]
        %v901 = vld [vmem:[%s6 + $0x10] sm:$0xf]
        %v902 = vld [vmem:[%s6 + $0x14] sm:$0xf]
        %v903 = vld [vmem:[%s6 + $0x18] sm:$0xf]
        %v904 = vld [vmem:[%s6 + $0x1c] sm:$0xf]
        %v905 = vld [vmem:[%s6 + $0x20] sm:$0xf]
        %v906 = vld [vmem:[%s6 + $0x24] sm:$0xf]
        %v907 = vld [vmem:[%s6 + $0x28] sm:$0xf]
        %v908 = vld [vmem:[%s6 + $0x2c] sm:$0xf]
        %v909 = vld [vmem:[%s6 + $0x30] sm:$0xf]
        %v910 = vld [vmem:[%s6 + $0x34] sm:$0xf]
        %v911 = vld [vmem:[%s6 + $0x38] sm:$0xf]
        %v912 = vld [vmem:[%s6 + $0x3c] sm:$0xf]
        %v913 = vld [vmem:[%s7] sm:$0x1]
        %v914 = vld [vmem:[%s8] sm:$0xf]
        %v915 = vld [vmem:[%s8 + $0x4] sm:$0xf]
        %v916 = vld [vmem:[%s8 + $0x8] sm:$0xf]
        %v917 = vld [vmem:[%s8 + $0xc] sm:$0xf]
        %v918 = vld [vmem:[%s8 + $0x10] sm:$0xf]
        %v919 = vld [vmem:[%s8 + $0x14] sm:$0xf]
        %v920 = vld [vmem:[%s8 + $0x18] sm:$0xf]
        %v921 = vld [vmem:[%s8 + $0x1c] sm:$0xf]
        %v922 = vld [vmem:[%s8 + $0x20] sm:$0xf]
        %v923 = vld [vmem:[%s8 + $0x24] sm:$0xf]
        %v924 = vld [vmem:[%s8 + $0x28] sm:$0xf]
        %v925 = vld [vmem:[%s8 + $0x2c] sm:$0xf]
        %v926 = vld [vmem:[%s8 + $0x30] sm:$0xf]
        %v927 = vld [vmem:[%s8 + $0x34] sm:$0xf]
        %v928 = vld [vmem:[%s8 + $0x38] sm:$0xf]
        %v929 = vld [vmem:[%s8 + $0x3c] sm:$0xf]
        %v930 = vld [vmem:[%s9] sm:$0x1]
        %v932 = vlaneseq
        %v933 = vshrl.u32 %v932, 7
        %v934 = vsub.s32 0, %v933
        %v935 = vrot.slane %v879, %v934
        %v953 = vunpack.c.l.b16 %v863
        %v954 = vunpack.c.l.b16 %v864
        %v955 = vunpack.c.l.b16 %v865
        %v956 = vunpack.c.l.b16 %v866
        %v957 = vunpack.c.l.b16 %v867
        %v958 = vunpack.c.l.b16 %v868
        %v959 = vunpack.c.l.b16 %v869
        %v960 = vunpack.c.l.b16 %v870
        %v961 = vunpack.c.l.b16 %v871
        %v962 = vunpack.c.l.b16 %v872
        %v963 = vunpack.c.l.b16 %v873
        %v964 = vunpack.c.l.b16 %v874
        %v965 = vunpack.c.l.b16 %v875
        %v966 = vunpack.c.l.b16 %v876
        %v967 = vunpack.c.l.b16 %v877
        %v968 = vunpack.c.l.b16 %v878
        %v969 = vpack.c.b16 %v954, %v953
        %v970 = vpack.c.b16 %v956, %v955
        %v971 = vpack.c.b16 %v958, %v957
        %v972 = vpack.c.b16 %v960, %v959
        %v973 = vpack.c.b16 %v962, %v961
        %v974 = vpack.c.b16 %v964, %v963
        %v975 = vpack.c.b16 %v966, %v965
        %v976 = vpack.c.b16 %v968, %v967
        %985 = vmatprep.subr.bf16.mxu0 0
        %986 = vmatpush1.bf16.msra.mxu0 %v976
        %987 = vmatprep.subr.bf16.mxu0 0
        %988 = vmatpush1.bf16.msra.mxu0 %v975
        %989 = vmatprep.subr.bf16.mxu0 0
        %990 = vmatpush1.bf16.msra.mxu0 %v974
        %991 = vmatprep.subr.bf16.mxu0 0
        %992 = vmatpush1.bf16.msra.mxu0 %v973
        %993 = vmatprep.subr.bf16.mxu0 0
        %994 = vmatpush1.bf16.msra.mxu0 %v972
        %995 = vmatprep.subr.bf16.mxu0 0
        %996 = vmatpush1.bf16.msra.mxu0 %v971
        %997 = vmatprep.subr.bf16.mxu0 0
        %998 = vmatpush1.bf16.msra.mxu0 %v970
        %999 = vmatprep.subr.bf16.mxu0 0
        %1000 = vmatpush1.bf16.msra.mxu0 %v969
        %1001 = vmatprep.subr.bf16.mxu0 0
        %1002 = vmatpush2.bf16.msra.mxu0 0
        %1003 = vmatprep.subr.bf16.mxu0 0
        %1004 = vmatpush2.bf16.msra.mxu0 0
        %1005 = vmatprep.subr.bf16.mxu0 0
        %1006 = vmatpush2.bf16.msra.mxu0 0
        %1007 = vmatprep.subr.bf16.mxu0 0
        %1008 = vmatpush2.bf16.msra.mxu0 0
        %1009 = vmatprep.subr.bf16.mxu0 0
        %1010 = vmatpush2.bf16.msra.mxu0 0
        %1011 = vmatprep.subr.bf16.mxu0 0
        %1012 = vmatpush2.bf16.msra.mxu0 0
        %1013 = vmatprep.subr.bf16.mxu0 0
        %1014 = vmatpush2.bf16.msra.mxu0 0
        %1015 = vmatprep.subr.bf16.mxu0 0
        %1016 = vmatpush2.bf16.msra.mxu0 0
        %1017 = vmatprep.mubr.bf16.mxu0 0
        %1018 = vmatmul.mubr.bf16.gmra.mxu0 %v862
        %v1019 = vpop.f32.mrf.mxu0
        %v1020 = vadd.f32 %v935, %v1019
        %v1021 = vpop.f32.mrf.mxu0
        %v1022 = vpop.f32.mrf.mxu0
        %v1023 = vpop.f32.mrf.mxu0
        %1024 = vdwg.mxu0
        %v1026 = vlaneseq
        %v1027 = vshrl.u32 %v1026, 7
        %v1028 = vsub.s32 0, %v1027
        %v1029 = vrot.slane %v896, %v1028
        %v1047 = vunpack.c.l.b16 %v880
        %v1048 = vunpack.c.l.b16 %v881
        %v1049 = vunpack.c.l.b16 %v882
        %v1050 = vunpack.c.l.b16 %v883
        %v1051 = vunpack.c.l.b16 %v884
        %v1052 = vunpack.c.l.b16 %v885
        %v1053 = vunpack.c.l.b16 %v886
        %v1054 = vunpack.c.l.b16 %v887
        %v1055 = vunpack.c.l.b16 %v888
        %v1056 = vunpack.c.l.b16 %v889
        %v1057 = vunpack.c.l.b16 %v890
        %v1058 = vunpack.c.l.b16 %v891
        %v1059 = vunpack.c.l.b16 %v892
        %v1060 = vunpack.c.l.b16 %v893
        %v1061 = vunpack.c.l.b16 %v894
        %v1062 = vunpack.c.l.b16 %v895
        %v1063 = vpack.c.b16 %v1048, %v1047
        %v1064 = vpack.c.b16 %v1050, %v1049
        %v1065 = vpack.c.b16 %v1052, %v1051
        %v1066 = vpack.c.b16 %v1054, %v1053
        %v1067 = vpack.c.b16 %v1056, %v1055
        %v1068 = vpack.c.b16 %v1058, %v1057
        %v1069 = vpack.c.b16 %v1060, %v1059
        %v1070 = vpack.c.b16 %v1062, %v1061
        %1079 = vmatprep.subr.bf16.mxu0 0
        %1080 = vmatpush1.bf16.msra.mxu0 %v1070
        %1081 = vmatprep.subr.bf16.mxu0 0
        %1082 = vmatpush1.bf16.msra.mxu0 %v1069
        %1083 = vmatprep.subr.bf16.mxu0 0
        %1084 = vmatpush1.bf16.msra.mxu0 %v1068
        %1085 = vmatprep.subr.bf16.mxu0 0
        %1086 = vmatpush1.bf16.msra.mxu0 %v1067
        %1087 = vmatprep.subr.bf16.mxu0 0
        %1088 = vmatpush1.bf16.msra.mxu0 %v1066
        %1089 = vmatprep.subr.bf16.mxu0 0
        %1090 = vmatpush1.bf16.msra.mxu0 %v1065
        %1091 = vmatprep.subr.bf16.mxu0 0
        %1092 = vmatpush1.bf16.msra.mxu0 %v1064
        %1093 = vmatprep.subr.bf16.mxu0 0
        %1094 = vmatpush1.bf16.msra.mxu0 %v1063
        %1095 = vmatprep.subr.bf16.mxu0 0
        %1096 = vmatpush2.bf16.msra.mxu0 0
        %1097 = vmatprep.subr.bf16.mxu0 0
        %1098 = vmatpush2.bf16.msra.mxu0 0
        %1099 = vmatprep.subr.bf16.mxu0 0
        %1100 = vmatpush2.bf16.msra.mxu0 0
        %1101 = vmatprep.subr.bf16.mxu0 0
        %1102 = vmatpush2.bf16.msra.mxu0 0
        %1103 = vmatprep.subr.bf16.mxu0 0
        %1104 = vmatpush2.bf16.msra.mxu0 0
        %1105 = vmatprep.subr.bf16.mxu0 0
        %1106 = vmatpush2.bf16.msra.mxu0 0
        %1107 = vmatprep.subr.bf16.mxu0 0
        %1108 = vmatpush2.bf16.msra.mxu0 0
        %1109 = vmatprep.subr.bf16.mxu0 0
        %1110 = vmatpush2.bf16.msra.mxu0 0
        %1111 = vmatprep.mubr.bf16.mxu0 0
        %1112 = vmatmul.mubr.bf16.gmra.mxu0 %v862
        %v1113 = vpop.f32.mrf.mxu0
        %v1114 = vadd.f32 %v1029, %v1113
        %v1115 = vpop.f32.mrf.mxu0
        %v1116 = vpop.f32.mrf.mxu0
        %v1117 = vpop.f32.mrf.mxu0
        %1118 = vdwg.mxu0
        %v1120 = vlaneseq
        %v1121 = vshrl.u32 %v1120, 7
        %v1122 = vsub.s32 0, %v1121
        %v1123 = vrot.slane %v913, %v1122
        %v1141 = vunpack.c.l.b16 %v897
        %v1142 = vunpack.c.l.b16 %v898
        %v1143 = vunpack.c.l.b16 %v899
        %v1144 = vunpack.c.l.b16 %v900
        %v1145 = vunpack.c.l.b16 %v901
        %v1146 = vunpack.c.l.b16 %v902
        %v1147 = vunpack.c.l.b16 %v903
        %v1148 = vunpack.c.l.b16 %v904
        %v1149 = vunpack.c.l.b16 %v905
        %v1150 = vunpack.c.l.b16 %v906
        %v1151 = vunpack.c.l.b16 %v907
        %v1152 = vunpack.c.l.b16 %v908
        %v1153 = vunpack.c.l.b16 %v909
        %v1154 = vunpack.c.l.b16 %v910
        %v1155 = vunpack.c.l.b16 %v911
        %v1156 = vunpack.c.l.b16 %v912
        %v1157 = vpack.c.b16 %v1142, %v1141
        %v1158 = vpack.c.b16 %v1144, %v1143
        %v1159 = vpack.c.b16 %v1146, %v1145
        %v1160 = vpack.c.b16 %v1148, %v1147
        %v1161 = vpack.c.b16 %v1150, %v1149
        %v1162 = vpack.c.b16 %v1152, %v1151
        %v1163 = vpack.c.b16 %v1154, %v1153
        %v1164 = vpack.c.b16 %v1156, %v1155
        %1173 = vmatprep.subr.bf16.mxu0 0
        %1174 = vmatpush1.bf16.msra.mxu0 %v1164
        %1175 = vmatprep.subr.bf16.mxu0 0
        %1176 = vmatpush1.bf16.msra.mxu0 %v1163
        %1177 = vmatprep.subr.bf16.mxu0 0
        %1178 = vmatpush1.bf16.msra.mxu0 %v1162
        %1179 = vmatprep.subr.bf16.mxu0 0
        %1180 = vmatpush1.bf16.msra.mxu0 %v1161
        %1181 = vmatprep.subr.bf16.mxu0 0
        %1182 = vmatpush1.bf16.msra.mxu0 %v1160
        %1183 = vmatprep.subr.bf16.mxu0 0
        %1184 = vmatpush1.bf16.msra.mxu0 %v1159
        %1185 = vmatprep.subr.bf16.mxu0 0
        %1186 = vmatpush1.bf16.msra.mxu0 %v1158
        %1187 = vmatprep.subr.bf16.mxu0 0
        %1188 = vmatpush1.bf16.msra.mxu0 %v1157
        %1189 = vmatprep.subr.bf16.mxu0 0
        %1190 = vmatpush2.bf16.msra.mxu0 0
        %1191 = vmatprep.subr.bf16.mxu0 0
        %1192 = vmatpush2.bf16.msra.mxu0 0
        %1193 = vmatprep.subr.bf16.mxu0 0
        %1194 = vmatpush2.bf16.msra.mxu0 0
        %1195 = vmatprep.subr.bf16.mxu0 0
        %1196 = vmatpush2.bf16.msra.mxu0 0
        %1197 = vmatprep.subr.bf16.mxu0 0
        %1198 = vmatpush2.bf16.msra.mxu0 0
        %1199 = vmatprep.subr.bf16.mxu0 0
        %1200 = vmatpush2.bf16.msra.mxu0 0
        %1201 = vmatprep.subr.bf16.mxu0 0
        %1202 = vmatpush2.bf16.msra.mxu0 0
        %1203 = vmatprep.subr.bf16.mxu0 0
        %1204 = vmatpush2.bf16.msra.mxu0 0
        %1205 = vmatprep.mubr.bf16.mxu0 0
        %1206 = vmatmul.mubr.bf16.gmra.mxu0 %v862
        %v1207 = vpop.f32.mrf.mxu0
        %v1208 = vadd.f32 %v1123, %v1207
        %v1209 = vpop.f32.mrf.mxu0
        %v1210 = vpop.f32.mrf.mxu0
        %v1211 = vpop.f32.mrf.mxu0
        %1212 = vdwg.mxu0
        %1214 = vrot.lane.b32.xlu0 %v1020, 96
        %v1215 = vpop.permute.xlu0 %1214
        %1217 = vrot.lane.b32.xlu0 %v1020, 64
        %v1218 = vpop.permute.xlu0 %1217
        %1220 = vrot.lane.b32.xlu0 %v1020, 32
        %v1221 = vpop.permute.xlu0 %1220
        %v1223 = vcombine.low %v1020, %v1218
        %v1224 = vcombine.high %v1020, %v1218
        %v1226 = vunpack.c.l.s4 1983009808
        %v1227 = vunpack.c.0.s8 %v1226
        %v1228 = vlaneseq
        %v1229 = vshrl.u32 %v1228, 7
        %v1230 = vsub.s32 %v1227, %v1229
        %v1231 = vrot.slane %v1223, %v1230
        %v1233 = vunpack.c.l.s4 1983009808
        %v1234 = vunpack.c.0.s8 %v1233
        %v1235 = vlaneseq
        %v1236 = vshrl.u32 %v1235, 7
        %v1237 = vsub.s32 %v1234, %v1236
        %v1238 = vrot.slane %v1224, %v1237
        %v1239 = vcombine.low %v1215, %v1221
        %v1240 = vcombine.high %v1215, %v1221
        %v1242 = vunpack.c.l.s4 1983009808
        %v1243 = vunpack.c.0.s8 %v1242
        %v1244 = vlaneseq
        %v1245 = vshrl.u32 %v1244, 7
        %v1246 = vsub.s32 %v1243, %v1245
        %v1247 = vrot.slane %v1239, %v1246
        %v1249 = vunpack.c.l.s4 1983009808
        %v1250 = vunpack.c.0.s8 %v1249
        %v1251 = vlaneseq
        %v1252 = vshrl.u32 %v1251, 7
        %v1253 = vsub.s32 %v1250, %v1252
        %v1254 = vrot.slane %v1240, %v1253
        %v1255 = vcombine.low %v1231, %v1247
        %v1256 = vcombine.high %v1231, %v1247
        %v1258 = vunpack.c.l.s4 1934713408
        %v1259 = vunpack.c.0.s8 %v1258
        %v1260 = vlaneseq
        %v1261 = vshrl.u32 %v1260, 7
        %v1262 = vsub.s32 %v1259, %v1261
        %v1263 = vrot.slane %v1255, %v1262
        %v1265 = vunpack.c.l.s4 1934713408
        %v1266 = vunpack.c.0.s8 %v1265
        %v1267 = vlaneseq
        %v1268 = vshrl.u32 %v1267, 7
        %v1269 = vsub.s32 %v1266, %v1268
        %v1270 = vrot.slane %v1256, %v1269
        %v1271 = vcombine.low %v1238, %v1254
        %v1272 = vcombine.high %v1238, %v1254
        %v1274 = vunpack.c.l.s4 1934713408
        %v1275 = vunpack.c.0.s8 %v1274
        %v1276 = vlaneseq
        %v1277 = vshrl.u32 %v1276, 7
        %v1278 = vsub.s32 %v1275, %v1277
        %v1279 = vrot.slane %v1271, %v1278
        %v1281 = vunpack.c.l.s4 1934713408
        %v1282 = vunpack.c.0.s8 %v1281
        %v1283 = vlaneseq
        %v1284 = vshrl.u32 %v1283, 7
        %v1285 = vsub.s32 %v1282, %v1284
        %v1286 = vrot.slane %v1272, %v1285
        %v1287 = vcombine.high %v1263, 0.0
        %v1288 = vcombine.high %v1270, 0.0
        %v1289 = vcombine.high %v1279, 0.0
        %v1290 = vcombine.high %v1286, 0.0
        %v1291 = vpack.c.bf16 %v1263, %v1263
        %v1292 = vpack.c.bf16 %v1287, %v1287
        %v1293 = vpack.c.bf16 %v1270, %v1270
        %v1294 = vpack.c.bf16 %v1288, %v1288
        %v1295 = vpack.c.bf16 %v1279, %v1279
        %v1296 = vpack.c.bf16 %v1289, %v1289
        %v1297 = vpack.c.bf16 %v1286, %v1286
        %v1298 = vpack.c.bf16 %v1290, %v1290
        %v1299 = vcombine.low %v1291, %v1295
        %v1301 = vunpack.c.l.s4 1983009808
        %v1302 = vunpack.c.0.s8 %v1301
        %v1303 = vlaneseq
        %v1304 = vshrl.u32 %v1303, 7
        %v1305 = vsub.s32 %v1302, %v1304
        %v1306 = vrot.slane %v1299, %v1305
        %v1307 = vcombine.low %v1293, %v1297
        %v1309 = vunpack.c.l.s4 1983009808
        %v1310 = vunpack.c.0.s8 %v1309
        %v1311 = vlaneseq
        %v1312 = vshrl.u32 %v1311, 7
        %v1313 = vsub.s32 %v1310, %v1312
        %v1314 = vrot.slane %v1307, %v1313
        %v1315 = vcombine.low %v1306, %v1314
        %v1317 = vunpack.c.l.s4 1934713408
        %v1318 = vunpack.c.0.s8 %v1317
        %v1319 = vlaneseq
        %v1320 = vshrl.u32 %v1319, 7
        %v1321 = vsub.s32 %v1318, %v1320
        %v1322 = vrot.slane %v1315, %v1321
        %v1323 = vcombine.high %v1322, 0
        %v1324 = vcombine.low %v1292, %v1296
        %v1326 = vunpack.c.l.s4 1983009808
        %v1327 = vunpack.c.0.s8 %v1326
        %v1328 = vlaneseq
        %v1329 = vshrl.u32 %v1328, 7
        %v1330 = vsub.s32 %v1327, %v1329
        %v1331 = vrot.slane %v1324, %v1330
        %v1332 = vcombine.low %v1294, %v1298
        %v1334 = vunpack.c.l.s4 1983009808
        %v1335 = vunpack.c.0.s8 %v1334
        %v1336 = vlaneseq
        %v1337 = vshrl.u32 %v1336, 7
        %v1338 = vsub.s32 %v1335, %v1337
        %v1339 = vrot.slane %v1332, %v1338
        %v1340 = vcombine.low %v1331, %v1339
        %v1342 = vunpack.c.l.s4 1934713408
        %v1343 = vunpack.c.0.s8 %v1342
        %v1344 = vlaneseq
        %v1345 = vshrl.u32 %v1344, 7
        %v1346 = vsub.s32 %v1343, %v1345
        %v1347 = vrot.slane %v1340, %v1346
        %v1348 = vcombine.high %v1347, 0
        %v1351 = vpack.i.b16 %v1347, %v1322
        %v1352 = vshrl.u32 %v1322, 16
        %v1353 = vshrl.u32 %v1347, 16
        %v1354 = vpack.i.b16 %v1353, %v1352
        %v1357 = vpack.i.b16 %v1348, %v1323
        %v1358 = vshrl.u32 %v1323, 16
        %v1359 = vshrl.u32 %v1348, 16
        %v1360 = vpack.i.b16 %v1359, %v1358
        %1362 = vrot.lane.b32.xlu0 %v1114, 96
        %v1363 = vpop.permute.xlu0 %1362
        %1365 = vrot.lane.b32.xlu0 %v1114, 64
        %v1366 = vpop.permute.xlu0 %1365
        %1368 = vrot.lane.b32.xlu0 %v1114, 32
        %v1369 = vpop.permute.xlu0 %1368
        %v1371 = vcombine.low %v1114, %v1366
        %v1372 = vcombine.high %v1114, %v1366
        %v1374 = vunpack.c.l.s4 1983009808
        %v1375 = vunpack.c.0.s8 %v1374
        %v1376 = vlaneseq
        %v1377 = vshrl.u32 %v1376, 7
        %v1378 = vsub.s32 %v1375, %v1377
        %v1379 = vrot.slane %v1371, %v1378
        %v1381 = vunpack.c.l.s4 1983009808
        %v1382 = vunpack.c.0.s8 %v1381
        %v1383 = vlaneseq
        %v1384 = vshrl.u32 %v1383, 7
        %v1385 = vsub.s32 %v1382, %v1384
        %v1386 = vrot.slane %v1372, %v1385
        %v1387 = vcombine.low %v1363, %v1369
        %v1388 = vcombine.high %v1363, %v1369
        %v1390 = vunpack.c.l.s4 1983009808
        %v1391 = vunpack.c.0.s8 %v1390
        %v1392 = vlaneseq
        %v1393 = vshrl.u32 %v1392, 7
        %v1394 = vsub.s32 %v1391, %v1393
        %v1395 = vrot.slane %v1387, %v1394
        %v1397 = vunpack.c.l.s4 1983009808
        %v1398 = vunpack.c.0.s8 %v1397
        %v1399 = vlaneseq
        %v1400 = vshrl.u32 %v1399, 7
        %v1401 = vsub.s32 %v1398, %v1400
        %v1402 = vrot.slane %v1388, %v1401
        %v1403 = vcombine.low %v1379, %v1395
        %v1404 = vcombine.high %v1379, %v1395
        %v1406 = vunpack.c.l.s4 1934713408
        %v1407 = vunpack.c.0.s8 %v1406
        %v1408 = vlaneseq
        %v1409 = vshrl.u32 %v1408, 7
        %v1410 = vsub.s32 %v1407, %v1409
        %v1411 = vrot.slane %v1403, %v1410
        %v1413 = vunpack.c.l.s4 1934713408
        %v1414 = vunpack.c.0.s8 %v1413
        %v1415 = vlaneseq
        %v1416 = vshrl.u32 %v1415, 7
        %v1417 = vsub.s32 %v1414, %v1416
        %v1418 = vrot.slane %v1404, %v1417
        %v1419 = vcombine.low %v1386, %v1402
        %v1420 = vcombine.high %v1386, %v1402
        %v1422 = vunpack.c.l.s4 1934713408
        %v1423 = vunpack.c.0.s8 %v1422
        %v1424 = vlaneseq
        %v1425 = vshrl.u32 %v1424, 7
        %v1426 = vsub.s32 %v1423, %v1425
        %v1427 = vrot.slane %v1419, %v1426
        %v1429 = vunpack.c.l.s4 1934713408
        %v1430 = vunpack.c.0.s8 %v1429
        %v1431 = vlaneseq
        %v1432 = vshrl.u32 %v1431, 7
        %v1433 = vsub.s32 %v1430, %v1432
        %v1434 = vrot.slane %v1420, %v1433
        %v1435 = vcombine.high %v1411, 0.0
        %v1436 = vcombine.high %v1418, 0.0
        %v1437 = vcombine.high %v1427, 0.0
        %v1438 = vcombine.high %v1434, 0.0
        %v1439 = vpack.c.bf16 %v1411, %v1411
        %v1440 = vpack.c.bf16 %v1435, %v1435
        %v1441 = vpack.c.bf16 %v1418, %v1418
        %v1442 = vpack.c.bf16 %v1436, %v1436
        %v1443 = vpack.c.bf16 %v1427, %v1427
        %v1444 = vpack.c.bf16 %v1437, %v1437
        %v1445 = vpack.c.bf16 %v1434, %v1434
        %v1446 = vpack.c.bf16 %v1438, %v1438
        %v1447 = vcombine.low %v1439, %v1443
        %v1449 = vunpack.c.l.s4 1983009808
        %v1450 = vunpack.c.0.s8 %v1449
        %v1451 = vlaneseq
        %v1452 = vshrl.u32 %v1451, 7
        %v1453 = vsub.s32 %v1450, %v1452
        %v1454 = vrot.slane %v1447, %v1453
        %v1455 = vcombine.low %v1441, %v1445
        %v1457 = vunpack.c.l.s4 1983009808
        %v1458 = vunpack.c.0.s8 %v1457
        %v1459 = vlaneseq
        %v1460 = vshrl.u32 %v1459, 7
        %v1461 = vsub.s32 %v1458, %v1460
        %v1462 = vrot.slane %v1455, %v1461
        %v1463 = vcombine.low %v1454, %v1462
        %v1465 = vunpack.c.l.s4 1934713408
        %v1466 = vunpack.c.0.s8 %v1465
        %v1467 = vlaneseq
        %v1468 = vshrl.u32 %v1467, 7
        %v1469 = vsub.s32 %v1466, %v1468
        %v1470 = vrot.slane %v1463, %v1469
        %v1471 = vcombine.high %v1470, 0
        %v1472 = vcombine.low %v1440, %v1444
        %v1474 = vunpack.c.l.s4 1983009808
        %v1475 = vunpack.c.0.s8 %v1474
        %v1476 = vlaneseq
        %v1477 = vshrl.u32 %v1476, 7
        %v1478 = vsub.s32 %v1475, %v1477
        %v1479 = vrot.slane %v1472, %v1478
        %v1480 = vcombine.low %v1442, %v1446
        %v1482 = vunpack.c.l.s4 1983009808
        %v1483 = vunpack.c.0.s8 %v1482
        %v1484 = vlaneseq
        %v1485 = vshrl.u32 %v1484, 7
        %v1486 = vsub.s32 %v1483, %v1485
        %v1487 = vrot.slane %v1480, %v1486
        %v1488 = vcombine.low %v1479, %v1487
        %v1490 = vunpack.c.l.s4 1934713408
        %v1491 = vunpack.c.0.s8 %v1490
        %v1492 = vlaneseq
        %v1493 = vshrl.u32 %v1492, 7
        %v1494 = vsub.s32 %v1491, %v1493
        %v1495 = vrot.slane %v1488, %v1494
        %v1496 = vcombine.high %v1495, 0
        %v1499 = vpack.i.b16 %v1495, %v1470
        %v1500 = vshrl.u32 %v1470, 16
        %v1501 = vshrl.u32 %v1495, 16
        %v1502 = vpack.i.b16 %v1501, %v1500
        %v1505 = vpack.i.b16 %v1496, %v1471
        %v1506 = vshrl.u32 %v1471, 16
        %v1507 = vshrl.u32 %v1496, 16
        %v1508 = vpack.i.b16 %v1507, %v1506
        %1510 = vrot.lane.b32.xlu0 %v1208, 96
        %v1511 = vpop.permute.xlu0 %1510
        %1513 = vrot.lane.b32.xlu0 %v1208, 64
        %v1514 = vpop.permute.xlu0 %1513
        %1516 = vrot.lane.b32.xlu0 %v1208, 32
        %v1517 = vpop.permute.xlu0 %1516
        %v1519 = vcombine.low %v1208, %v1514
        %v1520 = vcombine.high %v1208, %v1514
        %v1522 = vunpack.c.l.s4 1983009808
        %v1523 = vunpack.c.0.s8 %v1522
        %v1524 = vlaneseq
        %v1525 = vshrl.u32 %v1524, 7
        %v1526 = vsub.s32 %v1523, %v1525
        %v1527 = vrot.slane %v1519, %v1526
        %v1529 = vunpack.c.l.s4 1983009808
        %v1530 = vunpack.c.0.s8 %v1529
        %v1531 = vlaneseq
        %v1532 = vshrl.u32 %v1531, 7
        %v1533 = vsub.s32 %v1530, %v1532
        %v1534 = vrot.slane %v1520, %v1533
        %v1535 = vcombine.low %v1511, %v1517
        %v1536 = vcombine.high %v1511, %v1517
        %v1538 = vunpack.c.l.s4 1983009808
        %v1539 = vunpack.c.0.s8 %v1538
        %v1540 = vlaneseq
        %v1541 = vshrl.u32 %v1540, 7
        %v1542 = vsub.s32 %v1539, %v1541
        %v1543 = vrot.slane %v1535, %v1542
        %v1545 = vunpack.c.l.s4 1983009808
        %v1546 = vunpack.c.0.s8 %v1545
        %v1547 = vlaneseq
        %v1548 = vshrl.u32 %v1547, 7
        %v1549 = vsub.s32 %v1546, %v1548
        %v1550 = vrot.slane %v1536, %v1549
        %v1551 = vcombine.low %v1527, %v1543
        %v1552 = vcombine.high %v1527, %v1543
        %v1554 = vunpack.c.l.s4 1934713408
        %v1555 = vunpack.c.0.s8 %v1554
        %v1556 = vlaneseq
        %v1557 = vshrl.u32 %v1556, 7
        %v1558 = vsub.s32 %v1555, %v1557
        %v1559 = vrot.slane %v1551, %v1558
        %v1561 = vunpack.c.l.s4 1934713408
        %v1562 = vunpack.c.0.s8 %v1561
        %v1563 = vlaneseq
        %v1564 = vshrl.u32 %v1563, 7
        %v1565 = vsub.s32 %v1562, %v1564
        %v1566 = vrot.slane %v1552, %v1565
        %v1567 = vcombine.low %v1534, %v1550
        %v1568 = vcombine.high %v1534, %v1550
        %v1570 = vunpack.c.l.s4 1934713408
        %v1571 = vunpack.c.0.s8 %v1570
        %v1572 = vlaneseq
        %v1573 = vshrl.u32 %v1572, 7
        %v1574 = vsub.s32 %v1571, %v1573
        %v1575 = vrot.slane %v1567, %v1574
        %v1577 = vunpack.c.l.s4 1934713408
        %v1578 = vunpack.c.0.s8 %v1577
        %v1579 = vlaneseq
        %v1580 = vshrl.u32 %v1579, 7
        %v1581 = vsub.s32 %v1578, %v1580
        %v1582 = vrot.slane %v1568, %v1581
        %v1583 = vcombine.high %v1559, 0.0
        %v1584 = vcombine.high %v1566, 0.0
        %v1585 = vcombine.high %v1575, 0.0
        %v1586 = vcombine.high %v1582, 0.0
        %v1587 = vpack.c.bf16 %v1559, %v1559
        %v1588 = vpack.c.bf16 %v1583, %v1583
        %v1589 = vpack.c.bf16 %v1566, %v1566
        %v1590 = vpack.c.bf16 %v1584, %v1584
        %v1591 = vpack.c.bf16 %v1575, %v1575
        %v1592 = vpack.c.bf16 %v1585, %v1585
        %v1593 = vpack.c.bf16 %v1582, %v1582
        %v1594 = vpack.c.bf16 %v1586, %v1586
        %v1595 = vcombine.low %v1587, %v1591
        %v1597 = vunpack.c.l.s4 1983009808
        %v1598 = vunpack.c.0.s8 %v1597
        %v1599 = vlaneseq
        %v1600 = vshrl.u32 %v1599, 7
        %v1601 = vsub.s32 %v1598, %v1600
        %v1602 = vrot.slane %v1595, %v1601
        %v1603 = vcombine.low %v1589, %v1593
        %v1605 = vunpack.c.l.s4 1983009808
        %v1606 = vunpack.c.0.s8 %v1605
        %v1607 = vlaneseq
        %v1608 = vshrl.u32 %v1607, 7
        %v1609 = vsub.s32 %v1606, %v1608
        %v1610 = vrot.slane %v1603, %v1609
        %v1611 = vcombine.low %v1602, %v1610
        %v1613 = vunpack.c.l.s4 1934713408
        %v1614 = vunpack.c.0.s8 %v1613
        %v1615 = vlaneseq
        %v1616 = vshrl.u32 %v1615, 7
        %v1617 = vsub.s32 %v1614, %v1616
        %v1618 = vrot.slane %v1611, %v1617
        %v1619 = vcombine.high %v1618, 0
        %v1620 = vcombine.low %v1588, %v1592
        %v1622 = vunpack.c.l.s4 1983009808
        %v1623 = vunpack.c.0.s8 %v1622
        %v1624 = vlaneseq
        %v1625 = vshrl.u32 %v1624, 7
        %v1626 = vsub.s32 %v1623, %v1625
        %v1627 = vrot.slane %v1620, %v1626
        %v1628 = vcombine.low %v1590, %v1594
        %v1630 = vunpack.c.l.s4 1983009808
        %v1631 = vunpack.c.0.s8 %v1630
        %v1632 = vlaneseq
        %v1633 = vshrl.u32 %v1632, 7
        %v1634 = vsub.s32 %v1631, %v1633
        %v1635 = vrot.slane %v1628, %v1634
        %v1636 = vcombine.low %v1627, %v1635
        %v1638 = vunpack.c.l.s4 1934713408
        %v1639 = vunpack.c.0.s8 %v1638
        %v1640 = vlaneseq
        %v1641 = vshrl.u32 %v1640, 7
        %v1642 = vsub.s32 %v1639, %v1641
        %v1643 = vrot.slane %v1636, %v1642
        %v1644 = vcombine.high %v1643, 0
        %v1647 = vpack.i.b16 %v1643, %v1618
        %v1648 = vshrl.u32 %v1618, 16
        %v1649 = vshrl.u32 %v1643, 16
        %v1650 = vpack.i.b16 %v1649, %v1648
        %v1653 = vpack.i.b16 %v1644, %v1619
        %v1654 = vshrl.u32 %v1619, 16
        %v1655 = vshrl.u32 %v1644, 16
        %v1656 = vpack.i.b16 %v1655, %v1654
        %vm1657 = vcmask 261120
        %v1659 = vsel %vm1657, %v1351, 0
        %v1662 = vsel %vm1657, %v1499, 0
        %1664 = vmatprep.subr.bf16.mxu0 0
        %1665 = vmatpush1.bf16.xpose.msra.mxu0 0
        %1666 = vmatprep.subr.bf16.mxu0 0
        %1667 = vmatpush1.bf16.xpose.msra.mxu0 0
        %1668 = vmatprep.subr.bf16.mxu0 0
        %1669 = vmatpush1.bf16.xpose.msra.mxu0 0
        %1670 = vmatprep.subr.bf16.mxu0 0
        %1671 = vmatpush1.bf16.xpose.msra.mxu0 0
        %1672 = vmatprep.subr.bf16.mxu0 0
        %1673 = vmatpush1.bf16.xpose.msra.mxu0 0
        %1674 = vmatprep.subr.bf16.mxu0 0
        %1675 = vmatpush1.bf16.xpose.msra.mxu0 0
        %1676 = vmatprep.subr.bf16.mxu0 0
        %1677 = vmatpush1.bf16.xpose.msra.mxu0 0
        %1678 = vmatprep.subr.bf16.mxu0 0
        %1679 = vmatpush1.bf16.xpose.msra.mxu0 %v1662
        %1680 = vmatprep.subr.bf16.mxu0 0
        %1681 = vmatpush2.bf16.xpose.msra.mxu0 0
        %1682 = vmatprep.subr.bf16.mxu0 0
        %1683 = vmatpush2.bf16.xpose.msra.mxu0 0
        %1684 = vmatprep.subr.bf16.mxu0 0
        %1685 = vmatpush2.bf16.xpose.msra.mxu0 0
        %1686 = vmatprep.subr.bf16.mxu0 0
        %1687 = vmatpush2.bf16.xpose.msra.mxu0 0
        %1688 = vmatprep.subr.bf16.mxu0 0
        %1689 = vmatpush2.bf16.xpose.msra.mxu0 0
        %1690 = vmatprep.subr.bf16.mxu0 0
        %1691 = vmatpush2.bf16.xpose.msra.mxu0 0
        %1692 = vmatprep.subr.bf16.mxu0 0
        %1693 = vmatpush2.bf16.xpose.msra.mxu0 0
        %1694 = vmatprep.subr.bf16.mxu0 0
        %1695 = vmatpush2.bf16.xpose.msra.mxu0 0
        %1696 = vmatprep.mubr.bf16.mxu0 0
        %1697 = vmatmul.mubr.bf16.gmra.mxu0 %v1659
        %v1698 = vpop.f32.mrf.mxu0
        %v1699 = vadd.f32 0.0, %v1698
        %v1700 = vpop.f32.mrf.mxu0
        %v1701 = vpop.f32.mrf.mxu0
        %v1702 = vpop.f32.mrf.mxu0
        %1703 = vdwg.mxu0
        %v1705 = vsel %vm1657, %v1354, 0
        %v1708 = vsel %vm1657, %v1502, 0
        %1710 = vmatprep.subr.bf16.mxu0 0
        %1711 = vmatpush1.bf16.xpose.msra.mxu0 0
        %1712 = vmatprep.subr.bf16.mxu0 0
        %1713 = vmatpush1.bf16.xpose.msra.mxu0 0
        %1714 = vmatprep.subr.bf16.mxu0 0
        %1715 = vmatpush1.bf16.xpose.msra.mxu0 0
        %1716 = vmatprep.subr.bf16.mxu0 0
        %1717 = vmatpush1.bf16.xpose.msra.mxu0 0
        %1718 = vmatprep.subr.bf16.mxu0 0
        %1719 = vmatpush1.bf16.xpose.msra.mxu0 0
        %1720 = vmatprep.subr.bf16.mxu0 0
        %1721 = vmatpush1.bf16.xpose.msra.mxu0 0
        %1722 = vmatprep.subr.bf16.mxu0 0
        %1723 = vmatpush1.bf16.xpose.msra.mxu0 0
        %1724 = vmatprep.subr.bf16.mxu0 0
        %1725 = vmatpush1.bf16.xpose.msra.mxu0 %v1708
        %1726 = vmatprep.subr.bf16.mxu0 0
        %1727 = vmatpush2.bf16.xpose.msra.mxu0 0
        %1728 = vmatprep.subr.bf16.mxu0 0
        %1729 = vmatpush2.bf16.xpose.msra.mxu0 0
        %1730 = vmatprep.subr.bf16.mxu0 0
        %1731 = vmatpush2.bf16.xpose.msra.mxu0 0
        %1732 = vmatprep.subr.bf16.mxu0 0
        %1733 = vmatpush2.bf16.xpose.msra.mxu0 0
        %1734 = vmatprep.subr.bf16.mxu0 0
        %1735 = vmatpush2.bf16.xpose.msra.mxu0 0
        %1736 = vmatprep.subr.bf16.mxu0 0
        %1737 = vmatpush2.bf16.xpose.msra.mxu0 0
        %1738 = vmatprep.subr.bf16.mxu0 0
        %1739 = vmatpush2.bf16.xpose.msra.mxu0 0
        %1740 = vmatprep.subr.bf16.mxu0 0
        %1741 = vmatpush2.bf16.xpose.msra.mxu0 0
        %1742 = vmatprep.mubr.bf16.mxu0 0
        %1743 = vmatmul.mubr.bf16.gmra.mxu0 %v1705
        %v1744 = vpop.f32.mrf.mxu0
        %v1745 = vadd.f32 0.0, %v1744
        %v1746 = vpop.f32.mrf.mxu0
        %v1747 = vpop.f32.mrf.mxu0
        %v1748 = vpop.f32.mrf.mxu0
        %1749 = vdwg.mxu0
        %v1751 = vsel %vm1657, %v1357, 0
        %v1754 = vsel %vm1657, %v1505, 0
        %1756 = vmatprep.subr.bf16.mxu0 0
        %1757 = vmatpush1.bf16.xpose.msra.mxu0 0
        %1758 = vmatprep.subr.bf16.mxu0 0
        %1759 = vmatpush1.bf16.xpose.msra.mxu0 0
        %1760 = vmatprep.subr.bf16.mxu0 0
        %1761 = vmatpush1.bf16.xpose.msra.mxu0 0
        %1762 = vmatprep.subr.bf16.mxu0 0
        %1763 = vmatpush1.bf16.xpose.msra.mxu0 0
        %1764 = vmatprep.subr.bf16.mxu0 0
        %1765 = vmatpush1.bf16.xpose.msra.mxu0 0
        %1766 = vmatprep.subr.bf16.mxu0 0
        %1767 = vmatpush1.bf16.xpose.msra.mxu0 0
        %1768 = vmatprep.subr.bf16.mxu0 0
        %1769 = vmatpush1.bf16.xpose.msra.mxu0 0
        %1770 = vmatprep.subr.bf16.mxu0 0
        %1771 = vmatpush1.bf16.xpose.msra.mxu0 %v1754
        %1772 = vmatprep.subr.bf16.mxu0 0
        %1773 = vmatpush2.bf16.xpose.msra.mxu0 0
        %1774 = vmatprep.subr.bf16.mxu0 0
        %1775 = vmatpush2.bf16.xpose.msra.mxu0 0
        %1776 = vmatprep.subr.bf16.mxu0 0
        %1777 = vmatpush2.bf16.xpose.msra.mxu0 0
        %1778 = vmatprep.subr.bf16.mxu0 0
        %1779 = vmatpush2.bf16.xpose.msra.mxu0 0
        %1780 = vmatprep.subr.bf16.mxu0 0
        %1781 = vmatpush2.bf16.xpose.msra.mxu0 0
        %1782 = vmatprep.subr.bf16.mxu0 0
        %1783 = vmatpush2.bf16.xpose.msra.mxu0 0
        %1784 = vmatprep.subr.bf16.mxu0 0
        %1785 = vmatpush2.bf16.xpose.msra.mxu0 0
        %1786 = vmatprep.subr.bf16.mxu0 0
        %1787 = vmatpush2.bf16.xpose.msra.mxu0 0
        %1788 = vmatprep.mubr.bf16.mxu0 0
        %1789 = vmatmul.mubr.bf16.gmra.mxu0 %v1751
        %v1790 = vpop.f32.mrf.mxu0
        %v1791 = vadd.f32 0.0, %v1790
        %v1792 = vpop.f32.mrf.mxu0
        %v1793 = vpop.f32.mrf.mxu0
        %v1794 = vpop.f32.mrf.mxu0
        %1795 = vdwg.mxu0
        %v1797 = vsel %vm1657, %v1360, 0
        %v1800 = vsel %vm1657, %v1508, 0
        %1802 = vmatprep.subr.bf16.mxu0 0
        %1803 = vmatpush1.bf16.xpose.msra.mxu0 0
        %1804 = vmatprep.subr.bf16.mxu0 0
        %1805 = vmatpush1.bf16.xpose.msra.mxu0 0
        %1806 = vmatprep.subr.bf16.mxu0 0
        %1807 = vmatpush1.bf16.xpose.msra.mxu0 0
        %1808 = vmatprep.subr.bf16.mxu0 0
        %1809 = vmatpush1.bf16.xpose.msra.mxu0 0
        %1810 = vmatprep.subr.bf16.mxu0 0
        %1811 = vmatpush1.bf16.xpose.msra.mxu0 0
        %1812 = vmatprep.subr.bf16.mxu0 0
        %1813 = vmatpush1.bf16.xpose.msra.mxu0 0
        %1814 = vmatprep.subr.bf16.mxu0 0
        %1815 = vmatpush1.bf16.xpose.msra.mxu0 0
        %1816 = vmatprep.subr.bf16.mxu0 0
        %1817 = vmatpush1.bf16.xpose.msra.mxu0 %v1800
        %1818 = vmatprep.subr.bf16.mxu0 0
        %1819 = vmatpush2.bf16.xpose.msra.mxu0 0
        %1820 = vmatprep.subr.bf16.mxu0 0
        %1821 = vmatpush2.bf16.xpose.msra.mxu0 0
        %1822 = vmatprep.subr.bf16.mxu0 0
        %1823 = vmatpush2.bf16.xpose.msra.mxu0 0
        %1824 = vmatprep.subr.bf16.mxu0 0
        %1825 = vmatpush2.bf16.xpose.msra.mxu0 0
        %1826 = vmatprep.subr.bf16.mxu0 0
        %1827 = vmatpush2.bf16.xpose.msra.mxu0 0
        %1828 = vmatprep.subr.bf16.mxu0 0
        %1829 = vmatpush2.bf16.xpose.msra.mxu0 0
        %1830 = vmatprep.subr.bf16.mxu0 0
        %1831 = vmatpush2.bf16.xpose.msra.mxu0 0
        %1832 = vmatprep.subr.bf16.mxu0 0
        %1833 = vmatpush2.bf16.xpose.msra.mxu0 0
        %1834 = vmatprep.mubr.bf16.mxu0 0
        %1835 = vmatmul.mubr.bf16.gmra.mxu0 %v1797
        %v1836 = vpop.f32.mrf.mxu0
        %v1837 = vadd.f32 0.0, %v1836
        %v1838 = vpop.f32.mrf.mxu0
        %v1839 = vpop.f32.mrf.mxu0
        %v1840 = vpop.f32.mrf.mxu0
        %1841 = vdwg.mxu0
        %v1842 = vlaneseq
        %v1843 = vshrl.u32 %v1842, 7
        %v1844 = vlaneseq
        %v1845 = vand.u32 %v1844, 127
        %vm1846 = vcmp.ge.s32.totalorder %v1843, %v1845
        %v1847 = vsel %vm1846, 1, 0
        %vm1848 = vcmp.eq.s32.totalorder %v1847, 1
        %v1849 = vsel %vm1848, %v1699, -inf
        %v1850 = vsel %vm1848, %v1745, -inf
        %v1851 = vsel %vm1848, %v1791, -inf
        %v1852 = vsel %vm1848, %v1837, -inf
        %vm1853 = vcmask 64512
        %v1854 = vsel %vm1853, %v1849, -inf
        %1855 = vmax.xlane.f32.xlu0 %v1854
        %v1856 = vpop.xlane.xlu0 %1855
        %v1857 = vsel %vm1853, %v1850, -inf
        %1858 = vmax.xlane.f32.xlu0 %v1857
        %v1859 = vpop.xlane.xlu0 %1858
        %v1860 = vsel %vm1853, %v1851, -inf
        %1861 = vmax.xlane.f32.xlu0 %v1860
        %v1862 = vpop.xlane.xlu0 %1861
        %v1863 = vsel %vm1853, %v1852, -inf
        %1864 = vmax.xlane.f32.xlu0 %v1863
        %v1865 = vpop.xlane.xlu0 %1864
        %v1866 = vsub.f32 %v1849, %v1856
        %v1867 = vsub.f32 %v1850, %v1859
        %v1868 = vsub.f32 %v1851, %v1862
        %v1869 = vsub.f32 %v1852, %v1865
        %v1870 = vmul.f32 %v1866, 1.442695
        %v1871 = vpow.pop %v1870
        %v1872 = vmul.f32 %v1867, 1.442695
        %v1873 = vpow.pop %v1872
        %v1874 = vmul.f32 %v1868, 1.442695
        %v1875 = vpow.pop %v1874
        %v1876 = vmul.f32 %v1869, 1.442695
        %v1877 = vpow.pop %v1876
        %v1878 = vsel %vm1853, %v1871, 0.0
        %1879 = vadd.xlane.f32.xlu0 %v1878
        %v1880 = vpop.xlane.xlu0 %1879
        %v1881 = vsel %vm1853, %v1873, 0.0
        %1882 = vadd.xlane.f32.xlu0 %v1881
        %v1883 = vpop.xlane.xlu0 %1882
        %v1884 = vsel %vm1853, %v1875, 0.0
        %1885 = vadd.xlane.f32.xlu0 %v1884
        %v1886 = vpop.xlane.xlu0 %1885
        %v1887 = vsel %vm1853, %v1877, 0.0
        %1888 = vadd.xlane.f32.xlu0 %v1887
        %v1889 = vpop.xlane.xlu0 %1888
        %v1890 = vrcp.pop %v1880
        %v1891 = vrcp.pop %v1883
        %v1892 = vrcp.pop %v1886
        %v1893 = vrcp.pop %v1889
        %v1894 = vmul.f32 %v1871, %v1890
        %v1895 = vmul.f32 %v1873, %v1891
        %v1896 = vmul.f32 %v1875, %v1892
        %v1897 = vmul.f32 %v1877, %v1893
        %v1898 = vpack.c.bf16 %v1894, %v1894
        %v1899 = vpack.c.bf16 %v1895, %v1895
        %v1900 = vpack.c.bf16 %v1896, %v1896
        %v1901 = vpack.c.bf16 %v1897, %v1897
        %v1903 = vsel %vm1853, %v1898, 0
        %vm1905 = vcmask 1043456
        %v1907 = vsel %vm1905, %v1647, 0
        %1909 = vmatprep.subr.bf16.mxu0 0
        %1910 = vmatpush1.bf16.msra.mxu0 0
        %1911 = vmatprep.subr.bf16.mxu0 0
        %1912 = vmatpush1.bf16.msra.mxu0 0
        %1913 = vmatprep.subr.bf16.mxu0 0
        %1914 = vmatpush1.bf16.msra.mxu0 0
        %1915 = vmatprep.subr.bf16.mxu0 0
        %1916 = vmatpush1.bf16.msra.mxu0 0
        %1917 = vmatprep.subr.bf16.mxu0 0
        %1918 = vmatpush1.bf16.msra.mxu0 0
        %1919 = vmatprep.subr.bf16.mxu0 0
        %1920 = vmatpush1.bf16.msra.mxu0 0
        %1921 = vmatprep.subr.bf16.mxu0 0
        %1922 = vmatpush1.bf16.msra.mxu0 0
        %1923 = vmatprep.subr.bf16.mxu0 0
        %1924 = vmatpush1.bf16.msra.mxu0 %v1907
        %1925 = vmatprep.subr.bf16.mxu0 0
        %1926 = vmatpush2.bf16.msra.mxu0 0
        %1927 = vmatprep.subr.bf16.mxu0 0
        %1928 = vmatpush2.bf16.msra.mxu0 0
        %1929 = vmatprep.subr.bf16.mxu0 0
        %1930 = vmatpush2.bf16.msra.mxu0 0
        %1931 = vmatprep.subr.bf16.mxu0 0
        %1932 = vmatpush2.bf16.msra.mxu0 0
        %1933 = vmatprep.subr.bf16.mxu0 0
        %1934 = vmatpush2.bf16.msra.mxu0 0
        %1935 = vmatprep.subr.bf16.mxu0 0
        %1936 = vmatpush2.bf16.msra.mxu0 0
        %1937 = vmatprep.subr.bf16.mxu0 0
        %1938 = vmatpush2.bf16.msra.mxu0 0
        %1939 = vmatprep.subr.bf16.mxu0 0
        %1940 = vmatpush2.bf16.msra.mxu0 0
        %1941 = vmatprep.mubr.bf16.mxu0 0
        %1942 = vmatmul.mubr.bf16.gmra.mxu0 %v1903
        %v1943 = vpop.f32.mrf.mxu0
        %v1944 = vadd.f32 0.0, %v1943
        %v1945 = vpop.f32.mrf.mxu0
        %v1946 = vpop.f32.mrf.mxu0
        %v1947 = vpop.f32.mrf.mxu0
        %1948 = vdwg.mxu0
        %v1950 = vsel %vm1853, %v1899, 0
        %v1953 = vsel %vm1905, %v1650, 0
        %1955 = vmatprep.subr.bf16.mxu0 0
        %1956 = vmatpush1.bf16.msra.mxu0 0
        %1957 = vmatprep.subr.bf16.mxu0 0
        %1958 = vmatpush1.bf16.msra.mxu0 0
        %1959 = vmatprep.subr.bf16.mxu0 0
        %1960 = vmatpush1.bf16.msra.mxu0 0
        %1961 = vmatprep.subr.bf16.mxu0 0
        %1962 = vmatpush1.bf16.msra.mxu0 0
        %1963 = vmatprep.subr.bf16.mxu0 0
        %1964 = vmatpush1.bf16.msra.mxu0 0
        %1965 = vmatprep.subr.bf16.mxu0 0
        %1966 = vmatpush1.bf16.msra.mxu0 0
        %1967 = vmatprep.subr.bf16.mxu0 0
        %1968 = vmatpush1.bf16.msra.mxu0 0
        %1969 = vmatprep.subr.bf16.mxu0 0
        %1970 = vmatpush1.bf16.msra.mxu0 %v1953
        %1971 = vmatprep.subr.bf16.mxu0 0
        %1972 = vmatpush2.bf16.msra.mxu0 0
        %1973 = vmatprep.subr.bf16.mxu0 0
        %1974 = vmatpush2.bf16.msra.mxu0 0
        %1975 = vmatprep.subr.bf16.mxu0 0
        %1976 = vmatpush2.bf16.msra.mxu0 0
        %1977 = vmatprep.subr.bf16.mxu0 0
        %1978 = vmatpush2.bf16.msra.mxu0 0
        %1979 = vmatprep.subr.bf16.mxu0 0
        %1980 = vmatpush2.bf16.msra.mxu0 0
        %1981 = vmatprep.subr.bf16.mxu0 0
        %1982 = vmatpush2.bf16.msra.mxu0 0
        %1983 = vmatprep.subr.bf16.mxu0 0
        %1984 = vmatpush2.bf16.msra.mxu0 0
        %1985 = vmatprep.subr.bf16.mxu0 0
        %1986 = vmatpush2.bf16.msra.mxu0 0
        %1987 = vmatprep.mubr.bf16.mxu0 0
        %1988 = vmatmul.mubr.bf16.gmra.mxu0 %v1950
        %v1989 = vpop.f32.mrf.mxu0
        %v1990 = vadd.f32 0.0, %v1989
        %v1991 = vpop.f32.mrf.mxu0
        %v1992 = vpop.f32.mrf.mxu0
        %v1993 = vpop.f32.mrf.mxu0
        %1994 = vdwg.mxu0
        %v1996 = vsel %vm1853, %v1900, 0
        %v1999 = vsel %vm1905, %v1653, 0
        %2001 = vmatprep.subr.bf16.mxu0 0
        %2002 = vmatpush1.bf16.msra.mxu0 0
        %2003 = vmatprep.subr.bf16.mxu0 0
        %2004 = vmatpush1.bf16.msra.mxu0 0
        %2005 = vmatprep.subr.bf16.mxu0 0
        %2006 = vmatpush1.bf16.msra.mxu0 0
        %2007 = vmatprep.subr.bf16.mxu0 0
        %2008 = vmatpush1.bf16.msra.mxu0 0
        %2009 = vmatprep.subr.bf16.mxu0 0
        %2010 = vmatpush1.bf16.msra.mxu0 0
        %2011 = vmatprep.subr.bf16.mxu0 0
        %2012 = vmatpush1.bf16.msra.mxu0 0
        %2013 = vmatprep.subr.bf16.mxu0 0
        %2014 = vmatpush1.bf16.msra.mxu0 0
        %2015 = vmatprep.subr.bf16.mxu0 0
        %2016 = vmatpush1.bf16.msra.mxu0 %v1999
        %2017 = vmatprep.subr.bf16.mxu0 0
        %2018 = vmatpush2.bf16.msra.mxu0 0
        %2019 = vmatprep.subr.bf16.mxu0 0
        %2020 = vmatpush2.bf16.msra.mxu0 0
        %2021 = vmatprep.subr.bf16.mxu0 0
        %2022 = vmatpush2.bf16.msra.mxu0 0
        %2023 = vmatprep.subr.bf16.mxu0 0
        %2024 = vmatpush2.bf16.msra.mxu0 0
        %2025 = vmatprep.subr.bf16.mxu0 0
        %2026 = vmatpush2.bf16.msra.mxu0 0
        %2027 = vmatprep.subr.bf16.mxu0 0
        %2028 = vmatpush2.bf16.msra.mxu0 0
        %2029 = vmatprep.subr.bf16.mxu0 0
        %2030 = vmatpush2.bf16.msra.mxu0 0
        %2031 = vmatprep.subr.bf16.mxu0 0
        %2032 = vmatpush2.bf16.msra.mxu0 0
        %2033 = vmatprep.mubr.bf16.mxu0 0
        %2034 = vmatmul.mubr.bf16.gmra.mxu0 %v1996
        %v2035 = vpop.f32.mrf.mxu0
        %v2036 = vadd.f32 0.0, %v2035
        %v2037 = vpop.f32.mrf.mxu0
        %v2038 = vpop.f32.mrf.mxu0
        %v2039 = vpop.f32.mrf.mxu0
        %2040 = vdwg.mxu0
        %v2042 = vsel %vm1853, %v1901, 0
        %v2045 = vsel %vm1905, %v1656, 0
        %2047 = vmatprep.subr.bf16.mxu0 0
        %2048 = vmatpush1.bf16.msra.mxu0 0
        %2049 = vmatprep.subr.bf16.mxu0 0
        %2050 = vmatpush1.bf16.msra.mxu0 0
        %2051 = vmatprep.subr.bf16.mxu0 0
        %2052 = vmatpush1.bf16.msra.mxu0 0
        %2053 = vmatprep.subr.bf16.mxu0 0
        %2054 = vmatpush1.bf16.msra.mxu0 0
        %2055 = vmatprep.subr.bf16.mxu0 0
        %2056 = vmatpush1.bf16.msra.mxu0 0
        %2057 = vmatprep.subr.bf16.mxu0 0
        %2058 = vmatpush1.bf16.msra.mxu0 0
        %2059 = vmatprep.subr.bf16.mxu0 0
        %2060 = vmatpush1.bf16.msra.mxu0 0
        %2061 = vmatprep.subr.bf16.mxu0 0
        %2062 = vmatpush1.bf16.msra.mxu0 %v2045
        %2063 = vmatprep.subr.bf16.mxu0 0
        %2064 = vmatpush2.bf16.msra.mxu0 0
        %2065 = vmatprep.subr.bf16.mxu0 0
        %2066 = vmatpush2.bf16.msra.mxu0 0
        %2067 = vmatprep.subr.bf16.mxu0 0
        %2068 = vmatpush2.bf16.msra.mxu0 0
        %2069 = vmatprep.subr.bf16.mxu0 0
        %2070 = vmatpush2.bf16.msra.mxu0 0
        %2071 = vmatprep.subr.bf16.mxu0 0
        %2072 = vmatpush2.bf16.msra.mxu0 0
        %2073 = vmatprep.subr.bf16.mxu0 0
        %2074 = vmatpush2.bf16.msra.mxu0 0
        %2075 = vmatprep.subr.bf16.mxu0 0
        %2076 = vmatpush2.bf16.msra.mxu0 0
        %2077 = vmatprep.subr.bf16.mxu0 0
        %2078 = vmatpush2.bf16.msra.mxu0 0
        %2079 = vmatprep.mubr.bf16.mxu0 0
        %2080 = vmatmul.mubr.bf16.gmra.mxu0 %v2042
        %v2081 = vpop.f32.mrf.mxu0
        %v2082 = vadd.f32 0.0, %v2081
        %v2083 = vpop.f32.mrf.mxu0
        %v2084 = vpop.f32.mrf.mxu0
        %v2085 = vpop.f32.mrf.mxu0
        %2086 = vdwg.mxu0
        %v2087 = vcombine.low %v1944, %v2036
        %v2088 = vcombine.high %v1944, %v2036
        %v2090 = vunpack.c.l.s4 1983009808
        %v2091 = vunpack.c.0.s8 %v2090
        %v2092 = vlaneseq
        %v2093 = vshrl.u32 %v2092, 7
        %v2094 = vsub.s32 %v2091, %v2093
        %v2095 = vrot.slane %v2087, %v2094
        %v2097 = vunpack.c.l.s4 1983009808
        %v2098 = vunpack.c.0.s8 %v2097
        %v2099 = vlaneseq
        %v2100 = vshrl.u32 %v2099, 7
        %v2101 = vsub.s32 %v2098, %v2100
        %v2102 = vrot.slane %v2088, %v2101
        %v2103 = vcombine.low %v1990, %v2082
        %v2104 = vcombine.high %v1990, %v2082
        %v2106 = vunpack.c.l.s4 1983009808
        %v2107 = vunpack.c.0.s8 %v2106
        %v2108 = vlaneseq
        %v2109 = vshrl.u32 %v2108, 7
        %v2110 = vsub.s32 %v2107, %v2109
        %v2111 = vrot.slane %v2103, %v2110
        %v2113 = vunpack.c.l.s4 1983009808
        %v2114 = vunpack.c.0.s8 %v2113
        %v2115 = vlaneseq
        %v2116 = vshrl.u32 %v2115, 7
        %v2117 = vsub.s32 %v2114, %v2116
        %v2118 = vrot.slane %v2104, %v2117
        %v2119 = vcombine.low %v2095, %v2111
        %v2120 = vcombine.high %v2095, %v2111
        %v2122 = vunpack.c.l.s4 1934713408
        %v2123 = vunpack.c.0.s8 %v2122
        %v2124 = vlaneseq
        %v2125 = vshrl.u32 %v2124, 7
        %v2126 = vsub.s32 %v2123, %v2125
        %v2127 = vrot.slane %v2119, %v2126
        %v2129 = vunpack.c.l.s4 1934713408
        %v2130 = vunpack.c.0.s8 %v2129
        %v2131 = vlaneseq
        %v2132 = vshrl.u32 %v2131, 7
        %v2133 = vsub.s32 %v2130, %v2132
        %v2134 = vrot.slane %v2120, %v2133
        %v2135 = vcombine.low %v2102, %v2118
        %v2136 = vcombine.high %v2102, %v2118
        %v2138 = vunpack.c.l.s4 1934713408
        %v2139 = vunpack.c.0.s8 %v2138
        %v2140 = vlaneseq
        %v2141 = vshrl.u32 %v2140, 7
        %v2142 = vsub.s32 %v2139, %v2141
        %v2143 = vrot.slane %v2135, %v2142
        %v2145 = vunpack.c.l.s4 1934713408
        %v2146 = vunpack.c.0.s8 %v2145
        %v2147 = vlaneseq
        %v2148 = vshrl.u32 %v2147, 7
        %v2149 = vsub.s32 %v2146, %v2148
        %v2150 = vrot.slane %v2136, %v2149
        %v2151 = vcombine.high %v2127, 0.0
        %v2152 = vcombine.high %v2134, 0.0
        %v2153 = vcombine.high %v2143, 0.0
        %v2154 = vcombine.high %v2150, 0.0
        %v2155 = vcombine.low %v2127, %v2134
        %v2157 = vunpack.c.l.s4 1983009808
        %v2158 = vunpack.c.0.s8 %v2157
        %v2159 = vlaneseq
        %v2160 = vshrl.u32 %v2159, 7
        %v2161 = vsub.s32 %v2158, %v2160
        %v2162 = vrot.slane %v2155, %v2161
        %v2163 = vcombine.low %v2151, %v2152
        %v2165 = vunpack.c.l.s4 1983009808
        %v2166 = vunpack.c.0.s8 %v2165
        %v2167 = vlaneseq
        %v2168 = vshrl.u32 %v2167, 7
        %v2169 = vsub.s32 %v2166, %v2168
        %v2170 = vrot.slane %v2163, %v2169
        %v2171 = vcombine.low %v2143, %v2150
        %v2173 = vunpack.c.l.s4 1983009808
        %v2174 = vunpack.c.0.s8 %v2173
        %v2175 = vlaneseq
        %v2176 = vshrl.u32 %v2175, 7
        %v2177 = vsub.s32 %v2174, %v2176
        %v2178 = vrot.slane %v2171, %v2177
        %v2179 = vcombine.low %v2153, %v2154
        %v2181 = vunpack.c.l.s4 1983009808
        %v2182 = vunpack.c.0.s8 %v2181
        %v2183 = vlaneseq
        %v2184 = vshrl.u32 %v2183, 7
        %v2185 = vsub.s32 %v2182, %v2184
        %v2186 = vrot.slane %v2179, %v2185
        %v2187 = vcombine.low %v2162, %v2170
        %v2188 = vcombine.high %v2162, %v2170
        %v2190 = vunpack.c.l.s4 1934713408
        %v2191 = vunpack.c.0.s8 %v2190
        %v2192 = vlaneseq
        %v2193 = vshrl.u32 %v2192, 7
        %v2194 = vsub.s32 %v2191, %v2193
        %v2195 = vrot.slane %v2187, %v2194
        %v2197 = vunpack.c.l.s4 1934713408
        %v2198 = vunpack.c.0.s8 %v2197
        %v2199 = vlaneseq
        %v2200 = vshrl.u32 %v2199, 7
        %v2201 = vsub.s32 %v2198, %v2200
        %v2202 = vrot.slane %v2188, %v2201
        %v2203 = vcombine.low %v2178, %v2186
        %v2204 = vcombine.high %v2178, %v2186
        %v2206 = vunpack.c.l.s4 1934713408
        %v2207 = vunpack.c.0.s8 %v2206
        %v2208 = vlaneseq
        %v2209 = vshrl.u32 %v2208, 7
        %v2210 = vsub.s32 %v2207, %v2209
        %v2211 = vrot.slane %v2203, %v2210
        %v2213 = vunpack.c.l.s4 1934713408
        %v2214 = vunpack.c.0.s8 %v2213
        %v2215 = vlaneseq
        %v2216 = vshrl.u32 %v2215, 7
        %v2217 = vsub.s32 %v2214, %v2216
        %v2218 = vrot.slane %v2204, %v2217
        %v2219 = vcombine.low %v2195, %v2211
        %v2220 = vcombine.high %v2195, %v2211
        %v2221 = vcombine.low %v2202, %v2218
        %v2222 = vcombine.high %v2202, %v2218
        %2224 = vrot.lane.b32.xlu0 %v2220, 32
        %v2225 = vpop.permute.xlu0 %2224
        %2228 = vrot.lane.b32.xlu0 %v2221, 64
        %v2229 = vpop.permute.xlu0 %2228
        %2232 = vrot.lane.b32.xlu0 %v2222, 96
        %v2233 = vpop.permute.xlu0 %2232
        %v2235 = vsel %vm1657, %v2219, %v2225
        %vm2236 = vcmask 523264
        %v2237 = vsel %vm2236, %v2235, %v2229
        %vm2238 = vcmask 785408
        %v2239 = vsel %vm2238, %v2237, %v2233
        %v2240 = vpack.c.bf16 %v2239, %v2239
        %v2242 = vlaneseq
        %v2243 = vshrl.u32 %v2242, 7
        %v2244 = vsub.s32 0, %v2243
        %v2245 = vrot.slane %v930, %v2244
        %v2263 = vunpack.c.l.b16 %v914
        %v2264 = vunpack.c.l.b16 %v915
        %v2265 = vunpack.c.l.b16 %v916
        %v2266 = vunpack.c.l.b16 %v917
        %v2267 = vunpack.c.l.b16 %v918
        %v2268 = vunpack.c.l.b16 %v919
        %v2269 = vunpack.c.l.b16 %v920
        %v2270 = vunpack.c.l.b16 %v921
        %v2271 = vunpack.c.l.b16 %v922
        %v2272 = vunpack.c.l.b16 %v923
        %v2273 = vunpack.c.l.b16 %v924
        %v2274 = vunpack.c.l.b16 %v925
        %v2275 = vunpack.c.l.b16 %v926
        %v2276 = vunpack.c.l.b16 %v927
        %v2277 = vunpack.c.l.b16 %v928
        %v2278 = vunpack.c.l.b16 %v929
        %v2279 = vpack.c.b16 %v2264, %v2263
        %v2280 = vpack.c.b16 %v2266, %v2265
        %v2281 = vpack.c.b16 %v2268, %v2267
        %v2282 = vpack.c.b16 %v2270, %v2269
        %v2283 = vpack.c.b16 %v2272, %v2271
        %v2284 = vpack.c.b16 %v2274, %v2273
        %v2285 = vpack.c.b16 %v2276, %v2275
        %v2286 = vpack.c.b16 %v2278, %v2277
        %2295 = vmatprep.subr.bf16.mxu0 0
        %2296 = vmatpush1.bf16.msra.mxu0 %v2286
        %2297 = vmatprep.subr.bf16.mxu0 0
        %2298 = vmatpush1.bf16.msra.mxu0 %v2285
        %2299 = vmatprep.subr.bf16.mxu0 0
        %2300 = vmatpush1.bf16.msra.mxu0 %v2284
        %2301 = vmatprep.subr.bf16.mxu0 0
        %2302 = vmatpush1.bf16.msra.mxu0 %v2283
        %2303 = vmatprep.subr.bf16.mxu0 0
        %2304 = vmatpush1.bf16.msra.mxu0 %v2282
        %2305 = vmatprep.subr.bf16.mxu0 0
        %2306 = vmatpush1.bf16.msra.mxu0 %v2281
        %2307 = vmatprep.subr.bf16.mxu0 0
        %2308 = vmatpush1.bf16.msra.mxu0 %v2280
        %2309 = vmatprep.subr.bf16.mxu0 0
        %2310 = vmatpush1.bf16.msra.mxu0 %v2279
        %2311 = vmatprep.subr.bf16.mxu0 0
        %2312 = vmatpush2.bf16.msra.mxu0 0
        %2313 = vmatprep.subr.bf16.mxu0 0
        %2314 = vmatpush2.bf16.msra.mxu0 0
        %2315 = vmatprep.subr.bf16.mxu0 0
        %2316 = vmatpush2.bf16.msra.mxu0 0
        %2317 = vmatprep.subr.bf16.mxu0 0
        %2318 = vmatpush2.bf16.msra.mxu0 0
        %2319 = vmatprep.subr.bf16.mxu0 0
        %2320 = vmatpush2.bf16.msra.mxu0 0
        %2321 = vmatprep.subr.bf16.mxu0 0
        %2322 = vmatpush2.bf16.msra.mxu0 0
        %2323 = vmatprep.subr.bf16.mxu0 0
        %2324 = vmatpush2.bf16.msra.mxu0 0
        %2325 = vmatprep.subr.bf16.mxu0 0
        %2326 = vmatpush2.bf16.msra.mxu0 0
        %2327 = vmatprep.mubr.bf16.mxu0 0
        %2328 = vmatmul.mubr.bf16.gmra.mxu0 %v2240
        %v2329 = vpop.f32.mrf.mxu0
        %v2330 = vadd.f32 %v2245, %v2329
        %v2331 = vpop.f32.mrf.mxu0
        %v2332 = vpop.f32.mrf.mxu0
        %v2333 = vpop.f32.mrf.mxu0
        %2334 = vdwg.mxu0
        %v2335 = vld [vmem:[%s22] sm:$0x1]
        %v2336 = vld [vmem:[%s23] sm:$0x1]
        %v2337 = vadd.f32 %v859, %v2330
        %2338 = vadd.xlane.f32.xlu0 %v2337
        %v2339 = vpop.xlane.xlu0 %2338
        %v2340 = vrcp.pop 128.0
        %v2341 = vmul.f32 %v2339, %v2340
        %v2342 = vsub.f32 %v2337, %v2341
        %v2343 = vmul.f32 %v2342, %v2342
        %2344 = vadd.xlane.f32.xlu0 %v2343
        %v2345 = vpop.xlane.xlu0 %2344
        %v2346 = vmul.f32 %v2345, %v2340
        %v2347 = vadd.f32 %v2346, 1e-05
        %v2348 = vrsqrt.pop %v2347
        %v2349 = vmul.f32 %v2342, %v2348
        %v2351 = vlaneseq
        %v2352 = vshrl.u32 %v2351, 7
        %v2353 = vsub.s32 0, %v2352
        %v2354 = vrot.slane %v2335, %v2353
        %v2356 = vmul.f32 %v2349, %v2354
        %v2358 = vlaneseq
        %v2359 = vshrl.u32 %v2358, 7
        %v2360 = vsub.s32 0, %v2359
        %v2361 = vrot.slane %v2336, %v2360
        %v2363 = vadd.f32 %v2356, %v2361
        %v2364 = vpack.c.bf16 %v2363, %v2363
        %v2365 = vld [vmem:[%s10] sm:$0xf]
        %v2366 = vld [vmem:[%s10 + $0x4] sm:$0xf]
        %v2367 = vld [vmem:[%s10 + $0x8] sm:$0xf]
        %v2368 = vld [vmem:[%s10 + $0xc] sm:$0xf]
        %v2369 = vld [vmem:[%s10 + $0x10] sm:$0xf]
        %v2370 = vld [vmem:[%s10 + $0x14] sm:$0xf]
        %v2371 = vld [vmem:[%s10 + $0x18] sm:$0xf]
        %v2372 = vld [vmem:[%s10 + $0x1c] sm:$0xf]
        %v2373 = vld [vmem:[%s10 + $0x20] sm:$0xf]
        %v2374 = vld [vmem:[%s10 + $0x24] sm:$0xf]
        %v2375 = vld [vmem:[%s10 + $0x28] sm:$0xf]
        %v2376 = vld [vmem:[%s10 + $0x2c] sm:$0xf]
        %v2377 = vld [vmem:[%s10 + $0x30] sm:$0xf]
        %v2378 = vld [vmem:[%s10 + $0x34] sm:$0xf]
        %v2379 = vld [vmem:[%s10 + $0x38] sm:$0xf]
        %v2380 = vld [vmem:[%s10 + $0x3c] sm:$0xf]
        %v2381 = vld [vmem:[%s11] sm:$0x1]
        %v2382 = vld [vmem:[%s12] sm:$0xf]
        %v2383 = vld [vmem:[%s12 + $0x4] sm:$0xf]
        %v2384 = vld [vmem:[%s12 + $0x8] sm:$0xf]
        %v2385 = vld [vmem:[%s12 + $0xc] sm:$0xf]
        %v2386 = vld [vmem:[%s12 + $0x10] sm:$0xf]
        %v2387 = vld [vmem:[%s12 + $0x14] sm:$0xf]
        %v2388 = vld [vmem:[%s12 + $0x18] sm:$0xf]
        %v2389 = vld [vmem:[%s12 + $0x1c] sm:$0xf]
        %v2390 = vld [vmem:[%s12 + $0x20] sm:$0xf]
        %v2391 = vld [vmem:[%s12 + $0x24] sm:$0xf]
        %v2392 = vld [vmem:[%s12 + $0x28] sm:$0xf]
        %v2393 = vld [vmem:[%s12 + $0x2c] sm:$0xf]
        %v2394 = vld [vmem:[%s12 + $0x30] sm:$0xf]
        %v2395 = vld [vmem:[%s12 + $0x34] sm:$0xf]
        %v2396 = vld [vmem:[%s12 + $0x38] sm:$0xf]
        %v2397 = vld [vmem:[%s12 + $0x3c] sm:$0xf]
        %v2398 = vld [vmem:[%s13] sm:$0x1]
        %v2399 = vld [vmem:[%s14] sm:$0xf]
        %v2400 = vld [vmem:[%s14 + $0x4] sm:$0xf]
        %v2401 = vld [vmem:[%s14 + $0x8] sm:$0xf]
        %v2402 = vld [vmem:[%s14 + $0xc] sm:$0xf]
        %v2403 = vld [vmem:[%s14 + $0x10] sm:$0xf]
        %v2404 = vld [vmem:[%s14 + $0x14] sm:$0xf]
        %v2405 = vld [vmem:[%s14 + $0x18] sm:$0xf]
        %v2406 = vld [vmem:[%s14 + $0x1c] sm:$0xf]
        %v2407 = vld [vmem:[%s14 + $0x20] sm:$0xf]
        %v2408 = vld [vmem:[%s14 + $0x24] sm:$0xf]
        %v2409 = vld [vmem:[%s14 + $0x28] sm:$0xf]
        %v2410 = vld [vmem:[%s14 + $0x2c] sm:$0xf]
        %v2411 = vld [vmem:[%s14 + $0x30] sm:$0xf]
        %v2412 = vld [vmem:[%s14 + $0x34] sm:$0xf]
        %v2413 = vld [vmem:[%s14 + $0x38] sm:$0xf]
        %v2414 = vld [vmem:[%s14 + $0x3c] sm:$0xf]
        %v2415 = vld [vmem:[%s15] sm:$0x1]
        %v2416 = vld [vmem:[%s16] sm:$0xf]
        %v2417 = vld [vmem:[%s16 + $0x4] sm:$0xf]
        %v2418 = vld [vmem:[%s16 + $0x8] sm:$0xf]
        %v2419 = vld [vmem:[%s16 + $0xc] sm:$0xf]
        %v2420 = vld [vmem:[%s16 + $0x10] sm:$0xf]
        %v2421 = vld [vmem:[%s16 + $0x14] sm:$0xf]
        %v2422 = vld [vmem:[%s16 + $0x18] sm:$0xf]
        %v2423 = vld [vmem:[%s16 + $0x1c] sm:$0xf]
        %v2424 = vld [vmem:[%s16 + $0x20] sm:$0xf]
        %v2425 = vld [vmem:[%s16 + $0x24] sm:$0xf]
        %v2426 = vld [vmem:[%s16 + $0x28] sm:$0xf]
        %v2427 = vld [vmem:[%s16 + $0x2c] sm:$0xf]
        %v2428 = vld [vmem:[%s16 + $0x30] sm:$0xf]
        %v2429 = vld [vmem:[%s16 + $0x34] sm:$0xf]
        %v2430 = vld [vmem:[%s16 + $0x38] sm:$0xf]
        %v2431 = vld [vmem:[%s16 + $0x3c] sm:$0xf]
        %v2432 = vld [vmem:[%s17] sm:$0x1]
        %v2434 = vlaneseq
        %v2435 = vshrl.u32 %v2434, 7
        %v2436 = vsub.s32 0, %v2435
        %v2437 = vrot.slane %v2381, %v2436
        %v2455 = vunpack.c.l.b16 %v2365
        %v2456 = vunpack.c.l.b16 %v2366
        %v2457 = vunpack.c.l.b16 %v2367
        %v2458 = vunpack.c.l.b16 %v2368
        %v2459 = vunpack.c.l.b16 %v2369
        %v2460 = vunpack.c.l.b16 %v2370
        %v2461 = vunpack.c.l.b16 %v2371
        %v2462 = vunpack.c.l.b16 %v2372
        %v2463 = vunpack.c.l.b16 %v2373
        %v2464 = vunpack.c.l.b16 %v2374
        %v2465 = vunpack.c.l.b16 %v2375
        %v2466 = vunpack.c.l.b16 %v2376
        %v2467 = vunpack.c.l.b16 %v2377
        %v2468 = vunpack.c.l.b16 %v2378
        %v2469 = vunpack.c.l.b16 %v2379
        %v2470 = vunpack.c.l.b16 %v2380
        %v2471 = vpack.c.b16 %v2456, %v2455
        %v2472 = vpack.c.b16 %v2458, %v2457
        %v2473 = vpack.c.b16 %v2460, %v2459
        %v2474 = vpack.c.b16 %v2462, %v2461
        %v2475 = vpack.c.b16 %v2464, %v2463
        %v2476 = vpack.c.b16 %v2466, %v2465
        %v2477 = vpack.c.b16 %v2468, %v2467
        %v2478 = vpack.c.b16 %v2470, %v2469
        %2487 = vmatprep.subr.bf16.mxu0 0
        %2488 = vmatpush1.bf16.msra.mxu0 %v2478
        %2489 = vmatprep.subr.bf16.mxu0 0
        %2490 = vmatpush1.bf16.msra.mxu0 %v2477
        %2491 = vmatprep.subr.bf16.mxu0 0
        %2492 = vmatpush1.bf16.msra.mxu0 %v2476
        %2493 = vmatprep.subr.bf16.mxu0 0
        %2494 = vmatpush1.bf16.msra.mxu0 %v2475
        %2495 = vmatprep.subr.bf16.mxu0 0
        %2496 = vmatpush1.bf16.msra.mxu0 %v2474
        %2497 = vmatprep.subr.bf16.mxu0 0
        %2498 = vmatpush1.bf16.msra.mxu0 %v2473
        %2499 = vmatprep.subr.bf16.mxu0 0
        %2500 = vmatpush1.bf16.msra.mxu0 %v2472
        %2501 = vmatprep.subr.bf16.mxu0 0
        %2502 = vmatpush1.bf16.msra.mxu0 %v2471
        %2503 = vmatprep.subr.bf16.mxu0 0
        %2504 = vmatpush2.bf16.msra.mxu0 0
        %2505 = vmatprep.subr.bf16.mxu0 0
        %2506 = vmatpush2.bf16.msra.mxu0 0
        %2507 = vmatprep.subr.bf16.mxu0 0
        %2508 = vmatpush2.bf16.msra.mxu0 0
        %2509 = vmatprep.subr.bf16.mxu0 0
        %2510 = vmatpush2.bf16.msra.mxu0 0
        %2511 = vmatprep.subr.bf16.mxu0 0
        %2512 = vmatpush2.bf16.msra.mxu0 0
        %2513 = vmatprep.subr.bf16.mxu0 0
        %2514 = vmatpush2.bf16.msra.mxu0 0
        %2515 = vmatprep.subr.bf16.mxu0 0
        %2516 = vmatpush2.bf16.msra.mxu0 0
        %2517 = vmatprep.subr.bf16.mxu0 0
        %2518 = vmatpush2.bf16.msra.mxu0 0
        %2519 = vmatprep.mubr.bf16.mxu0 0
        %2520 = vmatmul.mubr.bf16.gmra.mxu0 %v2364
        %v2521 = vpop.f32.mrf.mxu0
        %v2522 = vadd.f32 %v2437, %v2521
        %v2523 = vpop.f32.mrf.mxu0
        %v2524 = vpop.f32.mrf.mxu0
        %v2525 = vpop.f32.mrf.mxu0
        %2526 = vdwg.mxu0
        %v2528 = vlaneseq
        %v2529 = vshrl.u32 %v2528, 7
        %v2530 = vsub.s32 0, %v2529
        %v2531 = vrot.slane %v2398, %v2530
        %v2549 = vunpack.c.l.b16 %v2382
        %v2550 = vunpack.c.l.b16 %v2383
        %v2551 = vunpack.c.l.b16 %v2384
        %v2552 = vunpack.c.l.b16 %v2385
        %v2553 = vunpack.c.l.b16 %v2386
        %v2554 = vunpack.c.l.b16 %v2387
        %v2555 = vunpack.c.l.b16 %v2388
        %v2556 = vunpack.c.l.b16 %v2389
        %v2557 = vunpack.c.l.b16 %v2390
        %v2558 = vunpack.c.l.b16 %v2391
        %v2559 = vunpack.c.l.b16 %v2392
        %v2560 = vunpack.c.l.b16 %v2393
        %v2561 = vunpack.c.l.b16 %v2394
        %v2562 = vunpack.c.l.b16 %v2395
        %v2563 = vunpack.c.l.b16 %v2396
        %v2564 = vunpack.c.l.b16 %v2397
        %v2565 = vpack.c.b16 %v2550, %v2549
        %v2566 = vpack.c.b16 %v2552, %v2551
        %v2567 = vpack.c.b16 %v2554, %v2553
        %v2568 = vpack.c.b16 %v2556, %v2555
        %v2569 = vpack.c.b16 %v2558, %v2557
        %v2570 = vpack.c.b16 %v2560, %v2559
        %v2571 = vpack.c.b16 %v2562, %v2561
        %v2572 = vpack.c.b16 %v2564, %v2563
        %2581 = vmatprep.subr.bf16.mxu0 0
        %2582 = vmatpush1.bf16.msra.mxu0 %v2572
        %2583 = vmatprep.subr.bf16.mxu0 0
        %2584 = vmatpush1.bf16.msra.mxu0 %v2571
        %2585 = vmatprep.subr.bf16.mxu0 0
        %2586 = vmatpush1.bf16.msra.mxu0 %v2570
        %2587 = vmatprep.subr.bf16.mxu0 0
        %2588 = vmatpush1.bf16.msra.mxu0 %v2569
        %2589 = vmatprep.subr.bf16.mxu0 0
        %2590 = vmatpush1.bf16.msra.mxu0 %v2568
        %2591 = vmatprep.subr.bf16.mxu0 0
        %2592 = vmatpush1.bf16.msra.mxu0 %v2567
        %2593 = vmatprep.subr.bf16.mxu0 0
        %2594 = vmatpush1.bf16.msra.mxu0 %v2566
        %2595 = vmatprep.subr.bf16.mxu0 0
        %2596 = vmatpush1.bf16.msra.mxu0 %v2565
        %2597 = vmatprep.subr.bf16.mxu0 0
        %2598 = vmatpush2.bf16.msra.mxu0 0
        %2599 = vmatprep.subr.bf16.mxu0 0
        %2600 = vmatpush2.bf16.msra.mxu0 0
        %2601 = vmatprep.subr.bf16.mxu0 0
        %2602 = vmatpush2.bf16.msra.mxu0 0
        %2603 = vmatprep.subr.bf16.mxu0 0
        %2604 = vmatpush2.bf16.msra.mxu0 0
        %2605 = vmatprep.subr.bf16.mxu0 0
        %2606 = vmatpush2.bf16.msra.mxu0 0
        %2607 = vmatprep.subr.bf16.mxu0 0
        %2608 = vmatpush2.bf16.msra.mxu0 0
        %2609 = vmatprep.subr.bf16.mxu0 0
        %2610 = vmatpush2.bf16.msra.mxu0 0
        %2611 = vmatprep.subr.bf16.mxu0 0
        %2612 = vmatpush2.bf16.msra.mxu0 0
        %2613 = vmatprep.mubr.bf16.mxu0 0
        %2614 = vmatmul.mubr.bf16.gmra.mxu0 %v861
        %v2615 = vpop.f32.mrf.mxu0
        %v2616 = vadd.f32 %v2531, %v2615
        %v2617 = vpop.f32.mrf.mxu0
        %v2618 = vpop.f32.mrf.mxu0
        %v2619 = vpop.f32.mrf.mxu0
        %2620 = vdwg.mxu0
        %v2622 = vlaneseq
        %v2623 = vshrl.u32 %v2622, 7
        %v2624 = vsub.s32 0, %v2623
        %v2625 = vrot.slane %v2415, %v2624
        %v2643 = vunpack.c.l.b16 %v2399
        %v2644 = vunpack.c.l.b16 %v2400
        %v2645 = vunpack.c.l.b16 %v2401
        %v2646 = vunpack.c.l.b16 %v2402
        %v2647 = vunpack.c.l.b16 %v2403
        %v2648 = vunpack.c.l.b16 %v2404
        %v2649 = vunpack.c.l.b16 %v2405
        %v2650 = vunpack.c.l.b16 %v2406
        %v2651 = vunpack.c.l.b16 %v2407
        %v2652 = vunpack.c.l.b16 %v2408
        %v2653 = vunpack.c.l.b16 %v2409
        %v2654 = vunpack.c.l.b16 %v2410
        %v2655 = vunpack.c.l.b16 %v2411
        %v2656 = vunpack.c.l.b16 %v2412
        %v2657 = vunpack.c.l.b16 %v2413
        %v2658 = vunpack.c.l.b16 %v2414
        %v2659 = vpack.c.b16 %v2644, %v2643
        %v2660 = vpack.c.b16 %v2646, %v2645
        %v2661 = vpack.c.b16 %v2648, %v2647
        %v2662 = vpack.c.b16 %v2650, %v2649
        %v2663 = vpack.c.b16 %v2652, %v2651
        %v2664 = vpack.c.b16 %v2654, %v2653
        %v2665 = vpack.c.b16 %v2656, %v2655
        %v2666 = vpack.c.b16 %v2658, %v2657
        %2675 = vmatprep.subr.bf16.mxu0 0
        %2676 = vmatpush1.bf16.msra.mxu0 %v2666
        %2677 = vmatprep.subr.bf16.mxu0 0
        %2678 = vmatpush1.bf16.msra.mxu0 %v2665
        %2679 = vmatprep.subr.bf16.mxu0 0
        %2680 = vmatpush1.bf16.msra.mxu0 %v2664
        %2681 = vmatprep.subr.bf16.mxu0 0
        %2682 = vmatpush1.bf16.msra.mxu0 %v2663
        %2683 = vmatprep.subr.bf16.mxu0 0
        %2684 = vmatpush1.bf16.msra.mxu0 %v2662
        %2685 = vmatprep.subr.bf16.mxu0 0
        %2686 = vmatpush1.bf16.msra.mxu0 %v2661
        %2687 = vmatprep.subr.bf16.mxu0 0
        %2688 = vmatpush1.bf16.msra.mxu0 %v2660
        %2689 = vmatprep.subr.bf16.mxu0 0
        %2690 = vmatpush1.bf16.msra.mxu0 %v2659
        %2691 = vmatprep.subr.bf16.mxu0 0
        %2692 = vmatpush2.bf16.msra.mxu0 0
        %2693 = vmatprep.subr.bf16.mxu0 0
        %2694 = vmatpush2.bf16.msra.mxu0 0
        %2695 = vmatprep.subr.bf16.mxu0 0
        %2696 = vmatpush2.bf16.msra.mxu0 0
        %2697 = vmatprep.subr.bf16.mxu0 0
        %2698 = vmatpush2.bf16.msra.mxu0 0
        %2699 = vmatprep.subr.bf16.mxu0 0
        %2700 = vmatpush2.bf16.msra.mxu0 0
        %2701 = vmatprep.subr.bf16.mxu0 0
        %2702 = vmatpush2.bf16.msra.mxu0 0
        %2703 = vmatprep.subr.bf16.mxu0 0
        %2704 = vmatpush2.bf16.msra.mxu0 0
        %2705 = vmatprep.subr.bf16.mxu0 0
        %2706 = vmatpush2.bf16.msra.mxu0 0
        %2707 = vmatprep.mubr.bf16.mxu0 0
        %2708 = vmatmul.mubr.bf16.gmra.mxu0 %v861
        %v2709 = vpop.f32.mrf.mxu0
        %v2710 = vadd.f32 %v2625, %v2709
        %v2711 = vpop.f32.mrf.mxu0
        %v2712 = vpop.f32.mrf.mxu0
        %v2713 = vpop.f32.mrf.mxu0
        %2714 = vdwg.mxu0
        %2716 = vrot.lane.b32.xlu0 %v2522, 96
        %v2717 = vpop.permute.xlu0 %2716
        %2719 = vrot.lane.b32.xlu0 %v2522, 64
        %v2720 = vpop.permute.xlu0 %2719
        %2722 = vrot.lane.b32.xlu0 %v2522, 32
        %v2723 = vpop.permute.xlu0 %2722
        %v2725 = vcombine.low %v2522, %v2720
        %v2726 = vcombine.high %v2522, %v2720
        %v2728 = vunpack.c.l.s4 1983009808
        %v2729 = vunpack.c.0.s8 %v2728
        %v2730 = vlaneseq
        %v2731 = vshrl.u32 %v2730, 7
        %v2732 = vsub.s32 %v2729, %v2731
        %v2733 = vrot.slane %v2725, %v2732
        %v2735 = vunpack.c.l.s4 1983009808
        %v2736 = vunpack.c.0.s8 %v2735
        %v2737 = vlaneseq
        %v2738 = vshrl.u32 %v2737, 7
        %v2739 = vsub.s32 %v2736, %v2738
        %v2740 = vrot.slane %v2726, %v2739
        %v2741 = vcombine.low %v2717, %v2723
        %v2742 = vcombine.high %v2717, %v2723
        %v2744 = vunpack.c.l.s4 1983009808
        %v2745 = vunpack.c.0.s8 %v2744
        %v2746 = vlaneseq
        %v2747 = vshrl.u32 %v2746, 7
        %v2748 = vsub.s32 %v2745, %v2747
        %v2749 = vrot.slane %v2741, %v2748
        %v2751 = vunpack.c.l.s4 1983009808
        %v2752 = vunpack.c.0.s8 %v2751
        %v2753 = vlaneseq
        %v2754 = vshrl.u32 %v2753, 7
        %v2755 = vsub.s32 %v2752, %v2754
        %v2756 = vrot.slane %v2742, %v2755
        %v2757 = vcombine.low %v2733, %v2749
        %v2758 = vcombine.high %v2733, %v2749
        %v2760 = vunpack.c.l.s4 1934713408
        %v2761 = vunpack.c.0.s8 %v2760
        %v2762 = vlaneseq
        %v2763 = vshrl.u32 %v2762, 7
        %v2764 = vsub.s32 %v2761, %v2763
        %v2765 = vrot.slane %v2757, %v2764
        %v2767 = vunpack.c.l.s4 1934713408
        %v2768 = vunpack.c.0.s8 %v2767
        %v2769 = vlaneseq
        %v2770 = vshrl.u32 %v2769, 7
        %v2771 = vsub.s32 %v2768, %v2770
        %v2772 = vrot.slane %v2758, %v2771
        %v2773 = vcombine.low %v2740, %v2756
        %v2774 = vcombine.high %v2740, %v2756
        %v2776 = vunpack.c.l.s4 1934713408
        %v2777 = vunpack.c.0.s8 %v2776
        %v2778 = vlaneseq
        %v2779 = vshrl.u32 %v2778, 7
        %v2780 = vsub.s32 %v2777, %v2779
        %v2781 = vrot.slane %v2773, %v2780
        %v2783 = vunpack.c.l.s4 1934713408
        %v2784 = vunpack.c.0.s8 %v2783
        %v2785 = vlaneseq
        %v2786 = vshrl.u32 %v2785, 7
        %v2787 = vsub.s32 %v2784, %v2786
        %v2788 = vrot.slane %v2774, %v2787
        %v2789 = vcombine.high %v2765, 0.0
        %v2790 = vcombine.high %v2772, 0.0
        %v2791 = vcombine.high %v2781, 0.0
        %v2792 = vcombine.high %v2788, 0.0
        %v2793 = vpack.c.bf16 %v2765, %v2765
        %v2794 = vpack.c.bf16 %v2789, %v2789
        %v2795 = vpack.c.bf16 %v2772, %v2772
        %v2796 = vpack.c.bf16 %v2790, %v2790
        %v2797 = vpack.c.bf16 %v2781, %v2781
        %v2798 = vpack.c.bf16 %v2791, %v2791
        %v2799 = vpack.c.bf16 %v2788, %v2788
        %v2800 = vpack.c.bf16 %v2792, %v2792
        %v2801 = vcombine.low %v2793, %v2797
        %v2803 = vunpack.c.l.s4 1983009808
        %v2804 = vunpack.c.0.s8 %v2803
        %v2805 = vlaneseq
        %v2806 = vshrl.u32 %v2805, 7
        %v2807 = vsub.s32 %v2804, %v2806
        %v2808 = vrot.slane %v2801, %v2807
        %v2809 = vcombine.low %v2795, %v2799
        %v2811 = vunpack.c.l.s4 1983009808
        %v2812 = vunpack.c.0.s8 %v2811
        %v2813 = vlaneseq
        %v2814 = vshrl.u32 %v2813, 7
        %v2815 = vsub.s32 %v2812, %v2814
        %v2816 = vrot.slane %v2809, %v2815
        %v2817 = vcombine.low %v2808, %v2816
        %v2819 = vunpack.c.l.s4 1934713408
        %v2820 = vunpack.c.0.s8 %v2819
        %v2821 = vlaneseq
        %v2822 = vshrl.u32 %v2821, 7
        %v2823 = vsub.s32 %v2820, %v2822
        %v2824 = vrot.slane %v2817, %v2823
        %v2825 = vcombine.high %v2824, 0
        %v2826 = vcombine.low %v2794, %v2798
        %v2828 = vunpack.c.l.s4 1983009808
        %v2829 = vunpack.c.0.s8 %v2828
        %v2830 = vlaneseq
        %v2831 = vshrl.u32 %v2830, 7
        %v2832 = vsub.s32 %v2829, %v2831
        %v2833 = vrot.slane %v2826, %v2832
        %v2834 = vcombine.low %v2796, %v2800
        %v2836 = vunpack.c.l.s4 1983009808
        %v2837 = vunpack.c.0.s8 %v2836
        %v2838 = vlaneseq
        %v2839 = vshrl.u32 %v2838, 7
        %v2840 = vsub.s32 %v2837, %v2839
        %v2841 = vrot.slane %v2834, %v2840
        %v2842 = vcombine.low %v2833, %v2841
        %v2844 = vunpack.c.l.s4 1934713408
        %v2845 = vunpack.c.0.s8 %v2844
        %v2846 = vlaneseq
        %v2847 = vshrl.u32 %v2846, 7
        %v2848 = vsub.s32 %v2845, %v2847
        %v2849 = vrot.slane %v2842, %v2848
        %v2850 = vcombine.high %v2849, 0
        %v2853 = vpack.i.b16 %v2849, %v2824
        %v2854 = vshrl.u32 %v2824, 16
        %v2855 = vshrl.u32 %v2849, 16
        %v2856 = vpack.i.b16 %v2855, %v2854
        %v2859 = vpack.i.b16 %v2850, %v2825
        %v2860 = vshrl.u32 %v2825, 16
        %v2861 = vshrl.u32 %v2850, 16
        %v2862 = vpack.i.b16 %v2861, %v2860
        %2864 = vrot.lane.b32.xlu0 %v2616, 96
        %v2865 = vpop.permute.xlu0 %2864
        %2867 = vrot.lane.b32.xlu0 %v2616, 64
        %v2868 = vpop.permute.xlu0 %2867
        %2870 = vrot.lane.b32.xlu0 %v2616, 32
        %v2871 = vpop.permute.xlu0 %2870
        %v2873 = vcombine.low %v2616, %v2868
        %v2874 = vcombine.high %v2616, %v2868
        %v2876 = vunpack.c.l.s4 1983009808
        %v2877 = vunpack.c.0.s8 %v2876
        %v2878 = vlaneseq
        %v2879 = vshrl.u32 %v2878, 7
        %v2880 = vsub.s32 %v2877, %v2879
        %v2881 = vrot.slane %v2873, %v2880
        %v2883 = vunpack.c.l.s4 1983009808
        %v2884 = vunpack.c.0.s8 %v2883
        %v2885 = vlaneseq
        %v2886 = vshrl.u32 %v2885, 7
        %v2887 = vsub.s32 %v2884, %v2886
        %v2888 = vrot.slane %v2874, %v2887
        %v2889 = vcombine.low %v2865, %v2871
        %v2890 = vcombine.high %v2865, %v2871
        %v2892 = vunpack.c.l.s4 1983009808
        %v2893 = vunpack.c.0.s8 %v2892
        %v2894 = vlaneseq
        %v2895 = vshrl.u32 %v2894, 7
        %v2896 = vsub.s32 %v2893, %v2895
        %v2897 = vrot.slane %v2889, %v2896
        %v2899 = vunpack.c.l.s4 1983009808
        %v2900 = vunpack.c.0.s8 %v2899
        %v2901 = vlaneseq
        %v2902 = vshrl.u32 %v2901, 7
        %v2903 = vsub.s32 %v2900, %v2902
        %v2904 = vrot.slane %v2890, %v2903
        %v2905 = vcombine.low %v2881, %v2897
        %v2906 = vcombine.high %v2881, %v2897
        %v2908 = vunpack.c.l.s4 1934713408
        %v2909 = vunpack.c.0.s8 %v2908
        %v2910 = vlaneseq
        %v2911 = vshrl.u32 %v2910, 7
        %v2912 = vsub.s32 %v2909, %v2911
        %v2913 = vrot.slane %v2905, %v2912
        %v2915 = vunpack.c.l.s4 1934713408
        %v2916 = vunpack.c.0.s8 %v2915
        %v2917 = vlaneseq
        %v2918 = vshrl.u32 %v2917, 7
        %v2919 = vsub.s32 %v2916, %v2918
        %v2920 = vrot.slane %v2906, %v2919
        %v2921 = vcombine.low %v2888, %v2904
        %v2922 = vcombine.high %v2888, %v2904
        %v2924 = vunpack.c.l.s4 1934713408
        %v2925 = vunpack.c.0.s8 %v2924
        %v2926 = vlaneseq
        %v2927 = vshrl.u32 %v2926, 7
        %v2928 = vsub.s32 %v2925, %v2927
        %v2929 = vrot.slane %v2921, %v2928
        %v2931 = vunpack.c.l.s4 1934713408
        %v2932 = vunpack.c.0.s8 %v2931
        %v2933 = vlaneseq
        %v2934 = vshrl.u32 %v2933, 7
        %v2935 = vsub.s32 %v2932, %v2934
        %v2936 = vrot.slane %v2922, %v2935
        %v2937 = vcombine.high %v2913, 0.0
        %v2938 = vcombine.high %v2920, 0.0
        %v2939 = vcombine.high %v2929, 0.0
        %v2940 = vcombine.high %v2936, 0.0
        %v2941 = vpack.c.bf16 %v2913, %v2913
        %v2942 = vpack.c.bf16 %v2937, %v2937
        %v2943 = vpack.c.bf16 %v2920, %v2920
        %v2944 = vpack.c.bf16 %v2938, %v2938
        %v2945 = vpack.c.bf16 %v2929, %v2929
        %v2946 = vpack.c.bf16 %v2939, %v2939
        %v2947 = vpack.c.bf16 %v2936, %v2936
        %v2948 = vpack.c.bf16 %v2940, %v2940
        %v2949 = vcombine.low %v2941, %v2945
        %v2951 = vunpack.c.l.s4 1983009808
        %v2952 = vunpack.c.0.s8 %v2951
        %v2953 = vlaneseq
        %v2954 = vshrl.u32 %v2953, 7
        %v2955 = vsub.s32 %v2952, %v2954
        %v2956 = vrot.slane %v2949, %v2955
        %v2957 = vcombine.low %v2943, %v2947
        %v2959 = vunpack.c.l.s4 1983009808
        %v2960 = vunpack.c.0.s8 %v2959
        %v2961 = vlaneseq
        %v2962 = vshrl.u32 %v2961, 7
        %v2963 = vsub.s32 %v2960, %v2962
        %v2964 = vrot.slane %v2957, %v2963
        %v2965 = vcombine.low %v2956, %v2964
        %v2967 = vunpack.c.l.s4 1934713408
        %v2968 = vunpack.c.0.s8 %v2967
        %v2969 = vlaneseq
        %v2970 = vshrl.u32 %v2969, 7
        %v2971 = vsub.s32 %v2968, %v2970
        %v2972 = vrot.slane %v2965, %v2971
        %v2973 = vcombine.high %v2972, 0
        %v2974 = vcombine.low %v2942, %v2946
        %v2976 = vunpack.c.l.s4 1983009808
        %v2977 = vunpack.c.0.s8 %v2976
        %v2978 = vlaneseq
        %v2979 = vshrl.u32 %v2978, 7
        %v2980 = vsub.s32 %v2977, %v2979
        %v2981 = vrot.slane %v2974, %v2980
        %v2982 = vcombine.low %v2944, %v2948
        %v2984 = vunpack.c.l.s4 1983009808
        %v2985 = vunpack.c.0.s8 %v2984
        %v2986 = vlaneseq
        %v2987 = vshrl.u32 %v2986, 7
        %v2988 = vsub.s32 %v2985, %v2987
        %v2989 = vrot.slane %v2982, %v2988
        %v2990 = vcombine.low %v2981, %v2989
        %v2992 = vunpack.c.l.s4 1934713408
        %v2993 = vunpack.c.0.s8 %v2992
        %v2994 = vlaneseq
        %v2995 = vshrl.u32 %v2994, 7
        %v2996 = vsub.s32 %v2993, %v2995
        %v2997 = vrot.slane %v2990, %v2996
        %v2998 = vcombine.high %v2997, 0
        %v3001 = vpack.i.b16 %v2997, %v2972
        %v3002 = vshrl.u32 %v2972, 16
        %v3003 = vshrl.u32 %v2997, 16
        %v3004 = vpack.i.b16 %v3003, %v3002
        %v3007 = vpack.i.b16 %v2998, %v2973
        %v3008 = vshrl.u32 %v2973, 16
        %v3009 = vshrl.u32 %v2998, 16
        %v3010 = vpack.i.b16 %v3009, %v3008
        %3012 = vrot.lane.b32.xlu0 %v2710, 96
        %v3013 = vpop.permute.xlu0 %3012
        %3015 = vrot.lane.b32.xlu0 %v2710, 64
        %v3016 = vpop.permute.xlu0 %3015
        %3018 = vrot.lane.b32.xlu0 %v2710, 32
        %v3019 = vpop.permute.xlu0 %3018
        %v3021 = vcombine.low %v2710, %v3016
        %v3022 = vcombine.high %v2710, %v3016
        %v3024 = vunpack.c.l.s4 1983009808
        %v3025 = vunpack.c.0.s8 %v3024
        %v3026 = vlaneseq
        %v3027 = vshrl.u32 %v3026, 7
        %v3028 = vsub.s32 %v3025, %v3027
        %v3029 = vrot.slane %v3021, %v3028
        %v3031 = vunpack.c.l.s4 1983009808
        %v3032 = vunpack.c.0.s8 %v3031
        %v3033 = vlaneseq
        %v3034 = vshrl.u32 %v3033, 7
        %v3035 = vsub.s32 %v3032, %v3034
        %v3036 = vrot.slane %v3022, %v3035
        %v3037 = vcombine.low %v3013, %v3019
        %v3038 = vcombine.high %v3013, %v3019
        %v3040 = vunpack.c.l.s4 1983009808
        %v3041 = vunpack.c.0.s8 %v3040
        %v3042 = vlaneseq
        %v3043 = vshrl.u32 %v3042, 7
        %v3044 = vsub.s32 %v3041, %v3043
        %v3045 = vrot.slane %v3037, %v3044
        %v3047 = vunpack.c.l.s4 1983009808
        %v3048 = vunpack.c.0.s8 %v3047
        %v3049 = vlaneseq
        %v3050 = vshrl.u32 %v3049, 7
        %v3051 = vsub.s32 %v3048, %v3050
        %v3052 = vrot.slane %v3038, %v3051
        %v3053 = vcombine.low %v3029, %v3045
        %v3054 = vcombine.high %v3029, %v3045
        %v3056 = vunpack.c.l.s4 1934713408
        %v3057 = vunpack.c.0.s8 %v3056
        %v3058 = vlaneseq
        %v3059 = vshrl.u32 %v3058, 7
        %v3060 = vsub.s32 %v3057, %v3059
        %v3061 = vrot.slane %v3053, %v3060
        %v3063 = vunpack.c.l.s4 1934713408
        %v3064 = vunpack.c.0.s8 %v3063
        %v3065 = vlaneseq
        %v3066 = vshrl.u32 %v3065, 7
        %v3067 = vsub.s32 %v3064, %v3066
        %v3068 = vrot.slane %v3054, %v3067
        %v3069 = vcombine.low %v3036, %v3052
        %v3070 = vcombine.high %v3036, %v3052
        %v3072 = vunpack.c.l.s4 1934713408
        %v3073 = vunpack.c.0.s8 %v3072
        %v3074 = vlaneseq
        %v3075 = vshrl.u32 %v3074, 7
        %v3076 = vsub.s32 %v3073, %v3075
        %v3077 = vrot.slane %v3069, %v3076
        %v3079 = vunpack.c.l.s4 1934713408
        %v3080 = vunpack.c.0.s8 %v3079
        %v3081 = vlaneseq
        %v3082 = vshrl.u32 %v3081, 7
        %v3083 = vsub.s32 %v3080, %v3082
        %v3084 = vrot.slane %v3070, %v3083
        %v3085 = vcombine.high %v3061, 0.0
        %v3086 = vcombine.high %v3068, 0.0
        %v3087 = vcombine.high %v3077, 0.0
        %v3088 = vcombine.high %v3084, 0.0
        %v3089 = vpack.c.bf16 %v3061, %v3061
        %v3090 = vpack.c.bf16 %v3085, %v3085
        %v3091 = vpack.c.bf16 %v3068, %v3068
        %v3092 = vpack.c.bf16 %v3086, %v3086
        %v3093 = vpack.c.bf16 %v3077, %v3077
        %v3094 = vpack.c.bf16 %v3087, %v3087
        %v3095 = vpack.c.bf16 %v3084, %v3084
        %v3096 = vpack.c.bf16 %v3088, %v3088
        %v3097 = vcombine.low %v3089, %v3093
        %v3099 = vunpack.c.l.s4 1983009808
        %v3100 = vunpack.c.0.s8 %v3099
        %v3101 = vlaneseq
        %v3102 = vshrl.u32 %v3101, 7
        %v3103 = vsub.s32 %v3100, %v3102
        %v3104 = vrot.slane %v3097, %v3103
        %v3105 = vcombine.low %v3091, %v3095
        %v3107 = vunpack.c.l.s4 1983009808
        %v3108 = vunpack.c.0.s8 %v3107
        %v3109 = vlaneseq
        %v3110 = vshrl.u32 %v3109, 7
        %v3111 = vsub.s32 %v3108, %v3110
        %v3112 = vrot.slane %v3105, %v3111
        %v3113 = vcombine.low %v3104, %v3112
        %v3115 = vunpack.c.l.s4 1934713408
        %v3116 = vunpack.c.0.s8 %v3115
        %v3117 = vlaneseq
        %v3118 = vshrl.u32 %v3117, 7
        %v3119 = vsub.s32 %v3116, %v3118
        %v3120 = vrot.slane %v3113, %v3119
        %v3121 = vcombine.high %v3120, 0
        %v3122 = vcombine.low %v3090, %v3094
        %v3124 = vunpack.c.l.s4 1983009808
        %v3125 = vunpack.c.0.s8 %v3124
        %v3126 = vlaneseq
        %v3127 = vshrl.u32 %v3126, 7
        %v3128 = vsub.s32 %v3125, %v3127
        %v3129 = vrot.slane %v3122, %v3128
        %v3130 = vcombine.low %v3092, %v3096
        %v3132 = vunpack.c.l.s4 1983009808
        %v3133 = vunpack.c.0.s8 %v3132
        %v3134 = vlaneseq
        %v3135 = vshrl.u32 %v3134, 7
        %v3136 = vsub.s32 %v3133, %v3135
        %v3137 = vrot.slane %v3130, %v3136
        %v3138 = vcombine.low %v3129, %v3137
        %v3140 = vunpack.c.l.s4 1934713408
        %v3141 = vunpack.c.0.s8 %v3140
        %v3142 = vlaneseq
        %v3143 = vshrl.u32 %v3142, 7
        %v3144 = vsub.s32 %v3141, %v3143
        %v3145 = vrot.slane %v3138, %v3144
        %v3146 = vcombine.high %v3145, 0
        %v3149 = vpack.i.b16 %v3145, %v3120
        %v3150 = vshrl.u32 %v3120, 16
        %v3151 = vshrl.u32 %v3145, 16
        %v3152 = vpack.i.b16 %v3151, %v3150
        %v3155 = vpack.i.b16 %v3146, %v3121
        %v3156 = vshrl.u32 %v3121, 16
        %v3157 = vshrl.u32 %v3146, 16
        %v3158 = vpack.i.b16 %v3157, %v3156
        %v3160 = vsel %vm1657, %v2853, 0
        %v3163 = vsel %vm1657, %v3001, 0
        %3165 = vmatprep.subr.bf16.mxu0 0
        %3166 = vmatpush1.bf16.xpose.msra.mxu0 0
        %3167 = vmatprep.subr.bf16.mxu0 0
        %3168 = vmatpush1.bf16.xpose.msra.mxu0 0
        %3169 = vmatprep.subr.bf16.mxu0 0
        %3170 = vmatpush1.bf16.xpose.msra.mxu0 0
        %3171 = vmatprep.subr.bf16.mxu0 0
        %3172 = vmatpush1.bf16.xpose.msra.mxu0 0
        %3173 = vmatprep.subr.bf16.mxu0 0
        %3174 = vmatpush1.bf16.xpose.msra.mxu0 0
        %3175 = vmatprep.subr.bf16.mxu0 0
        %3176 = vmatpush1.bf16.xpose.msra.mxu0 0
        %3177 = vmatprep.subr.bf16.mxu0 0
        %3178 = vmatpush1.bf16.xpose.msra.mxu0 0
        %3179 = vmatprep.subr.bf16.mxu0 0
        %3180 = vmatpush1.bf16.xpose.msra.mxu0 %v3163
        %3181 = vmatprep.subr.bf16.mxu0 0
        %3182 = vmatpush2.bf16.xpose.msra.mxu0 0
        %3183 = vmatprep.subr.bf16.mxu0 0
        %3184 = vmatpush2.bf16.xpose.msra.mxu0 0
        %3185 = vmatprep.subr.bf16.mxu0 0
        %3186 = vmatpush2.bf16.xpose.msra.mxu0 0
        %3187 = vmatprep.subr.bf16.mxu0 0
        %3188 = vmatpush2.bf16.xpose.msra.mxu0 0
        %3189 = vmatprep.subr.bf16.mxu0 0
        %3190 = vmatpush2.bf16.xpose.msra.mxu0 0
        %3191 = vmatprep.subr.bf16.mxu0 0
        %3192 = vmatpush2.bf16.xpose.msra.mxu0 0
        %3193 = vmatprep.subr.bf16.mxu0 0
        %3194 = vmatpush2.bf16.xpose.msra.mxu0 0
        %3195 = vmatprep.subr.bf16.mxu0 0
        %3196 = vmatpush2.bf16.xpose.msra.mxu0 0
        %3197 = vmatprep.mubr.bf16.mxu0 0
        %3198 = vmatmul.mubr.bf16.gmra.mxu0 %v3160
        %v3199 = vpop.f32.mrf.mxu0
        %v3200 = vadd.f32 0.0, %v3199
        %v3201 = vpop.f32.mrf.mxu0
        %v3202 = vpop.f32.mrf.mxu0
        %v3203 = vpop.f32.mrf.mxu0
        %3204 = vdwg.mxu0
        %v3206 = vsel %vm1657, %v2856, 0
        %v3209 = vsel %vm1657, %v3004, 0
        %3211 = vmatprep.subr.bf16.mxu0 0
        %3212 = vmatpush1.bf16.xpose.msra.mxu0 0
        %3213 = vmatprep.subr.bf16.mxu0 0
        %3214 = vmatpush1.bf16.xpose.msra.mxu0 0
        %3215 = vmatprep.subr.bf16.mxu0 0
        %3216 = vmatpush1.bf16.xpose.msra.mxu0 0
        %3217 = vmatprep.subr.bf16.mxu0 0
        %3218 = vmatpush1.bf16.xpose.msra.mxu0 0
        %3219 = vmatprep.subr.bf16.mxu0 0
        %3220 = vmatpush1.bf16.xpose.msra.mxu0 0
        %3221 = vmatprep.subr.bf16.mxu0 0
        %3222 = vmatpush1.bf16.xpose.msra.mxu0 0
        %3223 = vmatprep.subr.bf16.mxu0 0
        %3224 = vmatpush1.bf16.xpose.msra.mxu0 0
        %3225 = vmatprep.subr.bf16.mxu0 0
        %3226 = vmatpush1.bf16.xpose.msra.mxu0 %v3209
        %3227 = vmatprep.subr.bf16.mxu0 0
        %3228 = vmatpush2.bf16.xpose.msra.mxu0 0
        %3229 = vmatprep.subr.bf16.mxu0 0
        %3230 = vmatpush2.bf16.xpose.msra.mxu0 0
        %3231 = vmatprep.subr.bf16.mxu0 0
        %3232 = vmatpush2.bf16.xpose.msra.mxu0 0
        %3233 = vmatprep.subr.bf16.mxu0 0
        %3234 = vmatpush2.bf16.xpose.msra.mxu0 0
        %3235 = vmatprep.subr.bf16.mxu0 0
        %3236 = vmatpush2.bf16.xpose.msra.mxu0 0
        %3237 = vmatprep.subr.bf16.mxu0 0
        %3238 = vmatpush2.bf16.xpose.msra.mxu0 0
        %3239 = vmatprep.subr.bf16.mxu0 0
        %3240 = vmatpush2.bf16.xpose.msra.mxu0 0
        %3241 = vmatprep.subr.bf16.mxu0 0
        %3242 = vmatpush2.bf16.xpose.msra.mxu0 0
        %3243 = vmatprep.mubr.bf16.mxu0 0
        %3244 = vmatmul.mubr.bf16.gmra.mxu0 %v3206
        %v3245 = vpop.f32.mrf.mxu0
        %v3246 = vadd.f32 0.0, %v3245
        %v3247 = vpop.f32.mrf.mxu0
        %v3248 = vpop.f32.mrf.mxu0
        %v3249 = vpop.f32.mrf.mxu0
        %3250 = vdwg.mxu0
        %v3252 = vsel %vm1657, %v2859, 0
        %v3255 = vsel %vm1657, %v3007, 0
        %3257 = vmatprep.subr.bf16.mxu0 0
        %3258 = vmatpush1.bf16.xpose.msra.mxu0 0
        %3259 = vmatprep.subr.bf16.mxu0 0
        %3260 = vmatpush1.bf16.xpose.msra.mxu0 0
        %3261 = vmatprep.subr.bf16.mxu0 0
        %3262 = vmatpush1.bf16.xpose.msra.mxu0 0
        %3263 = vmatprep.subr.bf16.mxu0 0
        %3264 = vmatpush1.bf16.xpose.msra.mxu0 0
        %3265 = vmatprep.subr.bf16.mxu0 0
        %3266 = vmatpush1.bf16.xpose.msra.mxu0 0
        %3267 = vmatprep.subr.bf16.mxu0 0
        %3268 = vmatpush1.bf16.xpose.msra.mxu0 0
        %3269 = vmatprep.subr.bf16.mxu0 0
        %3270 = vmatpush1.bf16.xpose.msra.mxu0 0
        %3271 = vmatprep.subr.bf16.mxu0 0
        %3272 = vmatpush1.bf16.xpose.msra.mxu0 %v3255
        %3273 = vmatprep.subr.bf16.mxu0 0
        %3274 = vmatpush2.bf16.xpose.msra.mxu0 0
        %3275 = vmatprep.subr.bf16.mxu0 0
        %3276 = vmatpush2.bf16.xpose.msra.mxu0 0
        %3277 = vmatprep.subr.bf16.mxu0 0
        %3278 = vmatpush2.bf16.xpose.msra.mxu0 0
        %3279 = vmatprep.subr.bf16.mxu0 0
        %3280 = vmatpush2.bf16.xpose.msra.mxu0 0
        %3281 = vmatprep.subr.bf16.mxu0 0
        %3282 = vmatpush2.bf16.xpose.msra.mxu0 0
        %3283 = vmatprep.subr.bf16.mxu0 0
        %3284 = vmatpush2.bf16.xpose.msra.mxu0 0
        %3285 = vmatprep.subr.bf16.mxu0 0
        %3286 = vmatpush2.bf16.xpose.msra.mxu0 0
        %3287 = vmatprep.subr.bf16.mxu0 0
        %3288 = vmatpush2.bf16.xpose.msra.mxu0 0
        %3289 = vmatprep.mubr.bf16.mxu0 0
        %3290 = vmatmul.mubr.bf16.gmra.mxu0 %v3252
        %v3291 = vpop.f32.mrf.mxu0
        %v3292 = vadd.f32 0.0, %v3291
        %v3293 = vpop.f32.mrf.mxu0
        %v3294 = vpop.f32.mrf.mxu0
        %v3295 = vpop.f32.mrf.mxu0
        %3296 = vdwg.mxu0
        %v3298 = vsel %vm1657, %v2862, 0
        %v3301 = vsel %vm1657, %v3010, 0
        %3303 = vmatprep.subr.bf16.mxu0 0
        %3304 = vmatpush1.bf16.xpose.msra.mxu0 0
        %3305 = vmatprep.subr.bf16.mxu0 0
        %3306 = vmatpush1.bf16.xpose.msra.mxu0 0
        %3307 = vmatprep.subr.bf16.mxu0 0
        %3308 = vmatpush1.bf16.xpose.msra.mxu0 0
        %3309 = vmatprep.subr.bf16.mxu0 0
        %3310 = vmatpush1.bf16.xpose.msra.mxu0 0
        %3311 = vmatprep.subr.bf16.mxu0 0
        %3312 = vmatpush1.bf16.xpose.msra.mxu0 0
        %3313 = vmatprep.subr.bf16.mxu0 0
        %3314 = vmatpush1.bf16.xpose.msra.mxu0 0
        %3315 = vmatprep.subr.bf16.mxu0 0
        %3316 = vmatpush1.bf16.xpose.msra.mxu0 0
        %3317 = vmatprep.subr.bf16.mxu0 0
        %3318 = vmatpush1.bf16.xpose.msra.mxu0 %v3301
        %3319 = vmatprep.subr.bf16.mxu0 0
        %3320 = vmatpush2.bf16.xpose.msra.mxu0 0
        %3321 = vmatprep.subr.bf16.mxu0 0
        %3322 = vmatpush2.bf16.xpose.msra.mxu0 0
        %3323 = vmatprep.subr.bf16.mxu0 0
        %3324 = vmatpush2.bf16.xpose.msra.mxu0 0
        %3325 = vmatprep.subr.bf16.mxu0 0
        %3326 = vmatpush2.bf16.xpose.msra.mxu0 0
        %3327 = vmatprep.subr.bf16.mxu0 0
        %3328 = vmatpush2.bf16.xpose.msra.mxu0 0
        %3329 = vmatprep.subr.bf16.mxu0 0
        %3330 = vmatpush2.bf16.xpose.msra.mxu0 0
        %3331 = vmatprep.subr.bf16.mxu0 0
        %3332 = vmatpush2.bf16.xpose.msra.mxu0 0
        %3333 = vmatprep.subr.bf16.mxu0 0
        %3334 = vmatpush2.bf16.xpose.msra.mxu0 0
        %3335 = vmatprep.mubr.bf16.mxu0 0
        %3336 = vmatmul.mubr.bf16.gmra.mxu0 %v3298
        %v3337 = vpop.f32.mrf.mxu0
        %v3338 = vadd.f32 0.0, %v3337
        %v3339 = vpop.f32.mrf.mxu0
        %v3340 = vpop.f32.mrf.mxu0
        %v3341 = vpop.f32.mrf.mxu0
        %3342 = vdwg.mxu0
        %v3343 = vsel %vm1853, %v3200, -inf
        %3344 = vmax.xlane.f32.xlu0 %v3343
        %v3345 = vpop.xlane.xlu0 %3344
        %v3346 = vsel %vm1853, %v3246, -inf
        %3347 = vmax.xlane.f32.xlu0 %v3346
        %v3348 = vpop.xlane.xlu0 %3347
        %v3349 = vsel %vm1853, %v3292, -inf
        %3350 = vmax.xlane.f32.xlu0 %v3349
        %v3351 = vpop.xlane.xlu0 %3350
        %v3352 = vsel %vm1853, %v3338, -inf
        %3353 = vmax.xlane.f32.xlu0 %v3352
        %v3354 = vpop.xlane.xlu0 %3353
        %v3355 = vsub.f32 %v3200, %v3345
        %v3356 = vsub.f32 %v3246, %v3348
        %v3357 = vsub.f32 %v3292, %v3351
        %v3358 = vsub.f32 %v3338, %v3354
        %v3359 = vmul.f32 %v3355, 1.442695
        %v3360 = vpow.pop %v3359
        %v3361 = vmul.f32 %v3356, 1.442695
        %v3362 = vpow.pop %v3361
        %v3363 = vmul.f32 %v3357, 1.442695
        %v3364 = vpow.pop %v3363
        %v3365 = vmul.f32 %v3358, 1.442695
        %v3366 = vpow.pop %v3365
        %v3367 = vsel %vm1853, %v3360, 0.0
        %3368 = vadd.xlane.f32.xlu0 %v3367
        %v3369 = vpop.xlane.xlu0 %3368
        %v3370 = vsel %vm1853, %v3362, 0.0
        %3371 = vadd.xlane.f32.xlu0 %v3370
        %v3372 = vpop.xlane.xlu0 %3371
        %v3373 = vsel %vm1853, %v3364, 0.0
        %3374 = vadd.xlane.f32.xlu0 %v3373
        %v3375 = vpop.xlane.xlu0 %3374
        %v3376 = vsel %vm1853, %v3366, 0.0
        %3377 = vadd.xlane.f32.xlu0 %v3376
        %v3378 = vpop.xlane.xlu0 %3377
        %v3379 = vrcp.pop %v3369
        %v3380 = vrcp.pop %v3372
        %v3381 = vrcp.pop %v3375
        %v3382 = vrcp.pop %v3378
        %v3383 = vmul.f32 %v3360, %v3379
        %v3384 = vmul.f32 %v3362, %v3380
        %v3385 = vmul.f32 %v3364, %v3381
        %v3386 = vmul.f32 %v3366, %v3382
        %v3387 = vpack.c.bf16 %v3383, %v3383
        %v3388 = vpack.c.bf16 %v3384, %v3384
        %v3389 = vpack.c.bf16 %v3385, %v3385
        %v3390 = vpack.c.bf16 %v3386, %v3386
        %v3392 = vsel %vm1853, %v3387, 0
        %v3395 = vsel %vm1905, %v3149, 0
        %3397 = vmatprep.subr.bf16.mxu0 0
        %3398 = vmatpush1.bf16.msra.mxu0 0
        %3399 = vmatprep.subr.bf16.mxu0 0
        %3400 = vmatpush1.bf16.msra.mxu0 0
        %3401 = vmatprep.subr.bf16.mxu0 0
        %3402 = vmatpush1.bf16.msra.mxu0 0
        %3403 = vmatprep.subr.bf16.mxu0 0
        %3404 = vmatpush1.bf16.msra.mxu0 0
        %3405 = vmatprep.subr.bf16.mxu0 0
        %3406 = vmatpush1.bf16.msra.mxu0 0
        %3407 = vmatprep.subr.bf16.mxu0 0
        %3408 = vmatpush1.bf16.msra.mxu0 0
        %3409 = vmatprep.subr.bf16.mxu0 0
        %3410 = vmatpush1.bf16.msra.mxu0 0
        %3411 = vmatprep.subr.bf16.mxu0 0
        %3412 = vmatpush1.bf16.msra.mxu0 %v3395
        %3413 = vmatprep.subr.bf16.mxu0 0
        %3414 = vmatpush2.bf16.msra.mxu0 0
        %3415 = vmatprep.subr.bf16.mxu0 0
        %3416 = vmatpush2.bf16.msra.mxu0 0
        %3417 = vmatprep.subr.bf16.mxu0 0
        %3418 = vmatpush2.bf16.msra.mxu0 0
        %3419 = vmatprep.subr.bf16.mxu0 0
        %3420 = vmatpush2.bf16.msra.mxu0 0
        %3421 = vmatprep.subr.bf16.mxu0 0
        %3422 = vmatpush2.bf16.msra.mxu0 0
        %3423 = vmatprep.subr.bf16.mxu0 0
        %3424 = vmatpush2.bf16.msra.mxu0 0
        %3425 = vmatprep.subr.bf16.mxu0 0
        %3426 = vmatpush2.bf16.msra.mxu0 0
        %3427 = vmatprep.subr.bf16.mxu0 0
        %3428 = vmatpush2.bf16.msra.mxu0 0
        %3429 = vmatprep.mubr.bf16.mxu0 0
        %3430 = vmatmul.mubr.bf16.gmra.mxu0 %v3392
        %v3431 = vpop.f32.mrf.mxu0
        %v3432 = vadd.f32 0.0, %v3431
        %v3433 = vpop.f32.mrf.mxu0
        %v3434 = vpop.f32.mrf.mxu0
        %v3435 = vpop.f32.mrf.mxu0
        %3436 = vdwg.mxu0
        %v3438 = vsel %vm1853, %v3388, 0
        %v3441 = vsel %vm1905, %v3152, 0
        %3443 = vmatprep.subr.bf16.mxu0 0
        %3444 = vmatpush1.bf16.msra.mxu0 0
        %3445 = vmatprep.subr.bf16.mxu0 0
        %3446 = vmatpush1.bf16.msra.mxu0 0
        %3447 = vmatprep.subr.bf16.mxu0 0
        %3448 = vmatpush1.bf16.msra.mxu0 0
        %3449 = vmatprep.subr.bf16.mxu0 0
        %3450 = vmatpush1.bf16.msra.mxu0 0
        %3451 = vmatprep.subr.bf16.mxu0 0
        %3452 = vmatpush1.bf16.msra.mxu0 0
        %3453 = vmatprep.subr.bf16.mxu0 0
        %3454 = vmatpush1.bf16.msra.mxu0 0
        %3455 = vmatprep.subr.bf16.mxu0 0
        %3456 = vmatpush1.bf16.msra.mxu0 0
        %3457 = vmatprep.subr.bf16.mxu0 0
        %3458 = vmatpush1.bf16.msra.mxu0 %v3441
        %3459 = vmatprep.subr.bf16.mxu0 0
        %3460 = vmatpush2.bf16.msra.mxu0 0
        %3461 = vmatprep.subr.bf16.mxu0 0
        %3462 = vmatpush2.bf16.msra.mxu0 0
        %3463 = vmatprep.subr.bf16.mxu0 0
        %3464 = vmatpush2.bf16.msra.mxu0 0
        %3465 = vmatprep.subr.bf16.mxu0 0
        %3466 = vmatpush2.bf16.msra.mxu0 0
        %3467 = vmatprep.subr.bf16.mxu0 0
        %3468 = vmatpush2.bf16.msra.mxu0 0
        %3469 = vmatprep.subr.bf16.mxu0 0
        %3470 = vmatpush2.bf16.msra.mxu0 0
        %3471 = vmatprep.subr.bf16.mxu0 0
        %3472 = vmatpush2.bf16.msra.mxu0 0
        %3473 = vmatprep.subr.bf16.mxu0 0
        %3474 = vmatpush2.bf16.msra.mxu0 0
        %3475 = vmatprep.mubr.bf16.mxu0 0
        %3476 = vmatmul.mubr.bf16.gmra.mxu0 %v3438
        %v3477 = vpop.f32.mrf.mxu0
        %v3478 = vadd.f32 0.0, %v3477
        %v3479 = vpop.f32.mrf.mxu0
        %v3480 = vpop.f32.mrf.mxu0
        %v3481 = vpop.f32.mrf.mxu0
        %3482 = vdwg.mxu0
        %v3484 = vsel %vm1853, %v3389, 0
        %v3487 = vsel %vm1905, %v3155, 0
        %3489 = vmatprep.subr.bf16.mxu0 0
        %3490 = vmatpush1.bf16.msra.mxu0 0
        %3491 = vmatprep.subr.bf16.mxu0 0
        %3492 = vmatpush1.bf16.msra.mxu0 0
        %3493 = vmatprep.subr.bf16.mxu0 0
        %3494 = vmatpush1.bf16.msra.mxu0 0
        %3495 = vmatprep.subr.bf16.mxu0 0
        %3496 = vmatpush1.bf16.msra.mxu0 0
        %3497 = vmatprep.subr.bf16.mxu0 0
        %3498 = vmatpush1.bf16.msra.mxu0 0
        %3499 = vmatprep.subr.bf16.mxu0 0
        %3500 = vmatpush1.bf16.msra.mxu0 0
        %3501 = vmatprep.subr.bf16.mxu0 0
        %3502 = vmatpush1.bf16.msra.mxu0 0
        %3503 = vmatprep.subr.bf16.mxu0 0
        %3504 = vmatpush1.bf16.msra.mxu0 %v3487
        %3505 = vmatprep.subr.bf16.mxu0 0
        %3506 = vmatpush2.bf16.msra.mxu0 0
        %3507 = vmatprep.subr.bf16.mxu0 0
        %3508 = vmatpush2.bf16.msra.mxu0 0
        %3509 = vmatprep.subr.bf16.mxu0 0
        %3510 = vmatpush2.bf16.msra.mxu0 0
        %3511 = vmatprep.subr.bf16.mxu0 0
        %3512 = vmatpush2.bf16.msra.mxu0 0
        %3513 = vmatprep.subr.bf16.mxu0 0
        %3514 = vmatpush2.bf16.msra.mxu0 0
        %3515 = vmatprep.subr.bf16.mxu0 0
        %3516 = vmatpush2.bf16.msra.mxu0 0
        %3517 = vmatprep.subr.bf16.mxu0 0
        %3518 = vmatpush2.bf16.msra.mxu0 0
        %3519 = vmatprep.subr.bf16.mxu0 0
        %3520 = vmatpush2.bf16.msra.mxu0 0
        %3521 = vmatprep.mubr.bf16.mxu0 0
        %3522 = vmatmul.mubr.bf16.gmra.mxu0 %v3484
        %v3523 = vpop.f32.mrf.mxu0
        %v3524 = vadd.f32 0.0, %v3523
        %v3525 = vpop.f32.mrf.mxu0
        %v3526 = vpop.f32.mrf.mxu0
        %v3527 = vpop.f32.mrf.mxu0
        %3528 = vdwg.mxu0
        %v3530 = vsel %vm1853, %v3390, 0
        %v3533 = vsel %vm1905, %v3158, 0
        %3535 = vmatprep.subr.bf16.mxu0 0
        %3536 = vmatpush1.bf16.msra.mxu0 0
        %3537 = vmatprep.subr.bf16.mxu0 0
        %3538 = vmatpush1.bf16.msra.mxu0 0
        %3539 = vmatprep.subr.bf16.mxu0 0
        %3540 = vmatpush1.bf16.msra.mxu0 0
        %3541 = vmatprep.subr.bf16.mxu0 0
        %3542 = vmatpush1.bf16.msra.mxu0 0
        %3543 = vmatprep.subr.bf16.mxu0 0
        %3544 = vmatpush1.bf16.msra.mxu0 0
        %3545 = vmatprep.subr.bf16.mxu0 0
        %3546 = vmatpush1.bf16.msra.mxu0 0
        %3547 = vmatprep.subr.bf16.mxu0 0
        %3548 = vmatpush1.bf16.msra.mxu0 0
        %3549 = vmatprep.subr.bf16.mxu0 0
        %3550 = vmatpush1.bf16.msra.mxu0 %v3533
        %3551 = vmatprep.subr.bf16.mxu0 0
        %3552 = vmatpush2.bf16.msra.mxu0 0
        %3553 = vmatprep.subr.bf16.mxu0 0
        %3554 = vmatpush2.bf16.msra.mxu0 0
        %3555 = vmatprep.subr.bf16.mxu0 0
        %3556 = vmatpush2.bf16.msra.mxu0 0
        %3557 = vmatprep.subr.bf16.mxu0 0
        %3558 = vmatpush2.bf16.msra.mxu0 0
        %3559 = vmatprep.subr.bf16.mxu0 0
        %3560 = vmatpush2.bf16.msra.mxu0 0
        %3561 = vmatprep.subr.bf16.mxu0 0
        %3562 = vmatpush2.bf16.msra.mxu0 0
        %3563 = vmatprep.subr.bf16.mxu0 0
        %3564 = vmatpush2.bf16.msra.mxu0 0
        %3565 = vmatprep.subr.bf16.mxu0 0
        %3566 = vmatpush2.bf16.msra.mxu0 0
        %3567 = vmatprep.mubr.bf16.mxu0 0
        %3568 = vmatmul.mubr.bf16.gmra.mxu0 %v3530
        %v3569 = vpop.f32.mrf.mxu0
        %v3570 = vadd.f32 0.0, %v3569
        %v3571 = vpop.f32.mrf.mxu0
        %v3572 = vpop.f32.mrf.mxu0
        %v3573 = vpop.f32.mrf.mxu0
        %3574 = vdwg.mxu0
        %v3575 = vcombine.low %v3432, %v3524
        %v3576 = vcombine.high %v3432, %v3524
        %v3578 = vunpack.c.l.s4 1983009808
        %v3579 = vunpack.c.0.s8 %v3578
        %v3580 = vlaneseq
        %v3581 = vshrl.u32 %v3580, 7
        %v3582 = vsub.s32 %v3579, %v3581
        %v3583 = vrot.slane %v3575, %v3582
        %v3585 = vunpack.c.l.s4 1983009808
        %v3586 = vunpack.c.0.s8 %v3585
        %v3587 = vlaneseq
        %v3588 = vshrl.u32 %v3587, 7
        %v3589 = vsub.s32 %v3586, %v3588
        %v3590 = vrot.slane %v3576, %v3589
        %v3591 = vcombine.low %v3478, %v3570
        %v3592 = vcombine.high %v3478, %v3570
        %v3594 = vunpack.c.l.s4 1983009808
        %v3595 = vunpack.c.0.s8 %v3594
        %v3596 = vlaneseq
        %v3597 = vshrl.u32 %v3596, 7
        %v3598 = vsub.s32 %v3595, %v3597
        %v3599 = vrot.slane %v3591, %v3598
        %v3601 = vunpack.c.l.s4 1983009808
        %v3602 = vunpack.c.0.s8 %v3601
        %v3603 = vlaneseq
        %v3604 = vshrl.u32 %v3603, 7
        %v3605 = vsub.s32 %v3602, %v3604
        %v3606 = vrot.slane %v3592, %v3605
        %v3607 = vcombine.low %v3583, %v3599
        %v3608 = vcombine.high %v3583, %v3599
        %v3610 = vunpack.c.l.s4 1934713408
        %v3611 = vunpack.c.0.s8 %v3610
        %v3612 = vlaneseq
        %v3613 = vshrl.u32 %v3612, 7
        %v3614 = vsub.s32 %v3611, %v3613
        %v3615 = vrot.slane %v3607, %v3614
        %v3617 = vunpack.c.l.s4 1934713408
        %v3618 = vunpack.c.0.s8 %v3617
        %v3619 = vlaneseq
        %v3620 = vshrl.u32 %v3619, 7
        %v3621 = vsub.s32 %v3618, %v3620
        %v3622 = vrot.slane %v3608, %v3621
        %v3623 = vcombine.low %v3590, %v3606
        %v3624 = vcombine.high %v3590, %v3606
        %v3626 = vunpack.c.l.s4 1934713408
        %v3627 = vunpack.c.0.s8 %v3626
        %v3628 = vlaneseq
        %v3629 = vshrl.u32 %v3628, 7
        %v3630 = vsub.s32 %v3627, %v3629
        %v3631 = vrot.slane %v3623, %v3630
        %v3633 = vunpack.c.l.s4 1934713408
        %v3634 = vunpack.c.0.s8 %v3633
        %v3635 = vlaneseq
        %v3636 = vshrl.u32 %v3635, 7
        %v3637 = vsub.s32 %v3634, %v3636
        %v3638 = vrot.slane %v3624, %v3637
        %v3639 = vcombine.high %v3615, 0.0
        %v3640 = vcombine.high %v3622, 0.0
        %v3641 = vcombine.high %v3631, 0.0
        %v3642 = vcombine.high %v3638, 0.0
        %v3643 = vcombine.low %v3615, %v3622
        %v3645 = vunpack.c.l.s4 1983009808
        %v3646 = vunpack.c.0.s8 %v3645
        %v3647 = vlaneseq
        %v3648 = vshrl.u32 %v3647, 7
        %v3649 = vsub.s32 %v3646, %v3648
        %v3650 = vrot.slane %v3643, %v3649
        %v3651 = vcombine.low %v3639, %v3640
        %v3653 = vunpack.c.l.s4 1983009808
        %v3654 = vunpack.c.0.s8 %v3653
        %v3655 = vlaneseq
        %v3656 = vshrl.u32 %v3655, 7
        %v3657 = vsub.s32 %v3654, %v3656
        %v3658 = vrot.slane %v3651, %v3657
        %v3659 = vcombine.low %v3631, %v3638
        %v3661 = vunpack.c.l.s4 1983009808
        %v3662 = vunpack.c.0.s8 %v3661
        %v3663 = vlaneseq
        %v3664 = vshrl.u32 %v3663, 7
        %v3665 = vsub.s32 %v3662, %v3664
        %v3666 = vrot.slane %v3659, %v3665
        %v3667 = vcombine.low %v3641, %v3642
        %v3669 = vunpack.c.l.s4 1983009808
        %v3670 = vunpack.c.0.s8 %v3669
        %v3671 = vlaneseq
        %v3672 = vshrl.u32 %v3671, 7
        %v3673 = vsub.s32 %v3670, %v3672
        %v3674 = vrot.slane %v3667, %v3673
        %v3675 = vcombine.low %v3650, %v3658
        %v3676 = vcombine.high %v3650, %v3658
        %v3678 = vunpack.c.l.s4 1934713408
        %v3679 = vunpack.c.0.s8 %v3678
        %v3680 = vlaneseq
        %v3681 = vshrl.u32 %v3680, 7
        %v3682 = vsub.s32 %v3679, %v3681
        %v3683 = vrot.slane %v3675, %v3682
        %v3685 = vunpack.c.l.s4 1934713408
        %v3686 = vunpack.c.0.s8 %v3685
        %v3687 = vlaneseq
        %v3688 = vshrl.u32 %v3687, 7
        %v3689 = vsub.s32 %v3686, %v3688
        %v3690 = vrot.slane %v3676, %v3689
        %v3691 = vcombine.low %v3666, %v3674
        %v3692 = vcombine.high %v3666, %v3674
        %v3694 = vunpack.c.l.s4 1934713408
        %v3695 = vunpack.c.0.s8 %v3694
        %v3696 = vlaneseq
        %v3697 = vshrl.u32 %v3696, 7
        %v3698 = vsub.s32 %v3695, %v3697
        %v3699 = vrot.slane %v3691, %v3698
        %v3701 = vunpack.c.l.s4 1934713408
        %v3702 = vunpack.c.0.s8 %v3701
        %v3703 = vlaneseq
        %v3704 = vshrl.u32 %v3703, 7
        %v3705 = vsub.s32 %v3702, %v3704
        %v3706 = vrot.slane %v3692, %v3705
        %v3707 = vcombine.low %v3683, %v3699
        %v3708 = vcombine.high %v3683, %v3699
        %v3709 = vcombine.low %v3690, %v3706
        %v3710 = vcombine.high %v3690, %v3706
        %3712 = vrot.lane.b32.xlu0 %v3708, 32
        %v3713 = vpop.permute.xlu0 %3712
        %3716 = vrot.lane.b32.xlu0 %v3709, 64
        %v3717 = vpop.permute.xlu0 %3716
        %3720 = vrot.lane.b32.xlu0 %v3710, 96
        %v3721 = vpop.permute.xlu0 %3720
        %v3723 = vsel %vm1657, %v3707, %v3713
        %v3724 = vsel %vm2236, %v3723, %v3717
        %v3725 = vsel %vm2238, %v3724, %v3721
        %v3726 = vpack.c.bf16 %v3725, %v3725
        %v3728 = vlaneseq
        %v3729 = vshrl.u32 %v3728, 7
        %v3730 = vsub.s32 0, %v3729
        %v3731 = vrot.slane %v2432, %v3730
        %v3749 = vunpack.c.l.b16 %v2416
        %v3750 = vunpack.c.l.b16 %v2417
        %v3751 = vunpack.c.l.b16 %v2418
        %v3752 = vunpack.c.l.b16 %v2419
        %v3753 = vunpack.c.l.b16 %v2420
        %v3754 = vunpack.c.l.b16 %v2421
        %v3755 = vunpack.c.l.b16 %v2422
        %v3756 = vunpack.c.l.b16 %v2423
        %v3757 = vunpack.c.l.b16 %v2424
        %v3758 = vunpack.c.l.b16 %v2425
        %v3759 = vunpack.c.l.b16 %v2426
        %v3760 = vunpack.c.l.b16 %v2427
        %v3761 = vunpack.c.l.b16 %v2428
        %v3762 = vunpack.c.l.b16 %v2429
        %v3763 = vunpack.c.l.b16 %v2430
        %v3764 = vunpack.c.l.b16 %v2431
        %v3765 = vpack.c.b16 %v3750, %v3749
        %v3766 = vpack.c.b16 %v3752, %v3751
        %v3767 = vpack.c.b16 %v3754, %v3753
        %v3768 = vpack.c.b16 %v3756, %v3755
        %v3769 = vpack.c.b16 %v3758, %v3757
        %v3770 = vpack.c.b16 %v3760, %v3759
        %v3771 = vpack.c.b16 %v3762, %v3761
        %v3772 = vpack.c.b16 %v3764, %v3763
        %3781 = vmatprep.subr.bf16.mxu0 0
        %3782 = vmatpush1.bf16.msra.mxu0 %v3772
        %3783 = vmatprep.subr.bf16.mxu0 0
        %3784 = vmatpush1.bf16.msra.mxu0 %v3771
        %3785 = vmatprep.subr.bf16.mxu0 0
        %3786 = vmatpush1.bf16.msra.mxu0 %v3770
        %3787 = vmatprep.subr.bf16.mxu0 0
        %3788 = vmatpush1.bf16.msra.mxu0 %v3769
        %3789 = vmatprep.subr.bf16.mxu0 0
        %3790 = vmatpush1.bf16.msra.mxu0 %v3768
        %3791 = vmatprep.subr.bf16.mxu0 0
        %3792 = vmatpush1.bf16.msra.mxu0 %v3767
        %3793 = vmatprep.subr.bf16.mxu0 0
        %3794 = vmatpush1.bf16.msra.mxu0 %v3766
        %3795 = vmatprep.subr.bf16.mxu0 0
        %3796 = vmatpush1.bf16.msra.mxu0 %v3765
        %3797 = vmatprep.subr.bf16.mxu0 0
        %3798 = vmatpush2.bf16.msra.mxu0 0
        %3799 = vmatprep.subr.bf16.mxu0 0
        %3800 = vmatpush2.bf16.msra.mxu0 0
        %3801 = vmatprep.subr.bf16.mxu0 0
        %3802 = vmatpush2.bf16.msra.mxu0 0
        %3803 = vmatprep.subr.bf16.mxu0 0
        %3804 = vmatpush2.bf16.msra.mxu0 0
        %3805 = vmatprep.subr.bf16.mxu0 0
        %3806 = vmatpush2.bf16.msra.mxu0 0
        %3807 = vmatprep.subr.bf16.mxu0 0
        %3808 = vmatpush2.bf16.msra.mxu0 0
        %3809 = vmatprep.subr.bf16.mxu0 0
        %3810 = vmatpush2.bf16.msra.mxu0 0
        %3811 = vmatprep.subr.bf16.mxu0 0
        %3812 = vmatpush2.bf16.msra.mxu0 0
        %3813 = vmatprep.mubr.bf16.mxu0 0
        %3814 = vmatmul.mubr.bf16.gmra.mxu0 %v3726
        %v3815 = vpop.f32.mrf.mxu0
        %v3816 = vadd.f32 %v3731, %v3815
        %v3817 = vpop.f32.mrf.mxu0
        %v3818 = vpop.f32.mrf.mxu0
        %v3819 = vpop.f32.mrf.mxu0
        %3820 = vdwg.mxu0
        %v3821 = vld [vmem:[%s24] sm:$0x1]
        %v3822 = vld [vmem:[%s25] sm:$0x1]
        %v3823 = vadd.f32 %v2363, %v3816
        %3824 = vadd.xlane.f32.xlu0 %v3823
        %v3825 = vpop.xlane.xlu0 %3824
        %v3826 = vmul.f32 %v3825, %v2340
        %v3827 = vsub.f32 %v3823, %v3826
        %v3828 = vmul.f32 %v3827, %v3827
        %3829 = vadd.xlane.f32.xlu0 %v3828
        %v3830 = vpop.xlane.xlu0 %3829
        %v3831 = vmul.f32 %v3830, %v2340
        %v3832 = vadd.f32 %v3831, 1e-05
        %v3833 = vrsqrt.pop %v3832
        %v3834 = vmul.f32 %v3827, %v3833
        %v3836 = vlaneseq
        %v3837 = vshrl.u32 %v3836, 7
        %v3838 = vsub.s32 0, %v3837
        %v3839 = vrot.slane %v3821, %v3838
        %v3841 = vmul.f32 %v3834, %v3839
        %v3843 = vlaneseq
        %v3844 = vshrl.u32 %v3843, 7
        %v3845 = vsub.s32 0, %v3844
        %v3846 = vrot.slane %v3822, %v3845
        %v3848 = vadd.f32 %v3841, %v3846
        %v3849 = vld [vmem:[%s18] sm:$0xff]
        %v3850 = vld [vmem:[%s18 + $0x8] sm:$0xff]
        %v3851 = vld [vmem:[%s18 + $0x10] sm:$0xff]
        %v3852 = vld [vmem:[%s18 + $0x18] sm:$0xff]
        %v3853 = vld [vmem:[%s18 + $0x20] sm:$0xff]
        %v3854 = vld [vmem:[%s18 + $0x28] sm:$0xff]
        %v3855 = vld [vmem:[%s18 + $0x30] sm:$0xff]
        %v3856 = vld [vmem:[%s18 + $0x38] sm:$0xff]
        %v3857 = vld [vmem:[%s18 + $0x40] sm:$0xff]
        %v3858 = vld [vmem:[%s18 + $0x48] sm:$0xff]
        %v3859 = vld [vmem:[%s18 + $0x50] sm:$0xff]
        %v3860 = vld [vmem:[%s18 + $0x58] sm:$0xff]
        %v3861 = vld [vmem:[%s18 + $0x60] sm:$0xff]
        %v3862 = vld [vmem:[%s18 + $0x68] sm:$0xff]
        %v3863 = vld [vmem:[%s18 + $0x70] sm:$0xff]
        %v3864 = vld [vmem:[%s18 + $0x78] sm:$0xff]
        %v3865 = vld [vmem:[%s19] sm:$0x3]
        %v3866 = vld [vmem:[%s20] sm:$0xf]
        %v3867 = vld [vmem:[%s20 + $0x4] sm:$0xf]
        %v3868 = vld [vmem:[%s20 + $0x8] sm:$0xf]
        %v3869 = vld [vmem:[%s20 + $0xc] sm:$0xf]
        %v3870 = vld [vmem:[%s20 + $0x10] sm:$0xf]
        %v3871 = vld [vmem:[%s20 + $0x14] sm:$0xf]
        %v3872 = vld [vmem:[%s20 + $0x18] sm:$0xf]
        %v3873 = vld [vmem:[%s20 + $0x1c] sm:$0xf]
        %v3874 = vld [vmem:[%s20 + $0x20] sm:$0xf]
        %v3875 = vld [vmem:[%s20 + $0x24] sm:$0xf]
        %v3876 = vld [vmem:[%s20 + $0x28] sm:$0xf]
        %v3877 = vld [vmem:[%s20 + $0x2c] sm:$0xf]
        %v3878 = vld [vmem:[%s20 + $0x30] sm:$0xf]
        %v3879 = vld [vmem:[%s20 + $0x34] sm:$0xf]
        %v3880 = vld [vmem:[%s20 + $0x38] sm:$0xf]
        %v3881 = vld [vmem:[%s20 + $0x3c] sm:$0xf]
        %v3882 = vld [vmem:[%s20 + $0x40] sm:$0xf]
        %v3883 = vld [vmem:[%s20 + $0x44] sm:$0xf]
        %v3884 = vld [vmem:[%s20 + $0x48] sm:$0xf]
        %v3885 = vld [vmem:[%s20 + $0x4c] sm:$0xf]
        %v3886 = vld [vmem:[%s20 + $0x50] sm:$0xf]
        %v3887 = vld [vmem:[%s20 + $0x54] sm:$0xf]
        %v3888 = vld [vmem:[%s20 + $0x58] sm:$0xf]
        %v3889 = vld [vmem:[%s20 + $0x5c] sm:$0xf]
        %v3890 = vld [vmem:[%s20 + $0x60] sm:$0xf]
        %v3891 = vld [vmem:[%s20 + $0x64] sm:$0xf]
        %v3892 = vld [vmem:[%s20 + $0x68] sm:$0xf]
        %v3893 = vld [vmem:[%s20 + $0x6c] sm:$0xf]
        %v3894 = vld [vmem:[%s20 + $0x70] sm:$0xf]
        %v3895 = vld [vmem:[%s20 + $0x74] sm:$0xf]
        %v3896 = vld [vmem:[%s20 + $0x78] sm:$0xf]
        %v3897 = vld [vmem:[%s20 + $0x7c] sm:$0xf]
        %v3898 = vld [vmem:[%s21] sm:$0x1]
        %v3899 = vpack.c.bf16 %v3848, %v3848
        %v3901 = vlaneseq
        %v3902 = vshrl.u32 %v3901, 7
        %v3903 = vsub.s32 0, %v3902
        %v3904 = vrot.slane %v3865, %v3903
        %v3905 = vlaneseq
        %v3906 = vshrl.u32 %v3905, 7
        %v3907 = vsub.s32 1, %v3906
        %v3908 = vrot.slane %v3865, %v3907
        %v3927 = vunpack.c.l.b16 %v3849
        %v3928 = vunpack.c.h.b16 %v3849
        %v3929 = vunpack.c.l.b16 %v3850
        %v3930 = vunpack.c.h.b16 %v3850
        %v3931 = vunpack.c.l.b16 %v3851
        %v3932 = vunpack.c.h.b16 %v3851
        %v3933 = vunpack.c.l.b16 %v3852
        %v3934 = vunpack.c.h.b16 %v3852
        %v3935 = vunpack.c.l.b16 %v3853
        %v3936 = vunpack.c.h.b16 %v3853
        %v3937 = vunpack.c.l.b16 %v3854
        %v3938 = vunpack.c.h.b16 %v3854
        %v3939 = vunpack.c.l.b16 %v3855
        %v3940 = vunpack.c.h.b16 %v3855
        %v3941 = vunpack.c.l.b16 %v3856
        %v3942 = vunpack.c.h.b16 %v3856
        %v3943 = vunpack.c.l.b16 %v3857
        %v3944 = vunpack.c.h.b16 %v3857
        %v3945 = vunpack.c.l.b16 %v3858
        %v3946 = vunpack.c.h.b16 %v3858
        %v3947 = vunpack.c.l.b16 %v3859
        %v3948 = vunpack.c.h.b16 %v3859
        %v3949 = vunpack.c.l.b16 %v3860
        %v3950 = vunpack.c.h.b16 %v3860
        %v3951 = vunpack.c.l.b16 %v3861
        %v3952 = vunpack.c.h.b16 %v3861
        %v3953 = vunpack.c.l.b16 %v3862
        %v3954 = vunpack.c.h.b16 %v3862
        %v3955 = vunpack.c.l.b16 %v3863
        %v3956 = vunpack.c.h.b16 %v3863
        %v3957 = vunpack.c.l.b16 %v3864
        %v3958 = vunpack.c.h.b16 %v3864
        %v3959 = vpack.c.b16 %v3929, %v3927
        %v3960 = vpack.c.b16 %v3930, %v3928
        %v3961 = vpack.c.b16 %v3933, %v3931
        %v3962 = vpack.c.b16 %v3934, %v3932
        %v3963 = vpack.c.b16 %v3937, %v3935
        %v3964 = vpack.c.b16 %v3938, %v3936
        %v3965 = vpack.c.b16 %v3941, %v3939
        %v3966 = vpack.c.b16 %v3942, %v3940
        %v3967 = vpack.c.b16 %v3945, %v3943
        %v3968 = vpack.c.b16 %v3946, %v3944
        %v3969 = vpack.c.b16 %v3949, %v3947
        %v3970 = vpack.c.b16 %v3950, %v3948
        %v3971 = vpack.c.b16 %v3953, %v3951
        %v3972 = vpack.c.b16 %v3954, %v3952
        %v3973 = vpack.c.b16 %v3957, %v3955
        %v3974 = vpack.c.b16 %v3958, %v3956
        %3991 = vmatprep.subr.bf16.mxu0 %v3974
        %3992 = vmatpush1.bf16.msra.mxu0 %v3973
        %3993 = vmatprep.subr.bf16.mxu0 %v3972
        %3994 = vmatpush1.bf16.msra.mxu0 %v3971
        %3995 = vmatprep.subr.bf16.mxu0 %v3970
        %3996 = vmatpush1.bf16.msra.mxu0 %v3969
        %3997 = vmatprep.subr.bf16.mxu0 %v3968
        %3998 = vmatpush1.bf16.msra.mxu0 %v3967
        %3999 = vmatprep.subr.bf16.mxu0 %v3966
        %4000 = vmatpush1.bf16.msra.mxu0 %v3965
        %4001 = vmatprep.subr.bf16.mxu0 %v3964
        %4002 = vmatpush1.bf16.msra.mxu0 %v3963
        %4003 = vmatprep.subr.bf16.mxu0 %v3962
        %4004 = vmatpush1.bf16.msra.mxu0 %v3961
        %4005 = vmatprep.subr.bf16.mxu0 %v3960
        %4006 = vmatpush1.bf16.msra.mxu0 %v3959
        %4007 = vmatprep.subr.bf16.mxu0 0
        %4008 = vmatpush2.bf16.msra.mxu0 0
        %4009 = vmatprep.subr.bf16.mxu0 0
        %4010 = vmatpush2.bf16.msra.mxu0 0
        %4011 = vmatprep.subr.bf16.mxu0 0
        %4012 = vmatpush2.bf16.msra.mxu0 0
        %4013 = vmatprep.subr.bf16.mxu0 0
        %4014 = vmatpush2.bf16.msra.mxu0 0
        %4015 = vmatprep.subr.bf16.mxu0 0
        %4016 = vmatpush2.bf16.msra.mxu0 0
        %4017 = vmatprep.subr.bf16.mxu0 0
        %4018 = vmatpush2.bf16.msra.mxu0 0
        %4019 = vmatprep.subr.bf16.mxu0 0
        %4020 = vmatpush2.bf16.msra.mxu0 0
        %4021 = vmatprep.subr.bf16.mxu0 0
        %4022 = vmatpush2.bf16.msra.mxu0 0
        %4023 = vmatprep.mubr.bf16.mxu0 0
        %4024 = vmatmul.mubr.bf16.gmra.mxu0 %v3899
        %v4025 = vpop.f32.mrf.mxu0
        %v4026 = vadd.f32 %v3904, %v4025
        %v4027 = vpop.f32.mrf.mxu0
        %v4028 = vadd.f32 %v3908, %v4027
        %v4029 = vpop.f32.mrf.mxu0
        %v4030 = vpop.f32.mrf.mxu0
        %4031 = vdwg.mxu0
        %v4032 = vmax.f32 %v4026, 0.0
        %v4033 = vmax.f32 %v4028, 0.0
        %v4034 = vpack.c.bf16 %v4032, %v4032
        %v4035 = vpack.c.bf16 %v4033, %v4033
        %v4037 = vlaneseq
        %v4038 = vshrl.u32 %v4037, 7
        %v4039 = vsub.s32 0, %v4038
        %v4040 = vrot.slane %v3898, %v4039
        %v4074 = vunpack.c.l.b16 %v3866
        %v4075 = vunpack.c.l.b16 %v3867
        %v4076 = vunpack.c.l.b16 %v3868
        %v4077 = vunpack.c.l.b16 %v3869
        %v4078 = vunpack.c.l.b16 %v3870
        %v4079 = vunpack.c.l.b16 %v3871
        %v4080 = vunpack.c.l.b16 %v3872
        %v4081 = vunpack.c.l.b16 %v3873
        %v4082 = vunpack.c.l.b16 %v3874
        %v4083 = vunpack.c.l.b16 %v3875
        %v4084 = vunpack.c.l.b16 %v3876
        %v4085 = vunpack.c.l.b16 %v3877
        %v4086 = vunpack.c.l.b16 %v3878
        %v4087 = vunpack.c.l.b16 %v3879
        %v4088 = vunpack.c.l.b16 %v3880
        %v4089 = vunpack.c.l.b16 %v3881
        %v4090 = vunpack.c.l.b16 %v3882
        %v4091 = vunpack.c.l.b16 %v3883
        %v4092 = vunpack.c.l.b16 %v3884
        %v4093 = vunpack.c.l.b16 %v3885
        %v4094 = vunpack.c.l.b16 %v3886
        %v4095 = vunpack.c.l.b16 %v3887
        %v4096 = vunpack.c.l.b16 %v3888
        %v4097 = vunpack.c.l.b16 %v3889
        %v4098 = vunpack.c.l.b16 %v3890
        %v4099 = vunpack.c.l.b16 %v3891
        %v4100 = vunpack.c.l.b16 %v3892
        %v4101 = vunpack.c.l.b16 %v3893
        %v4102 = vunpack.c.l.b16 %v3894
        %v4103 = vunpack.c.l.b16 %v3895
        %v4104 = vunpack.c.l.b16 %v3896
        %v4105 = vunpack.c.l.b16 %v3897
        %v4106 = vpack.c.b16 %v4075, %v4074
        %v4107 = vpack.c.b16 %v4077, %v4076
        %v4108 = vpack.c.b16 %v4079, %v4078
        %v4109 = vpack.c.b16 %v4081, %v4080
        %v4110 = vpack.c.b16 %v4083, %v4082
        %v4111 = vpack.c.b16 %v4085, %v4084
        %v4112 = vpack.c.b16 %v4087, %v4086
        %v4113 = vpack.c.b16 %v4089, %v4088
        %v4114 = vpack.c.b16 %v4091, %v4090
        %v4115 = vpack.c.b16 %v4093, %v4092
        %v4116 = vpack.c.b16 %v4095, %v4094
        %v4117 = vpack.c.b16 %v4097, %v4096
        %v4118 = vpack.c.b16 %v4099, %v4098
        %v4119 = vpack.c.b16 %v4101, %v4100
        %v4120 = vpack.c.b16 %v4103, %v4102
        %v4121 = vpack.c.b16 %v4105, %v4104
        %4138 = vmatprep.subr.bf16.mxu0 0
        %4139 = vmatpush1.bf16.msra.mxu0 %v4113
        %4140 = vmatprep.subr.bf16.mxu0 0
        %4141 = vmatpush1.bf16.msra.mxu0 %v4112
        %4142 = vmatprep.subr.bf16.mxu0 0
        %4143 = vmatpush1.bf16.msra.mxu0 %v4111
        %4144 = vmatprep.subr.bf16.mxu0 0
        %4145 = vmatpush1.bf16.msra.mxu0 %v4110
        %4146 = vmatprep.subr.bf16.mxu0 0
        %4147 = vmatpush1.bf16.msra.mxu0 %v4109
        %4148 = vmatprep.subr.bf16.mxu0 0
        %4149 = vmatpush1.bf16.msra.mxu0 %v4108
        %4150 = vmatprep.subr.bf16.mxu0 0
        %4151 = vmatpush1.bf16.msra.mxu0 %v4107
        %4152 = vmatprep.subr.bf16.mxu0 0
        %4153 = vmatpush1.bf16.msra.mxu0 %v4106
        %4154 = vmatprep.subr.bf16.mxu0 0
        %4155 = vmatpush2.bf16.msra.mxu0 %v4121
        %4156 = vmatprep.subr.bf16.mxu0 0
        %4157 = vmatpush2.bf16.msra.mxu0 %v4120
        %4158 = vmatprep.subr.bf16.mxu0 0
        %4159 = vmatpush2.bf16.msra.mxu0 %v4119
        %4160 = vmatprep.subr.bf16.mxu0 0
        %4161 = vmatpush2.bf16.msra.mxu0 %v4118
        %4162 = vmatprep.subr.bf16.mxu0 0
        %4163 = vmatpush2.bf16.msra.mxu0 %v4117
        %4164 = vmatprep.subr.bf16.mxu0 0
        %4165 = vmatpush2.bf16.msra.mxu0 %v4116
        %4166 = vmatprep.subr.bf16.mxu0 0
        %4167 = vmatpush2.bf16.msra.mxu0 %v4115
        %4168 = vmatprep.subr.bf16.mxu0 0
        %4169 = vmatpush2.bf16.msra.mxu0 %v4114
        %4170 = vmatprep.mubr.bf16.mxu0 %v4035
        %4171 = vmatmul.mubr.bf16.gmra.mxu0 %v4034
        %v4172 = vpop.f32.mrf.mxu0
        %v4173 = vadd.f32 %v4040, %v4172
        %v4174 = vpop.f32.mrf.mxu0
        %v4175 = vpop.f32.mrf.mxu0
        %v4176 = vpop.f32.mrf.mxu0
        %4177 = vdwg.mxu0
        %v4178 = vld [vmem:[%s26] sm:$0x1]
        %v4179 = vld [vmem:[%s27] sm:$0x1]
        %v4180 = vadd.f32 %v3848, %v4173
        %4181 = vadd.xlane.f32.xlu0 %v4180
        %v4182 = vpop.xlane.xlu0 %4181
        %v4183 = vmul.f32 %v4182, %v2340
        %v4184 = vsub.f32 %v4180, %v4183
        %v4185 = vmul.f32 %v4184, %v4184
        %4186 = vadd.xlane.f32.xlu0 %v4185
        %v4187 = vpop.xlane.xlu0 %4186
        %v4188 = vmul.f32 %v4187, %v2340
        %v4189 = vadd.f32 %v4188, 1e-05
        %v4190 = vrsqrt.pop %v4189
        %v4191 = vmul.f32 %v4184, %v4190
        %v4193 = vlaneseq
        %v4194 = vshrl.u32 %v4193, 7
        %v4195 = vsub.s32 0, %v4194
        %v4196 = vrot.slane %v4178, %v4195
        %v4198 = vmul.f32 %v4191, %v4196
        %v4200 = vlaneseq
        %v4201 = vshrl.u32 %v4200, 7
        %v4202 = vsub.s32 0, %v4201
        %v4203 = vrot.slane %v4179, %v4202
        %v4205 = vadd.f32 %v4198, %v4203
        %4206 = vst [vmem:[%s849] sm:$0xff] %v4205
        %s4207 = sand.u32 %s648, 1
        %s4208 = scalar_lea.sflag [#allocation3], %s4207
        %s4209 = sand.u32 %s648, 1
        %s4210 = smul.addr %s4209, 8
        %s4211 = scalar_lea.vmem [#allocation2], %s4210
        // Predicated region
        $region133: #{transformer_decoder_forward.3} parent=131 // pred_check
          %p4212 = pneg %p658
        $region134: #{transformer_decoder_forward.3} parent=131 // pred_check_branch
          %4214 = sbr.rel (%p4212) target = $region136
        $region135: #{transformer_decoder_forward.3} parent=131 // pred_region
          %s4216 = ssub.s32 128, 128
          %4217 = vsyncadd %s4208, %s4216
          %s4218 = smul.addr %s42, 128
          %s4219 = scalar_lea.hbm %s28, %s4218
          %s4221 = sshll.u32 %s4211, 4
          %s4222 = int_to_ptr.vmem [resolvable:$true] %s4221
          %4224 = dma.vmem_to_hbm [thread:$0]  %s4222, 128, %s4219, %s4208
        $region136: #{transformer_decoder_forward.3} parent=131 // pred_fallthru
          _
      $region132: #{transformer_decoder_forward.3} parent=5 // pred_fallthru
        _
      %p4225 = scmp.le.s32.totalorder 2, %s37
      // Predicated region
      $region137: #{transformer_decoder_forward.3} parent=5 // pred_check
        %p4226 = pneg %p4225
      $region138: #{transformer_decoder_forward.3} parent=5 // pred_check_branch
        %4228 = sbr.rel (%p4226) target = $region140
      $region139: #{transformer_decoder_forward.3} parent=5 // pred_region
        %s4229 = ssub.s32 %s37, 2
        // Predicated region
        $region141: #{transformer_decoder_forward.3} parent=139 // pred_check
          %p4230 = pneg %p664
        $region142: #{transformer_decoder_forward.3} parent=139 // pred_check_branch
          %4232 = sbr.rel (%p4230) target = $region144
        $region143: #{transformer_decoder_forward.3} parent=139 // pred_region
          %s4233 = sand.u32 %s649, 1
          %s4234 = scalar_lea.sflag [#allocation3], %s4233
          %s4235 = sand.u32 %s649, 1
          %s4236 = smul.addr %s4235, 8
          %s4237 = scalar_lea.vmem [#allocation2], %s4236
          %4238 = dma.done %s4234, 128
        $region144: #{transformer_decoder_forward.3} parent=139 // pred_fallthru
          _
      $region140: #{transformer_decoder_forward.3} parent=5 // pred_fallthru
        _
    $region6: #{transformer_decoder_forward.3} parent=1 // loop_footer
      %s41 = sadd.s32 1, %s37
    $region7: #{transformer_decoder_forward.3} parent=1 // loop_footer_branch
      %36 = sbr.rel target = $region3
    $region8: #{transformer_decoder_forward.3} parent=1 // loop_exit
      _
    %4239 = vsyncpa [#allocation3], 1
    %s4240 = scalar_lea.sflag [#allocation3], 1
    %4241 = vsyncpa %s4240, 1

// kernel: transformer_decoder_forward.2
$region0: #{transformer_decoder_forward.2}
  #allocation0 [shape = 'u32[]', space=smem, size = 0x4, offset = 0x4, fixed_abs, tag = 'smem constant byte address 0x4 - core index']
  #allocation1 [shape = 'u32[144,128]{1,0:T(1,128)}', space=vmem, size = 0x12000, scoped, tag = 'internal scratch']
  %s0 = inlined_call_operand.vmem [shape: f32[2,8,128], index: 0, kind: input, shape index: {}]
  %s1 = inlined_call_operand.vmem [shape: f32[2,8,128], index: 1, kind: input, shape index: {}]
  %s2 = inlined_call_operand.vmem [shape: bf16[128,128], index: 2, kind: input, shape index: {}]
  %s3 = inlined_call_operand.hbm [shape: f32[1,128], index: 3, kind: input, shape index: {}]
  %s4 = inlined_call_operand.hbm [shape: bf16[128,128], index: 4, kind: input, shape index: {}]
  %s5 = inlined_call_operand.hbm [shape: f32[1,128], index: 5, kind: input, shape index: {}]
  %s6 = inlined_call_operand.hbm [shape: bf16[128,128], index: 6, kind: input, shape index: {}]
  %s7 = inlined_call_operand.hbm [shape: f32[1,128], index: 7, kind: input, shape index: {}]
  %s8 = inlined_call_operand.hbm [shape: bf16[128,128], index: 8, kind: input, shape index: {}]
  %s9 = inlined_call_operand.hbm [shape: f32[1,128], index: 9, kind: input, shape index: {}]
  %s10 = inlined_call_operand.hbm [shape: bf16[128,128], index: 10, kind: input, shape index: {}]
  %s11 = inlined_call_operand.hbm [shape: f32[1,128], index: 11, kind: input, shape index: {}]
  %s12 = inlined_call_operand.hbm [shape: bf16[128,128], index: 12, kind: input, shape index: {}]
  %s13 = inlined_call_operand.hbm [shape: f32[1,128], index: 13, kind: input, shape index: {}]
  %s14 = inlined_call_operand.hbm [shape: bf16[128,128], index: 14, kind: input, shape index: {}]
  %s15 = inlined_call_operand.hbm [shape: f32[1,128], index: 15, kind: input, shape index: {}]
  %s16 = inlined_call_operand.hbm [shape: bf16[128,128], index: 16, kind: input, shape index: {}]
  %s17 = inlined_call_operand.vmem [shape: f32[1,128], index: 17, kind: input, shape index: {}]
  %s18 = inlined_call_operand.hbm [shape: bf16[128,256], index: 18, kind: input, shape index: {}]
  %s19 = inlined_call_operand.hbm [shape: f32[1,256], index: 19, kind: input, shape index: {}]
  %s20 = inlined_call_operand.hbm [shape: bf16[256,128], index: 20, kind: input, shape index: {}]
  %s21 = inlined_call_operand.hbm [shape: f32[1,128], index: 21, kind: input, shape index: {}]
  %s22 = inlined_call_operand.vmem [shape: f32[1,128], index: 22, kind: input, shape index: {}]
  %s23 = inlined_call_operand.vmem [shape: f32[1,128], index: 23, kind: input, shape index: {}]
  %s24 = inlined_call_operand.vmem [shape: f32[1,128], index: 24, kind: input, shape index: {}]
  %s25 = inlined_call_operand.vmem [shape: f32[1,128], index: 25, kind: input, shape index: {}]
  %s26 = inlined_call_operand.vmem [shape: f32[1,128], index: 26, kind: input, shape index: {}]
  %s27 = inlined_call_operand.vmem [shape: f32[1,128], index: 27, kind: input, shape index: {}]
  %s28 = inlined_call_operand.vmem [shape: f32[2,8,128], index: 28, kind: output, shape index: {}]
  %s29 = sld [smem:[#allocation0]]
  $region217: #{transformer_decoder_forward.2} parent=0
    _
  %s31 = ssub.s32 1, %s29
  %s32 = scalar_select 0, %s31, %s29
  $region1: #{transformer_decoder_forward.2} parent=0
    #allocation2 [shape = 'u8[512]{0}', space=vmem, size = 0x400, scoped, tag = 'input window, operand 3, single buffered']
    #allocation3 [shape = 's32[2]{0}', space=sflag, size = 0x8, scoped, tag = 'scoped memory for transformer_decoder_forward.2']
    #allocation4 [shape = 'u8[32768]{0}', space=vmem, size = 0x8000, scoped, tag = 'input window, operand 4, single buffered']
    #allocation5 [shape = 's32[1]{0}', space=sflag, size = 0x4, scoped, tag = 'scoped memory for transformer_decoder_forward.2']
    #allocation6 [shape = 'u8[512]{0}', space=vmem, size = 0x400, scoped, tag = 'input window, operand 5, single buffered']
    #allocation7 [shape = 'u8[32768]{0}', space=vmem, size = 0x8000, scoped, tag = 'input window, operand 6, single buffered']
    #allocation8 [shape = 's32[1]{0}', space=sflag, size = 0x4, scoped, tag = 'scoped memory for transformer_decoder_forward.2']
    #allocation9 [shape = 'u8[512]{0}', space=vmem, size = 0x400, scoped, tag = 'input window, operand 7, single buffered']
    #allocation10 [shape = 'u8[32768]{0}', space=vmem, size = 0x8000, scoped, tag = 'input window, operand 8, single buffered']
    #allocation11 [shape = 's32[1]{0}', space=sflag, size = 0x4, scoped, tag = 'scoped memory for transformer_decoder_forward.2']
    #allocation12 [shape = 'u8[512]{0}', space=vmem, size = 0x400, scoped, tag = 'input window, operand 9, single buffered']
    #allocation13 [shape = 'u8[32768]{0}', space=vmem, size = 0x8000, scoped, tag = 'input window, operand 10, single buffered']
    #allocation14 [shape = 's32[1]{0}', space=sflag, size = 0x4, scoped, tag = 'scoped memory for transformer_decoder_forward.2']
    #allocation15 [shape = 'u8[512]{0}', space=vmem, size = 0x400, scoped, tag = 'input window, operand 11, single buffered']
    #allocation16 [shape = 'u8[32768]{0}', space=vmem, size = 0x8000, scoped, tag = 'input window, operand 12, single buffered']
    #allocation17 [shape = 's32[1]{0}', space=sflag, size = 0x4, scoped, tag = 'scoped memory for transformer_decoder_forward.2']
    #allocation18 [shape = 'u8[512]{0}', space=vmem, size = 0x400, scoped, tag = 'input window, operand 13, single buffered']
    #allocation19 [shape = 'u8[32768]{0}', space=vmem, size = 0x8000, scoped, tag = 'input window, operand 14, single buffered']
    #allocation20 [shape = 's32[1]{0}', space=sflag, size = 0x4, scoped, tag = 'scoped memory for transformer_decoder_forward.2']
    #allocation21 [shape = 'u8[512]{0}', space=vmem, size = 0x400, scoped, tag = 'input window, operand 15, single buffered']
    #allocation22 [shape = 'u8[32768]{0}', space=vmem, size = 0x8000, scoped, tag = 'input window, operand 16, single buffered']
    #allocation23 [shape = 's32[1]{0}', space=sflag, size = 0x4, scoped, tag = 'scoped memory for transformer_decoder_forward.2']
    #allocation24 [shape = 'u8[65536]{0}', space=vmem, size = 0x10000, scoped, tag = 'input window, operand 18, single buffered']
    #allocation25 [shape = 'u8[1024]{0}', space=vmem, size = 0x400, scoped, tag = 'input window, operand 19, single buffered']
    #allocation26 [shape = 's32[1]{0}', space=sflag, size = 0x4, scoped, tag = 'scoped memory for transformer_decoder_forward.2']
    #allocation27 [shape = 'u8[65536]{0}', space=vmem, size = 0x10000, scoped, tag = 'input window, operand 20, single buffered']
    #allocation28 [shape = 'u8[512]{0}', space=vmem, size = 0x400, scoped, tag = 'input window, operand 21, single buffered']
    #allocation29 [shape = 's32[1]{0}', space=sflag, size = 0x4, scoped, tag = 'scoped memory for transformer_decoder_forward.2']
    %33 = vsyncpa [#allocation3], 0
    %34 = vsyncpa [#allocation5], 0
    %35 = vsyncpa [#allocation8], 0
    %36 = vsyncpa [#allocation11], 0
    %37 = vsyncpa [#allocation14], 0
    %38 = vsyncpa [#allocation17], 0
    %39 = vsyncpa [#allocation20], 0
    %40 = vsyncpa [#allocation23], 0
    %41 = vsyncpa [#allocation26], 0
    %42 = vsyncpa [#allocation29], 0
    loop: start=0, step=1, limit=4
    $region2: #{transformer_decoder_forward.2} parent=1 // loop_pre_header
      _
    $region3: #{transformer_decoder_forward.2} parent=1 // loop_header
      %s44 = sphi 0, %s48
      %p45 = scmp.ge.s32.totalorder %s44, 4
      %s54 = sphi 0, %s56
      %s57 = sphi 0, %s54
      %s58 = sphi 0, %s57
      %s74 = sphi 0, %s58
      %s80 = sphi 0, %s82
      %s83 = sphi 0, %s80
      %s84 = sphi 0, %s83
      %s100 = sphi 0, %s84
      %s104 = sphi 0, %s104
      %s106 = sphi 0, %s104
      %s107 = sphi 0, %s106
      %s121 = sphi 0, %s107
      %s125 = sphi 0, %s125
      %s127 = sphi 0, %s125
      %s128 = sphi 0, %s127
      %s142 = sphi 0, %s128
      %s146 = sphi 0, %s146
      %s148 = sphi 0, %s146
      %s149 = sphi 0, %s148
      %s163 = sphi 0, %s149
      %s167 = sphi 0, %s167
      %s169 = sphi 0, %s167
      %s170 = sphi 0, %s169
      %s184 = sphi 0, %s170
      %s188 = sphi 0, %s188
      %s190 = sphi 0, %s188
      %s191 = sphi 0, %s190
      %s205 = sphi 0, %s191
      %s209 = sphi 0, %s209
      %s211 = sphi 0, %s209
      %s212 = sphi 0, %s211
      %s226 = sphi 0, %s212
      %s230 = sphi 0, %s230
      %s232 = sphi 0, %s230
      %s233 = sphi 0, %s232
      %s247 = sphi 0, %s233
      %s251 = sphi 0, %s251
      %s253 = sphi 0, %s251
      %s254 = sphi 0, %s253
      %s268 = sphi 0, %s254
      %s272 = sphi 0, %s272
      %s274 = sphi 0, %s272
      %s275 = sphi 0, %s274
      %s289 = sphi 0, %s275
      %s293 = sphi 0, %s293
      %s295 = sphi 0, %s293
      %s296 = sphi 0, %s295
      %s310 = sphi 0, %s296
      %s314 = sphi 0, %s314
      %s316 = sphi 0, %s314
      %s317 = sphi 0, %s316
      %s331 = sphi 0, %s317
      %s335 = sphi 0, %s335
      %s337 = sphi 0, %s335
      %s338 = sphi 0, %s337
      %s352 = sphi 0, %s338
      %s356 = sphi 0, %s356
      %s358 = sphi 0, %s356
      %s359 = sphi 0, %s358
      %s373 = sphi 0, %s359
      %s377 = sphi 0, %s377
      %s379 = sphi 0, %s377
      %s380 = sphi 0, %s379
      %s394 = sphi 0, %s380
      %s398 = sphi 0, %s398
      %s400 = sphi 0, %s398
      %s401 = sphi 0, %s400
      %s415 = sphi 0, %s401
      %s419 = sphi 0, %s419
      %s421 = sphi 0, %s419
      %s422 = sphi 0, %s421
      %s436 = sphi 0, %s422
      %s440 = sphi 0, %s440
      %s442 = sphi 0, %s440
      %s443 = sphi 0, %s442
      %s457 = sphi 0, %s443
      %s461 = sphi 0, %s461
      %s463 = sphi 0, %s461
      %s464 = sphi 0, %s463
      %s478 = sphi 0, %s464
      %s482 = sphi 0, %s482
      %s484 = sphi 0, %s482
      %s485 = sphi 0, %s484
      %s499 = sphi 0, %s485
      %s503 = sphi 0, %s503
      %s505 = sphi 0, %s503
      %s506 = sphi 0, %s505
      %s520 = sphi 0, %s506
      %s524 = sphi 0, %s524
      %s526 = sphi 0, %s524
      %s527 = sphi 0, %s526
      %s541 = sphi 0, %s527
      %s545 = sphi 0, %s545
      %s547 = sphi 0, %s545
      %s548 = sphi 0, %s547
      %s562 = sphi 0, %s548
      %s566 = sphi 0, %s566
      %s568 = sphi 0, %s566
      %s569 = sphi 0, %s568
      %s583 = sphi 0, %s569
      %s587 = sphi 0, %s587
      %s589 = sphi 0, %s587
      %s590 = sphi 0, %s589
      %s604 = sphi 0, %s590
      %s608 = sphi 0, %s608
      %s610 = sphi 0, %s608
      %s611 = sphi 0, %s610
      %s625 = sphi 0, %s611
      %s629 = sphi 0, %s629
      %s631 = sphi 0, %s629
      %s632 = sphi 0, %s631
      %s646 = sphi 0, %s632
      %s652 = sphi 0, %s654
      %s655 = sphi 0, %s652
      %s656 = sphi 0, %s655
      %s672 = sphi 0, %s656
    $region4: #{transformer_decoder_forward.2} parent=1 // loop_header_branch
      %47 = sbr.rel (%p45) target = $region8
    $region5: #{transformer_decoder_forward.2} parent=1 // loop_body
      %s49 = ssub.s32 %s44, 1
      %s50 = ssub.s32 %s44, 2
      %s51 = sadd.s32 %s44, 1
      %s52 = ssub.s32 %s44, %s51
      %p53 = scmp.eq.s32.totalorder %s52, 0
      %s55 = sadd.s32 %s54, 1
      %s56 = scalar_select %p53, %s54, %s55
      %p59 = pneg %p53
      %p60 = scmp.eq.s32.totalorder %s44, 1
      %p61 = por %p59, %p60
      %p62 = scmp.ne.s32.totalorder %s54, %s57
      %p63 = scmp.eq.s32.totalorder %s44, 0
      %p64 = por %p62, %p63
      %p65 = scmp.ne.s32.totalorder %s54, %s57
      %p66 = scmp.eq.s32.totalorder %s49, 1
      %p67 = por %p65, %p66
      %p68 = scmp.ne.s32.totalorder %s57, %s58
      %p69 = scmp.eq.s32.totalorder %s49, 0
      %p70 = por %p68, %p69
      %p71 = scmp.ne.s32.totalorder %s57, %s58
      %p72 = scmp.eq.s32.totalorder %s50, 1
      %p73 = por %p71, %p72
      %p75 = scmp.ne.s32.totalorder %s58, %s74
      %p76 = scmp.eq.s32.totalorder %s50, 0
      %p77 = por %p75, %p76
      %s78 = ssub.s32 %s44, %s51
      %p79 = scmp.eq.s32.totalorder %s78, 0
      %s81 = sadd.s32 %s80, 1
      %s82 = scalar_select %p79, %s80, %s81
      %p85 = pneg %p79
      %p86 = scmp.eq.s32.totalorder %s44, 1
      %p87 = por %p85, %p86
      %p88 = scmp.ne.s32.totalorder %s80, %s83
      %p89 = scmp.eq.s32.totalorder %s44, 0
      %p90 = por %p88, %p89
      %p91 = scmp.ne.s32.totalorder %s80, %s83
      %p92 = scmp.eq.s32.totalorder %s49, 1
      %p93 = por %p91, %p92
      %p94 = scmp.ne.s32.totalorder %s83, %s84
      %p95 = scmp.eq.s32.totalorder %s49, 0
      %p96 = por %p94, %p95
      %p97 = scmp.ne.s32.totalorder %s83, %s84
      %p98 = scmp.eq.s32.totalorder %s50, 1
      %p99 = por %p97, %p98
      %p101 = scmp.ne.s32.totalorder %s84, %s100
      %p102 = scmp.eq.s32.totalorder %s50, 0
      %p103 = por %p101, %p102
      %s105 = sadd.s32 %s104, 1
      %p108 = scmp.eq.s32.totalorder %s44, 1
      %p109 = scmp.ne.s32.totalorder %s104, %s106
      %p110 = scmp.eq.s32.totalorder %s44, 0
      %p111 = por %p109, %p110
      %p112 = scmp.ne.s32.totalorder %s104, %s106
      %p113 = scmp.eq.s32.totalorder %s49, 1
      %p114 = por %p112, %p113
      %p115 = scmp.ne.s32.totalorder %s106, %s107
      %p116 = scmp.eq.s32.totalorder %s49, 0
      %p117 = por %p115, %p116
      %p118 = scmp.ne.s32.totalorder %s106, %s107
      %p119 = scmp.eq.s32.totalorder %s50, 1
      %p120 = por %p118, %p119
      %p122 = scmp.ne.s32.totalorder %s107, %s121
      %p123 = scmp.eq.s32.totalorder %s50, 0
      %p124 = por %p122, %p123
      %s126 = sadd.s32 %s125, 1
      %p129 = scmp.eq.s32.totalorder %s44, 1
      %p130 = scmp.ne.s32.totalorder %s125, %s127
      %p131 = scmp.eq.s32.totalorder %s44, 0
      %p132 = por %p130, %p131
      %p133 = scmp.ne.s32.totalorder %s125, %s127
      %p134 = scmp.eq.s32.totalorder %s49, 1
      %p135 = por %p133, %p134
      %p136 = scmp.ne.s32.totalorder %s127, %s128
      %p137 = scmp.eq.s32.totalorder %s49, 0
      %p138 = por %p136, %p137
      %p139 = scmp.ne.s32.totalorder %s127, %s128
      %p140 = scmp.eq.s32.totalorder %s50, 1
      %p141 = por %p139, %p140
      %p143 = scmp.ne.s32.totalorder %s128, %s142
      %p144 = scmp.eq.s32.totalorder %s50, 0
      %p145 = por %p143, %p144
      %s147 = sadd.s32 %s146, 1
      %p150 = scmp.eq.s32.totalorder %s44, 1
      %p151 = scmp.ne.s32.totalorder %s146, %s148
      %p152 = scmp.eq.s32.totalorder %s44, 0
      %p153 = por %p151, %p152
      %p154 = scmp.ne.s32.totalorder %s146, %s148
      %p155 = scmp.eq.s32.totalorder %s49, 1
      %p156 = por %p154, %p155
      %p157 = scmp.ne.s32.totalorder %s148, %s149
      %p158 = scmp.eq.s32.totalorder %s49, 0
      %p159 = por %p157, %p158
      %p160 = scmp.ne.s32.totalorder %s148, %s149
      %p161 = scmp.eq.s32.totalorder %s50, 1
      %p162 = por %p160, %p161
      %p164 = scmp.ne.s32.totalorder %s149, %s163
      %p165 = scmp.eq.s32.totalorder %s50, 0
      %p166 = por %p164, %p165
      %s168 = sadd.s32 %s167, 1
      %p171 = scmp.eq.s32.totalorder %s44, 1
      %p172 = scmp.ne.s32.totalorder %s167, %s169
      %p173 = scmp.eq.s32.totalorder %s44, 0
      %p174 = por %p172, %p173
      %p175 = scmp.ne.s32.totalorder %s167, %s169
      %p176 = scmp.eq.s32.totalorder %s49, 1
      %p177 = por %p175, %p176
      %p178 = scmp.ne.s32.totalorder %s169, %s170
      %p179 = scmp.eq.s32.totalorder %s49, 0
      %p180 = por %p178, %p179
      %p181 = scmp.ne.s32.totalorder %s169, %s170
      %p182 = scmp.eq.s32.totalorder %s50, 1
      %p183 = por %p181, %p182
      %p185 = scmp.ne.s32.totalorder %s170, %s184
      %p186 = scmp.eq.s32.totalorder %s50, 0
      %p187 = por %p185, %p186
      %s189 = sadd.s32 %s188, 1
      %p192 = scmp.eq.s32.totalorder %s44, 1
      %p193 = scmp.ne.s32.totalorder %s188, %s190
      %p194 = scmp.eq.s32.totalorder %s44, 0
      %p195 = por %p193, %p194
      %p196 = scmp.ne.s32.totalorder %s188, %s190
      %p197 = scmp.eq.s32.totalorder %s49, 1
      %p198 = por %p196, %p197
      %p199 = scmp.ne.s32.totalorder %s190, %s191
      %p200 = scmp.eq.s32.totalorder %s49, 0
      %p201 = por %p199, %p200
      %p202 = scmp.ne.s32.totalorder %s190, %s191
      %p203 = scmp.eq.s32.totalorder %s50, 1
      %p204 = por %p202, %p203
      %p206 = scmp.ne.s32.totalorder %s191, %s205
      %p207 = scmp.eq.s32.totalorder %s50, 0
      %p208 = por %p206, %p207
      %s210 = sadd.s32 %s209, 1
      %p213 = scmp.eq.s32.totalorder %s44, 1
      %p214 = scmp.ne.s32.totalorder %s209, %s211
      %p215 = scmp.eq.s32.totalorder %s44, 0
      %p216 = por %p214, %p215
      %p217 = scmp.ne.s32.totalorder %s209, %s211
      %p218 = scmp.eq.s32.totalorder %s49, 1
      %p219 = por %p217, %p218
      %p220 = scmp.ne.s32.totalorder %s211, %s212
      %p221 = scmp.eq.s32.totalorder %s49, 0
      %p222 = por %p220, %p221
      %p223 = scmp.ne.s32.totalorder %s211, %s212
      %p224 = scmp.eq.s32.totalorder %s50, 1
      %p225 = por %p223, %p224
      %p227 = scmp.ne.s32.totalorder %s212, %s226
      %p228 = scmp.eq.s32.totalorder %s50, 0
      %p229 = por %p227, %p228
      %s231 = sadd.s32 %s230, 1
      %p234 = scmp.eq.s32.totalorder %s44, 1
      %p235 = scmp.ne.s32.totalorder %s230, %s232
      %p236 = scmp.eq.s32.totalorder %s44, 0
      %p237 = por %p235, %p236
      %p238 = scmp.ne.s32.totalorder %s230, %s232
      %p239 = scmp.eq.s32.totalorder %s49, 1
      %p240 = por %p238, %p239
      %p241 = scmp.ne.s32.totalorder %s232, %s233
      %p242 = scmp.eq.s32.totalorder %s49, 0
      %p243 = por %p241, %p242
      %p244 = scmp.ne.s32.totalorder %s232, %s233
      %p245 = scmp.eq.s32.totalorder %s50, 1
      %p246 = por %p244, %p245
      %p248 = scmp.ne.s32.totalorder %s233, %s247
      %p249 = scmp.eq.s32.totalorder %s50, 0
      %p250 = por %p248, %p249
      %s252 = sadd.s32 %s251, 1
      %p255 = scmp.eq.s32.totalorder %s44, 1
      %p256 = scmp.ne.s32.totalorder %s251, %s253
      %p257 = scmp.eq.s32.totalorder %s44, 0
      %p258 = por %p256, %p257
      %p259 = scmp.ne.s32.totalorder %s251, %s253
      %p260 = scmp.eq.s32.totalorder %s49, 1
      %p261 = por %p259, %p260
      %p262 = scmp.ne.s32.totalorder %s253, %s254
      %p263 = scmp.eq.s32.totalorder %s49, 0
      %p264 = por %p262, %p263
      %p265 = scmp.ne.s32.totalorder %s253, %s254
      %p266 = scmp.eq.s32.totalorder %s50, 1
      %p267 = por %p265, %p266
      %p269 = scmp.ne.s32.totalorder %s254, %s268
      %p270 = scmp.eq.s32.totalorder %s50, 0
      %p271 = por %p269, %p270
      %s273 = sadd.s32 %s272, 1
      %p276 = scmp.eq.s32.totalorder %s44, 1
      %p277 = scmp.ne.s32.totalorder %s272, %s274
      %p278 = scmp.eq.s32.totalorder %s44, 0
      %p279 = por %p277, %p278
      %p280 = scmp.ne.s32.totalorder %s272, %s274
      %p281 = scmp.eq.s32.totalorder %s49, 1
      %p282 = por %p280, %p281
      %p283 = scmp.ne.s32.totalorder %s274, %s275
      %p284 = scmp.eq.s32.totalorder %s49, 0
      %p285 = por %p283, %p284
      %p286 = scmp.ne.s32.totalorder %s274, %s275
      %p287 = scmp.eq.s32.totalorder %s50, 1
      %p288 = por %p286, %p287
      %p290 = scmp.ne.s32.totalorder %s275, %s289
      %p291 = scmp.eq.s32.totalorder %s50, 0
      %p292 = por %p290, %p291
      %s294 = sadd.s32 %s293, 1
      %p297 = scmp.eq.s32.totalorder %s44, 1
      %p298 = scmp.ne.s32.totalorder %s293, %s295
      %p299 = scmp.eq.s32.totalorder %s44, 0
      %p300 = por %p298, %p299
      %p301 = scmp.ne.s32.totalorder %s293, %s295
      %p302 = scmp.eq.s32.totalorder %s49, 1
      %p303 = por %p301, %p302
      %p304 = scmp.ne.s32.totalorder %s295, %s296
      %p305 = scmp.eq.s32.totalorder %s49, 0
      %p306 = por %p304, %p305
      %p307 = scmp.ne.s32.totalorder %s295, %s296
      %p308 = scmp.eq.s32.totalorder %s50, 1
      %p309 = por %p307, %p308
      %p311 = scmp.ne.s32.totalorder %s296, %s310
      %p312 = scmp.eq.s32.totalorder %s50, 0
      %p313 = por %p311, %p312
      %s315 = sadd.s32 %s314, 1
      %p318 = scmp.eq.s32.totalorder %s44, 1
      %p319 = scmp.ne.s32.totalorder %s314, %s316
      %p320 = scmp.eq.s32.totalorder %s44, 0
      %p321 = por %p319, %p320
      %p322 = scmp.ne.s32.totalorder %s314, %s316
      %p323 = scmp.eq.s32.totalorder %s49, 1
      %p324 = por %p322, %p323
      %p325 = scmp.ne.s32.totalorder %s316, %s317
      %p326 = scmp.eq.s32.totalorder %s49, 0
      %p327 = por %p325, %p326
      %p328 = scmp.ne.s32.totalorder %s316, %s317
      %p329 = scmp.eq.s32.totalorder %s50, 1
      %p330 = por %p328, %p329
      %p332 = scmp.ne.s32.totalorder %s317, %s331
      %p333 = scmp.eq.s32.totalorder %s50, 0
      %p334 = por %p332, %p333
      %s336 = sadd.s32 %s335, 1
      %p339 = scmp.eq.s32.totalorder %s44, 1
      %p340 = scmp.ne.s32.totalorder %s335, %s337
      %p341 = scmp.eq.s32.totalorder %s44, 0
      %p342 = por %p340, %p341
      %p343 = scmp.ne.s32.totalorder %s335, %s337
      %p344 = scmp.eq.s32.totalorder %s49, 1
      %p345 = por %p343, %p344
      %p346 = scmp.ne.s32.totalorder %s337, %s338
      %p347 = scmp.eq.s32.totalorder %s49, 0
      %p348 = por %p346, %p347
      %p349 = scmp.ne.s32.totalorder %s337, %s338
      %p350 = scmp.eq.s32.totalorder %s50, 1
      %p351 = por %p349, %p350
      %p353 = scmp.ne.s32.totalorder %s338, %s352
      %p354 = scmp.eq.s32.totalorder %s50, 0
      %p355 = por %p353, %p354
      %s357 = sadd.s32 %s356, 1
      %p360 = scmp.eq.s32.totalorder %s44, 1
      %p361 = scmp.ne.s32.totalorder %s356, %s358
      %p362 = scmp.eq.s32.totalorder %s44, 0
      %p363 = por %p361, %p362
      %p364 = scmp.ne.s32.totalorder %s356, %s358
      %p365 = scmp.eq.s32.totalorder %s49, 1
      %p366 = por %p364, %p365
      %p367 = scmp.ne.s32.totalorder %s358, %s359
      %p368 = scmp.eq.s32.totalorder %s49, 0
      %p369 = por %p367, %p368
      %p370 = scmp.ne.s32.totalorder %s358, %s359
      %p371 = scmp.eq.s32.totalorder %s50, 1
      %p372 = por %p370, %p371
      %p374 = scmp.ne.s32.totalorder %s359, %s373
      %p375 = scmp.eq.s32.totalorder %s50, 0
      %p376 = por %p374, %p375
      %s378 = sadd.s32 %s377, 1
      %p381 = scmp.eq.s32.totalorder %s44, 1
      %p382 = scmp.ne.s32.totalorder %s377, %s379
      %p383 = scmp.eq.s32.totalorder %s44, 0
      %p384 = por %p382, %p383
      %p385 = scmp.ne.s32.totalorder %s377, %s379
      %p386 = scmp.eq.s32.totalorder %s49, 1
      %p387 = por %p385, %p386
      %p388 = scmp.ne.s32.totalorder %s379, %s380
      %p389 = scmp.eq.s32.totalorder %s49, 0
      %p390 = por %p388, %p389
      %p391 = scmp.ne.s32.totalorder %s379, %s380
      %p392 = scmp.eq.s32.totalorder %s50, 1
      %p393 = por %p391, %p392
      %p395 = scmp.ne.s32.totalorder %s380, %s394
      %p396 = scmp.eq.s32.totalorder %s50, 0
      %p397 = por %p395, %p396
      %s399 = sadd.s32 %s398, 1
      %p402 = scmp.eq.s32.totalorder %s44, 1
      %p403 = scmp.ne.s32.totalorder %s398, %s400
      %p404 = scmp.eq.s32.totalorder %s44, 0
      %p405 = por %p403, %p404
      %p406 = scmp.ne.s32.totalorder %s398, %s400
      %p407 = scmp.eq.s32.totalorder %s49, 1
      %p408 = por %p406, %p407
      %p409 = scmp.ne.s32.totalorder %s400, %s401
      %p410 = scmp.eq.s32.totalorder %s49, 0
      %p411 = por %p409, %p410
      %p412 = scmp.ne.s32.totalorder %s400, %s401
      %p413 = scmp.eq.s32.totalorder %s50, 1
      %p414 = por %p412, %p413
      %p416 = scmp.ne.s32.totalorder %s401, %s415
      %p417 = scmp.eq.s32.totalorder %s50, 0
      %p418 = por %p416, %p417
      %s420 = sadd.s32 %s419, 1
      %p423 = scmp.eq.s32.totalorder %s44, 1
      %p424 = scmp.ne.s32.totalorder %s419, %s421
      %p425 = scmp.eq.s32.totalorder %s44, 0
      %p426 = por %p424, %p425
      %p427 = scmp.ne.s32.totalorder %s419, %s421
      %p428 = scmp.eq.s32.totalorder %s49, 1
      %p429 = por %p427, %p428
      %p430 = scmp.ne.s32.totalorder %s421, %s422
      %p431 = scmp.eq.s32.totalorder %s49, 0
      %p432 = por %p430, %p431
      %p433 = scmp.ne.s32.totalorder %s421, %s422
      %p434 = scmp.eq.s32.totalorder %s50, 1
      %p435 = por %p433, %p434
      %p437 = scmp.ne.s32.totalorder %s422, %s436
      %p438 = scmp.eq.s32.totalorder %s50, 0
      %p439 = por %p437, %p438
      %s441 = sadd.s32 %s440, 1
      %p444 = scmp.eq.s32.totalorder %s44, 1
      %p445 = scmp.ne.s32.totalorder %s440, %s442
      %p446 = scmp.eq.s32.totalorder %s44, 0
      %p447 = por %p445, %p446
      %p448 = scmp.ne.s32.totalorder %s440, %s442
      %p449 = scmp.eq.s32.totalorder %s49, 1
      %p450 = por %p448, %p449
      %p451 = scmp.ne.s32.totalorder %s442, %s443
      %p452 = scmp.eq.s32.totalorder %s49, 0
      %p453 = por %p451, %p452
      %p454 = scmp.ne.s32.totalorder %s442, %s443
      %p455 = scmp.eq.s32.totalorder %s50, 1
      %p456 = por %p454, %p455
      %p458 = scmp.ne.s32.totalorder %s443, %s457
      %p459 = scmp.eq.s32.totalorder %s50, 0
      %p460 = por %p458, %p459
      %s462 = sadd.s32 %s461, 1
      %p465 = scmp.eq.s32.totalorder %s44, 1
      %p466 = scmp.ne.s32.totalorder %s461, %s463
      %p467 = scmp.eq.s32.totalorder %s44, 0
      %p468 = por %p466, %p467
      %p469 = scmp.ne.s32.totalorder %s461, %s463
      %p470 = scmp.eq.s32.totalorder %s49, 1
      %p471 = por %p469, %p470
      %p472 = scmp.ne.s32.totalorder %s463, %s464
      %p473 = scmp.eq.s32.totalorder %s49, 0
      %p474 = por %p472, %p473
      %p475 = scmp.ne.s32.totalorder %s463, %s464
      %p476 = scmp.eq.s32.totalorder %s50, 1
      %p477 = por %p475, %p476
      %p479 = scmp.ne.s32.totalorder %s464, %s478
      %p480 = scmp.eq.s32.totalorder %s50, 0
      %p481 = por %p479, %p480
      %s483 = sadd.s32 %s482, 1
      %p486 = scmp.eq.s32.totalorder %s44, 1
      %p487 = scmp.ne.s32.totalorder %s482, %s484
      %p488 = scmp.eq.s32.totalorder %s44, 0
      %p489 = por %p487, %p488
      %p490 = scmp.ne.s32.totalorder %s482, %s484
      %p491 = scmp.eq.s32.totalorder %s49, 1
      %p492 = por %p490, %p491
      %p493 = scmp.ne.s32.totalorder %s484, %s485
      %p494 = scmp.eq.s32.totalorder %s49, 0
      %p495 = por %p493, %p494
      %p496 = scmp.ne.s32.totalorder %s484, %s485
      %p497 = scmp.eq.s32.totalorder %s50, 1
      %p498 = por %p496, %p497
      %p500 = scmp.ne.s32.totalorder %s485, %s499
      %p501 = scmp.eq.s32.totalorder %s50, 0
      %p502 = por %p500, %p501
      %s504 = sadd.s32 %s503, 1
      %p507 = scmp.eq.s32.totalorder %s44, 1
      %p508 = scmp.ne.s32.totalorder %s503, %s505
      %p509 = scmp.eq.s32.totalorder %s44, 0
      %p510 = por %p508, %p509
      %p511 = scmp.ne.s32.totalorder %s503, %s505
      %p512 = scmp.eq.s32.totalorder %s49, 1
      %p513 = por %p511, %p512
      %p514 = scmp.ne.s32.totalorder %s505, %s506
      %p515 = scmp.eq.s32.totalorder %s49, 0
      %p516 = por %p514, %p515
      %p517 = scmp.ne.s32.totalorder %s505, %s506
      %p518 = scmp.eq.s32.totalorder %s50, 1
      %p519 = por %p517, %p518
      %p521 = scmp.ne.s32.totalorder %s506, %s520
      %p522 = scmp.eq.s32.totalorder %s50, 0
      %p523 = por %p521, %p522
      %s525 = sadd.s32 %s524, 1
      %p528 = scmp.eq.s32.totalorder %s44, 1
      %p529 = scmp.ne.s32.totalorder %s524, %s526
      %p530 = scmp.eq.s32.totalorder %s44, 0
      %p531 = por %p529, %p530
      %p532 = scmp.ne.s32.totalorder %s524, %s526
      %p533 = scmp.eq.s32.totalorder %s49, 1
      %p534 = por %p532, %p533
      %p535 = scmp.ne.s32.totalorder %s526, %s527
      %p536 = scmp.eq.s32.totalorder %s49, 0
      %p537 = por %p535, %p536
      %p538 = scmp.ne.s32.totalorder %s526, %s527
      %p539 = scmp.eq.s32.totalorder %s50, 1
      %p540 = por %p538, %p539
      %p542 = scmp.ne.s32.totalorder %s527, %s541
      %p543 = scmp.eq.s32.totalorder %s50, 0
      %p544 = por %p542, %p543
      %s546 = sadd.s32 %s545, 1
      %p549 = scmp.eq.s32.totalorder %s44, 1
      %p550 = scmp.ne.s32.totalorder %s545, %s547
      %p551 = scmp.eq.s32.totalorder %s44, 0
      %p552 = por %p550, %p551
      %p553 = scmp.ne.s32.totalorder %s545, %s547
      %p554 = scmp.eq.s32.totalorder %s49, 1
      %p555 = por %p553, %p554
      %p556 = scmp.ne.s32.totalorder %s547, %s548
      %p557 = scmp.eq.s32.totalorder %s49, 0
      %p558 = por %p556, %p557
      %p559 = scmp.ne.s32.totalorder %s547, %s548
      %p560 = scmp.eq.s32.totalorder %s50, 1
      %p561 = por %p559, %p560
      %p563 = scmp.ne.s32.totalorder %s548, %s562
      %p564 = scmp.eq.s32.totalorder %s50, 0
      %p565 = por %p563, %p564
      %s567 = sadd.s32 %s566, 1
      %p570 = scmp.eq.s32.totalorder %s44, 1
      %p571 = scmp.ne.s32.totalorder %s566, %s568
      %p572 = scmp.eq.s32.totalorder %s44, 0
      %p573 = por %p571, %p572
      %p574 = scmp.ne.s32.totalorder %s566, %s568
      %p575 = scmp.eq.s32.totalorder %s49, 1
      %p576 = por %p574, %p575
      %p577 = scmp.ne.s32.totalorder %s568, %s569
      %p578 = scmp.eq.s32.totalorder %s49, 0
      %p579 = por %p577, %p578
      %p580 = scmp.ne.s32.totalorder %s568, %s569
      %p581 = scmp.eq.s32.totalorder %s50, 1
      %p582 = por %p580, %p581
      %p584 = scmp.ne.s32.totalorder %s569, %s583
      %p585 = scmp.eq.s32.totalorder %s50, 0
      %p586 = por %p584, %p585
      %s588 = sadd.s32 %s587, 1
      %p591 = scmp.eq.s32.totalorder %s44, 1
      %p592 = scmp.ne.s32.totalorder %s587, %s589
      %p593 = scmp.eq.s32.totalorder %s44, 0
      %p594 = por %p592, %p593
      %p595 = scmp.ne.s32.totalorder %s587, %s589
      %p596 = scmp.eq.s32.totalorder %s49, 1
      %p597 = por %p595, %p596
      %p598 = scmp.ne.s32.totalorder %s589, %s590
      %p599 = scmp.eq.s32.totalorder %s49, 0
      %p600 = por %p598, %p599
      %p601 = scmp.ne.s32.totalorder %s589, %s590
      %p602 = scmp.eq.s32.totalorder %s50, 1
      %p603 = por %p601, %p602
      %p605 = scmp.ne.s32.totalorder %s590, %s604
      %p606 = scmp.eq.s32.totalorder %s50, 0
      %p607 = por %p605, %p606
      %s609 = sadd.s32 %s608, 1
      %p612 = scmp.eq.s32.totalorder %s44, 1
      %p613 = scmp.ne.s32.totalorder %s608, %s610
      %p614 = scmp.eq.s32.totalorder %s44, 0
      %p615 = por %p613, %p614
      %p616 = scmp.ne.s32.totalorder %s608, %s610
      %p617 = scmp.eq.s32.totalorder %s49, 1
      %p618 = por %p616, %p617
      %p619 = scmp.ne.s32.totalorder %s610, %s611
      %p620 = scmp.eq.s32.totalorder %s49, 0
      %p621 = por %p619, %p620
      %p622 = scmp.ne.s32.totalorder %s610, %s611
      %p623 = scmp.eq.s32.totalorder %s50, 1
      %p624 = por %p622, %p623
      %p626 = scmp.ne.s32.totalorder %s611, %s625
      %p627 = scmp.eq.s32.totalorder %s50, 0
      %p628 = por %p626, %p627
      %s630 = sadd.s32 %s629, 1
      %p633 = scmp.eq.s32.totalorder %s44, 1
      %p634 = scmp.ne.s32.totalorder %s629, %s631
      %p635 = scmp.eq.s32.totalorder %s44, 0
      %p636 = por %p634, %p635
      %p637 = scmp.ne.s32.totalorder %s629, %s631
      %p638 = scmp.eq.s32.totalorder %s49, 1
      %p639 = por %p637, %p638
      %p640 = scmp.ne.s32.totalorder %s631, %s632
      %p641 = scmp.eq.s32.totalorder %s49, 0
      %p642 = por %p640, %p641
      %p643 = scmp.ne.s32.totalorder %s631, %s632
      %p644 = scmp.eq.s32.totalorder %s50, 1
      %p645 = por %p643, %p644
      %p647 = scmp.ne.s32.totalorder %s632, %s646
      %p648 = scmp.eq.s32.totalorder %s50, 0
      %p649 = por %p647, %p648
      %s650 = ssub.s32 %s44, %s51
      %p651 = scmp.eq.s32.totalorder %s650, 0
      %s653 = sadd.s32 %s652, 1
      %s654 = scalar_select %p651, %s652, %s653
      %p657 = pneg %p651
      %p658 = scmp.eq.s32.totalorder %s44, 1
      %p659 = por %p657, %p658
      %p660 = scmp.ne.s32.totalorder %s652, %s655
      %p661 = scmp.eq.s32.totalorder %s44, 0
      %p662 = por %p660, %p661
      %p663 = scmp.ne.s32.totalorder %s652, %s655
      %p664 = scmp.eq.s32.totalorder %s49, 1
      %p665 = por %p663, %p664
      %p666 = scmp.ne.s32.totalorder %s655, %s656
      %p667 = scmp.eq.s32.totalorder %s49, 0
      %p668 = por %p666, %p667
      %p669 = scmp.ne.s32.totalorder %s655, %s656
      %p670 = scmp.eq.s32.totalorder %s50, 1
      %p671 = por %p669, %p670
      %p673 = scmp.ne.s32.totalorder %s656, %s672
      %p674 = scmp.eq.s32.totalorder %s50, 0
      %p675 = por %p673, %p674
      %p676 = scmp.le.s32.totalorder 1, %s44
      %p677 = scmp.lt.s32.totalorder %s44, 3
      %p678 = pnand %p676, %p677
      %p679 = pneg %p678
      // Predicated region
      $region9: #{transformer_decoder_forward.2} parent=5 // pred_check
        _
      $region10: #{transformer_decoder_forward.2} parent=5 // pred_check_branch
        %681 = sbr.rel (%p678) target = $region12
      $region11: #{transformer_decoder_forward.2} parent=5 // pred_region
        %s682 = ssub.s32 %s44, 1
        // Predicated region
        $region13: #{transformer_decoder_forward.2} parent=11 // pred_check
          %p683 = pneg %p117
        $region14: #{transformer_decoder_forward.2} parent=11 // pred_check_branch
          %685 = sbr.rel (%p683) target = $region16
        $region15: #{transformer_decoder_forward.2} parent=11 // pred_region
          _
        $region16: #{transformer_decoder_forward.2} parent=11 // pred_fallthru
          _
        // Predicated region
        $region17: #{transformer_decoder_forward.2} parent=11 // pred_check
          %p686 = pneg %p138
        $region18: #{transformer_decoder_forward.2} parent=11 // pred_check_branch
          %688 = sbr.rel (%p686) target = $region20
        $region19: #{transformer_decoder_forward.2} parent=11 // pred_region
          %s690 = ssub.s32 16, 16
          %691 = vsyncadd [#allocation3], %s690
          %s693 = sshll.u32 [#allocation2], 4
          %s694 = int_to_ptr.vmem [resolvable:$true] %s693
          %696 = dma.hbm_to_vmem [thread:$0]  %s3, 16, %s694, [#allocation3]
        $region20: #{transformer_decoder_forward.2} parent=11 // pred_fallthru
          _
        // Predicated region
        $region21: #{transformer_decoder_forward.2} parent=11 // pred_check
          %p697 = pneg %p159
        $region22: #{transformer_decoder_forward.2} parent=11 // pred_check_branch
          %699 = sbr.rel (%p697) target = $region24
        $region23: #{transformer_decoder_forward.2} parent=11 // pred_region
          %s701 = ssub.s32 1024, 1024
          %702 = vsyncadd [#allocation5], %s701
          %s703 = sshll.u32 [#allocation4], 4
          %s704 = int_to_ptr.vmem [resolvable:$true] %s703
          %709 = dma.hbm_to_vmem [thread:$0]  %s4, 1024, %s704, [#allocation5], 64, 64, 4
        $region24: #{transformer_decoder_forward.2} parent=11 // pred_fallthru
          _
        // Predicated region
        $region25: #{transformer_decoder_forward.2} parent=11 // pred_check
          %p710 = pneg %p180
        $region26: #{transformer_decoder_forward.2} parent=11 // pred_check_branch
          %712 = sbr.rel (%p710) target = $region28
        $region27: #{transformer_decoder_forward.2} parent=11 // pred_region
          %s714 = ssub.s32 16, 16
          %715 = vsyncadd [#allocation5], %s714
          %s717 = sshll.u32 [#allocation6], 4
          %s718 = int_to_ptr.vmem [resolvable:$true] %s717
          %720 = dma.hbm_to_vmem [thread:$0]  %s5, 16, %s718, [#allocation5]
        $region28: #{transformer_decoder_forward.2} parent=11 // pred_fallthru
          _
        // Predicated region
        $region29: #{transformer_decoder_forward.2} parent=11 // pred_check
          %p721 = pneg %p201
        $region30: #{transformer_decoder_forward.2} parent=11 // pred_check_branch
          %723 = sbr.rel (%p721) target = $region32
        $region31: #{transformer_decoder_forward.2} parent=11 // pred_region
          %s725 = ssub.s32 1024, 1024
          %726 = vsyncadd [#allocation8], %s725
          %s727 = sshll.u32 [#allocation7], 4
          %s728 = int_to_ptr.vmem [resolvable:$true] %s727
          %733 = dma.hbm_to_vmem [thread:$0]  %s6, 1024, %s728, [#allocation8], 64, 64, 4
        $region32: #{transformer_decoder_forward.2} parent=11 // pred_fallthru
          _
        // Predicated region
        $region33: #{transformer_decoder_forward.2} parent=11 // pred_check
          %p734 = pneg %p222
        $region34: #{transformer_decoder_forward.2} parent=11 // pred_check_branch
          %736 = sbr.rel (%p734) target = $region36
        $region35: #{transformer_decoder_forward.2} parent=11 // pred_region
          %s738 = ssub.s32 16, 16
          %739 = vsyncadd [#allocation8], %s738
          %s741 = sshll.u32 [#allocation9], 4
          %s742 = int_to_ptr.vmem [resolvable:$true] %s741
          %744 = dma.hbm_to_vmem [thread:$0]  %s7, 16, %s742, [#allocation8]
        $region36: #{transformer_decoder_forward.2} parent=11 // pred_fallthru
          _
        // Predicated region
        $region37: #{transformer_decoder_forward.2} parent=11 // pred_check
          %p745 = pneg %p243
        $region38: #{transformer_decoder_forward.2} parent=11 // pred_check_branch
          %747 = sbr.rel (%p745) target = $region40
        $region39: #{transformer_decoder_forward.2} parent=11 // pred_region
          %s749 = ssub.s32 1024, 1024
          %750 = vsyncadd [#allocation11], %s749
          %s751 = sshll.u32 [#allocation10], 4
          %s752 = int_to_ptr.vmem [resolvable:$true] %s751
          %757 = dma.hbm_to_vmem [thread:$0]  %s8, 1024, %s752, [#allocation11], 64, 64, 4
        $region40: #{transformer_decoder_forward.2} parent=11 // pred_fallthru
          _
        // Predicated region
        $region41: #{transformer_decoder_forward.2} parent=11 // pred_check
          %p758 = pneg %p264
        $region42: #{transformer_decoder_forward.2} parent=11 // pred_check_branch
          %760 = sbr.rel (%p758) target = $region44
        $region43: #{transformer_decoder_forward.2} parent=11 // pred_region
          %s762 = ssub.s32 16, 16
          %763 = vsyncadd [#allocation11], %s762
          %s765 = sshll.u32 [#allocation12], 4
          %s766 = int_to_ptr.vmem [resolvable:$true] %s765
          %768 = dma.hbm_to_vmem [thread:$0]  %s9, 16, %s766, [#allocation11]
        $region44: #{transformer_decoder_forward.2} parent=11 // pred_fallthru
          _
        // Predicated region
        $region45: #{transformer_decoder_forward.2} parent=11 // pred_check
          %p769 = pneg %p285
        $region46: #{transformer_decoder_forward.2} parent=11 // pred_check_branch
          %771 = sbr.rel (%p769) target = $region48
        $region47: #{transformer_decoder_forward.2} parent=11 // pred_region
          %s773 = ssub.s32 1024, 1024
          %774 = vsyncadd [#allocation14], %s773
          %s775 = sshll.u32 [#allocation13], 4
          %s776 = int_to_ptr.vmem [resolvable:$true] %s775
          %781 = dma.hbm_to_vmem [thread:$0]  %s10, 1024, %s776, [#allocation14], 64, 64, 4
        $region48: #{transformer_decoder_forward.2} parent=11 // pred_fallthru
          _
        // Predicated region
        $region49: #{transformer_decoder_forward.2} parent=11 // pred_check
          %p782 = pneg %p306
        $region50: #{transformer_decoder_forward.2} parent=11 // pred_check_branch
          %784 = sbr.rel (%p782) target = $region52
        $region51: #{transformer_decoder_forward.2} parent=11 // pred_region
          %s786 = ssub.s32 16, 16
          %787 = vsyncadd [#allocation14], %s786
          %s789 = sshll.u32 [#allocation15], 4
          %s790 = int_to_ptr.vmem [resolvable:$true] %s789
          %792 = dma.hbm_to_vmem [thread:$0]  %s11, 16, %s790, [#allocation14]
        $region52: #{transformer_decoder_forward.2} parent=11 // pred_fallthru
          _
        // Predicated region
        $region53: #{transformer_decoder_forward.2} parent=11 // pred_check
          %p793 = pneg %p327
        $region54: #{transformer_decoder_forward.2} parent=11 // pred_check_branch
          %795 = sbr.rel (%p793) target = $region56
        $region55: #{transformer_decoder_forward.2} parent=11 // pred_region
          %s797 = ssub.s32 1024, 1024
          %798 = vsyncadd [#allocation17], %s797
          %s799 = sshll.u32 [#allocation16], 4
          %s800 = int_to_ptr.vmem [resolvable:$true] %s799
          %805 = dma.hbm_to_vmem [thread:$0]  %s12, 1024, %s800, [#allocation17], 64, 64, 4
        $region56: #{transformer_decoder_forward.2} parent=11 // pred_fallthru
          _
        // Predicated region
        $region57: #{transformer_decoder_forward.2} parent=11 // pred_check
          %p806 = pneg %p348
        $region58: #{transformer_decoder_forward.2} parent=11 // pred_check_branch
          %808 = sbr.rel (%p806) target = $region60
        $region59: #{transformer_decoder_forward.2} parent=11 // pred_region
          %s810 = ssub.s32 16, 16
          %811 = vsyncadd [#allocation17], %s810
          %s813 = sshll.u32 [#allocation18], 4
          %s814 = int_to_ptr.vmem [resolvable:$true] %s813
          %816 = dma.hbm_to_vmem [thread:$0]  %s13, 16, %s814, [#allocation17]
        $region60: #{transformer_decoder_forward.2} parent=11 // pred_fallthru
          _
        // Predicated region
        $region61: #{transformer_decoder_forward.2} parent=11 // pred_check
          %p817 = pneg %p369
        $region62: #{transformer_decoder_forward.2} parent=11 // pred_check_branch
          %819 = sbr.rel (%p817) target = $region64
        $region63: #{transformer_decoder_forward.2} parent=11 // pred_region
          %s821 = ssub.s32 1024, 1024
          %822 = vsyncadd [#allocation20], %s821
          %s823 = sshll.u32 [#allocation19], 4
          %s824 = int_to_ptr.vmem [resolvable:$true] %s823
          %829 = dma.hbm_to_vmem [thread:$0]  %s14, 1024, %s824, [#allocation20], 64, 64, 4
        $region64: #{transformer_decoder_forward.2} parent=11 // pred_fallthru
          _
        // Predicated region
        $region65: #{transformer_decoder_forward.2} parent=11 // pred_check
          %p830 = pneg %p390
        $region66: #{transformer_decoder_forward.2} parent=11 // pred_check_branch
          %832 = sbr.rel (%p830) target = $region68
        $region67: #{transformer_decoder_forward.2} parent=11 // pred_region
          %s834 = ssub.s32 16, 16
          %835 = vsyncadd [#allocation20], %s834
          %s837 = sshll.u32 [#allocation21], 4
          %s838 = int_to_ptr.vmem [resolvable:$true] %s837
          %840 = dma.hbm_to_vmem [thread:$0]  %s15, 16, %s838, [#allocation20]
        $region68: #{transformer_decoder_forward.2} parent=11 // pred_fallthru
          _
        // Predicated region
        $region69: #{transformer_decoder_forward.2} parent=11 // pred_check
          %p841 = pneg %p411
        $region70: #{transformer_decoder_forward.2} parent=11 // pred_check_branch
          %843 = sbr.rel (%p841) target = $region72
        $region71: #{transformer_decoder_forward.2} parent=11 // pred_region
          %s845 = ssub.s32 1024, 1024
          %846 = vsyncadd [#allocation23], %s845
          %s847 = sshll.u32 [#allocation22], 4
          %s848 = int_to_ptr.vmem [resolvable:$true] %s847
          %853 = dma.hbm_to_vmem [thread:$0]  %s16, 1024, %s848, [#allocation23], 64, 64, 4
        $region72: #{transformer_decoder_forward.2} parent=11 // pred_fallthru
          _
        // Predicated region
        $region73: #{transformer_decoder_forward.2} parent=11 // pred_check
          %p854 = pneg %p432
        $region74: #{transformer_decoder_forward.2} parent=11 // pred_check_branch
          %856 = sbr.rel (%p854) target = $region76
        $region75: #{transformer_decoder_forward.2} parent=11 // pred_region
          _
        $region76: #{transformer_decoder_forward.2} parent=11 // pred_fallthru
          _
        // Predicated region
        $region77: #{transformer_decoder_forward.2} parent=11 // pred_check
          %p857 = pneg %p453
        $region78: #{transformer_decoder_forward.2} parent=11 // pred_check_branch
          %859 = sbr.rel (%p857) target = $region80
        $region79: #{transformer_decoder_forward.2} parent=11 // pred_region
          %s861 = ssub.s32 2048, 2048
          %862 = vsyncadd [#allocation23], %s861
          %s863 = sshll.u32 [#allocation24], 4
          %s864 = int_to_ptr.vmem [resolvable:$true] %s863
          %869 = dma.hbm_to_vmem [thread:$0]  %s18, 2048, %s864, [#allocation23], 128, 128, 8
        $region80: #{transformer_decoder_forward.2} parent=11 // pred_fallthru
          _
        // Predicated region
        $region81: #{transformer_decoder_forward.2} parent=11 // pred_check
          %p870 = pneg %p474
        $region82: #{transformer_decoder_forward.2} parent=11 // pred_check_branch
          %872 = sbr.rel (%p870) target = $region84
        $region83: #{transformer_decoder_forward.2} parent=11 // pred_region
          %s874 = ssub.s32 32, 32
          %875 = vsyncadd [#allocation26], %s874
          %s877 = sshll.u32 [#allocation25], 4
          %s878 = int_to_ptr.vmem [resolvable:$true] %s877
          %880 = dma.hbm_to_vmem [thread:$0]  %s19, 32, %s878, [#allocation26]
        $region84: #{transformer_decoder_forward.2} parent=11 // pred_fallthru
          _
        // Predicated region
        $region85: #{transformer_decoder_forward.2} parent=11 // pred_check
          %p881 = pneg %p495
        $region86: #{transformer_decoder_forward.2} parent=11 // pred_check_branch
          %883 = sbr.rel (%p881) target = $region88
        $region87: #{transformer_decoder_forward.2} parent=11 // pred_region
          %s885 = ssub.s32 2048, 2048
          %886 = vsyncadd [#allocation26], %s885
          %s887 = sshll.u32 [#allocation27], 4
          %s888 = int_to_ptr.vmem [resolvable:$true] %s887
          %893 = dma.hbm_to_vmem [thread:$0]  %s20, 2048, %s888, [#allocation26], 64, 64, 4
        $region88: #{transformer_decoder_forward.2} parent=11 // pred_fallthru
          _
        // Predicated region
        $region89: #{transformer_decoder_forward.2} parent=11 // pred_check
          %p894 = pneg %p516
        $region90: #{transformer_decoder_forward.2} parent=11 // pred_check_branch
          %896 = sbr.rel (%p894) target = $region92
        $region91: #{transformer_decoder_forward.2} parent=11 // pred_region
          %s898 = ssub.s32 16, 16
          %899 = vsyncadd [#allocation29], %s898
          %s901 = sshll.u32 [#allocation28], 4
          %s902 = int_to_ptr.vmem [resolvable:$true] %s901
          %904 = dma.hbm_to_vmem [thread:$0]  %s21, 16, %s902, [#allocation29]
        $region92: #{transformer_decoder_forward.2} parent=11 // pred_fallthru
          _
        // Predicated region
        $region93: #{transformer_decoder_forward.2} parent=11 // pred_check
          %p905 = pneg %p537
        $region94: #{transformer_decoder_forward.2} parent=11 // pred_check_branch
          %907 = sbr.rel (%p905) target = $region96
        $region95: #{transformer_decoder_forward.2} parent=11 // pred_region
          _
        $region96: #{transformer_decoder_forward.2} parent=11 // pred_fallthru
          _
        // Predicated region
        $region97: #{transformer_decoder_forward.2} parent=11 // pred_check
          %p908 = pneg %p558
        $region98: #{transformer_decoder_forward.2} parent=11 // pred_check_branch
          %910 = sbr.rel (%p908) target = $region100
        $region99: #{transformer_decoder_forward.2} parent=11 // pred_region
          _
        $region100: #{transformer_decoder_forward.2} parent=11 // pred_fallthru
          _
        // Predicated region
        $region101: #{transformer_decoder_forward.2} parent=11 // pred_check
          %p911 = pneg %p579
        $region102: #{transformer_decoder_forward.2} parent=11 // pred_check_branch
          %913 = sbr.rel (%p911) target = $region104
        $region103: #{transformer_decoder_forward.2} parent=11 // pred_region
          _
        $region104: #{transformer_decoder_forward.2} parent=11 // pred_fallthru
          _
        // Predicated region
        $region105: #{transformer_decoder_forward.2} parent=11 // pred_check
          %p914 = pneg %p600
        $region106: #{transformer_decoder_forward.2} parent=11 // pred_check_branch
          %916 = sbr.rel (%p914) target = $region108
        $region107: #{transformer_decoder_forward.2} parent=11 // pred_region
          _
        $region108: #{transformer_decoder_forward.2} parent=11 // pred_fallthru
          _
        // Predicated region
        $region109: #{transformer_decoder_forward.2} parent=11 // pred_check
          %p917 = pneg %p621
        $region110: #{transformer_decoder_forward.2} parent=11 // pred_check_branch
          %919 = sbr.rel (%p917) target = $region112
        $region111: #{transformer_decoder_forward.2} parent=11 // pred_region
          _
        $region112: #{transformer_decoder_forward.2} parent=11 // pred_fallthru
          _
        // Predicated region
        $region113: #{transformer_decoder_forward.2} parent=11 // pred_check
          %p920 = pneg %p642
        $region114: #{transformer_decoder_forward.2} parent=11 // pred_check_branch
          %922 = sbr.rel (%p920) target = $region116
        $region115: #{transformer_decoder_forward.2} parent=11 // pred_region
          _
        $region116: #{transformer_decoder_forward.2} parent=11 // pred_fallthru
          _
      $region12: #{transformer_decoder_forward.2} parent=5 // pred_fallthru
        _
      %p923 = scmp.lt.s32.totalorder %s44, 2
      // Predicated region
      $region117: #{transformer_decoder_forward.2} parent=5 // pred_check
        %p924 = pneg %p923
      $region118: #{transformer_decoder_forward.2} parent=5 // pred_check_branch
        %926 = sbr.rel (%p924) target = $region120
      $region119: #{transformer_decoder_forward.2} parent=5 // pred_region
        // Predicated region
        $region121: #{transformer_decoder_forward.2} parent=119 // pred_check
          %p927 = pneg %p64
        $region122: #{transformer_decoder_forward.2} parent=119 // pred_check_branch
          %929 = sbr.rel (%p927) target = $region124
        $region123: #{transformer_decoder_forward.2} parent=119 // pred_region
          %p930 = scmp.lt.s32.totalorder %s44, 1
          %s931 = scalar_select %p930, %s44, 1
          %s932 = smul.addr %s931, 8
          %s933 = scalar_lea.vmem %s0, %s932
        $region124: #{transformer_decoder_forward.2} parent=119 // pred_fallthru
          _
        // Predicated region
        $region125: #{transformer_decoder_forward.2} parent=119 // pred_check
          %p934 = pneg %p90
        $region126: #{transformer_decoder_forward.2} parent=119 // pred_check_branch
          %936 = sbr.rel (%p934) target = $region128
        $region127: #{transformer_decoder_forward.2} parent=119 // pred_region
          %p937 = scmp.lt.s32.totalorder %s44, 1
          %s938 = scalar_select %p937, %s44, 1
          %s939 = smul.addr %s938, 8
          %s940 = scalar_lea.vmem %s1, %s939
        $region128: #{transformer_decoder_forward.2} parent=119 // pred_fallthru
          _
      $region120: #{transformer_decoder_forward.2} parent=5 // pred_fallthru
        _
      %p941 = scmp.le.s32.totalorder 1, %s44
      %p942 = scmp.lt.s32.totalorder %s44, 3
      %p943 = pnand %p941, %p942
      %p944 = pneg %p943
      // Predicated region
      $region129: #{transformer_decoder_forward.2} parent=5 // pred_check
        _
      $region130: #{transformer_decoder_forward.2} parent=5 // pred_check_branch
        %946 = sbr.rel (%p943) target = $region132
      $region131: #{transformer_decoder_forward.2} parent=5 // pred_region
        %s947 = ssub.s32 %s44, 1
        // Predicated region
        $region133: #{transformer_decoder_forward.2} parent=131 // pred_check
          %p948 = pneg %p138
        $region134: #{transformer_decoder_forward.2} parent=131 // pred_check_branch
          %950 = sbr.rel (%p948) target = $region136
        $region135: #{transformer_decoder_forward.2} parent=131 // pred_region
          %951 = dma.done [#allocation3], 16
        $region136: #{transformer_decoder_forward.2} parent=131 // pred_fallthru
          _
        // Predicated region
        $region137: #{transformer_decoder_forward.2} parent=131 // pred_check
          %p952 = pneg %p159
        $region138: #{transformer_decoder_forward.2} parent=131 // pred_check_branch
          %954 = sbr.rel (%p952) target = $region140
        $region139: #{transformer_decoder_forward.2} parent=131 // pred_region
          %955 = dma.done [#allocation5], 1024
        $region140: #{transformer_decoder_forward.2} parent=131 // pred_fallthru
          _
        // Predicated region
        $region141: #{transformer_decoder_forward.2} parent=131 // pred_check
          %p956 = pneg %p180
        $region142: #{transformer_decoder_forward.2} parent=131 // pred_check_branch
          %958 = sbr.rel (%p956) target = $region144
        $region143: #{transformer_decoder_forward.2} parent=131 // pred_region
          %959 = dma.done [#allocation5], 16
        $region144: #{transformer_decoder_forward.2} parent=131 // pred_fallthru
          _
        // Predicated region
        $region145: #{transformer_decoder_forward.2} parent=131 // pred_check
          %p960 = pneg %p201
        $region146: #{transformer_decoder_forward.2} parent=131 // pred_check_branch
          %962 = sbr.rel (%p960) target = $region148
        $region147: #{transformer_decoder_forward.2} parent=131 // pred_region
          %963 = dma.done [#allocation8], 1024
        $region148: #{transformer_decoder_forward.2} parent=131 // pred_fallthru
          _
        // Predicated region
        $region149: #{transformer_decoder_forward.2} parent=131 // pred_check
          %p964 = pneg %p222
        $region150: #{transformer_decoder_forward.2} parent=131 // pred_check_branch
          %966 = sbr.rel (%p964) target = $region152
        $region151: #{transformer_decoder_forward.2} parent=131 // pred_region
          %967 = dma.done [#allocation8], 16
        $region152: #{transformer_decoder_forward.2} parent=131 // pred_fallthru
          _
        // Predicated region
        $region153: #{transformer_decoder_forward.2} parent=131 // pred_check
          %p968 = pneg %p243
        $region154: #{transformer_decoder_forward.2} parent=131 // pred_check_branch
          %970 = sbr.rel (%p968) target = $region156
        $region155: #{transformer_decoder_forward.2} parent=131 // pred_region
          %971 = dma.done [#allocation11], 1024
        $region156: #{transformer_decoder_forward.2} parent=131 // pred_fallthru
          _
        // Predicated region
        $region157: #{transformer_decoder_forward.2} parent=131 // pred_check
          %p972 = pneg %p264
        $region158: #{transformer_decoder_forward.2} parent=131 // pred_check_branch
          %974 = sbr.rel (%p972) target = $region160
        $region159: #{transformer_decoder_forward.2} parent=131 // pred_region
          %975 = dma.done [#allocation11], 16
        $region160: #{transformer_decoder_forward.2} parent=131 // pred_fallthru
          _
        // Predicated region
        $region161: #{transformer_decoder_forward.2} parent=131 // pred_check
          %p976 = pneg %p285
        $region162: #{transformer_decoder_forward.2} parent=131 // pred_check_branch
          %978 = sbr.rel (%p976) target = $region164
        $region163: #{transformer_decoder_forward.2} parent=131 // pred_region
          %979 = dma.done [#allocation14], 1024
        $region164: #{transformer_decoder_forward.2} parent=131 // pred_fallthru
          _
        // Predicated region
        $region165: #{transformer_decoder_forward.2} parent=131 // pred_check
          %p980 = pneg %p306
        $region166: #{transformer_decoder_forward.2} parent=131 // pred_check_branch
          %982 = sbr.rel (%p980) target = $region168
        $region167: #{transformer_decoder_forward.2} parent=131 // pred_region
          %983 = dma.done [#allocation14], 16
        $region168: #{transformer_decoder_forward.2} parent=131 // pred_fallthru
          _
        // Predicated region
        $region169: #{transformer_decoder_forward.2} parent=131 // pred_check
          %p984 = pneg %p327
        $region170: #{transformer_decoder_forward.2} parent=131 // pred_check_branch
          %986 = sbr.rel (%p984) target = $region172
        $region171: #{transformer_decoder_forward.2} parent=131 // pred_region
          %987 = dma.done [#allocation17], 1024
        $region172: #{transformer_decoder_forward.2} parent=131 // pred_fallthru
          _
        // Predicated region
        $region173: #{transformer_decoder_forward.2} parent=131 // pred_check
          %p988 = pneg %p348
        $region174: #{transformer_decoder_forward.2} parent=131 // pred_check_branch
          %990 = sbr.rel (%p988) target = $region176
        $region175: #{transformer_decoder_forward.2} parent=131 // pred_region
          %991 = dma.done [#allocation17], 16
        $region176: #{transformer_decoder_forward.2} parent=131 // pred_fallthru
          _
        // Predicated region
        $region177: #{transformer_decoder_forward.2} parent=131 // pred_check
          %p992 = pneg %p369
        $region178: #{transformer_decoder_forward.2} parent=131 // pred_check_branch
          %994 = sbr.rel (%p992) target = $region180
        $region179: #{transformer_decoder_forward.2} parent=131 // pred_region
          %995 = dma.done [#allocation20], 1024
        $region180: #{transformer_decoder_forward.2} parent=131 // pred_fallthru
          _
        // Predicated region
        $region181: #{transformer_decoder_forward.2} parent=131 // pred_check
          %p996 = pneg %p390
        $region182: #{transformer_decoder_forward.2} parent=131 // pred_check_branch
          %998 = sbr.rel (%p996) target = $region184
        $region183: #{transformer_decoder_forward.2} parent=131 // pred_region
          %999 = dma.done [#allocation20], 16
        $region184: #{transformer_decoder_forward.2} parent=131 // pred_fallthru
          _
        // Predicated region
        $region185: #{transformer_decoder_forward.2} parent=131 // pred_check
          %p1000 = pneg %p411
        $region186: #{transformer_decoder_forward.2} parent=131 // pred_check_branch
          %1002 = sbr.rel (%p1000) target = $region188
        $region187: #{transformer_decoder_forward.2} parent=131 // pred_region
          %1003 = dma.done [#allocation23], 1024
        $region188: #{transformer_decoder_forward.2} parent=131 // pred_fallthru
          _
        // Predicated region
        $region189: #{transformer_decoder_forward.2} parent=131 // pred_check
          %p1004 = pneg %p453
        $region190: #{transformer_decoder_forward.2} parent=131 // pred_check_branch
          %1006 = sbr.rel (%p1004) target = $region192
        $region191: #{transformer_decoder_forward.2} parent=131 // pred_region
          %1007 = dma.done [#allocation23], 2048
        $region192: #{transformer_decoder_forward.2} parent=131 // pred_fallthru
          _
        // Predicated region
        $region193: #{transformer_decoder_forward.2} parent=131 // pred_check
          %p1008 = pneg %p474
        $region194: #{transformer_decoder_forward.2} parent=131 // pred_check_branch
          %1010 = sbr.rel (%p1008) target = $region196
        $region195: #{transformer_decoder_forward.2} parent=131 // pred_region
          %1011 = dma.done [#allocation26], 32
        $region196: #{transformer_decoder_forward.2} parent=131 // pred_fallthru
          _
        // Predicated region
        $region197: #{transformer_decoder_forward.2} parent=131 // pred_check
          %p1012 = pneg %p495
        $region198: #{transformer_decoder_forward.2} parent=131 // pred_check_branch
          %1014 = sbr.rel (%p1012) target = $region200
        $region199: #{transformer_decoder_forward.2} parent=131 // pred_region
          %1015 = dma.done [#allocation26], 2048
        $region200: #{transformer_decoder_forward.2} parent=131 // pred_fallthru
          _
        // Predicated region
        $region201: #{transformer_decoder_forward.2} parent=131 // pred_check
          %p1016 = pneg %p516
        $region202: #{transformer_decoder_forward.2} parent=131 // pred_check_branch
          %1018 = sbr.rel (%p1016) target = $region204
        $region203: #{transformer_decoder_forward.2} parent=131 // pred_region
          %1019 = dma.done [#allocation29], 16
        $region204: #{transformer_decoder_forward.2} parent=131 // pred_fallthru
          _
        %p1020 = scmp.lt.s32.totalorder %s49, 1
        %s1021 = scalar_select %p1020, %s49, 1
        %s1022 = smul.addr %s1021, 8
        %s1023 = scalar_lea.vmem %s0, %s1022
        %p1024 = pneg %p70
        %p1025 = pneg %p67
        %p1026 = scmp.lt.s32.totalorder %s49, 1
        %s1027 = scalar_select %p1026, %s49, 1
        %s1028 = smul.addr %s1027, 8
        %s1029 = scalar_lea.vmem %s1, %s1028
        %p1030 = pneg %p96
        %p1031 = pneg %p93
        %p1032 = pneg %p117
        %p1033 = pneg %p114
        %p1034 = pneg %p138
        %p1035 = pneg %p135
        %p1036 = pneg %p159
        %p1037 = pneg %p156
        %p1038 = pneg %p180
        %p1039 = pneg %p177
        %p1040 = pneg %p201
        %p1041 = pneg %p198
        %p1042 = pneg %p222
        %p1043 = pneg %p219
        %p1044 = pneg %p243
        %p1045 = pneg %p240
        %p1046 = pneg %p264
        %p1047 = pneg %p261
        %p1048 = pneg %p285
        %p1049 = pneg %p282
        %p1050 = pneg %p306
        %p1051 = pneg %p303
        %p1052 = pneg %p327
        %p1053 = pneg %p324
        %p1054 = pneg %p348
        %p1055 = pneg %p345
        %p1056 = pneg %p369
        %p1057 = pneg %p366
        %p1058 = pneg %p390
        %p1059 = pneg %p387
        %p1060 = pneg %p411
        %p1061 = pneg %p408
        %p1062 = pneg %p432
        %p1063 = pneg %p429
        %p1064 = pneg %p453
        %p1065 = pneg %p450
        %p1066 = pneg %p474
        %p1067 = pneg %p471
        %p1068 = pneg %p495
        %p1069 = pneg %p492
        %p1070 = pneg %p516
        %p1071 = pneg %p513
        %p1072 = pneg %p537
        %p1073 = pneg %p534
        %p1074 = pneg %p558
        %p1075 = pneg %p555
        %p1076 = pneg %p579
        %p1077 = pneg %p576
        %p1078 = pneg %p600
        %p1079 = pneg %p597
        %p1080 = pneg %p621
        %p1081 = pneg %p618
        %p1082 = pneg %p642
        %p1083 = pneg %p639
        %p1084 = pneg %p668
        %p1085 = pneg %p665
        %p1086 = scmp.lt.s32.totalorder %s49, 1
        %s1087 = scalar_select %p1086, %s49, 1
        %s1088 = smul.addr %s1087, 8
        %s1089 = scalar_lea.vmem %s28, %s1088
        %p1090 = scmp.lt.s32.totalorder %s49, 1
        %s1091 = scalar_select %p1090, %s49, 1
        %s1092 = smul.addr %s1091, 8
        %s1093 = scalar_lea.vmem %s0, %s1092
        %p1094 = scmp.lt.s32.totalorder %s49, 1
        %s1095 = scalar_select %p1094, %s49, 1
        %s1096 = smul.addr %s1095, 8
        %s1097 = scalar_lea.vmem %s1, %s1096
        %p1098 = scmp.lt.s32.totalorder %s49, 1
        %s1099 = scalar_select %p1098, %s49, 1
        %s1100 = smul.addr %s1099, 8
        %s1101 = scalar_lea.vmem %s28, %s1100
        %v1103 = vld [vmem:[%s1093] sm:$0xff]
        %v1104 = vld [vmem:[%s1097] sm:$0xff]
        %v1105 = vpack.c.bf16 %v1104, %v1104
        %v1106 = vpack.c.bf16 %v1103, %v1103
        %v1107 = vld [vmem:[%s2] sm:$0xf]
        %v1108 = vld [vmem:[%s2 + $0x4] sm:$0xf]
        %v1109 = vld [vmem:[%s2 + $0x8] sm:$0xf]
        %v1110 = vld [vmem:[%s2 + $0xc] sm:$0xf]
        %v1111 = vld [vmem:[%s2 + $0x10] sm:$0xf]
        %v1112 = vld [vmem:[%s2 + $0x14] sm:$0xf]
        %v1113 = vld [vmem:[%s2 + $0x18] sm:$0xf]
        %v1114 = vld [vmem:[%s2 + $0x1c] sm:$0xf]
        %v1115 = vld [vmem:[%s2 + $0x20] sm:$0xf]
        %v1116 = vld [vmem:[%s2 + $0x24] sm:$0xf]
        %v1117 = vld [vmem:[%s2 + $0x28] sm:$0xf]
        %v1118 = vld [vmem:[%s2 + $0x2c] sm:$0xf]
        %v1119 = vld [vmem:[%s2 + $0x30] sm:$0xf]
        %v1120 = vld [vmem:[%s2 + $0x34] sm:$0xf]
        %v1121 = vld [vmem:[%s2 + $0x38] sm:$0xf]
        %v1122 = vld [vmem:[%s2 + $0x3c] sm:$0xf]
        %v1123 = vld [vmem:[#allocation2] sm:$0x1]
        %v1124 = vld [vmem:[#allocation4] sm:$0xf]
        %v1125 = vld [vmem:[#allocation4 + $0x4] sm:$0xf]
        %v1126 = vld [vmem:[#allocation4 + $0x8] sm:$0xf]
        %v1127 = vld [vmem:[#allocation4 + $0xc] sm:$0xf]
        %v1128 = vld [vmem:[#allocation4 + $0x10] sm:$0xf]
        %v1129 = vld [vmem:[#allocation4 + $0x14] sm:$0xf]
        %v1130 = vld [vmem:[#allocation4 + $0x18] sm:$0xf]
        %v1131 = vld [vmem:[#allocation4 + $0x1c] sm:$0xf]
        %v1132 = vld [vmem:[#allocation4 + $0x20] sm:$0xf]
        %v1133 = vld [vmem:[#allocation4 + $0x24] sm:$0xf]
        %v1134 = vld [vmem:[#allocation4 + $0x28] sm:$0xf]
        %v1135 = vld [vmem:[#allocation4 + $0x2c] sm:$0xf]
        %v1136 = vld [vmem:[#allocation4 + $0x30] sm:$0xf]
        %v1137 = vld [vmem:[#allocation4 + $0x34] sm:$0xf]
        %v1138 = vld [vmem:[#allocation4 + $0x38] sm:$0xf]
        %v1139 = vld [vmem:[#allocation4 + $0x3c] sm:$0xf]
        %v1140 = vld [vmem:[#allocation6] sm:$0x1]
        %v1141 = vld [vmem:[#allocation7] sm:$0xf]
        %v1142 = vld [vmem:[#allocation7 + $0x4] sm:$0xf]
        %v1143 = vld [vmem:[#allocation7 + $0x8] sm:$0xf]
        %v1144 = vld [vmem:[#allocation7 + $0xc] sm:$0xf]
        %v1145 = vld [vmem:[#allocation7 + $0x10] sm:$0xf]
        %v1146 = vld [vmem:[#allocation7 + $0x14] sm:$0xf]
        %v1147 = vld [vmem:[#allocation7 + $0x18] sm:$0xf]
        %v1148 = vld [vmem:[#allocation7 + $0x1c] sm:$0xf]
        %v1149 = vld [vmem:[#allocation7 + $0x20] sm:$0xf]
        %v1150 = vld [vmem:[#allocation7 + $0x24] sm:$0xf]
        %v1151 = vld [vmem:[#allocation7 + $0x28] sm:$0xf]
        %v1152 = vld [vmem:[#allocation7 + $0x2c] sm:$0xf]
        %v1153 = vld [vmem:[#allocation7 + $0x30] sm:$0xf]
        %v1154 = vld [vmem:[#allocation7 + $0x34] sm:$0xf]
        %v1155 = vld [vmem:[#allocation7 + $0x38] sm:$0xf]
        %v1156 = vld [vmem:[#allocation7 + $0x3c] sm:$0xf]
        %v1157 = vld [vmem:[#allocation9] sm:$0x1]
        %v1158 = vld [vmem:[#allocation10] sm:$0xf]
        %v1159 = vld [vmem:[#allocation10 + $0x4] sm:$0xf]
        %v1160 = vld [vmem:[#allocation10 + $0x8] sm:$0xf]
        %v1161 = vld [vmem:[#allocation10 + $0xc] sm:$0xf]
        %v1162 = vld [vmem:[#allocation10 + $0x10] sm:$0xf]
        %v1163 = vld [vmem:[#allocation10 + $0x14] sm:$0xf]
        %v1164 = vld [vmem:[#allocation10 + $0x18] sm:$0xf]
        %v1165 = vld [vmem:[#allocation10 + $0x1c] sm:$0xf]
        %v1166 = vld [vmem:[#allocation10 + $0x20] sm:$0xf]
        %v1167 = vld [vmem:[#allocation10 + $0x24] sm:$0xf]
        %v1168 = vld [vmem:[#allocation10 + $0x28] sm:$0xf]
        %v1169 = vld [vmem:[#allocation10 + $0x2c] sm:$0xf]
        %v1170 = vld [vmem:[#allocation10 + $0x30] sm:$0xf]
        %v1171 = vld [vmem:[#allocation10 + $0x34] sm:$0xf]
        %v1172 = vld [vmem:[#allocation10 + $0x38] sm:$0xf]
        %v1173 = vld [vmem:[#allocation10 + $0x3c] sm:$0xf]
        %v1174 = vld [vmem:[#allocation12] sm:$0x1]
        %v1176 = vlaneseq
        %v1177 = vshrl.u32 %v1176, 7
        %v1178 = vsub.s32 0, %v1177
        %v1179 = vrot.slane %v1123, %v1178
        %v1197 = vunpack.c.l.b16 %v1107
        %v1198 = vunpack.c.l.b16 %v1108
        %v1199 = vunpack.c.l.b16 %v1109
        %v1200 = vunpack.c.l.b16 %v1110
        %v1201 = vunpack.c.l.b16 %v1111
        %v1202 = vunpack.c.l.b16 %v1112
        %v1203 = vunpack.c.l.b16 %v1113
        %v1204 = vunpack.c.l.b16 %v1114
        %v1205 = vunpack.c.l.b16 %v1115
        %v1206 = vunpack.c.l.b16 %v1116
        %v1207 = vunpack.c.l.b16 %v1117
        %v1208 = vunpack.c.l.b16 %v1118
        %v1209 = vunpack.c.l.b16 %v1119
        %v1210 = vunpack.c.l.b16 %v1120
        %v1211 = vunpack.c.l.b16 %v1121
        %v1212 = vunpack.c.l.b16 %v1122
        %v1213 = vpack.c.b16 %v1198, %v1197
        %v1214 = vpack.c.b16 %v1200, %v1199
        %v1215 = vpack.c.b16 %v1202, %v1201
        %v1216 = vpack.c.b16 %v1204, %v1203
        %v1217 = vpack.c.b16 %v1206, %v1205
        %v1218 = vpack.c.b16 %v1208, %v1207
        %v1219 = vpack.c.b16 %v1210, %v1209
        %v1220 = vpack.c.b16 %v1212, %v1211
        %1229 = vmatprep.subr.bf16.mxu0 0
        %1230 = vmatpush1.bf16.msra.mxu0 %v1220
        %1231 = vmatprep.subr.bf16.mxu0 0
        %1232 = vmatpush1.bf16.msra.mxu0 %v1219
        %1233 = vmatprep.subr.bf16.mxu0 0
        %1234 = vmatpush1.bf16.msra.mxu0 %v1218
        %1235 = vmatprep.subr.bf16.mxu0 0
        %1236 = vmatpush1.bf16.msra.mxu0 %v1217
        %1237 = vmatprep.subr.bf16.mxu0 0
        %1238 = vmatpush1.bf16.msra.mxu0 %v1216
        %1239 = vmatprep.subr.bf16.mxu0 0
        %1240 = vmatpush1.bf16.msra.mxu0 %v1215
        %1241 = vmatprep.subr.bf16.mxu0 0
        %1242 = vmatpush1.bf16.msra.mxu0 %v1214
        %1243 = vmatprep.subr.bf16.mxu0 0
        %1244 = vmatpush1.bf16.msra.mxu0 %v1213
        %1245 = vmatprep.subr.bf16.mxu0 0
        %1246 = vmatpush2.bf16.msra.mxu0 0
        %1247 = vmatprep.subr.bf16.mxu0 0
        %1248 = vmatpush2.bf16.msra.mxu0 0
        %1249 = vmatprep.subr.bf16.mxu0 0
        %1250 = vmatpush2.bf16.msra.mxu0 0
        %1251 = vmatprep.subr.bf16.mxu0 0
        %1252 = vmatpush2.bf16.msra.mxu0 0
        %1253 = vmatprep.subr.bf16.mxu0 0
        %1254 = vmatpush2.bf16.msra.mxu0 0
        %1255 = vmatprep.subr.bf16.mxu0 0
        %1256 = vmatpush2.bf16.msra.mxu0 0
        %1257 = vmatprep.subr.bf16.mxu0 0
        %1258 = vmatpush2.bf16.msra.mxu0 0
        %1259 = vmatprep.subr.bf16.mxu0 0
        %1260 = vmatpush2.bf16.msra.mxu0 0
        %1261 = vmatprep.mubr.bf16.mxu0 0
        %1262 = vmatmul.mubr.bf16.gmra.mxu0 %v1106
        %v1263 = vpop.f32.mrf.mxu0
        %v1264 = vadd.f32 %v1179, %v1263
        %v1265 = vpop.f32.mrf.mxu0
        %v1266 = vpop.f32.mrf.mxu0
        %v1267 = vpop.f32.mrf.mxu0
        %1268 = vdwg.mxu0
        %v1270 = vlaneseq
        %v1271 = vshrl.u32 %v1270, 7
        %v1272 = vsub.s32 0, %v1271
        %v1273 = vrot.slane %v1140, %v1272
        %v1291 = vunpack.c.l.b16 %v1124
        %v1292 = vunpack.c.l.b16 %v1125
        %v1293 = vunpack.c.l.b16 %v1126
        %v1294 = vunpack.c.l.b16 %v1127
        %v1295 = vunpack.c.l.b16 %v1128
        %v1296 = vunpack.c.l.b16 %v1129
        %v1297 = vunpack.c.l.b16 %v1130
        %v1298 = vunpack.c.l.b16 %v1131
        %v1299 = vunpack.c.l.b16 %v1132
        %v1300 = vunpack.c.l.b16 %v1133
        %v1301 = vunpack.c.l.b16 %v1134
        %v1302 = vunpack.c.l.b16 %v1135
        %v1303 = vunpack.c.l.b16 %v1136
        %v1304 = vunpack.c.l.b16 %v1137
        %v1305 = vunpack.c.l.b16 %v1138
        %v1306 = vunpack.c.l.b16 %v1139
        %v1307 = vpack.c.b16 %v1292, %v1291
        %v1308 = vpack.c.b16 %v1294, %v1293
        %v1309 = vpack.c.b16 %v1296, %v1295
        %v1310 = vpack.c.b16 %v1298, %v1297
        %v1311 = vpack.c.b16 %v1300, %v1299
        %v1312 = vpack.c.b16 %v1302, %v1301
        %v1313 = vpack.c.b16 %v1304, %v1303
        %v1314 = vpack.c.b16 %v1306, %v1305
        %1323 = vmatprep.subr.bf16.mxu0 0
        %1324 = vmatpush1.bf16.msra.mxu0 %v1314
        %1325 = vmatprep.subr.bf16.mxu0 0
        %1326 = vmatpush1.bf16.msra.mxu0 %v1313
        %1327 = vmatprep.subr.bf16.mxu0 0
        %1328 = vmatpush1.bf16.msra.mxu0 %v1312
        %1329 = vmatprep.subr.bf16.mxu0 0
        %1330 = vmatpush1.bf16.msra.mxu0 %v1311
        %1331 = vmatprep.subr.bf16.mxu0 0
        %1332 = vmatpush1.bf16.msra.mxu0 %v1310
        %1333 = vmatprep.subr.bf16.mxu0 0
        %1334 = vmatpush1.bf16.msra.mxu0 %v1309
        %1335 = vmatprep.subr.bf16.mxu0 0
        %1336 = vmatpush1.bf16.msra.mxu0 %v1308
        %1337 = vmatprep.subr.bf16.mxu0 0
        %1338 = vmatpush1.bf16.msra.mxu0 %v1307
        %1339 = vmatprep.subr.bf16.mxu0 0
        %1340 = vmatpush2.bf16.msra.mxu0 0
        %1341 = vmatprep.subr.bf16.mxu0 0
        %1342 = vmatpush2.bf16.msra.mxu0 0
        %1343 = vmatprep.subr.bf16.mxu0 0
        %1344 = vmatpush2.bf16.msra.mxu0 0
        %1345 = vmatprep.subr.bf16.mxu0 0
        %1346 = vmatpush2.bf16.msra.mxu0 0
        %1347 = vmatprep.subr.bf16.mxu0 0
        %1348 = vmatpush2.bf16.msra.mxu0 0
        %1349 = vmatprep.subr.bf16.mxu0 0
        %1350 = vmatpush2.bf16.msra.mxu0 0
        %1351 = vmatprep.subr.bf16.mxu0 0
        %1352 = vmatpush2.bf16.msra.mxu0 0
        %1353 = vmatprep.subr.bf16.mxu0 0
        %1354 = vmatpush2.bf16.msra.mxu0 0
        %1355 = vmatprep.mubr.bf16.mxu0 0
        %1356 = vmatmul.mubr.bf16.gmra.mxu0 %v1106
        %v1357 = vpop.f32.mrf.mxu0
        %v1358 = vadd.f32 %v1273, %v1357
        %v1359 = vpop.f32.mrf.mxu0
        %v1360 = vpop.f32.mrf.mxu0
        %v1361 = vpop.f32.mrf.mxu0
        %1362 = vdwg.mxu0
        %v1364 = vlaneseq
        %v1365 = vshrl.u32 %v1364, 7
        %v1366 = vsub.s32 0, %v1365
        %v1367 = vrot.slane %v1157, %v1366
        %v1385 = vunpack.c.l.b16 %v1141
        %v1386 = vunpack.c.l.b16 %v1142
        %v1387 = vunpack.c.l.b16 %v1143
        %v1388 = vunpack.c.l.b16 %v1144
        %v1389 = vunpack.c.l.b16 %v1145
        %v1390 = vunpack.c.l.b16 %v1146
        %v1391 = vunpack.c.l.b16 %v1147
        %v1392 = vunpack.c.l.b16 %v1148
        %v1393 = vunpack.c.l.b16 %v1149
        %v1394 = vunpack.c.l.b16 %v1150
        %v1395 = vunpack.c.l.b16 %v1151
        %v1396 = vunpack.c.l.b16 %v1152
        %v1397 = vunpack.c.l.b16 %v1153
        %v1398 = vunpack.c.l.b16 %v1154
        %v1399 = vunpack.c.l.b16 %v1155
        %v1400 = vunpack.c.l.b16 %v1156
        %v1401 = vpack.c.b16 %v1386, %v1385
        %v1402 = vpack.c.b16 %v1388, %v1387
        %v1403 = vpack.c.b16 %v1390, %v1389
        %v1404 = vpack.c.b16 %v1392, %v1391
        %v1405 = vpack.c.b16 %v1394, %v1393
        %v1406 = vpack.c.b16 %v1396, %v1395
        %v1407 = vpack.c.b16 %v1398, %v1397
        %v1408 = vpack.c.b16 %v1400, %v1399
        %1417 = vmatprep.subr.bf16.mxu0 0
        %1418 = vmatpush1.bf16.msra.mxu0 %v1408
        %1419 = vmatprep.subr.bf16.mxu0 0
        %1420 = vmatpush1.bf16.msra.mxu0 %v1407
        %1421 = vmatprep.subr.bf16.mxu0 0
        %1422 = vmatpush1.bf16.msra.mxu0 %v1406
        %1423 = vmatprep.subr.bf16.mxu0 0
        %1424 = vmatpush1.bf16.msra.mxu0 %v1405
        %1425 = vmatprep.subr.bf16.mxu0 0
        %1426 = vmatpush1.bf16.msra.mxu0 %v1404
        %1427 = vmatprep.subr.bf16.mxu0 0
        %1428 = vmatpush1.bf16.msra.mxu0 %v1403
        %1429 = vmatprep.subr.bf16.mxu0 0
        %1430 = vmatpush1.bf16.msra.mxu0 %v1402
        %1431 = vmatprep.subr.bf16.mxu0 0
        %1432 = vmatpush1.bf16.msra.mxu0 %v1401
        %1433 = vmatprep.subr.bf16.mxu0 0
        %1434 = vmatpush2.bf16.msra.mxu0 0
        %1435 = vmatprep.subr.bf16.mxu0 0
        %1436 = vmatpush2.bf16.msra.mxu0 0
        %1437 = vmatprep.subr.bf16.mxu0 0
        %1438 = vmatpush2.bf16.msra.mxu0 0
        %1439 = vmatprep.subr.bf16.mxu0 0
        %1440 = vmatpush2.bf16.msra.mxu0 0
        %1441 = vmatprep.subr.bf16.mxu0 0
        %1442 = vmatpush2.bf16.msra.mxu0 0
        %1443 = vmatprep.subr.bf16.mxu0 0
        %1444 = vmatpush2.bf16.msra.mxu0 0
        %1445 = vmatprep.subr.bf16.mxu0 0
        %1446 = vmatpush2.bf16.msra.mxu0 0
        %1447 = vmatprep.subr.bf16.mxu0 0
        %1448 = vmatpush2.bf16.msra.mxu0 0
        %1449 = vmatprep.mubr.bf16.mxu0 0
        %1450 = vmatmul.mubr.bf16.gmra.mxu0 %v1106
        %v1451 = vpop.f32.mrf.mxu0
        %v1452 = vadd.f32 %v1367, %v1451
        %v1453 = vpop.f32.mrf.mxu0
        %v1454 = vpop.f32.mrf.mxu0
        %v1455 = vpop.f32.mrf.mxu0
        %1456 = vdwg.mxu0
        %1458 = vrot.lane.b32.xlu0 %v1264, 96
        %v1459 = vpop.permute.xlu0 %1458
        %1461 = vrot.lane.b32.xlu0 %v1264, 64
        %v1462 = vpop.permute.xlu0 %1461
        %1464 = vrot.lane.b32.xlu0 %v1264, 32
        %v1465 = vpop.permute.xlu0 %1464
        %v1467 = vcombine.low %v1264, %v1462
        %v1468 = vcombine.high %v1264, %v1462
        %v1470 = vunpack.c.l.s4 1983009808
        %v1471 = vunpack.c.0.s8 %v1470
        %v1472 = vlaneseq
        %v1473 = vshrl.u32 %v1472, 7
        %v1474 = vsub.s32 %v1471, %v1473
        %v1475 = vrot.slane %v1467, %v1474
        %v1477 = vunpack.c.l.s4 1983009808
        %v1478 = vunpack.c.0.s8 %v1477
        %v1479 = vlaneseq
        %v1480 = vshrl.u32 %v1479, 7
        %v1481 = vsub.s32 %v1478, %v1480
        %v1482 = vrot.slane %v1468, %v1481
        %v1483 = vcombine.low %v1459, %v1465
        %v1484 = vcombine.high %v1459, %v1465
        %v1486 = vunpack.c.l.s4 1983009808
        %v1487 = vunpack.c.0.s8 %v1486
        %v1488 = vlaneseq
        %v1489 = vshrl.u32 %v1488, 7
        %v1490 = vsub.s32 %v1487, %v1489
        %v1491 = vrot.slane %v1483, %v1490
        %v1493 = vunpack.c.l.s4 1983009808
        %v1494 = vunpack.c.0.s8 %v1493
        %v1495 = vlaneseq
        %v1496 = vshrl.u32 %v1495, 7
        %v1497 = vsub.s32 %v1494, %v1496
        %v1498 = vrot.slane %v1484, %v1497
        %v1499 = vcombine.low %v1475, %v1491
        %v1500 = vcombine.high %v1475, %v1491
        %v1502 = vunpack.c.l.s4 1934713408
        %v1503 = vunpack.c.0.s8 %v1502
        %v1504 = vlaneseq
        %v1505 = vshrl.u32 %v1504, 7
        %v1506 = vsub.s32 %v1503, %v1505
        %v1507 = vrot.slane %v1499, %v1506
        %v1509 = vunpack.c.l.s4 1934713408
        %v1510 = vunpack.c.0.s8 %v1509
        %v1511 = vlaneseq
        %v1512 = vshrl.u32 %v1511, 7
        %v1513 = vsub.s32 %v1510, %v1512
        %v1514 = vrot.slane %v1500, %v1513
        %v1515 = vcombine.low %v1482, %v1498
        %v1516 = vcombine.high %v1482, %v1498
        %v1518 = vunpack.c.l.s4 1934713408
        %v1519 = vunpack.c.0.s8 %v1518
        %v1520 = vlaneseq
        %v1521 = vshrl.u32 %v1520, 7
        %v1522 = vsub.s32 %v1519, %v1521
        %v1523 = vrot.slane %v1515, %v1522
        %v1525 = vunpack.c.l.s4 1934713408
        %v1526 = vunpack.c.0.s8 %v1525
        %v1527 = vlaneseq
        %v1528 = vshrl.u32 %v1527, 7
        %v1529 = vsub.s32 %v1526, %v1528
        %v1530 = vrot.slane %v1516, %v1529
        %v1531 = vcombine.high %v1507, 0.0
        %v1532 = vcombine.high %v1514, 0.0
        %v1533 = vcombine.high %v1523, 0.0
        %v1534 = vcombine.high %v1530, 0.0
        %v1535 = vpack.c.bf16 %v1507, %v1507
        %v1536 = vpack.c.bf16 %v1531, %v1531
        %v1537 = vpack.c.bf16 %v1514, %v1514
        %v1538 = vpack.c.bf16 %v1532, %v1532
        %v1539 = vpack.c.bf16 %v1523, %v1523
        %v1540 = vpack.c.bf16 %v1533, %v1533
        %v1541 = vpack.c.bf16 %v1530, %v1530
        %v1542 = vpack.c.bf16 %v1534, %v1534
        %v1543 = vcombine.low %v1535, %v1539
        %v1545 = vunpack.c.l.s4 1983009808
        %v1546 = vunpack.c.0.s8 %v1545
        %v1547 = vlaneseq
        %v1548 = vshrl.u32 %v1547, 7
        %v1549 = vsub.s32 %v1546, %v1548
        %v1550 = vrot.slane %v1543, %v1549
        %v1551 = vcombine.low %v1537, %v1541
        %v1553 = vunpack.c.l.s4 1983009808
        %v1554 = vunpack.c.0.s8 %v1553
        %v1555 = vlaneseq
        %v1556 = vshrl.u32 %v1555, 7
        %v1557 = vsub.s32 %v1554, %v1556
        %v1558 = vrot.slane %v1551, %v1557
        %v1559 = vcombine.low %v1550, %v1558
        %v1561 = vunpack.c.l.s4 1934713408
        %v1562 = vunpack.c.0.s8 %v1561
        %v1563 = vlaneseq
        %v1564 = vshrl.u32 %v1563, 7
        %v1565 = vsub.s32 %v1562, %v1564
        %v1566 = vrot.slane %v1559, %v1565
        %v1567 = vcombine.high %v1566, 0
        %v1568 = vcombine.low %v1536, %v1540
        %v1570 = vunpack.c.l.s4 1983009808
        %v1571 = vunpack.c.0.s8 %v1570
        %v1572 = vlaneseq
        %v1573 = vshrl.u32 %v1572, 7
        %v1574 = vsub.s32 %v1571, %v1573
        %v1575 = vrot.slane %v1568, %v1574
        %v1576 = vcombine.low %v1538, %v1542
        %v1578 = vunpack.c.l.s4 1983009808
        %v1579 = vunpack.c.0.s8 %v1578
        %v1580 = vlaneseq
        %v1581 = vshrl.u32 %v1580, 7
        %v1582 = vsub.s32 %v1579, %v1581
        %v1583 = vrot.slane %v1576, %v1582
        %v1584 = vcombine.low %v1575, %v1583
        %v1586 = vunpack.c.l.s4 1934713408
        %v1587 = vunpack.c.0.s8 %v1586
        %v1588 = vlaneseq
        %v1589 = vshrl.u32 %v1588, 7
        %v1590 = vsub.s32 %v1587, %v1589
        %v1591 = vrot.slane %v1584, %v1590
        %v1592 = vcombine.high %v1591, 0
        %v1595 = vpack.i.b16 %v1591, %v1566
        %v1596 = vshrl.u32 %v1566, 16
        %v1597 = vshrl.u32 %v1591, 16
        %v1598 = vpack.i.b16 %v1597, %v1596
        %v1601 = vpack.i.b16 %v1592, %v1567
        %v1602 = vshrl.u32 %v1567, 16
        %v1603 = vshrl.u32 %v1592, 16
        %v1604 = vpack.i.b16 %v1603, %v1602
        %1606 = vrot.lane.b32.xlu0 %v1358, 96
        %v1607 = vpop.permute.xlu0 %1606
        %1609 = vrot.lane.b32.xlu0 %v1358, 64
        %v1610 = vpop.permute.xlu0 %1609
        %1612 = vrot.lane.b32.xlu0 %v1358, 32
        %v1613 = vpop.permute.xlu0 %1612
        %v1615 = vcombine.low %v1358, %v1610
        %v1616 = vcombine.high %v1358, %v1610
        %v1618 = vunpack.c.l.s4 1983009808
        %v1619 = vunpack.c.0.s8 %v1618
        %v1620 = vlaneseq
        %v1621 = vshrl.u32 %v1620, 7
        %v1622 = vsub.s32 %v1619, %v1621
        %v1623 = vrot.slane %v1615, %v1622
        %v1625 = vunpack.c.l.s4 1983009808
        %v1626 = vunpack.c.0.s8 %v1625
        %v1627 = vlaneseq
        %v1628 = vshrl.u32 %v1627, 7
        %v1629 = vsub.s32 %v1626, %v1628
        %v1630 = vrot.slane %v1616, %v1629
        %v1631 = vcombine.low %v1607, %v1613
        %v1632 = vcombine.high %v1607, %v1613
        %v1634 = vunpack.c.l.s4 1983009808
        %v1635 = vunpack.c.0.s8 %v1634
        %v1636 = vlaneseq
        %v1637 = vshrl.u32 %v1636, 7
        %v1638 = vsub.s32 %v1635, %v1637
        %v1639 = vrot.slane %v1631, %v1638
        %v1641 = vunpack.c.l.s4 1983009808
        %v1642 = vunpack.c.0.s8 %v1641
        %v1643 = vlaneseq
        %v1644 = vshrl.u32 %v1643, 7
        %v1645 = vsub.s32 %v1642, %v1644
        %v1646 = vrot.slane %v1632, %v1645
        %v1647 = vcombine.low %v1623, %v1639
        %v1648 = vcombine.high %v1623, %v1639
        %v1650 = vunpack.c.l.s4 1934713408
        %v1651 = vunpack.c.0.s8 %v1650
        %v1652 = vlaneseq
        %v1653 = vshrl.u32 %v1652, 7
        %v1654 = vsub.s32 %v1651, %v1653
        %v1655 = vrot.slane %v1647, %v1654
        %v1657 = vunpack.c.l.s4 1934713408
        %v1658 = vunpack.c.0.s8 %v1657
        %v1659 = vlaneseq
        %v1660 = vshrl.u32 %v1659, 7
        %v1661 = vsub.s32 %v1658, %v1660
        %v1662 = vrot.slane %v1648, %v1661
        %v1663 = vcombine.low %v1630, %v1646
        %v1664 = vcombine.high %v1630, %v1646
        %v1666 = vunpack.c.l.s4 1934713408
        %v1667 = vunpack.c.0.s8 %v1666
        %v1668 = vlaneseq
        %v1669 = vshrl.u32 %v1668, 7
        %v1670 = vsub.s32 %v1667, %v1669
        %v1671 = vrot.slane %v1663, %v1670
        %v1673 = vunpack.c.l.s4 1934713408
        %v1674 = vunpack.c.0.s8 %v1673
        %v1675 = vlaneseq
        %v1676 = vshrl.u32 %v1675, 7
        %v1677 = vsub.s32 %v1674, %v1676
        %v1678 = vrot.slane %v1664, %v1677
        %v1679 = vcombine.high %v1655, 0.0
        %v1680 = vcombine.high %v1662, 0.0
        %v1681 = vcombine.high %v1671, 0.0
        %v1682 = vcombine.high %v1678, 0.0
        %v1683 = vpack.c.bf16 %v1655, %v1655
        %v1684 = vpack.c.bf16 %v1679, %v1679
        %v1685 = vpack.c.bf16 %v1662, %v1662
        %v1686 = vpack.c.bf16 %v1680, %v1680
        %v1687 = vpack.c.bf16 %v1671, %v1671
        %v1688 = vpack.c.bf16 %v1681, %v1681
        %v1689 = vpack.c.bf16 %v1678, %v1678
        %v1690 = vpack.c.bf16 %v1682, %v1682
        %v1691 = vcombine.low %v1683, %v1687
        %v1693 = vunpack.c.l.s4 1983009808
        %v1694 = vunpack.c.0.s8 %v1693
        %v1695 = vlaneseq
        %v1696 = vshrl.u32 %v1695, 7
        %v1697 = vsub.s32 %v1694, %v1696
        %v1698 = vrot.slane %v1691, %v1697
        %v1699 = vcombine.low %v1685, %v1689
        %v1701 = vunpack.c.l.s4 1983009808
        %v1702 = vunpack.c.0.s8 %v1701
        %v1703 = vlaneseq
        %v1704 = vshrl.u32 %v1703, 7
        %v1705 = vsub.s32 %v1702, %v1704
        %v1706 = vrot.slane %v1699, %v1705
        %v1707 = vcombine.low %v1698, %v1706
        %v1709 = vunpack.c.l.s4 1934713408
        %v1710 = vunpack.c.0.s8 %v1709
        %v1711 = vlaneseq
        %v1712 = vshrl.u32 %v1711, 7
        %v1713 = vsub.s32 %v1710, %v1712
        %v1714 = vrot.slane %v1707, %v1713
        %v1715 = vcombine.high %v1714, 0
        %v1716 = vcombine.low %v1684, %v1688
        %v1718 = vunpack.c.l.s4 1983009808
        %v1719 = vunpack.c.0.s8 %v1718
        %v1720 = vlaneseq
        %v1721 = vshrl.u32 %v1720, 7
        %v1722 = vsub.s32 %v1719, %v1721
        %v1723 = vrot.slane %v1716, %v1722
        %v1724 = vcombine.low %v1686, %v1690
        %v1726 = vunpack.c.l.s4 1983009808
        %v1727 = vunpack.c.0.s8 %v1726
        %v1728 = vlaneseq
        %v1729 = vshrl.u32 %v1728, 7
        %v1730 = vsub.s32 %v1727, %v1729
        %v1731 = vrot.slane %v1724, %v1730
        %v1732 = vcombine.low %v1723, %v1731
        %v1734 = vunpack.c.l.s4 1934713408
        %v1735 = vunpack.c.0.s8 %v1734
        %v1736 = vlaneseq
        %v1737 = vshrl.u32 %v1736, 7
        %v1738 = vsub.s32 %v1735, %v1737
        %v1739 = vrot.slane %v1732, %v1738
        %v1740 = vcombine.high %v1739, 0
        %v1743 = vpack.i.b16 %v1739, %v1714
        %v1744 = vshrl.u32 %v1714, 16
        %v1745 = vshrl.u32 %v1739, 16
        %v1746 = vpack.i.b16 %v1745, %v1744
        %v1749 = vpack.i.b16 %v1740, %v1715
        %v1750 = vshrl.u32 %v1715, 16
        %v1751 = vshrl.u32 %v1740, 16
        %v1752 = vpack.i.b16 %v1751, %v1750
        %1754 = vrot.lane.b32.xlu0 %v1452, 96
        %v1755 = vpop.permute.xlu0 %1754
        %1757 = vrot.lane.b32.xlu0 %v1452, 64
        %v1758 = vpop.permute.xlu0 %1757
        %1760 = vrot.lane.b32.xlu0 %v1452, 32
        %v1761 = vpop.permute.xlu0 %1760
        %v1763 = vcombine.low %v1452, %v1758
        %v1764 = vcombine.high %v1452, %v1758
        %v1766 = vunpack.c.l.s4 1983009808
        %v1767 = vunpack.c.0.s8 %v1766
        %v1768 = vlaneseq
        %v1769 = vshrl.u32 %v1768, 7
        %v1770 = vsub.s32 %v1767, %v1769
        %v1771 = vrot.slane %v1763, %v1770
        %v1773 = vunpack.c.l.s4 1983009808
        %v1774 = vunpack.c.0.s8 %v1773
        %v1775 = vlaneseq
        %v1776 = vshrl.u32 %v1775, 7
        %v1777 = vsub.s32 %v1774, %v1776
        %v1778 = vrot.slane %v1764, %v1777
        %v1779 = vcombine.low %v1755, %v1761
        %v1780 = vcombine.high %v1755, %v1761
        %v1782 = vunpack.c.l.s4 1983009808
        %v1783 = vunpack.c.0.s8 %v1782
        %v1784 = vlaneseq
        %v1785 = vshrl.u32 %v1784, 7
        %v1786 = vsub.s32 %v1783, %v1785
        %v1787 = vrot.slane %v1779, %v1786
        %v1789 = vunpack.c.l.s4 1983009808
        %v1790 = vunpack.c.0.s8 %v1789
        %v1791 = vlaneseq
        %v1792 = vshrl.u32 %v1791, 7
        %v1793 = vsub.s32 %v1790, %v1792
        %v1794 = vrot.slane %v1780, %v1793
        %v1795 = vcombine.low %v1771, %v1787
        %v1796 = vcombine.high %v1771, %v1787
        %v1798 = vunpack.c.l.s4 1934713408
        %v1799 = vunpack.c.0.s8 %v1798
        %v1800 = vlaneseq
        %v1801 = vshrl.u32 %v1800, 7
        %v1802 = vsub.s32 %v1799, %v1801
        %v1803 = vrot.slane %v1795, %v1802
        %v1805 = vunpack.c.l.s4 1934713408
        %v1806 = vunpack.c.0.s8 %v1805
        %v1807 = vlaneseq
        %v1808 = vshrl.u32 %v1807, 7
        %v1809 = vsub.s32 %v1806, %v1808
        %v1810 = vrot.slane %v1796, %v1809
        %v1811 = vcombine.low %v1778, %v1794
        %v1812 = vcombine.high %v1778, %v1794
        %v1814 = vunpack.c.l.s4 1934713408
        %v1815 = vunpack.c.0.s8 %v1814
        %v1816 = vlaneseq
        %v1817 = vshrl.u32 %v1816, 7
        %v1818 = vsub.s32 %v1815, %v1817
        %v1819 = vrot.slane %v1811, %v1818
        %v1821 = vunpack.c.l.s4 1934713408
        %v1822 = vunpack.c.0.s8 %v1821
        %v1823 = vlaneseq
        %v1824 = vshrl.u32 %v1823, 7
        %v1825 = vsub.s32 %v1822, %v1824
        %v1826 = vrot.slane %v1812, %v1825
        %v1827 = vcombine.high %v1803, 0.0
        %v1828 = vcombine.high %v1810, 0.0
        %v1829 = vcombine.high %v1819, 0.0
        %v1830 = vcombine.high %v1826, 0.0
        %v1831 = vpack.c.bf16 %v1803, %v1803
        %v1832 = vpack.c.bf16 %v1827, %v1827
        %v1833 = vpack.c.bf16 %v1810, %v1810
        %v1834 = vpack.c.bf16 %v1828, %v1828
        %v1835 = vpack.c.bf16 %v1819, %v1819
        %v1836 = vpack.c.bf16 %v1829, %v1829
        %v1837 = vpack.c.bf16 %v1826, %v1826
        %v1838 = vpack.c.bf16 %v1830, %v1830
        %v1839 = vcombine.low %v1831, %v1835
        %v1841 = vunpack.c.l.s4 1983009808
        %v1842 = vunpack.c.0.s8 %v1841
        %v1843 = vlaneseq
        %v1844 = vshrl.u32 %v1843, 7
        %v1845 = vsub.s32 %v1842, %v1844
        %v1846 = vrot.slane %v1839, %v1845
        %v1847 = vcombine.low %v1833, %v1837
        %v1849 = vunpack.c.l.s4 1983009808
        %v1850 = vunpack.c.0.s8 %v1849
        %v1851 = vlaneseq
        %v1852 = vshrl.u32 %v1851, 7
        %v1853 = vsub.s32 %v1850, %v1852
        %v1854 = vrot.slane %v1847, %v1853
        %v1855 = vcombine.low %v1846, %v1854
        %v1857 = vunpack.c.l.s4 1934713408
        %v1858 = vunpack.c.0.s8 %v1857
        %v1859 = vlaneseq
        %v1860 = vshrl.u32 %v1859, 7
        %v1861 = vsub.s32 %v1858, %v1860
        %v1862 = vrot.slane %v1855, %v1861
        %v1863 = vcombine.high %v1862, 0
        %v1864 = vcombine.low %v1832, %v1836
        %v1866 = vunpack.c.l.s4 1983009808
        %v1867 = vunpack.c.0.s8 %v1866
        %v1868 = vlaneseq
        %v1869 = vshrl.u32 %v1868, 7
        %v1870 = vsub.s32 %v1867, %v1869
        %v1871 = vrot.slane %v1864, %v1870
        %v1872 = vcombine.low %v1834, %v1838
        %v1874 = vunpack.c.l.s4 1983009808
        %v1875 = vunpack.c.0.s8 %v1874
        %v1876 = vlaneseq
        %v1877 = vshrl.u32 %v1876, 7
        %v1878 = vsub.s32 %v1875, %v1877
        %v1879 = vrot.slane %v1872, %v1878
        %v1880 = vcombine.low %v1871, %v1879
        %v1882 = vunpack.c.l.s4 1934713408
        %v1883 = vunpack.c.0.s8 %v1882
        %v1884 = vlaneseq
        %v1885 = vshrl.u32 %v1884, 7
        %v1886 = vsub.s32 %v1883, %v1885
        %v1887 = vrot.slane %v1880, %v1886
        %v1888 = vcombine.high %v1887, 0
        %v1891 = vpack.i.b16 %v1887, %v1862
        %v1892 = vshrl.u32 %v1862, 16
        %v1893 = vshrl.u32 %v1887, 16
        %v1894 = vpack.i.b16 %v1893, %v1892
        %v1897 = vpack.i.b16 %v1888, %v1863
        %v1898 = vshrl.u32 %v1863, 16
        %v1899 = vshrl.u32 %v1888, 16
        %v1900 = vpack.i.b16 %v1899, %v1898
        %vm1901 = vcmask 261120
        %v1903 = vsel %vm1901, %v1595, 0
        %v1906 = vsel %vm1901, %v1743, 0
        %1908 = vmatprep.subr.bf16.mxu0 0
        %1909 = vmatpush1.bf16.xpose.msra.mxu0 0
        %1910 = vmatprep.subr.bf16.mxu0 0
        %1911 = vmatpush1.bf16.xpose.msra.mxu0 0
        %1912 = vmatprep.subr.bf16.mxu0 0
        %1913 = vmatpush1.bf16.xpose.msra.mxu0 0
        %1914 = vmatprep.subr.bf16.mxu0 0
        %1915 = vmatpush1.bf16.xpose.msra.mxu0 0
        %1916 = vmatprep.subr.bf16.mxu0 0
        %1917 = vmatpush1.bf16.xpose.msra.mxu0 0
        %1918 = vmatprep.subr.bf16.mxu0 0
        %1919 = vmatpush1.bf16.xpose.msra.mxu0 0
        %1920 = vmatprep.subr.bf16.mxu0 0
        %1921 = vmatpush1.bf16.xpose.msra.mxu0 0
        %1922 = vmatprep.subr.bf16.mxu0 0
        %1923 = vmatpush1.bf16.xpose.msra.mxu0 %v1906
        %1924 = vmatprep.subr.bf16.mxu0 0
        %1925 = vmatpush2.bf16.xpose.msra.mxu0 0
        %1926 = vmatprep.subr.bf16.mxu0 0
        %1927 = vmatpush2.bf16.xpose.msra.mxu0 0
        %1928 = vmatprep.subr.bf16.mxu0 0
        %1929 = vmatpush2.bf16.xpose.msra.mxu0 0
        %1930 = vmatprep.subr.bf16.mxu0 0
        %1931 = vmatpush2.bf16.xpose.msra.mxu0 0
        %1932 = vmatprep.subr.bf16.mxu0 0
        %1933 = vmatpush2.bf16.xpose.msra.mxu0 0
        %1934 = vmatprep.subr.bf16.mxu0 0
        %1935 = vmatpush2.bf16.xpose.msra.mxu0 0
        %1936 = vmatprep.subr.bf16.mxu0 0
        %1937 = vmatpush2.bf16.xpose.msra.mxu0 0
        %1938 = vmatprep.subr.bf16.mxu0 0
        %1939 = vmatpush2.bf16.xpose.msra.mxu0 0
        %1940 = vmatprep.mubr.bf16.mxu0 0
        %1941 = vmatmul.mubr.bf16.gmra.mxu0 %v1903
        %v1942 = vpop.f32.mrf.mxu0
        %v1943 = vadd.f32 0.0, %v1942
        %v1944 = vpop.f32.mrf.mxu0
        %v1945 = vpop.f32.mrf.mxu0
        %v1946 = vpop.f32.mrf.mxu0
        %1947 = vdwg.mxu0
        %v1949 = vsel %vm1901, %v1598, 0
        %v1952 = vsel %vm1901, %v1746, 0
        %1954 = vmatprep.subr.bf16.mxu0 0
        %1955 = vmatpush1.bf16.xpose.msra.mxu0 0
        %1956 = vmatprep.subr.bf16.mxu0 0
        %1957 = vmatpush1.bf16.xpose.msra.mxu0 0
        %1958 = vmatprep.subr.bf16.mxu0 0
        %1959 = vmatpush1.bf16.xpose.msra.mxu0 0
        %1960 = vmatprep.subr.bf16.mxu0 0
        %1961 = vmatpush1.bf16.xpose.msra.mxu0 0
        %1962 = vmatprep.subr.bf16.mxu0 0
        %1963 = vmatpush1.bf16.xpose.msra.mxu0 0
        %1964 = vmatprep.subr.bf16.mxu0 0
        %1965 = vmatpush1.bf16.xpose.msra.mxu0 0
        %1966 = vmatprep.subr.bf16.mxu0 0
        %1967 = vmatpush1.bf16.xpose.msra.mxu0 0
        %1968 = vmatprep.subr.bf16.mxu0 0
        %1969 = vmatpush1.bf16.xpose.msra.mxu0 %v1952
        %1970 = vmatprep.subr.bf16.mxu0 0
        %1971 = vmatpush2.bf16.xpose.msra.mxu0 0
        %1972 = vmatprep.subr.bf16.mxu0 0
        %1973 = vmatpush2.bf16.xpose.msra.mxu0 0
        %1974 = vmatprep.subr.bf16.mxu0 0
        %1975 = vmatpush2.bf16.xpose.msra.mxu0 0
        %1976 = vmatprep.subr.bf16.mxu0 0
        %1977 = vmatpush2.bf16.xpose.msra.mxu0 0
        %1978 = vmatprep.subr.bf16.mxu0 0
        %1979 = vmatpush2.bf16.xpose.msra.mxu0 0
        %1980 = vmatprep.subr.bf16.mxu0 0
        %1981 = vmatpush2.bf16.xpose.msra.mxu0 0
        %1982 = vmatprep.subr.bf16.mxu0 0
        %1983 = vmatpush2.bf16.xpose.msra.mxu0 0
        %1984 = vmatprep.subr.bf16.mxu0 0
        %1985 = vmatpush2.bf16.xpose.msra.mxu0 0
        %1986 = vmatprep.mubr.bf16.mxu0 0
        %1987 = vmatmul.mubr.bf16.gmra.mxu0 %v1949
        %v1988 = vpop.f32.mrf.mxu0
        %v1989 = vadd.f32 0.0, %v1988
        %v1990 = vpop.f32.mrf.mxu0
        %v1991 = vpop.f32.mrf.mxu0
        %v1992 = vpop.f32.mrf.mxu0
        %1993 = vdwg.mxu0
        %v1995 = vsel %vm1901, %v1601, 0
        %v1998 = vsel %vm1901, %v1749, 0
        %2000 = vmatprep.subr.bf16.mxu0 0
        %2001 = vmatpush1.bf16.xpose.msra.mxu0 0
        %2002 = vmatprep.subr.bf16.mxu0 0
        %2003 = vmatpush1.bf16.xpose.msra.mxu0 0
        %2004 = vmatprep.subr.bf16.mxu0 0
        %2005 = vmatpush1.bf16.xpose.msra.mxu0 0
        %2006 = vmatprep.subr.bf16.mxu0 0
        %2007 = vmatpush1.bf16.xpose.msra.mxu0 0
        %2008 = vmatprep.subr.bf16.mxu0 0
        %2009 = vmatpush1.bf16.xpose.msra.mxu0 0
        %2010 = vmatprep.subr.bf16.mxu0 0
        %2011 = vmatpush1.bf16.xpose.msra.mxu0 0
        %2012 = vmatprep.subr.bf16.mxu0 0
        %2013 = vmatpush1.bf16.xpose.msra.mxu0 0
        %2014 = vmatprep.subr.bf16.mxu0 0
        %2015 = vmatpush1.bf16.xpose.msra.mxu0 %v1998
        %2016 = vmatprep.subr.bf16.mxu0 0
        %2017 = vmatpush2.bf16.xpose.msra.mxu0 0
        %2018 = vmatprep.subr.bf16.mxu0 0
        %2019 = vmatpush2.bf16.xpose.msra.mxu0 0
        %2020 = vmatprep.subr.bf16.mxu0 0
        %2021 = vmatpush2.bf16.xpose.msra.mxu0 0
        %2022 = vmatprep.subr.bf16.mxu0 0
        %2023 = vmatpush2.bf16.xpose.msra.mxu0 0
        %2024 = vmatprep.subr.bf16.mxu0 0
        %2025 = vmatpush2.bf16.xpose.msra.mxu0 0
        %2026 = vmatprep.subr.bf16.mxu0 0
        %2027 = vmatpush2.bf16.xpose.msra.mxu0 0
        %2028 = vmatprep.subr.bf16.mxu0 0
        %2029 = vmatpush2.bf16.xpose.msra.mxu0 0
        %2030 = vmatprep.subr.bf16.mxu0 0
        %2031 = vmatpush2.bf16.xpose.msra.mxu0 0
        %2032 = vmatprep.mubr.bf16.mxu0 0
        %2033 = vmatmul.mubr.bf16.gmra.mxu0 %v1995
        %v2034 = vpop.f32.mrf.mxu0
        %v2035 = vadd.f32 0.0, %v2034
        %v2036 = vpop.f32.mrf.mxu0
        %v2037 = vpop.f32.mrf.mxu0
        %v2038 = vpop.f32.mrf.mxu0
        %2039 = vdwg.mxu0
        %v2041 = vsel %vm1901, %v1604, 0
        %v2044 = vsel %vm1901, %v1752, 0
        %2046 = vmatprep.subr.bf16.mxu0 0
        %2047 = vmatpush1.bf16.xpose.msra.mxu0 0
        %2048 = vmatprep.subr.bf16.mxu0 0
        %2049 = vmatpush1.bf16.xpose.msra.mxu0 0
        %2050 = vmatprep.subr.bf16.mxu0 0
        %2051 = vmatpush1.bf16.xpose.msra.mxu0 0
        %2052 = vmatprep.subr.bf16.mxu0 0
        %2053 = vmatpush1.bf16.xpose.msra.mxu0 0
        %2054 = vmatprep.subr.bf16.mxu0 0
        %2055 = vmatpush1.bf16.xpose.msra.mxu0 0
        %2056 = vmatprep.subr.bf16.mxu0 0
        %2057 = vmatpush1.bf16.xpose.msra.mxu0 0
        %2058 = vmatprep.subr.bf16.mxu0 0
        %2059 = vmatpush1.bf16.xpose.msra.mxu0 0
        %2060 = vmatprep.subr.bf16.mxu0 0
        %2061 = vmatpush1.bf16.xpose.msra.mxu0 %v2044
        %2062 = vmatprep.subr.bf16.mxu0 0
        %2063 = vmatpush2.bf16.xpose.msra.mxu0 0
        %2064 = vmatprep.subr.bf16.mxu0 0
        %2065 = vmatpush2.bf16.xpose.msra.mxu0 0
        %2066 = vmatprep.subr.bf16.mxu0 0
        %2067 = vmatpush2.bf16.xpose.msra.mxu0 0
        %2068 = vmatprep.subr.bf16.mxu0 0
        %2069 = vmatpush2.bf16.xpose.msra.mxu0 0
        %2070 = vmatprep.subr.bf16.mxu0 0
        %2071 = vmatpush2.bf16.xpose.msra.mxu0 0
        %2072 = vmatprep.subr.bf16.mxu0 0
        %2073 = vmatpush2.bf16.xpose.msra.mxu0 0
        %2074 = vmatprep.subr.bf16.mxu0 0
        %2075 = vmatpush2.bf16.xpose.msra.mxu0 0
        %2076 = vmatprep.subr.bf16.mxu0 0
        %2077 = vmatpush2.bf16.xpose.msra.mxu0 0
        %2078 = vmatprep.mubr.bf16.mxu0 0
        %2079 = vmatmul.mubr.bf16.gmra.mxu0 %v2041
        %v2080 = vpop.f32.mrf.mxu0
        %v2081 = vadd.f32 0.0, %v2080
        %v2082 = vpop.f32.mrf.mxu0
        %v2083 = vpop.f32.mrf.mxu0
        %v2084 = vpop.f32.mrf.mxu0
        %2085 = vdwg.mxu0
        %v2086 = vlaneseq
        %v2087 = vshrl.u32 %v2086, 7
        %v2088 = vlaneseq
        %v2089 = vand.u32 %v2088, 127
        %vm2090 = vcmp.ge.s32.totalorder %v2087, %v2089
        %v2091 = vsel %vm2090, 1, 0
        %vm2092 = vcmp.eq.s32.totalorder %v2091, 1
        %v2093 = vsel %vm2092, %v1943, -inf
        %v2094 = vsel %vm2092, %v1989, -inf
        %v2095 = vsel %vm2092, %v2035, -inf
        %v2096 = vsel %vm2092, %v2081, -inf
        %vm2097 = vcmask 64512
        %v2098 = vsel %vm2097, %v2093, -inf
        %2099 = vmax.xlane.f32.xlu0 %v2098
        %v2100 = vpop.xlane.xlu0 %2099
        %v2101 = vsel %vm2097, %v2094, -inf
        %2102 = vmax.xlane.f32.xlu0 %v2101
        %v2103 = vpop.xlane.xlu0 %2102
        %v2104 = vsel %vm2097, %v2095, -inf
        %2105 = vmax.xlane.f32.xlu0 %v2104
        %v2106 = vpop.xlane.xlu0 %2105
        %v2107 = vsel %vm2097, %v2096, -inf
        %2108 = vmax.xlane.f32.xlu0 %v2107
        %v2109 = vpop.xlane.xlu0 %2108
        %v2110 = vsub.f32 %v2093, %v2100
        %v2111 = vsub.f32 %v2094, %v2103
        %v2112 = vsub.f32 %v2095, %v2106
        %v2113 = vsub.f32 %v2096, %v2109
        %v2114 = vmul.f32 %v2110, 1.442695
        %v2115 = vpow.pop %v2114
        %v2116 = vmul.f32 %v2111, 1.442695
        %v2117 = vpow.pop %v2116
        %v2118 = vmul.f32 %v2112, 1.442695
        %v2119 = vpow.pop %v2118
        %v2120 = vmul.f32 %v2113, 1.442695
        %v2121 = vpow.pop %v2120
        %v2122 = vsel %vm2097, %v2115, 0.0
        %2123 = vadd.xlane.f32.xlu0 %v2122
        %v2124 = vpop.xlane.xlu0 %2123
        %v2125 = vsel %vm2097, %v2117, 0.0
        %2126 = vadd.xlane.f32.xlu0 %v2125
        %v2127 = vpop.xlane.xlu0 %2126
        %v2128 = vsel %vm2097, %v2119, 0.0
        %2129 = vadd.xlane.f32.xlu0 %v2128
        %v2130 = vpop.xlane.xlu0 %2129
        %v2131 = vsel %vm2097, %v2121, 0.0
        %2132 = vadd.xlane.f32.xlu0 %v2131
        %v2133 = vpop.xlane.xlu0 %2132
        %v2134 = vrcp.pop %v2124
        %v2135 = vrcp.pop %v2127
        %v2136 = vrcp.pop %v2130
        %v2137 = vrcp.pop %v2133
        %v2138 = vmul.f32 %v2115, %v2134
        %v2139 = vmul.f32 %v2117, %v2135
        %v2140 = vmul.f32 %v2119, %v2136
        %v2141 = vmul.f32 %v2121, %v2137
        %v2142 = vpack.c.bf16 %v2138, %v2138
        %v2143 = vpack.c.bf16 %v2139, %v2139
        %v2144 = vpack.c.bf16 %v2140, %v2140
        %v2145 = vpack.c.bf16 %v2141, %v2141
        %v2147 = vsel %vm2097, %v2142, 0
        %vm2149 = vcmask 1043456
        %v2151 = vsel %vm2149, %v1891, 0
        %2153 = vmatprep.subr.bf16.mxu0 0
        %2154 = vmatpush1.bf16.msra.mxu0 0
        %2155 = vmatprep.subr.bf16.mxu0 0
        %2156 = vmatpush1.bf16.msra.mxu0 0
        %2157 = vmatprep.subr.bf16.mxu0 0
        %2158 = vmatpush1.bf16.msra.mxu0 0
        %2159 = vmatprep.subr.bf16.mxu0 0
        %2160 = vmatpush1.bf16.msra.mxu0 0
        %2161 = vmatprep.subr.bf16.mxu0 0
        %2162 = vmatpush1.bf16.msra.mxu0 0
        %2163 = vmatprep.subr.bf16.mxu0 0
        %2164 = vmatpush1.bf16.msra.mxu0 0
        %2165 = vmatprep.subr.bf16.mxu0 0
        %2166 = vmatpush1.bf16.msra.mxu0 0
        %2167 = vmatprep.subr.bf16.mxu0 0
        %2168 = vmatpush1.bf16.msra.mxu0 %v2151
        %2169 = vmatprep.subr.bf16.mxu0 0
        %2170 = vmatpush2.bf16.msra.mxu0 0
        %2171 = vmatprep.subr.bf16.mxu0 0
        %2172 = vmatpush2.bf16.msra.mxu0 0
        %2173 = vmatprep.subr.bf16.mxu0 0
        %2174 = vmatpush2.bf16.msra.mxu0 0
        %2175 = vmatprep.subr.bf16.mxu0 0
        %2176 = vmatpush2.bf16.msra.mxu0 0
        %2177 = vmatprep.subr.bf16.mxu0 0
        %2178 = vmatpush2.bf16.msra.mxu0 0
        %2179 = vmatprep.subr.bf16.mxu0 0
        %2180 = vmatpush2.bf16.msra.mxu0 0
        %2181 = vmatprep.subr.bf16.mxu0 0
        %2182 = vmatpush2.bf16.msra.mxu0 0
        %2183 = vmatprep.subr.bf16.mxu0 0
        %2184 = vmatpush2.bf16.msra.mxu0 0
        %2185 = vmatprep.mubr.bf16.mxu0 0
        %2186 = vmatmul.mubr.bf16.gmra.mxu0 %v2147
        %v2187 = vpop.f32.mrf.mxu0
        %v2188 = vadd.f32 0.0, %v2187
        %v2189 = vpop.f32.mrf.mxu0
        %v2190 = vpop.f32.mrf.mxu0
        %v2191 = vpop.f32.mrf.mxu0
        %2192 = vdwg.mxu0
        %v2194 = vsel %vm2097, %v2143, 0
        %v2197 = vsel %vm2149, %v1894, 0
        %2199 = vmatprep.subr.bf16.mxu0 0
        %2200 = vmatpush1.bf16.msra.mxu0 0
        %2201 = vmatprep.subr.bf16.mxu0 0
        %2202 = vmatpush1.bf16.msra.mxu0 0
        %2203 = vmatprep.subr.bf16.mxu0 0
        %2204 = vmatpush1.bf16.msra.mxu0 0
        %2205 = vmatprep.subr.bf16.mxu0 0
        %2206 = vmatpush1.bf16.msra.mxu0 0
        %2207 = vmatprep.subr.bf16.mxu0 0
        %2208 = vmatpush1.bf16.msra.mxu0 0
        %2209 = vmatprep.subr.bf16.mxu0 0
        %2210 = vmatpush1.bf16.msra.mxu0 0
        %2211 = vmatprep.subr.bf16.mxu0 0
        %2212 = vmatpush1.bf16.msra.mxu0 0
        %2213 = vmatprep.subr.bf16.mxu0 0
        %2214 = vmatpush1.bf16.msra.mxu0 %v2197
        %2215 = vmatprep.subr.bf16.mxu0 0
        %2216 = vmatpush2.bf16.msra.mxu0 0
        %2217 = vmatprep.subr.bf16.mxu0 0
        %2218 = vmatpush2.bf16.msra.mxu0 0
        %2219 = vmatprep.subr.bf16.mxu0 0
        %2220 = vmatpush2.bf16.msra.mxu0 0
        %2221 = vmatprep.subr.bf16.mxu0 0
        %2222 = vmatpush2.bf16.msra.mxu0 0
        %2223 = vmatprep.subr.bf16.mxu0 0
        %2224 = vmatpush2.bf16.msra.mxu0 0
        %2225 = vmatprep.subr.bf16.mxu0 0
        %2226 = vmatpush2.bf16.msra.mxu0 0
        %2227 = vmatprep.subr.bf16.mxu0 0
        %2228 = vmatpush2.bf16.msra.mxu0 0
        %2229 = vmatprep.subr.bf16.mxu0 0
        %2230 = vmatpush2.bf16.msra.mxu0 0
        %2231 = vmatprep.mubr.bf16.mxu0 0
        %2232 = vmatmul.mubr.bf16.gmra.mxu0 %v2194
        %v2233 = vpop.f32.mrf.mxu0
        %v2234 = vadd.f32 0.0, %v2233
        %v2235 = vpop.f32.mrf.mxu0
        %v2236 = vpop.f32.mrf.mxu0
        %v2237 = vpop.f32.mrf.mxu0
        %2238 = vdwg.mxu0
        %v2240 = vsel %vm2097, %v2144, 0
        %v2243 = vsel %vm2149, %v1897, 0
        %2245 = vmatprep.subr.bf16.mxu0 0
        %2246 = vmatpush1.bf16.msra.mxu0 0
        %2247 = vmatprep.subr.bf16.mxu0 0
        %2248 = vmatpush1.bf16.msra.mxu0 0
        %2249 = vmatprep.subr.bf16.mxu0 0
        %2250 = vmatpush1.bf16.msra.mxu0 0
        %2251 = vmatprep.subr.bf16.mxu0 0
        %2252 = vmatpush1.bf16.msra.mxu0 0
        %2253 = vmatprep.subr.bf16.mxu0 0
        %2254 = vmatpush1.bf16.msra.mxu0 0
        %2255 = vmatprep.subr.bf16.mxu0 0
        %2256 = vmatpush1.bf16.msra.mxu0 0
        %2257 = vmatprep.subr.bf16.mxu0 0
        %2258 = vmatpush1.bf16.msra.mxu0 0
        %2259 = vmatprep.subr.bf16.mxu0 0
        %2260 = vmatpush1.bf16.msra.mxu0 %v2243
        %2261 = vmatprep.subr.bf16.mxu0 0
        %2262 = vmatpush2.bf16.msra.mxu0 0
        %2263 = vmatprep.subr.bf16.mxu0 0
        %2264 = vmatpush2.bf16.msra.mxu0 0
        %2265 = vmatprep.subr.bf16.mxu0 0
        %2266 = vmatpush2.bf16.msra.mxu0 0
        %2267 = vmatprep.subr.bf16.mxu0 0
        %2268 = vmatpush2.bf16.msra.mxu0 0
        %2269 = vmatprep.subr.bf16.mxu0 0
        %2270 = vmatpush2.bf16.msra.mxu0 0
        %2271 = vmatprep.subr.bf16.mxu0 0
        %2272 = vmatpush2.bf16.msra.mxu0 0
        %2273 = vmatprep.subr.bf16.mxu0 0
        %2274 = vmatpush2.bf16.msra.mxu0 0
        %2275 = vmatprep.subr.bf16.mxu0 0
        %2276 = vmatpush2.bf16.msra.mxu0 0
        %2277 = vmatprep.mubr.bf16.mxu0 0
        %2278 = vmatmul.mubr.bf16.gmra.mxu0 %v2240
        %v2279 = vpop.f32.mrf.mxu0
        %v2280 = vadd.f32 0.0, %v2279
        %v2281 = vpop.f32.mrf.mxu0
        %v2282 = vpop.f32.mrf.mxu0
        %v2283 = vpop.f32.mrf.mxu0
        %2284 = vdwg.mxu0
        %v2286 = vsel %vm2097, %v2145, 0
        %v2289 = vsel %vm2149, %v1900, 0
        %2291 = vmatprep.subr.bf16.mxu0 0
        %2292 = vmatpush1.bf16.msra.mxu0 0
        %2293 = vmatprep.subr.bf16.mxu0 0
        %2294 = vmatpush1.bf16.msra.mxu0 0
        %2295 = vmatprep.subr.bf16.mxu0 0
        %2296 = vmatpush1.bf16.msra.mxu0 0
        %2297 = vmatprep.subr.bf16.mxu0 0
        %2298 = vmatpush1.bf16.msra.mxu0 0
        %2299 = vmatprep.subr.bf16.mxu0 0
        %2300 = vmatpush1.bf16.msra.mxu0 0
        %2301 = vmatprep.subr.bf16.mxu0 0
        %2302 = vmatpush1.bf16.msra.mxu0 0
        %2303 = vmatprep.subr.bf16.mxu0 0
        %2304 = vmatpush1.bf16.msra.mxu0 0
        %2305 = vmatprep.subr.bf16.mxu0 0
        %2306 = vmatpush1.bf16.msra.mxu0 %v2289
        %2307 = vmatprep.subr.bf16.mxu0 0
        %2308 = vmatpush2.bf16.msra.mxu0 0
        %2309 = vmatprep.subr.bf16.mxu0 0
        %2310 = vmatpush2.bf16.msra.mxu0 0
        %2311 = vmatprep.subr.bf16.mxu0 0
        %2312 = vmatpush2.bf16.msra.mxu0 0
        %2313 = vmatprep.subr.bf16.mxu0 0
        %2314 = vmatpush2.bf16.msra.mxu0 0
        %2315 = vmatprep.subr.bf16.mxu0 0
        %2316 = vmatpush2.bf16.msra.mxu0 0
        %2317 = vmatprep.subr.bf16.mxu0 0
        %2318 = vmatpush2.bf16.msra.mxu0 0
        %2319 = vmatprep.subr.bf16.mxu0 0
        %2320 = vmatpush2.bf16.msra.mxu0 0
        %2321 = vmatprep.subr.bf16.mxu0 0
        %2322 = vmatpush2.bf16.msra.mxu0 0
        %2323 = vmatprep.mubr.bf16.mxu0 0
        %2324 = vmatmul.mubr.bf16.gmra.mxu0 %v2286
        %v2325 = vpop.f32.mrf.mxu0
        %v2326 = vadd.f32 0.0, %v2325
        %v2327 = vpop.f32.mrf.mxu0
        %v2328 = vpop.f32.mrf.mxu0
        %v2329 = vpop.f32.mrf.mxu0
        %2330 = vdwg.mxu0
        %v2331 = vcombine.low %v2188, %v2280
        %v2332 = vcombine.high %v2188, %v2280
        %v2334 = vunpack.c.l.s4 1983009808
        %v2335 = vunpack.c.0.s8 %v2334
        %v2336 = vlaneseq
        %v2337 = vshrl.u32 %v2336, 7
        %v2338 = vsub.s32 %v2335, %v2337
        %v2339 = vrot.slane %v2331, %v2338
        %v2341 = vunpack.c.l.s4 1983009808
        %v2342 = vunpack.c.0.s8 %v2341
        %v2343 = vlaneseq
        %v2344 = vshrl.u32 %v2343, 7
        %v2345 = vsub.s32 %v2342, %v2344
        %v2346 = vrot.slane %v2332, %v2345
        %v2347 = vcombine.low %v2234, %v2326
        %v2348 = vcombine.high %v2234, %v2326
        %v2350 = vunpack.c.l.s4 1983009808
        %v2351 = vunpack.c.0.s8 %v2350
        %v2352 = vlaneseq
        %v2353 = vshrl.u32 %v2352, 7
        %v2354 = vsub.s32 %v2351, %v2353
        %v2355 = vrot.slane %v2347, %v2354
        %v2357 = vunpack.c.l.s4 1983009808
        %v2358 = vunpack.c.0.s8 %v2357
        %v2359 = vlaneseq
        %v2360 = vshrl.u32 %v2359, 7
        %v2361 = vsub.s32 %v2358, %v2360
        %v2362 = vrot.slane %v2348, %v2361
        %v2363 = vcombine.low %v2339, %v2355
        %v2364 = vcombine.high %v2339, %v2355
        %v2366 = vunpack.c.l.s4 1934713408
        %v2367 = vunpack.c.0.s8 %v2366
        %v2368 = vlaneseq
        %v2369 = vshrl.u32 %v2368, 7
        %v2370 = vsub.s32 %v2367, %v2369
        %v2371 = vrot.slane %v2363, %v2370
        %v2373 = vunpack.c.l.s4 1934713408
        %v2374 = vunpack.c.0.s8 %v2373
        %v2375 = vlaneseq
        %v2376 = vshrl.u32 %v2375, 7
        %v2377 = vsub.s32 %v2374, %v2376
        %v2378 = vrot.slane %v2364, %v2377
        %v2379 = vcombine.low %v2346, %v2362
        %v2380 = vcombine.high %v2346, %v2362
        %v2382 = vunpack.c.l.s4 1934713408
        %v2383 = vunpack.c.0.s8 %v2382
        %v2384 = vlaneseq
        %v2385 = vshrl.u32 %v2384, 7
        %v2386 = vsub.s32 %v2383, %v2385
        %v2387 = vrot.slane %v2379, %v2386
        %v2389 = vunpack.c.l.s4 1934713408
        %v2390 = vunpack.c.0.s8 %v2389
        %v2391 = vlaneseq
        %v2392 = vshrl.u32 %v2391, 7
        %v2393 = vsub.s32 %v2390, %v2392
        %v2394 = vrot.slane %v2380, %v2393
        %v2395 = vcombine.high %v2371, 0.0
        %v2396 = vcombine.high %v2378, 0.0
        %v2397 = vcombine.high %v2387, 0.0
        %v2398 = vcombine.high %v2394, 0.0
        %v2399 = vcombine.low %v2371, %v2378
        %v2401 = vunpack.c.l.s4 1983009808
        %v2402 = vunpack.c.0.s8 %v2401
        %v2403 = vlaneseq
        %v2404 = vshrl.u32 %v2403, 7
        %v2405 = vsub.s32 %v2402, %v2404
        %v2406 = vrot.slane %v2399, %v2405
        %v2407 = vcombine.low %v2395, %v2396
        %v2409 = vunpack.c.l.s4 1983009808
        %v2410 = vunpack.c.0.s8 %v2409
        %v2411 = vlaneseq
        %v2412 = vshrl.u32 %v2411, 7
        %v2413 = vsub.s32 %v2410, %v2412
        %v2414 = vrot.slane %v2407, %v2413
        %v2415 = vcombine.low %v2387, %v2394
        %v2417 = vunpack.c.l.s4 1983009808
        %v2418 = vunpack.c.0.s8 %v2417
        %v2419 = vlaneseq
        %v2420 = vshrl.u32 %v2419, 7
        %v2421 = vsub.s32 %v2418, %v2420
        %v2422 = vrot.slane %v2415, %v2421
        %v2423 = vcombine.low %v2397, %v2398
        %v2425 = vunpack.c.l.s4 1983009808
        %v2426 = vunpack.c.0.s8 %v2425
        %v2427 = vlaneseq
        %v2428 = vshrl.u32 %v2427, 7
        %v2429 = vsub.s32 %v2426, %v2428
        %v2430 = vrot.slane %v2423, %v2429
        %v2431 = vcombine.low %v2406, %v2414
        %v2432 = vcombine.high %v2406, %v2414
        %v2434 = vunpack.c.l.s4 1934713408
        %v2435 = vunpack.c.0.s8 %v2434
        %v2436 = vlaneseq
        %v2437 = vshrl.u32 %v2436, 7
        %v2438 = vsub.s32 %v2435, %v2437
        %v2439 = vrot.slane %v2431, %v2438
        %v2441 = vunpack.c.l.s4 1934713408
        %v2442 = vunpack.c.0.s8 %v2441
        %v2443 = vlaneseq
        %v2444 = vshrl.u32 %v2443, 7
        %v2445 = vsub.s32 %v2442, %v2444
        %v2446 = vrot.slane %v2432, %v2445
        %v2447 = vcombine.low %v2422, %v2430
        %v2448 = vcombine.high %v2422, %v2430
        %v2450 = vunpack.c.l.s4 1934713408
        %v2451 = vunpack.c.0.s8 %v2450
        %v2452 = vlaneseq
        %v2453 = vshrl.u32 %v2452, 7
        %v2454 = vsub.s32 %v2451, %v2453
        %v2455 = vrot.slane %v2447, %v2454
        %v2457 = vunpack.c.l.s4 1934713408
        %v2458 = vunpack.c.0.s8 %v2457
        %v2459 = vlaneseq
        %v2460 = vshrl.u32 %v2459, 7
        %v2461 = vsub.s32 %v2458, %v2460
        %v2462 = vrot.slane %v2448, %v2461
        %v2463 = vcombine.low %v2439, %v2455
        %v2464 = vcombine.high %v2439, %v2455
        %v2465 = vcombine.low %v2446, %v2462
        %v2466 = vcombine.high %v2446, %v2462
        %2468 = vrot.lane.b32.xlu0 %v2464, 32
        %v2469 = vpop.permute.xlu0 %2468
        %2472 = vrot.lane.b32.xlu0 %v2465, 64
        %v2473 = vpop.permute.xlu0 %2472
        %2476 = vrot.lane.b32.xlu0 %v2466, 96
        %v2477 = vpop.permute.xlu0 %2476
        %v2479 = vsel %vm1901, %v2463, %v2469
        %vm2480 = vcmask 523264
        %v2481 = vsel %vm2480, %v2479, %v2473
        %vm2482 = vcmask 785408
        %v2483 = vsel %vm2482, %v2481, %v2477
        %v2484 = vpack.c.bf16 %v2483, %v2483
        %v2486 = vlaneseq
        %v2487 = vshrl.u32 %v2486, 7
        %v2488 = vsub.s32 0, %v2487
        %v2489 = vrot.slane %v1174, %v2488
        %v2507 = vunpack.c.l.b16 %v1158
        %v2508 = vunpack.c.l.b16 %v1159
        %v2509 = vunpack.c.l.b16 %v1160
        %v2510 = vunpack.c.l.b16 %v1161
        %v2511 = vunpack.c.l.b16 %v1162
        %v2512 = vunpack.c.l.b16 %v1163
        %v2513 = vunpack.c.l.b16 %v1164
        %v2514 = vunpack.c.l.b16 %v1165
        %v2515 = vunpack.c.l.b16 %v1166
        %v2516 = vunpack.c.l.b16 %v1167
        %v2517 = vunpack.c.l.b16 %v1168
        %v2518 = vunpack.c.l.b16 %v1169
        %v2519 = vunpack.c.l.b16 %v1170
        %v2520 = vunpack.c.l.b16 %v1171
        %v2521 = vunpack.c.l.b16 %v1172
        %v2522 = vunpack.c.l.b16 %v1173
        %v2523 = vpack.c.b16 %v2508, %v2507
        %v2524 = vpack.c.b16 %v2510, %v2509
        %v2525 = vpack.c.b16 %v2512, %v2511
        %v2526 = vpack.c.b16 %v2514, %v2513
        %v2527 = vpack.c.b16 %v2516, %v2515
        %v2528 = vpack.c.b16 %v2518, %v2517
        %v2529 = vpack.c.b16 %v2520, %v2519
        %v2530 = vpack.c.b16 %v2522, %v2521
        %2539 = vmatprep.subr.bf16.mxu0 0
        %2540 = vmatpush1.bf16.msra.mxu0 %v2530
        %2541 = vmatprep.subr.bf16.mxu0 0
        %2542 = vmatpush1.bf16.msra.mxu0 %v2529
        %2543 = vmatprep.subr.bf16.mxu0 0
        %2544 = vmatpush1.bf16.msra.mxu0 %v2528
        %2545 = vmatprep.subr.bf16.mxu0 0
        %2546 = vmatpush1.bf16.msra.mxu0 %v2527
        %2547 = vmatprep.subr.bf16.mxu0 0
        %2548 = vmatpush1.bf16.msra.mxu0 %v2526
        %2549 = vmatprep.subr.bf16.mxu0 0
        %2550 = vmatpush1.bf16.msra.mxu0 %v2525
        %2551 = vmatprep.subr.bf16.mxu0 0
        %2552 = vmatpush1.bf16.msra.mxu0 %v2524
        %2553 = vmatprep.subr.bf16.mxu0 0
        %2554 = vmatpush1.bf16.msra.mxu0 %v2523
        %2555 = vmatprep.subr.bf16.mxu0 0
        %2556 = vmatpush2.bf16.msra.mxu0 0
        %2557 = vmatprep.subr.bf16.mxu0 0
        %2558 = vmatpush2.bf16.msra.mxu0 0
        %2559 = vmatprep.subr.bf16.mxu0 0
        %2560 = vmatpush2.bf16.msra.mxu0 0
        %2561 = vmatprep.subr.bf16.mxu0 0
        %2562 = vmatpush2.bf16.msra.mxu0 0
        %2563 = vmatprep.subr.bf16.mxu0 0
        %2564 = vmatpush2.bf16.msra.mxu0 0
        %2565 = vmatprep.subr.bf16.mxu0 0
        %2566 = vmatpush2.bf16.msra.mxu0 0
        %2567 = vmatprep.subr.bf16.mxu0 0
        %2568 = vmatpush2.bf16.msra.mxu0 0
        %2569 = vmatprep.subr.bf16.mxu0 0
        %2570 = vmatpush2.bf16.msra.mxu0 0
        %2571 = vmatprep.mubr.bf16.mxu0 0
        %2572 = vmatmul.mubr.bf16.gmra.mxu0 %v2484
        %v2573 = vpop.f32.mrf.mxu0
        %v2574 = vadd.f32 %v2489, %v2573
        %v2575 = vpop.f32.mrf.mxu0
        %v2576 = vpop.f32.mrf.mxu0
        %v2577 = vpop.f32.mrf.mxu0
        %2578 = vdwg.mxu0
        %v2579 = vld [vmem:[%s22] sm:$0x1]
        %v2580 = vld [vmem:[%s23] sm:$0x1]
        %v2581 = vadd.f32 %v1103, %v2574
        %2582 = vadd.xlane.f32.xlu0 %v2581
        %v2583 = vpop.xlane.xlu0 %2582
        %v2584 = vrcp.pop 128.0
        %v2585 = vmul.f32 %v2583, %v2584
        %v2586 = vsub.f32 %v2581, %v2585
        %v2587 = vmul.f32 %v2586, %v2586
        %2588 = vadd.xlane.f32.xlu0 %v2587
        %v2589 = vpop.xlane.xlu0 %2588
        %v2590 = vmul.f32 %v2589, %v2584
        %v2591 = vadd.f32 %v2590, 1e-05
        %v2592 = vrsqrt.pop %v2591
        %v2593 = vmul.f32 %v2586, %v2592
        %v2595 = vlaneseq
        %v2596 = vshrl.u32 %v2595, 7
        %v2597 = vsub.s32 0, %v2596
        %v2598 = vrot.slane %v2579, %v2597
        %v2600 = vmul.f32 %v2593, %v2598
        %v2602 = vlaneseq
        %v2603 = vshrl.u32 %v2602, 7
        %v2604 = vsub.s32 0, %v2603
        %v2605 = vrot.slane %v2580, %v2604
        %v2607 = vadd.f32 %v2600, %v2605
        %v2608 = vpack.c.bf16 %v2607, %v2607
        %v2609 = vld [vmem:[#allocation13] sm:$0xf]
        %v2610 = vld [vmem:[#allocation13 + $0x4] sm:$0xf]
        %v2611 = vld [vmem:[#allocation13 + $0x8] sm:$0xf]
        %v2612 = vld [vmem:[#allocation13 + $0xc] sm:$0xf]
        %v2613 = vld [vmem:[#allocation13 + $0x10] sm:$0xf]
        %v2614 = vld [vmem:[#allocation13 + $0x14] sm:$0xf]
        %v2615 = vld [vmem:[#allocation13 + $0x18] sm:$0xf]
        %v2616 = vld [vmem:[#allocation13 + $0x1c] sm:$0xf]
        %v2617 = vld [vmem:[#allocation13 + $0x20] sm:$0xf]
        %v2618 = vld [vmem:[#allocation13 + $0x24] sm:$0xf]
        %v2619 = vld [vmem:[#allocation13 + $0x28] sm:$0xf]
        %v2620 = vld [vmem:[#allocation13 + $0x2c] sm:$0xf]
        %v2621 = vld [vmem:[#allocation13 + $0x30] sm:$0xf]
        %v2622 = vld [vmem:[#allocation13 + $0x34] sm:$0xf]
        %v2623 = vld [vmem:[#allocation13 + $0x38] sm:$0xf]
        %v2624 = vld [vmem:[#allocation13 + $0x3c] sm:$0xf]
        %v2625 = vld [vmem:[#allocation15] sm:$0x1]
        %v2626 = vld [vmem:[#allocation16] sm:$0xf]
        %v2627 = vld [vmem:[#allocation16 + $0x4] sm:$0xf]
        %v2628 = vld [vmem:[#allocation16 + $0x8] sm:$0xf]
        %v2629 = vld [vmem:[#allocation16 + $0xc] sm:$0xf]
        %v2630 = vld [vmem:[#allocation16 + $0x10] sm:$0xf]
        %v2631 = vld [vmem:[#allocation16 + $0x14] sm:$0xf]
        %v2632 = vld [vmem:[#allocation16 + $0x18] sm:$0xf]
        %v2633 = vld [vmem:[#allocation16 + $0x1c] sm:$0xf]
        %v2634 = vld [vmem:[#allocation16 + $0x20] sm:$0xf]
        %v2635 = vld [vmem:[#allocation16 + $0x24] sm:$0xf]
        %v2636 = vld [vmem:[#allocation16 + $0x28] sm:$0xf]
        %v2637 = vld [vmem:[#allocation16 + $0x2c] sm:$0xf]
        %v2638 = vld [vmem:[#allocation16 + $0x30] sm:$0xf]
        %v2639 = vld [vmem:[#allocation16 + $0x34] sm:$0xf]
        %v2640 = vld [vmem:[#allocation16 + $0x38] sm:$0xf]
        %v2641 = vld [vmem:[#allocation16 + $0x3c] sm:$0xf]
        %v2642 = vld [vmem:[#allocation18] sm:$0x1]
        %v2643 = vld [vmem:[#allocation19] sm:$0xf]
        %v2644 = vld [vmem:[#allocation19 + $0x4] sm:$0xf]
        %v2645 = vld [vmem:[#allocation19 + $0x8] sm:$0xf]
        %v2646 = vld [vmem:[#allocation19 + $0xc] sm:$0xf]
        %v2647 = vld [vmem:[#allocation19 + $0x10] sm:$0xf]
        %v2648 = vld [vmem:[#allocation19 + $0x14] sm:$0xf]
        %v2649 = vld [vmem:[#allocation19 + $0x18] sm:$0xf]
        %v2650 = vld [vmem:[#allocation19 + $0x1c] sm:$0xf]
        %v2651 = vld [vmem:[#allocation19 + $0x20] sm:$0xf]
        %v2652 = vld [vmem:[#allocation19 + $0x24] sm:$0xf]
        %v2653 = vld [vmem:[#allocation19 + $0x28] sm:$0xf]
        %v2654 = vld [vmem:[#allocation19 + $0x2c] sm:$0xf]
        %v2655 = vld [vmem:[#allocation19 + $0x30] sm:$0xf]
        %v2656 = vld [vmem:[#allocation19 + $0x34] sm:$0xf]
        %v2657 = vld [vmem:[#allocation19 + $0x38] sm:$0xf]
        %v2658 = vld [vmem:[#allocation19 + $0x3c] sm:$0xf]
        %v2659 = vld [vmem:[#allocation21] sm:$0x1]
        %v2660 = vld [vmem:[#allocation22] sm:$0xf]
        %v2661 = vld [vmem:[#allocation22 + $0x4] sm:$0xf]
        %v2662 = vld [vmem:[#allocation22 + $0x8] sm:$0xf]
        %v2663 = vld [vmem:[#allocation22 + $0xc] sm:$0xf]
        %v2664 = vld [vmem:[#allocation22 + $0x10] sm:$0xf]
        %v2665 = vld [vmem:[#allocation22 + $0x14] sm:$0xf]
        %v2666 = vld [vmem:[#allocation22 + $0x18] sm:$0xf]
        %v2667 = vld [vmem:[#allocation22 + $0x1c] sm:$0xf]
        %v2668 = vld [vmem:[#allocation22 + $0x20] sm:$0xf]
        %v2669 = vld [vmem:[#allocation22 + $0x24] sm:$0xf]
        %v2670 = vld [vmem:[#allocation22 + $0x28] sm:$0xf]
        %v2671 = vld [vmem:[#allocation22 + $0x2c] sm:$0xf]
        %v2672 = vld [vmem:[#allocation22 + $0x30] sm:$0xf]
        %v2673 = vld [vmem:[#allocation22 + $0x34] sm:$0xf]
        %v2674 = vld [vmem:[#allocation22 + $0x38] sm:$0xf]
        %v2675 = vld [vmem:[#allocation22 + $0x3c] sm:$0xf]
        %v2676 = vld [vmem:[%s17] sm:$0x1]
        %v2678 = vlaneseq
        %v2679 = vshrl.u32 %v2678, 7
        %v2680 = vsub.s32 0, %v2679
        %v2681 = vrot.slane %v2625, %v2680
        %v2699 = vunpack.c.l.b16 %v2609
        %v2700 = vunpack.c.l.b16 %v2610
        %v2701 = vunpack.c.l.b16 %v2611
        %v2702 = vunpack.c.l.b16 %v2612
        %v2703 = vunpack.c.l.b16 %v2613
        %v2704 = vunpack.c.l.b16 %v2614
        %v2705 = vunpack.c.l.b16 %v2615
        %v2706 = vunpack.c.l.b16 %v2616
        %v2707 = vunpack.c.l.b16 %v2617
        %v2708 = vunpack.c.l.b16 %v2618
        %v2709 = vunpack.c.l.b16 %v2619
        %v2710 = vunpack.c.l.b16 %v2620
        %v2711 = vunpack.c.l.b16 %v2621
        %v2712 = vunpack.c.l.b16 %v2622
        %v2713 = vunpack.c.l.b16 %v2623
        %v2714 = vunpack.c.l.b16 %v2624
        %v2715 = vpack.c.b16 %v2700, %v2699
        %v2716 = vpack.c.b16 %v2702, %v2701
        %v2717 = vpack.c.b16 %v2704, %v2703
        %v2718 = vpack.c.b16 %v2706, %v2705
        %v2719 = vpack.c.b16 %v2708, %v2707
        %v2720 = vpack.c.b16 %v2710, %v2709
        %v2721 = vpack.c.b16 %v2712, %v2711
        %v2722 = vpack.c.b16 %v2714, %v2713
        %2731 = vmatprep.subr.bf16.mxu0 0
        %2732 = vmatpush1.bf16.msra.mxu0 %v2722
        %2733 = vmatprep.subr.bf16.mxu0 0
        %2734 = vmatpush1.bf16.msra.mxu0 %v2721
        %2735 = vmatprep.subr.bf16.mxu0 0
        %2736 = vmatpush1.bf16.msra.mxu0 %v2720
        %2737 = vmatprep.subr.bf16.mxu0 0
        %2738 = vmatpush1.bf16.msra.mxu0 %v2719
        %2739 = vmatprep.subr.bf16.mxu0 0
        %2740 = vmatpush1.bf16.msra.mxu0 %v2718
        %2741 = vmatprep.subr.bf16.mxu0 0
        %2742 = vmatpush1.bf16.msra.mxu0 %v2717
        %2743 = vmatprep.subr.bf16.mxu0 0
        %2744 = vmatpush1.bf16.msra.mxu0 %v2716
        %2745 = vmatprep.subr.bf16.mxu0 0
        %2746 = vmatpush1.bf16.msra.mxu0 %v2715
        %2747 = vmatprep.subr.bf16.mxu0 0
        %2748 = vmatpush2.bf16.msra.mxu0 0
        %2749 = vmatprep.subr.bf16.mxu0 0
        %2750 = vmatpush2.bf16.msra.mxu0 0
        %2751 = vmatprep.subr.bf16.mxu0 0
        %2752 = vmatpush2.bf16.msra.mxu0 0
        %2753 = vmatprep.subr.bf16.mxu0 0
        %2754 = vmatpush2.bf16.msra.mxu0 0
        %2755 = vmatprep.subr.bf16.mxu0 0
        %2756 = vmatpush2.bf16.msra.mxu0 0
        %2757 = vmatprep.subr.bf16.mxu0 0
        %2758 = vmatpush2.bf16.msra.mxu0 0
        %2759 = vmatprep.subr.bf16.mxu0 0
        %2760 = vmatpush2.bf16.msra.mxu0 0
        %2761 = vmatprep.subr.bf16.mxu0 0
        %2762 = vmatpush2.bf16.msra.mxu0 0
        %2763 = vmatprep.mubr.bf16.mxu0 0
        %2764 = vmatmul.mubr.bf16.gmra.mxu0 %v2608
        %v2765 = vpop.f32.mrf.mxu0
        %v2766 = vadd.f32 %v2681, %v2765
        %v2767 = vpop.f32.mrf.mxu0
        %v2768 = vpop.f32.mrf.mxu0
        %v2769 = vpop.f32.mrf.mxu0
        %2770 = vdwg.mxu0
        %v2772 = vlaneseq
        %v2773 = vshrl.u32 %v2772, 7
        %v2774 = vsub.s32 0, %v2773
        %v2775 = vrot.slane %v2642, %v2774
        %v2793 = vunpack.c.l.b16 %v2626
        %v2794 = vunpack.c.l.b16 %v2627
        %v2795 = vunpack.c.l.b16 %v2628
        %v2796 = vunpack.c.l.b16 %v2629
        %v2797 = vunpack.c.l.b16 %v2630
        %v2798 = vunpack.c.l.b16 %v2631
        %v2799 = vunpack.c.l.b16 %v2632
        %v2800 = vunpack.c.l.b16 %v2633
        %v2801 = vunpack.c.l.b16 %v2634
        %v2802 = vunpack.c.l.b16 %v2635
        %v2803 = vunpack.c.l.b16 %v2636
        %v2804 = vunpack.c.l.b16 %v2637
        %v2805 = vunpack.c.l.b16 %v2638
        %v2806 = vunpack.c.l.b16 %v2639
        %v2807 = vunpack.c.l.b16 %v2640
        %v2808 = vunpack.c.l.b16 %v2641
        %v2809 = vpack.c.b16 %v2794, %v2793
        %v2810 = vpack.c.b16 %v2796, %v2795
        %v2811 = vpack.c.b16 %v2798, %v2797
        %v2812 = vpack.c.b16 %v2800, %v2799
        %v2813 = vpack.c.b16 %v2802, %v2801
        %v2814 = vpack.c.b16 %v2804, %v2803
        %v2815 = vpack.c.b16 %v2806, %v2805
        %v2816 = vpack.c.b16 %v2808, %v2807
        %2825 = vmatprep.subr.bf16.mxu0 0
        %2826 = vmatpush1.bf16.msra.mxu0 %v2816
        %2827 = vmatprep.subr.bf16.mxu0 0
        %2828 = vmatpush1.bf16.msra.mxu0 %v2815
        %2829 = vmatprep.subr.bf16.mxu0 0
        %2830 = vmatpush1.bf16.msra.mxu0 %v2814
        %2831 = vmatprep.subr.bf16.mxu0 0
        %2832 = vmatpush1.bf16.msra.mxu0 %v2813
        %2833 = vmatprep.subr.bf16.mxu0 0
        %2834 = vmatpush1.bf16.msra.mxu0 %v2812
        %2835 = vmatprep.subr.bf16.mxu0 0
        %2836 = vmatpush1.bf16.msra.mxu0 %v2811
        %2837 = vmatprep.subr.bf16.mxu0 0
        %2838 = vmatpush1.bf16.msra.mxu0 %v2810
        %2839 = vmatprep.subr.bf16.mxu0 0
        %2840 = vmatpush1.bf16.msra.mxu0 %v2809
        %2841 = vmatprep.subr.bf16.mxu0 0
        %2842 = vmatpush2.bf16.msra.mxu0 0
        %2843 = vmatprep.subr.bf16.mxu0 0
        %2844 = vmatpush2.bf16.msra.mxu0 0
        %2845 = vmatprep.subr.bf16.mxu0 0
        %2846 = vmatpush2.bf16.msra.mxu0 0
        %2847 = vmatprep.subr.bf16.mxu0 0
        %2848 = vmatpush2.bf16.msra.mxu0 0
        %2849 = vmatprep.subr.bf16.mxu0 0
        %2850 = vmatpush2.bf16.msra.mxu0 0
        %2851 = vmatprep.subr.bf16.mxu0 0
        %2852 = vmatpush2.bf16.msra.mxu0 0
        %2853 = vmatprep.subr.bf16.mxu0 0
        %2854 = vmatpush2.bf16.msra.mxu0 0
        %2855 = vmatprep.subr.bf16.mxu0 0
        %2856 = vmatpush2.bf16.msra.mxu0 0
        %2857 = vmatprep.mubr.bf16.mxu0 0
        %2858 = vmatmul.mubr.bf16.gmra.mxu0 %v1105
        %v2859 = vpop.f32.mrf.mxu0
        %v2860 = vadd.f32 %v2775, %v2859
        %v2861 = vpop.f32.mrf.mxu0
        %v2862 = vpop.f32.mrf.mxu0
        %v2863 = vpop.f32.mrf.mxu0
        %2864 = vdwg.mxu0
        %v2866 = vlaneseq
        %v2867 = vshrl.u32 %v2866, 7
        %v2868 = vsub.s32 0, %v2867
        %v2869 = vrot.slane %v2659, %v2868
        %v2887 = vunpack.c.l.b16 %v2643
        %v2888 = vunpack.c.l.b16 %v2644
        %v2889 = vunpack.c.l.b16 %v2645
        %v2890 = vunpack.c.l.b16 %v2646
        %v2891 = vunpack.c.l.b16 %v2647
        %v2892 = vunpack.c.l.b16 %v2648
        %v2893 = vunpack.c.l.b16 %v2649
        %v2894 = vunpack.c.l.b16 %v2650
        %v2895 = vunpack.c.l.b16 %v2651
        %v2896 = vunpack.c.l.b16 %v2652
        %v2897 = vunpack.c.l.b16 %v2653
        %v2898 = vunpack.c.l.b16 %v2654
        %v2899 = vunpack.c.l.b16 %v2655
        %v2900 = vunpack.c.l.b16 %v2656
        %v2901 = vunpack.c.l.b16 %v2657
        %v2902 = vunpack.c.l.b16 %v2658
        %v2903 = vpack.c.b16 %v2888, %v2887
        %v2904 = vpack.c.b16 %v2890, %v2889
        %v2905 = vpack.c.b16 %v2892, %v2891
        %v2906 = vpack.c.b16 %v2894, %v2893
        %v2907 = vpack.c.b16 %v2896, %v2895
        %v2908 = vpack.c.b16 %v2898, %v2897
        %v2909 = vpack.c.b16 %v2900, %v2899
        %v2910 = vpack.c.b16 %v2902, %v2901
        %2919 = vmatprep.subr.bf16.mxu0 0
        %2920 = vmatpush1.bf16.msra.mxu0 %v2910
        %2921 = vmatprep.subr.bf16.mxu0 0
        %2922 = vmatpush1.bf16.msra.mxu0 %v2909
        %2923 = vmatprep.subr.bf16.mxu0 0
        %2924 = vmatpush1.bf16.msra.mxu0 %v2908
        %2925 = vmatprep.subr.bf16.mxu0 0
        %2926 = vmatpush1.bf16.msra.mxu0 %v2907
        %2927 = vmatprep.subr.bf16.mxu0 0
        %2928 = vmatpush1.bf16.msra.mxu0 %v2906
        %2929 = vmatprep.subr.bf16.mxu0 0
        %2930 = vmatpush1.bf16.msra.mxu0 %v2905
        %2931 = vmatprep.subr.bf16.mxu0 0
        %2932 = vmatpush1.bf16.msra.mxu0 %v2904
        %2933 = vmatprep.subr.bf16.mxu0 0
        %2934 = vmatpush1.bf16.msra.mxu0 %v2903
        %2935 = vmatprep.subr.bf16.mxu0 0
        %2936 = vmatpush2.bf16.msra.mxu0 0
        %2937 = vmatprep.subr.bf16.mxu0 0
        %2938 = vmatpush2.bf16.msra.mxu0 0
        %2939 = vmatprep.subr.bf16.mxu0 0
        %2940 = vmatpush2.bf16.msra.mxu0 0
        %2941 = vmatprep.subr.bf16.mxu0 0
        %2942 = vmatpush2.bf16.msra.mxu0 0
        %2943 = vmatprep.subr.bf16.mxu0 0
        %2944 = vmatpush2.bf16.msra.mxu0 0
        %2945 = vmatprep.subr.bf16.mxu0 0
        %2946 = vmatpush2.bf16.msra.mxu0 0
        %2947 = vmatprep.subr.bf16.mxu0 0
        %2948 = vmatpush2.bf16.msra.mxu0 0
        %2949 = vmatprep.subr.bf16.mxu0 0
        %2950 = vmatpush2.bf16.msra.mxu0 0
        %2951 = vmatprep.mubr.bf16.mxu0 0
        %2952 = vmatmul.mubr.bf16.gmra.mxu0 %v1105
        %v2953 = vpop.f32.mrf.mxu0
        %v2954 = vadd.f32 %v2869, %v2953
        %v2955 = vpop.f32.mrf.mxu0
        %v2956 = vpop.f32.mrf.mxu0
        %v2957 = vpop.f32.mrf.mxu0
        %2958 = vdwg.mxu0
        %2960 = vrot.lane.b32.xlu0 %v2766, 96
        %v2961 = vpop.permute.xlu0 %2960
        %2963 = vrot.lane.b32.xlu0 %v2766, 64
        %v2964 = vpop.permute.xlu0 %2963
        %2966 = vrot.lane.b32.xlu0 %v2766, 32
        %v2967 = vpop.permute.xlu0 %2966
        %v2969 = vcombine.low %v2766, %v2964
        %v2970 = vcombine.high %v2766, %v2964
        %v2972 = vunpack.c.l.s4 1983009808
        %v2973 = vunpack.c.0.s8 %v2972
        %v2974 = vlaneseq
        %v2975 = vshrl.u32 %v2974, 7
        %v2976 = vsub.s32 %v2973, %v2975
        %v2977 = vrot.slane %v2969, %v2976
        %v2979 = vunpack.c.l.s4 1983009808
        %v2980 = vunpack.c.0.s8 %v2979
        %v2981 = vlaneseq
        %v2982 = vshrl.u32 %v2981, 7
        %v2983 = vsub.s32 %v2980, %v2982
        %v2984 = vrot.slane %v2970, %v2983
        %v2985 = vcombine.low %v2961, %v2967
        %v2986 = vcombine.high %v2961, %v2967
        %v2988 = vunpack.c.l.s4 1983009808
        %v2989 = vunpack.c.0.s8 %v2988
        %v2990 = vlaneseq
        %v2991 = vshrl.u32 %v2990, 7
        %v2992 = vsub.s32 %v2989, %v2991
        %v2993 = vrot.slane %v2985, %v2992
        %v2995 = vunpack.c.l.s4 1983009808
        %v2996 = vunpack.c.0.s8 %v2995
        %v2997 = vlaneseq
        %v2998 = vshrl.u32 %v2997, 7
        %v2999 = vsub.s32 %v2996, %v2998
        %v3000 = vrot.slane %v2986, %v2999
        %v3001 = vcombine.low %v2977, %v2993
        %v3002 = vcombine.high %v2977, %v2993
        %v3004 = vunpack.c.l.s4 1934713408
        %v3005 = vunpack.c.0.s8 %v3004
        %v3006 = vlaneseq
        %v3007 = vshrl.u32 %v3006, 7
        %v3008 = vsub.s32 %v3005, %v3007
        %v3009 = vrot.slane %v3001, %v3008
        %v3011 = vunpack.c.l.s4 1934713408
        %v3012 = vunpack.c.0.s8 %v3011
        %v3013 = vlaneseq
        %v3014 = vshrl.u32 %v3013, 7
        %v3015 = vsub.s32 %v3012, %v3014
        %v3016 = vrot.slane %v3002, %v3015
        %v3017 = vcombine.low %v2984, %v3000
        %v3018 = vcombine.high %v2984, %v3000
        %v3020 = vunpack.c.l.s4 1934713408
        %v3021 = vunpack.c.0.s8 %v3020
        %v3022 = vlaneseq
        %v3023 = vshrl.u32 %v3022, 7
        %v3024 = vsub.s32 %v3021, %v3023
        %v3025 = vrot.slane %v3017, %v3024
        %v3027 = vunpack.c.l.s4 1934713408
        %v3028 = vunpack.c.0.s8 %v3027
        %v3029 = vlaneseq
        %v3030 = vshrl.u32 %v3029, 7
        %v3031 = vsub.s32 %v3028, %v3030
        %v3032 = vrot.slane %v3018, %v3031
        %v3033 = vcombine.high %v3009, 0.0
        %v3034 = vcombine.high %v3016, 0.0
        %v3035 = vcombine.high %v3025, 0.0
        %v3036 = vcombine.high %v3032, 0.0
        %v3037 = vpack.c.bf16 %v3009, %v3009
        %v3038 = vpack.c.bf16 %v3033, %v3033
        %v3039 = vpack.c.bf16 %v3016, %v3016
        %v3040 = vpack.c.bf16 %v3034, %v3034
        %v3041 = vpack.c.bf16 %v3025, %v3025
        %v3042 = vpack.c.bf16 %v3035, %v3035
        %v3043 = vpack.c.bf16 %v3032, %v3032
        %v3044 = vpack.c.bf16 %v3036, %v3036
        %v3045 = vcombine.low %v3037, %v3041
        %v3047 = vunpack.c.l.s4 1983009808
        %v3048 = vunpack.c.0.s8 %v3047
        %v3049 = vlaneseq
        %v3050 = vshrl.u32 %v3049, 7
        %v3051 = vsub.s32 %v3048, %v3050
        %v3052 = vrot.slane %v3045, %v3051
        %v3053 = vcombine.low %v3039, %v3043
        %v3055 = vunpack.c.l.s4 1983009808
        %v3056 = vunpack.c.0.s8 %v3055
        %v3057 = vlaneseq
        %v3058 = vshrl.u32 %v3057, 7
        %v3059 = vsub.s32 %v3056, %v3058
        %v3060 = vrot.slane %v3053, %v3059
        %v3061 = vcombine.low %v3052, %v3060
        %v3063 = vunpack.c.l.s4 1934713408
        %v3064 = vunpack.c.0.s8 %v3063
        %v3065 = vlaneseq
        %v3066 = vshrl.u32 %v3065, 7
        %v3067 = vsub.s32 %v3064, %v3066
        %v3068 = vrot.slane %v3061, %v3067
        %v3069 = vcombine.high %v3068, 0
        %v3070 = vcombine.low %v3038, %v3042
        %v3072 = vunpack.c.l.s4 1983009808
        %v3073 = vunpack.c.0.s8 %v3072
        %v3074 = vlaneseq
        %v3075 = vshrl.u32 %v3074, 7
        %v3076 = vsub.s32 %v3073, %v3075
        %v3077 = vrot.slane %v3070, %v3076
        %v3078 = vcombine.low %v3040, %v3044
        %v3080 = vunpack.c.l.s4 1983009808
        %v3081 = vunpack.c.0.s8 %v3080
        %v3082 = vlaneseq
        %v3083 = vshrl.u32 %v3082, 7
        %v3084 = vsub.s32 %v3081, %v3083
        %v3085 = vrot.slane %v3078, %v3084
        %v3086 = vcombine.low %v3077, %v3085
        %v3088 = vunpack.c.l.s4 1934713408
        %v3089 = vunpack.c.0.s8 %v3088
        %v3090 = vlaneseq
        %v3091 = vshrl.u32 %v3090, 7
        %v3092 = vsub.s32 %v3089, %v3091
        %v3093 = vrot.slane %v3086, %v3092
        %v3094 = vcombine.high %v3093, 0
        %v3097 = vpack.i.b16 %v3093, %v3068
        %v3098 = vshrl.u32 %v3068, 16
        %v3099 = vshrl.u32 %v3093, 16
        %v3100 = vpack.i.b16 %v3099, %v3098
        %v3103 = vpack.i.b16 %v3094, %v3069
        %v3104 = vshrl.u32 %v3069, 16
        %v3105 = vshrl.u32 %v3094, 16
        %v3106 = vpack.i.b16 %v3105, %v3104
        %3108 = vrot.lane.b32.xlu0 %v2860, 96
        %v3109 = vpop.permute.xlu0 %3108
        %3111 = vrot.lane.b32.xlu0 %v2860, 64
        %v3112 = vpop.permute.xlu0 %3111
        %3114 = vrot.lane.b32.xlu0 %v2860, 32
        %v3115 = vpop.permute.xlu0 %3114
        %v3117 = vcombine.low %v2860, %v3112
        %v3118 = vcombine.high %v2860, %v3112
        %v3120 = vunpack.c.l.s4 1983009808
        %v3121 = vunpack.c.0.s8 %v3120
        %v3122 = vlaneseq
        %v3123 = vshrl.u32 %v3122, 7
        %v3124 = vsub.s32 %v3121, %v3123
        %v3125 = vrot.slane %v3117, %v3124
        %v3127 = vunpack.c.l.s4 1983009808
        %v3128 = vunpack.c.0.s8 %v3127
        %v3129 = vlaneseq
        %v3130 = vshrl.u32 %v3129, 7
        %v3131 = vsub.s32 %v3128, %v3130
        %v3132 = vrot.slane %v3118, %v3131
        %v3133 = vcombine.low %v3109, %v3115
        %v3134 = vcombine.high %v3109, %v3115
        %v3136 = vunpack.c.l.s4 1983009808
        %v3137 = vunpack.c.0.s8 %v3136
        %v3138 = vlaneseq
        %v3139 = vshrl.u32 %v3138, 7
        %v3140 = vsub.s32 %v3137, %v3139
        %v3141 = vrot.slane %v3133, %v3140
        %v3143 = vunpack.c.l.s4 1983009808
        %v3144 = vunpack.c.0.s8 %v3143
        %v3145 = vlaneseq
        %v3146 = vshrl.u32 %v3145, 7
        %v3147 = vsub.s32 %v3144, %v3146
        %v3148 = vrot.slane %v3134, %v3147
        %v3149 = vcombine.low %v3125, %v3141
        %v3150 = vcombine.high %v3125, %v3141
        %v3152 = vunpack.c.l.s4 1934713408
        %v3153 = vunpack.c.0.s8 %v3152
        %v3154 = vlaneseq
        %v3155 = vshrl.u32 %v3154, 7
        %v3156 = vsub.s32 %v3153, %v3155
        %v3157 = vrot.slane %v3149, %v3156
        %v3159 = vunpack.c.l.s4 1934713408
        %v3160 = vunpack.c.0.s8 %v3159
        %v3161 = vlaneseq
        %v3162 = vshrl.u32 %v3161, 7
        %v3163 = vsub.s32 %v3160, %v3162
        %v3164 = vrot.slane %v3150, %v3163
        %v3165 = vcombine.low %v3132, %v3148
        %v3166 = vcombine.high %v3132, %v3148
        %v3168 = vunpack.c.l.s4 1934713408
        %v3169 = vunpack.c.0.s8 %v3168
        %v3170 = vlaneseq
        %v3171 = vshrl.u32 %v3170, 7
        %v3172 = vsub.s32 %v3169, %v3171
        %v3173 = vrot.slane %v3165, %v3172
        %v3175 = vunpack.c.l.s4 1934713408
        %v3176 = vunpack.c.0.s8 %v3175
        %v3177 = vlaneseq
        %v3178 = vshrl.u32 %v3177, 7
        %v3179 = vsub.s32 %v3176, %v3178
        %v3180 = vrot.slane %v3166, %v3179
        %v3181 = vcombine.high %v3157, 0.0
        %v3182 = vcombine.high %v3164, 0.0
        %v3183 = vcombine.high %v3173, 0.0
        %v3184 = vcombine.high %v3180, 0.0
        %v3185 = vpack.c.bf16 %v3157, %v3157
        %v3186 = vpack.c.bf16 %v3181, %v3181
        %v3187 = vpack.c.bf16 %v3164, %v3164
        %v3188 = vpack.c.bf16 %v3182, %v3182
        %v3189 = vpack.c.bf16 %v3173, %v3173
        %v3190 = vpack.c.bf16 %v3183, %v3183
        %v3191 = vpack.c.bf16 %v3180, %v3180
        %v3192 = vpack.c.bf16 %v3184, %v3184
        %v3193 = vcombine.low %v3185, %v3189
        %v3195 = vunpack.c.l.s4 1983009808
        %v3196 = vunpack.c.0.s8 %v3195
        %v3197 = vlaneseq
        %v3198 = vshrl.u32 %v3197, 7
        %v3199 = vsub.s32 %v3196, %v3198
        %v3200 = vrot.slane %v3193, %v3199
        %v3201 = vcombine.low %v3187, %v3191
        %v3203 = vunpack.c.l.s4 1983009808
        %v3204 = vunpack.c.0.s8 %v3203
        %v3205 = vlaneseq
        %v3206 = vshrl.u32 %v3205, 7
        %v3207 = vsub.s32 %v3204, %v3206
        %v3208 = vrot.slane %v3201, %v3207
        %v3209 = vcombine.low %v3200, %v3208
        %v3211 = vunpack.c.l.s4 1934713408
        %v3212 = vunpack.c.0.s8 %v3211
        %v3213 = vlaneseq
        %v3214 = vshrl.u32 %v3213, 7
        %v3215 = vsub.s32 %v3212, %v3214
        %v3216 = vrot.slane %v3209, %v3215
        %v3217 = vcombine.high %v3216, 0
        %v3218 = vcombine.low %v3186, %v3190
        %v3220 = vunpack.c.l.s4 1983009808
        %v3221 = vunpack.c.0.s8 %v3220
        %v3222 = vlaneseq
        %v3223 = vshrl.u32 %v3222, 7
        %v3224 = vsub.s32 %v3221, %v3223
        %v3225 = vrot.slane %v3218, %v3224
        %v3226 = vcombine.low %v3188, %v3192
        %v3228 = vunpack.c.l.s4 1983009808
        %v3229 = vunpack.c.0.s8 %v3228
        %v3230 = vlaneseq
        %v3231 = vshrl.u32 %v3230, 7
        %v3232 = vsub.s32 %v3229, %v3231
        %v3233 = vrot.slane %v3226, %v3232
        %v3234 = vcombine.low %v3225, %v3233
        %v3236 = vunpack.c.l.s4 1934713408
        %v3237 = vunpack.c.0.s8 %v3236
        %v3238 = vlaneseq
        %v3239 = vshrl.u32 %v3238, 7
        %v3240 = vsub.s32 %v3237, %v3239
        %v3241 = vrot.slane %v3234, %v3240
        %v3242 = vcombine.high %v3241, 0
        %v3245 = vpack.i.b16 %v3241, %v3216
        %v3246 = vshrl.u32 %v3216, 16
        %v3247 = vshrl.u32 %v3241, 16
        %v3248 = vpack.i.b16 %v3247, %v3246
        %v3251 = vpack.i.b16 %v3242, %v3217
        %v3252 = vshrl.u32 %v3217, 16
        %v3253 = vshrl.u32 %v3242, 16
        %v3254 = vpack.i.b16 %v3253, %v3252
        %3256 = vrot.lane.b32.xlu0 %v2954, 96
        %v3257 = vpop.permute.xlu0 %3256
        %3259 = vrot.lane.b32.xlu0 %v2954, 64
        %v3260 = vpop.permute.xlu0 %3259
        %3262 = vrot.lane.b32.xlu0 %v2954, 32
        %v3263 = vpop.permute.xlu0 %3262
        %v3265 = vcombine.low %v2954, %v3260
        %v3266 = vcombine.high %v2954, %v3260
        %v3268 = vunpack.c.l.s4 1983009808
        %v3269 = vunpack.c.0.s8 %v3268
        %v3270 = vlaneseq
        %v3271 = vshrl.u32 %v3270, 7
        %v3272 = vsub.s32 %v3269, %v3271
        %v3273 = vrot.slane %v3265, %v3272
        %v3275 = vunpack.c.l.s4 1983009808
        %v3276 = vunpack.c.0.s8 %v3275
        %v3277 = vlaneseq
        %v3278 = vshrl.u32 %v3277, 7
        %v3279 = vsub.s32 %v3276, %v3278
        %v3280 = vrot.slane %v3266, %v3279
        %v3281 = vcombine.low %v3257, %v3263
        %v3282 = vcombine.high %v3257, %v3263
        %v3284 = vunpack.c.l.s4 1983009808
        %v3285 = vunpack.c.0.s8 %v3284
        %v3286 = vlaneseq
        %v3287 = vshrl.u32 %v3286, 7
        %v3288 = vsub.s32 %v3285, %v3287
        %v3289 = vrot.slane %v3281, %v3288
        %v3291 = vunpack.c.l.s4 1983009808
        %v3292 = vunpack.c.0.s8 %v3291
        %v3293 = vlaneseq
        %v3294 = vshrl.u32 %v3293, 7
        %v3295 = vsub.s32 %v3292, %v3294
        %v3296 = vrot.slane %v3282, %v3295
        %v3297 = vcombine.low %v3273, %v3289
        %v3298 = vcombine.high %v3273, %v3289
        %v3300 = vunpack.c.l.s4 1934713408
        %v3301 = vunpack.c.0.s8 %v3300
        %v3302 = vlaneseq
        %v3303 = vshrl.u32 %v3302, 7
        %v3304 = vsub.s32 %v3301, %v3303
        %v3305 = vrot.slane %v3297, %v3304
        %v3307 = vunpack.c.l.s4 1934713408
        %v3308 = vunpack.c.0.s8 %v3307
        %v3309 = vlaneseq
        %v3310 = vshrl.u32 %v3309, 7
        %v3311 = vsub.s32 %v3308, %v3310
        %v3312 = vrot.slane %v3298, %v3311
        %v3313 = vcombine.low %v3280, %v3296
        %v3314 = vcombine.high %v3280, %v3296
        %v3316 = vunpack.c.l.s4 1934713408
        %v3317 = vunpack.c.0.s8 %v3316
        %v3318 = vlaneseq
        %v3319 = vshrl.u32 %v3318, 7
        %v3320 = vsub.s32 %v3317, %v3319
        %v3321 = vrot.slane %v3313, %v3320
        %v3323 = vunpack.c.l.s4 1934713408
        %v3324 = vunpack.c.0.s8 %v3323
        %v3325 = vlaneseq
        %v3326 = vshrl.u32 %v3325, 7
        %v3327 = vsub.s32 %v3324, %v3326
        %v3328 = vrot.slane %v3314, %v3327
        %v3329 = vcombine.high %v3305, 0.0
        %v3330 = vcombine.high %v3312, 0.0
        %v3331 = vcombine.high %v3321, 0.0
        %v3332 = vcombine.high %v3328, 0.0
        %v3333 = vpack.c.bf16 %v3305, %v3305
        %v3334 = vpack.c.bf16 %v3329, %v3329
        %v3335 = vpack.c.bf16 %v3312, %v3312
        %v3336 = vpack.c.bf16 %v3330, %v3330
        %v3337 = vpack.c.bf16 %v3321, %v3321
        %v3338 = vpack.c.bf16 %v3331, %v3331
        %v3339 = vpack.c.bf16 %v3328, %v3328
        %v3340 = vpack.c.bf16 %v3332, %v3332
        %v3341 = vcombine.low %v3333, %v3337
        %v3343 = vunpack.c.l.s4 1983009808
        %v3344 = vunpack.c.0.s8 %v3343
        %v3345 = vlaneseq
        %v3346 = vshrl.u32 %v3345, 7
        %v3347 = vsub.s32 %v3344, %v3346
        %v3348 = vrot.slane %v3341, %v3347
        %v3349 = vcombine.low %v3335, %v3339
        %v3351 = vunpack.c.l.s4 1983009808
        %v3352 = vunpack.c.0.s8 %v3351
        %v3353 = vlaneseq
        %v3354 = vshrl.u32 %v3353, 7
        %v3355 = vsub.s32 %v3352, %v3354
        %v3356 = vrot.slane %v3349, %v3355
        %v3357 = vcombine.low %v3348, %v3356
        %v3359 = vunpack.c.l.s4 1934713408
        %v3360 = vunpack.c.0.s8 %v3359
        %v3361 = vlaneseq
        %v3362 = vshrl.u32 %v3361, 7
        %v3363 = vsub.s32 %v3360, %v3362
        %v3364 = vrot.slane %v3357, %v3363
        %v3365 = vcombine.high %v3364, 0
        %v3366 = vcombine.low %v3334, %v3338
        %v3368 = vunpack.c.l.s4 1983009808
        %v3369 = vunpack.c.0.s8 %v3368
        %v3370 = vlaneseq
        %v3371 = vshrl.u32 %v3370, 7
        %v3372 = vsub.s32 %v3369, %v3371
        %v3373 = vrot.slane %v3366, %v3372
        %v3374 = vcombine.low %v3336, %v3340
        %v3376 = vunpack.c.l.s4 1983009808
        %v3377 = vunpack.c.0.s8 %v3376
        %v3378 = vlaneseq
        %v3379 = vshrl.u32 %v3378, 7
        %v3380 = vsub.s32 %v3377, %v3379
        %v3381 = vrot.slane %v3374, %v3380
        %v3382 = vcombine.low %v3373, %v3381
        %v3384 = vunpack.c.l.s4 1934713408
        %v3385 = vunpack.c.0.s8 %v3384
        %v3386 = vlaneseq
        %v3387 = vshrl.u32 %v3386, 7
        %v3388 = vsub.s32 %v3385, %v3387
        %v3389 = vrot.slane %v3382, %v3388
        %v3390 = vcombine.high %v3389, 0
        %v3393 = vpack.i.b16 %v3389, %v3364
        %v3394 = vshrl.u32 %v3364, 16
        %v3395 = vshrl.u32 %v3389, 16
        %v3396 = vpack.i.b16 %v3395, %v3394
        %v3399 = vpack.i.b16 %v3390, %v3365
        %v3400 = vshrl.u32 %v3365, 16
        %v3401 = vshrl.u32 %v3390, 16
        %v3402 = vpack.i.b16 %v3401, %v3400
        %v3404 = vsel %vm1901, %v3097, 0
        %v3407 = vsel %vm1901, %v3245, 0
        %3409 = vmatprep.subr.bf16.mxu0 0
        %3410 = vmatpush1.bf16.xpose.msra.mxu0 0
        %3411 = vmatprep.subr.bf16.mxu0 0
        %3412 = vmatpush1.bf16.xpose.msra.mxu0 0
        %3413 = vmatprep.subr.bf16.mxu0 0
        %3414 = vmatpush1.bf16.xpose.msra.mxu0 0
        %3415 = vmatprep.subr.bf16.mxu0 0
        %3416 = vmatpush1.bf16.xpose.msra.mxu0 0
        %3417 = vmatprep.subr.bf16.mxu0 0
        %3418 = vmatpush1.bf16.xpose.msra.mxu0 0
        %3419 = vmatprep.subr.bf16.mxu0 0
        %3420 = vmatpush1.bf16.xpose.msra.mxu0 0
        %3421 = vmatprep.subr.bf16.mxu0 0
        %3422 = vmatpush1.bf16.xpose.msra.mxu0 0
        %3423 = vmatprep.subr.bf16.mxu0 0
        %3424 = vmatpush1.bf16.xpose.msra.mxu0 %v3407
        %3425 = vmatprep.subr.bf16.mxu0 0
        %3426 = vmatpush2.bf16.xpose.msra.mxu0 0
        %3427 = vmatprep.subr.bf16.mxu0 0
        %3428 = vmatpush2.bf16.xpose.msra.mxu0 0
        %3429 = vmatprep.subr.bf16.mxu0 0
        %3430 = vmatpush2.bf16.xpose.msra.mxu0 0
        %3431 = vmatprep.subr.bf16.mxu0 0
        %3432 = vmatpush2.bf16.xpose.msra.mxu0 0
        %3433 = vmatprep.subr.bf16.mxu0 0
        %3434 = vmatpush2.bf16.xpose.msra.mxu0 0
        %3435 = vmatprep.subr.bf16.mxu0 0
        %3436 = vmatpush2.bf16.xpose.msra.mxu0 0
        %3437 = vmatprep.subr.bf16.mxu0 0
        %3438 = vmatpush2.bf16.xpose.msra.mxu0 0
        %3439 = vmatprep.subr.bf16.mxu0 0
        %3440 = vmatpush2.bf16.xpose.msra.mxu0 0
        %3441 = vmatprep.mubr.bf16.mxu0 0
        %3442 = vmatmul.mubr.bf16.gmra.mxu0 %v3404
        %v3443 = vpop.f32.mrf.mxu0
        %v3444 = vadd.f32 0.0, %v3443
        %v3445 = vpop.f32.mrf.mxu0
        %v3446 = vpop.f32.mrf.mxu0
        %v3447 = vpop.f32.mrf.mxu0
        %3448 = vdwg.mxu0
        %v3450 = vsel %vm1901, %v3100, 0
        %v3453 = vsel %vm1901, %v3248, 0
        %3455 = vmatprep.subr.bf16.mxu0 0
        %3456 = vmatpush1.bf16.xpose.msra.mxu0 0
        %3457 = vmatprep.subr.bf16.mxu0 0
        %3458 = vmatpush1.bf16.xpose.msra.mxu0 0
        %3459 = vmatprep.subr.bf16.mxu0 0
        %3460 = vmatpush1.bf16.xpose.msra.mxu0 0
        %3461 = vmatprep.subr.bf16.mxu0 0
        %3462 = vmatpush1.bf16.xpose.msra.mxu0 0
        %3463 = vmatprep.subr.bf16.mxu0 0
        %3464 = vmatpush1.bf16.xpose.msra.mxu0 0
        %3465 = vmatprep.subr.bf16.mxu0 0
        %3466 = vmatpush1.bf16.xpose.msra.mxu0 0
        %3467 = vmatprep.subr.bf16.mxu0 0
        %3468 = vmatpush1.bf16.xpose.msra.mxu0 0
        %3469 = vmatprep.subr.bf16.mxu0 0
        %3470 = vmatpush1.bf16.xpose.msra.mxu0 %v3453
        %3471 = vmatprep.subr.bf16.mxu0 0
        %3472 = vmatpush2.bf16.xpose.msra.mxu0 0
        %3473 = vmatprep.subr.bf16.mxu0 0
        %3474 = vmatpush2.bf16.xpose.msra.mxu0 0
        %3475 = vmatprep.subr.bf16.mxu0 0
        %3476 = vmatpush2.bf16.xpose.msra.mxu0 0
        %3477 = vmatprep.subr.bf16.mxu0 0
        %3478 = vmatpush2.bf16.xpose.msra.mxu0 0
        %3479 = vmatprep.subr.bf16.mxu0 0
        %3480 = vmatpush2.bf16.xpose.msra.mxu0 0
        %3481 = vmatprep.subr.bf16.mxu0 0
        %3482 = vmatpush2.bf16.xpose.msra.mxu0 0
        %3483 = vmatprep.subr.bf16.mxu0 0
        %3484 = vmatpush2.bf16.xpose.msra.mxu0 0
        %3485 = vmatprep.subr.bf16.mxu0 0
        %3486 = vmatpush2.bf16.xpose.msra.mxu0 0
        %3487 = vmatprep.mubr.bf16.mxu0 0
        %3488 = vmatmul.mubr.bf16.gmra.mxu0 %v3450
        %v3489 = vpop.f32.mrf.mxu0
        %v3490 = vadd.f32 0.0, %v3489
        %v3491 = vpop.f32.mrf.mxu0
        %v3492 = vpop.f32.mrf.mxu0
        %v3493 = vpop.f32.mrf.mxu0
        %3494 = vdwg.mxu0
        %v3496 = vsel %vm1901, %v3103, 0
        %v3499 = vsel %vm1901, %v3251, 0
        %3501 = vmatprep.subr.bf16.mxu0 0
        %3502 = vmatpush1.bf16.xpose.msra.mxu0 0
        %3503 = vmatprep.subr.bf16.mxu0 0
        %3504 = vmatpush1.bf16.xpose.msra.mxu0 0
        %3505 = vmatprep.subr.bf16.mxu0 0
        %3506 = vmatpush1.bf16.xpose.msra.mxu0 0
        %3507 = vmatprep.subr.bf16.mxu0 0
        %3508 = vmatpush1.bf16.xpose.msra.mxu0 0
        %3509 = vmatprep.subr.bf16.mxu0 0
        %3510 = vmatpush1.bf16.xpose.msra.mxu0 0
        %3511 = vmatprep.subr.bf16.mxu0 0
        %3512 = vmatpush1.bf16.xpose.msra.mxu0 0
        %3513 = vmatprep.subr.bf16.mxu0 0
        %3514 = vmatpush1.bf16.xpose.msra.mxu0 0
        %3515 = vmatprep.subr.bf16.mxu0 0
        %3516 = vmatpush1.bf16.xpose.msra.mxu0 %v3499
        %3517 = vmatprep.subr.bf16.mxu0 0
        %3518 = vmatpush2.bf16.xpose.msra.mxu0 0
        %3519 = vmatprep.subr.bf16.mxu0 0
        %3520 = vmatpush2.bf16.xpose.msra.mxu0 0
        %3521 = vmatprep.subr.bf16.mxu0 0
        %3522 = vmatpush2.bf16.xpose.msra.mxu0 0
        %3523 = vmatprep.subr.bf16.mxu0 0
        %3524 = vmatpush2.bf16.xpose.msra.mxu0 0
        %3525 = vmatprep.subr.bf16.mxu0 0
        %3526 = vmatpush2.bf16.xpose.msra.mxu0 0
        %3527 = vmatprep.subr.bf16.mxu0 0
        %3528 = vmatpush2.bf16.xpose.msra.mxu0 0
        %3529 = vmatprep.subr.bf16.mxu0 0
        %3530 = vmatpush2.bf16.xpose.msra.mxu0 0
        %3531 = vmatprep.subr.bf16.mxu0 0
        %3532 = vmatpush2.bf16.xpose.msra.mxu0 0
        %3533 = vmatprep.mubr.bf16.mxu0 0
        %3534 = vmatmul.mubr.bf16.gmra.mxu0 %v3496
        %v3535 = vpop.f32.mrf.mxu0
        %v3536 = vadd.f32 0.0, %v3535
        %v3537 = vpop.f32.mrf.mxu0
        %v3538 = vpop.f32.mrf.mxu0
        %v3539 = vpop.f32.mrf.mxu0
        %3540 = vdwg.mxu0
        %v3542 = vsel %vm1901, %v3106, 0
        %v3545 = vsel %vm1901, %v3254, 0
        %3547 = vmatprep.subr.bf16.mxu0 0
        %3548 = vmatpush1.bf16.xpose.msra.mxu0 0
        %3549 = vmatprep.subr.bf16.mxu0 0
        %3550 = vmatpush1.bf16.xpose.msra.mxu0 0
        %3551 = vmatprep.subr.bf16.mxu0 0
        %3552 = vmatpush1.bf16.xpose.msra.mxu0 0
        %3553 = vmatprep.subr.bf16.mxu0 0
        %3554 = vmatpush1.bf16.xpose.msra.mxu0 0
        %3555 = vmatprep.subr.bf16.mxu0 0
        %3556 = vmatpush1.bf16.xpose.msra.mxu0 0
        %3557 = vmatprep.subr.bf16.mxu0 0
        %3558 = vmatpush1.bf16.xpose.msra.mxu0 0
        %3559 = vmatprep.subr.bf16.mxu0 0
        %3560 = vmatpush1.bf16.xpose.msra.mxu0 0
        %3561 = vmatprep.subr.bf16.mxu0 0
        %3562 = vmatpush1.bf16.xpose.msra.mxu0 %v3545
        %3563 = vmatprep.subr.bf16.mxu0 0
        %3564 = vmatpush2.bf16.xpose.msra.mxu0 0
        %3565 = vmatprep.subr.bf16.mxu0 0
        %3566 = vmatpush2.bf16.xpose.msra.mxu0 0
        %3567 = vmatprep.subr.bf16.mxu0 0
        %3568 = vmatpush2.bf16.xpose.msra.mxu0 0
        %3569 = vmatprep.subr.bf16.mxu0 0
        %3570 = vmatpush2.bf16.xpose.msra.mxu0 0
        %3571 = vmatprep.subr.bf16.mxu0 0
        %3572 = vmatpush2.bf16.xpose.msra.mxu0 0
        %3573 = vmatprep.subr.bf16.mxu0 0
        %3574 = vmatpush2.bf16.xpose.msra.mxu0 0
        %3575 = vmatprep.subr.bf16.mxu0 0
        %3576 = vmatpush2.bf16.xpose.msra.mxu0 0
        %3577 = vmatprep.subr.bf16.mxu0 0
        %3578 = vmatpush2.bf16.xpose.msra.mxu0 0
        %3579 = vmatprep.mubr.bf16.mxu0 0
        %3580 = vmatmul.mubr.bf16.gmra.mxu0 %v3542
        %v3581 = vpop.f32.mrf.mxu0
        %v3582 = vadd.f32 0.0, %v3581
        %v3583 = vpop.f32.mrf.mxu0
        %v3584 = vpop.f32.mrf.mxu0
        %v3585 = vpop.f32.mrf.mxu0
        %3586 = vdwg.mxu0
        %v3587 = vsel %vm2097, %v3444, -inf
        %3588 = vmax.xlane.f32.xlu0 %v3587
        %v3589 = vpop.xlane.xlu0 %3588
        %v3590 = vsel %vm2097, %v3490, -inf
        %3591 = vmax.xlane.f32.xlu0 %v3590
        %v3592 = vpop.xlane.xlu0 %3591
        %v3593 = vsel %vm2097, %v3536, -inf
        %3594 = vmax.xlane.f32.xlu0 %v3593
        %v3595 = vpop.xlane.xlu0 %3594
        %v3596 = vsel %vm2097, %v3582, -inf
        %3597 = vmax.xlane.f32.xlu0 %v3596
        %v3598 = vpop.xlane.xlu0 %3597
        %v3599 = vsub.f32 %v3444, %v3589
        %v3600 = vsub.f32 %v3490, %v3592
        %v3601 = vsub.f32 %v3536, %v3595
        %v3602 = vsub.f32 %v3582, %v3598
        %v3603 = vmul.f32 %v3599, 1.442695
        %v3604 = vpow.pop %v3603
        %v3605 = vmul.f32 %v3600, 1.442695
        %v3606 = vpow.pop %v3605
        %v3607 = vmul.f32 %v3601, 1.442695
        %v3608 = vpow.pop %v3607
        %v3609 = vmul.f32 %v3602, 1.442695
        %v3610 = vpow.pop %v3609
        %v3611 = vsel %vm2097, %v3604, 0.0
        %3612 = vadd.xlane.f32.xlu0 %v3611
        %v3613 = vpop.xlane.xlu0 %3612
        %v3614 = vsel %vm2097, %v3606, 0.0
        %3615 = vadd.xlane.f32.xlu0 %v3614
        %v3616 = vpop.xlane.xlu0 %3615
        %v3617 = vsel %vm2097, %v3608, 0.0
        %3618 = vadd.xlane.f32.xlu0 %v3617
        %v3619 = vpop.xlane.xlu0 %3618
        %v3620 = vsel %vm2097, %v3610, 0.0
        %3621 = vadd.xlane.f32.xlu0 %v3620
        %v3622 = vpop.xlane.xlu0 %3621
        %v3623 = vrcp.pop %v3613
        %v3624 = vrcp.pop %v3616
        %v3625 = vrcp.pop %v3619
        %v3626 = vrcp.pop %v3622
        %v3627 = vmul.f32 %v3604, %v3623
        %v3628 = vmul.f32 %v3606, %v3624
        %v3629 = vmul.f32 %v3608, %v3625
        %v3630 = vmul.f32 %v3610, %v3626
        %v3631 = vpack.c.bf16 %v3627, %v3627
        %v3632 = vpack.c.bf16 %v3628, %v3628
        %v3633 = vpack.c.bf16 %v3629, %v3629
        %v3634 = vpack.c.bf16 %v3630, %v3630
        %v3636 = vsel %vm2097, %v3631, 0
        %v3639 = vsel %vm2149, %v3393, 0
        %3641 = vmatprep.subr.bf16.mxu0 0
        %3642 = vmatpush1.bf16.msra.mxu0 0
        %3643 = vmatprep.subr.bf16.mxu0 0
        %3644 = vmatpush1.bf16.msra.mxu0 0
        %3645 = vmatprep.subr.bf16.mxu0 0
        %3646 = vmatpush1.bf16.msra.mxu0 0
        %3647 = vmatprep.subr.bf16.mxu0 0
        %3648 = vmatpush1.bf16.msra.mxu0 0
        %3649 = vmatprep.subr.bf16.mxu0 0
        %3650 = vmatpush1.bf16.msra.mxu0 0
        %3651 = vmatprep.subr.bf16.mxu0 0
        %3652 = vmatpush1.bf16.msra.mxu0 0
        %3653 = vmatprep.subr.bf16.mxu0 0
        %3654 = vmatpush1.bf16.msra.mxu0 0
        %3655 = vmatprep.subr.bf16.mxu0 0
        %3656 = vmatpush1.bf16.msra.mxu0 %v3639
        %3657 = vmatprep.subr.bf16.mxu0 0
        %3658 = vmatpush2.bf16.msra.mxu0 0
        %3659 = vmatprep.subr.bf16.mxu0 0
        %3660 = vmatpush2.bf16.msra.mxu0 0
        %3661 = vmatprep.subr.bf16.mxu0 0
        %3662 = vmatpush2.bf16.msra.mxu0 0
        %3663 = vmatprep.subr.bf16.mxu0 0
        %3664 = vmatpush2.bf16.msra.mxu0 0
        %3665 = vmatprep.subr.bf16.mxu0 0
        %3666 = vmatpush2.bf16.msra.mxu0 0
        %3667 = vmatprep.subr.bf16.mxu0 0
        %3668 = vmatpush2.bf16.msra.mxu0 0
        %3669 = vmatprep.subr.bf16.mxu0 0
        %3670 = vmatpush2.bf16.msra.mxu0 0
        %3671 = vmatprep.subr.bf16.mxu0 0
        %3672 = vmatpush2.bf16.msra.mxu0 0
        %3673 = vmatprep.mubr.bf16.mxu0 0
        %3674 = vmatmul.mubr.bf16.gmra.mxu0 %v3636
        %v3675 = vpop.f32.mrf.mxu0
        %v3676 = vadd.f32 0.0, %v3675
        %v3677 = vpop.f32.mrf.mxu0
        %v3678 = vpop.f32.mrf.mxu0
        %v3679 = vpop.f32.mrf.mxu0
        %3680 = vdwg.mxu0
        %v3682 = vsel %vm2097, %v3632, 0
        %v3685 = vsel %vm2149, %v3396, 0
        %3687 = vmatprep.subr.bf16.mxu0 0
        %3688 = vmatpush1.bf16.msra.mxu0 0
        %3689 = vmatprep.subr.bf16.mxu0 0
        %3690 = vmatpush1.bf16.msra.mxu0 0
        %3691 = vmatprep.subr.bf16.mxu0 0
        %3692 = vmatpush1.bf16.msra.mxu0 0
        %3693 = vmatprep.subr.bf16.mxu0 0
        %3694 = vmatpush1.bf16.msra.mxu0 0
        %3695 = vmatprep.subr.bf16.mxu0 0
        %3696 = vmatpush1.bf16.msra.mxu0 0
        %3697 = vmatprep.subr.bf16.mxu0 0
        %3698 = vmatpush1.bf16.msra.mxu0 0
        %3699 = vmatprep.subr.bf16.mxu0 0
        %3700 = vmatpush1.bf16.msra.mxu0 0
        %3701 = vmatprep.subr.bf16.mxu0 0
        %3702 = vmatpush1.bf16.msra.mxu0 %v3685
        %3703 = vmatprep.subr.bf16.mxu0 0
        %3704 = vmatpush2.bf16.msra.mxu0 0
        %3705 = vmatprep.subr.bf16.mxu0 0
        %3706 = vmatpush2.bf16.msra.mxu0 0
        %3707 = vmatprep.subr.bf16.mxu0 0
        %3708 = vmatpush2.bf16.msra.mxu0 0
        %3709 = vmatprep.subr.bf16.mxu0 0
        %3710 = vmatpush2.bf16.msra.mxu0 0
        %3711 = vmatprep.subr.bf16.mxu0 0
        %3712 = vmatpush2.bf16.msra.mxu0 0
        %3713 = vmatprep.subr.bf16.mxu0 0
        %3714 = vmatpush2.bf16.msra.mxu0 0
        %3715 = vmatprep.subr.bf16.mxu0 0
        %3716 = vmatpush2.bf16.msra.mxu0 0
        %3717 = vmatprep.subr.bf16.mxu0 0
        %3718 = vmatpush2.bf16.msra.mxu0 0
        %3719 = vmatprep.mubr.bf16.mxu0 0
        %3720 = vmatmul.mubr.bf16.gmra.mxu0 %v3682
        %v3721 = vpop.f32.mrf.mxu0
        %v3722 = vadd.f32 0.0, %v3721
        %v3723 = vpop.f32.mrf.mxu0
        %v3724 = vpop.f32.mrf.mxu0
        %v3725 = vpop.f32.mrf.mxu0
        %3726 = vdwg.mxu0
        %v3728 = vsel %vm2097, %v3633, 0
        %v3731 = vsel %vm2149, %v3399, 0
        %3733 = vmatprep.subr.bf16.mxu0 0
        %3734 = vmatpush1.bf16.msra.mxu0 0
        %3735 = vmatprep.subr.bf16.mxu0 0
        %3736 = vmatpush1.bf16.msra.mxu0 0
        %3737 = vmatprep.subr.bf16.mxu0 0
        %3738 = vmatpush1.bf16.msra.mxu0 0
        %3739 = vmatprep.subr.bf16.mxu0 0
        %3740 = vmatpush1.bf16.msra.mxu0 0
        %3741 = vmatprep.subr.bf16.mxu0 0
        %3742 = vmatpush1.bf16.msra.mxu0 0
        %3743 = vmatprep.subr.bf16.mxu0 0
        %3744 = vmatpush1.bf16.msra.mxu0 0
        %3745 = vmatprep.subr.bf16.mxu0 0
        %3746 = vmatpush1.bf16.msra.mxu0 0
        %3747 = vmatprep.subr.bf16.mxu0 0
        %3748 = vmatpush1.bf16.msra.mxu0 %v3731
        %3749 = vmatprep.subr.bf16.mxu0 0
        %3750 = vmatpush2.bf16.msra.mxu0 0
        %3751 = vmatprep.subr.bf16.mxu0 0
        %3752 = vmatpush2.bf16.msra.mxu0 0
        %3753 = vmatprep.subr.bf16.mxu0 0
        %3754 = vmatpush2.bf16.msra.mxu0 0
        %3755 = vmatprep.subr.bf16.mxu0 0
        %3756 = vmatpush2.bf16.msra.mxu0 0
        %3757 = vmatprep.subr.bf16.mxu0 0
        %3758 = vmatpush2.bf16.msra.mxu0 0
        %3759 = vmatprep.subr.bf16.mxu0 0
        %3760 = vmatpush2.bf16.msra.mxu0 0
        %3761 = vmatprep.subr.bf16.mxu0 0
        %3762 = vmatpush2.bf16.msra.mxu0 0
        %3763 = vmatprep.subr.bf16.mxu0 0
        %3764 = vmatpush2.bf16.msra.mxu0 0
        %3765 = vmatprep.mubr.bf16.mxu0 0
        %3766 = vmatmul.mubr.bf16.gmra.mxu0 %v3728
        %v3767 = vpop.f32.mrf.mxu0
        %v3768 = vadd.f32 0.0, %v3767
        %v3769 = vpop.f32.mrf.mxu0
        %v3770 = vpop.f32.mrf.mxu0
        %v3771 = vpop.f32.mrf.mxu0
        %3772 = vdwg.mxu0
        %v3774 = vsel %vm2097, %v3634, 0
        %v3777 = vsel %vm2149, %v3402, 0
        %3779 = vmatprep.subr.bf16.mxu0 0
        %3780 = vmatpush1.bf16.msra.mxu0 0
        %3781 = vmatprep.subr.bf16.mxu0 0
        %3782 = vmatpush1.bf16.msra.mxu0 0
        %3783 = vmatprep.subr.bf16.mxu0 0
        %3784 = vmatpush1.bf16.msra.mxu0 0
        %3785 = vmatprep.subr.bf16.mxu0 0
        %3786 = vmatpush1.bf16.msra.mxu0 0
        %3787 = vmatprep.subr.bf16.mxu0 0
        %3788 = vmatpush1.bf16.msra.mxu0 0
        %3789 = vmatprep.subr.bf16.mxu0 0
        %3790 = vmatpush1.bf16.msra.mxu0 0
        %3791 = vmatprep.subr.bf16.mxu0 0
        %3792 = vmatpush1.bf16.msra.mxu0 0
        %3793 = vmatprep.subr.bf16.mxu0 0
        %3794 = vmatpush1.bf16.msra.mxu0 %v3777
        %3795 = vmatprep.subr.bf16.mxu0 0
        %3796 = vmatpush2.bf16.msra.mxu0 0
        %3797 = vmatprep.subr.bf16.mxu0 0
        %3798 = vmatpush2.bf16.msra.mxu0 0
        %3799 = vmatprep.subr.bf16.mxu0 0
        %3800 = vmatpush2.bf16.msra.mxu0 0
        %3801 = vmatprep.subr.bf16.mxu0 0
        %3802 = vmatpush2.bf16.msra.mxu0 0
        %3803 = vmatprep.subr.bf16.mxu0 0
        %3804 = vmatpush2.bf16.msra.mxu0 0
        %3805 = vmatprep.subr.bf16.mxu0 0
        %3806 = vmatpush2.bf16.msra.mxu0 0
        %3807 = vmatprep.subr.bf16.mxu0 0
        %3808 = vmatpush2.bf16.msra.mxu0 0
        %3809 = vmatprep.subr.bf16.mxu0 0
        %3810 = vmatpush2.bf16.msra.mxu0 0
        %3811 = vmatprep.mubr.bf16.mxu0 0
        %3812 = vmatmul.mubr.bf16.gmra.mxu0 %v3774
        %v3813 = vpop.f32.mrf.mxu0
        %v3814 = vadd.f32 0.0, %v3813
        %v3815 = vpop.f32.mrf.mxu0
        %v3816 = vpop.f32.mrf.mxu0
        %v3817 = vpop.f32.mrf.mxu0
        %3818 = vdwg.mxu0
        %v3819 = vcombine.low %v3676, %v3768
        %v3820 = vcombine.high %v3676, %v3768
        %v3822 = vunpack.c.l.s4 1983009808
        %v3823 = vunpack.c.0.s8 %v3822
        %v3824 = vlaneseq
        %v3825 = vshrl.u32 %v3824, 7
        %v3826 = vsub.s32 %v3823, %v3825
        %v3827 = vrot.slane %v3819, %v3826
        %v3829 = vunpack.c.l.s4 1983009808
        %v3830 = vunpack.c.0.s8 %v3829
        %v3831 = vlaneseq
        %v3832 = vshrl.u32 %v3831, 7
        %v3833 = vsub.s32 %v3830, %v3832
        %v3834 = vrot.slane %v3820, %v3833
        %v3835 = vcombine.low %v3722, %v3814
        %v3836 = vcombine.high %v3722, %v3814
        %v3838 = vunpack.c.l.s4 1983009808
        %v3839 = vunpack.c.0.s8 %v3838
        %v3840 = vlaneseq
        %v3841 = vshrl.u32 %v3840, 7
        %v3842 = vsub.s32 %v3839, %v3841
        %v3843 = vrot.slane %v3835, %v3842
        %v3845 = vunpack.c.l.s4 1983009808
        %v3846 = vunpack.c.0.s8 %v3845
        %v3847 = vlaneseq
        %v3848 = vshrl.u32 %v3847, 7
        %v3849 = vsub.s32 %v3846, %v3848
        %v3850 = vrot.slane %v3836, %v3849
        %v3851 = vcombine.low %v3827, %v3843
        %v3852 = vcombine.high %v3827, %v3843
        %v3854 = vunpack.c.l.s4 1934713408
        %v3855 = vunpack.c.0.s8 %v3854
        %v3856 = vlaneseq
        %v3857 = vshrl.u32 %v3856, 7
        %v3858 = vsub.s32 %v3855, %v3857
        %v3859 = vrot.slane %v3851, %v3858
        %v3861 = vunpack.c.l.s4 1934713408
        %v3862 = vunpack.c.0.s8 %v3861
        %v3863 = vlaneseq
        %v3864 = vshrl.u32 %v3863, 7
        %v3865 = vsub.s32 %v3862, %v3864
        %v3866 = vrot.slane %v3852, %v3865
        %v3867 = vcombine.low %v3834, %v3850
        %v3868 = vcombine.high %v3834, %v3850
        %v3870 = vunpack.c.l.s4 1934713408
        %v3871 = vunpack.c.0.s8 %v3870
        %v3872 = vlaneseq
        %v3873 = vshrl.u32 %v3872, 7
        %v3874 = vsub.s32 %v3871, %v3873
        %v3875 = vrot.slane %v3867, %v3874
        %v3877 = vunpack.c.l.s4 1934713408
        %v3878 = vunpack.c.0.s8 %v3877
        %v3879 = vlaneseq
        %v3880 = vshrl.u32 %v3879, 7
        %v3881 = vsub.s32 %v3878, %v3880
        %v3882 = vrot.slane %v3868, %v3881
        %v3883 = vcombine.high %v3859, 0.0
        %v3884 = vcombine.high %v3866, 0.0
        %v3885 = vcombine.high %v3875, 0.0
        %v3886 = vcombine.high %v3882, 0.0
        %v3887 = vcombine.low %v3859, %v3866
        %v3889 = vunpack.c.l.s4 1983009808
        %v3890 = vunpack.c.0.s8 %v3889
        %v3891 = vlaneseq
        %v3892 = vshrl.u32 %v3891, 7
        %v3893 = vsub.s32 %v3890, %v3892
        %v3894 = vrot.slane %v3887, %v3893
        %v3895 = vcombine.low %v3883, %v3884
        %v3897 = vunpack.c.l.s4 1983009808
        %v3898 = vunpack.c.0.s8 %v3897
        %v3899 = vlaneseq
        %v3900 = vshrl.u32 %v3899, 7
        %v3901 = vsub.s32 %v3898, %v3900
        %v3902 = vrot.slane %v3895, %v3901
        %v3903 = vcombine.low %v3875, %v3882
        %v3905 = vunpack.c.l.s4 1983009808
        %v3906 = vunpack.c.0.s8 %v3905
        %v3907 = vlaneseq
        %v3908 = vshrl.u32 %v3907, 7
        %v3909 = vsub.s32 %v3906, %v3908
        %v3910 = vrot.slane %v3903, %v3909
        %v3911 = vcombine.low %v3885, %v3886
        %v3913 = vunpack.c.l.s4 1983009808
        %v3914 = vunpack.c.0.s8 %v3913
        %v3915 = vlaneseq
        %v3916 = vshrl.u32 %v3915, 7
        %v3917 = vsub.s32 %v3914, %v3916
        %v3918 = vrot.slane %v3911, %v3917
        %v3919 = vcombine.low %v3894, %v3902
        %v3920 = vcombine.high %v3894, %v3902
        %v3922 = vunpack.c.l.s4 1934713408
        %v3923 = vunpack.c.0.s8 %v3922
        %v3924 = vlaneseq
        %v3925 = vshrl.u32 %v3924, 7
        %v3926 = vsub.s32 %v3923, %v3925
        %v3927 = vrot.slane %v3919, %v3926
        %v3929 = vunpack.c.l.s4 1934713408
        %v3930 = vunpack.c.0.s8 %v3929
        %v3931 = vlaneseq
        %v3932 = vshrl.u32 %v3931, 7
        %v3933 = vsub.s32 %v3930, %v3932
        %v3934 = vrot.slane %v3920, %v3933
        %v3935 = vcombine.low %v3910, %v3918
        %v3936 = vcombine.high %v3910, %v3918
        %v3938 = vunpack.c.l.s4 1934713408
        %v3939 = vunpack.c.0.s8 %v3938
        %v3940 = vlaneseq
        %v3941 = vshrl.u32 %v3940, 7
        %v3942 = vsub.s32 %v3939, %v3941
        %v3943 = vrot.slane %v3935, %v3942
        %v3945 = vunpack.c.l.s4 1934713408
        %v3946 = vunpack.c.0.s8 %v3945
        %v3947 = vlaneseq
        %v3948 = vshrl.u32 %v3947, 7
        %v3949 = vsub.s32 %v3946, %v3948
        %v3950 = vrot.slane %v3936, %v3949
        %v3951 = vcombine.low %v3927, %v3943
        %v3952 = vcombine.high %v3927, %v3943
        %v3953 = vcombine.low %v3934, %v3950
        %v3954 = vcombine.high %v3934, %v3950
        %3956 = vrot.lane.b32.xlu0 %v3952, 32
        %v3957 = vpop.permute.xlu0 %3956
        %3960 = vrot.lane.b32.xlu0 %v3953, 64
        %v3961 = vpop.permute.xlu0 %3960
        %3964 = vrot.lane.b32.xlu0 %v3954, 96
        %v3965 = vpop.permute.xlu0 %3964
        %v3967 = vsel %vm1901, %v3951, %v3957
        %v3968 = vsel %vm2480, %v3967, %v3961
        %v3969 = vsel %vm2482, %v3968, %v3965
        %v3970 = vpack.c.bf16 %v3969, %v3969
        %v3972 = vlaneseq
        %v3973 = vshrl.u32 %v3972, 7
        %v3974 = vsub.s32 0, %v3973
        %v3975 = vrot.slane %v2676, %v3974
        %v3993 = vunpack.c.l.b16 %v2660
        %v3994 = vunpack.c.l.b16 %v2661
        %v3995 = vunpack.c.l.b16 %v2662
        %v3996 = vunpack.c.l.b16 %v2663
        %v3997 = vunpack.c.l.b16 %v2664
        %v3998 = vunpack.c.l.b16 %v2665
        %v3999 = vunpack.c.l.b16 %v2666
        %v4000 = vunpack.c.l.b16 %v2667
        %v4001 = vunpack.c.l.b16 %v2668
        %v4002 = vunpack.c.l.b16 %v2669
        %v4003 = vunpack.c.l.b16 %v2670
        %v4004 = vunpack.c.l.b16 %v2671
        %v4005 = vunpack.c.l.b16 %v2672
        %v4006 = vunpack.c.l.b16 %v2673
        %v4007 = vunpack.c.l.b16 %v2674
        %v4008 = vunpack.c.l.b16 %v2675
        %v4009 = vpack.c.b16 %v3994, %v3993
        %v4010 = vpack.c.b16 %v3996, %v3995
        %v4011 = vpack.c.b16 %v3998, %v3997
        %v4012 = vpack.c.b16 %v4000, %v3999
        %v4013 = vpack.c.b16 %v4002, %v4001
        %v4014 = vpack.c.b16 %v4004, %v4003
        %v4015 = vpack.c.b16 %v4006, %v4005
        %v4016 = vpack.c.b16 %v4008, %v4007
        %4025 = vmatprep.subr.bf16.mxu0 0
        %4026 = vmatpush1.bf16.msra.mxu0 %v4016
        %4027 = vmatprep.subr.bf16.mxu0 0
        %4028 = vmatpush1.bf16.msra.mxu0 %v4015
        %4029 = vmatprep.subr.bf16.mxu0 0
        %4030 = vmatpush1.bf16.msra.mxu0 %v4014
        %4031 = vmatprep.subr.bf16.mxu0 0
        %4032 = vmatpush1.bf16.msra.mxu0 %v4013
        %4033 = vmatprep.subr.bf16.mxu0 0
        %4034 = vmatpush1.bf16.msra.mxu0 %v4012
        %4035 = vmatprep.subr.bf16.mxu0 0
        %4036 = vmatpush1.bf16.msra.mxu0 %v4011
        %4037 = vmatprep.subr.bf16.mxu0 0
        %4038 = vmatpush1.bf16.msra.mxu0 %v4010
        %4039 = vmatprep.subr.bf16.mxu0 0
        %4040 = vmatpush1.bf16.msra.mxu0 %v4009
        %4041 = vmatprep.subr.bf16.mxu0 0
        %4042 = vmatpush2.bf16.msra.mxu0 0
        %4043 = vmatprep.subr.bf16.mxu0 0
        %4044 = vmatpush2.bf16.msra.mxu0 0
        %4045 = vmatprep.subr.bf16.mxu0 0
        %4046 = vmatpush2.bf16.msra.mxu0 0
        %4047 = vmatprep.subr.bf16.mxu0 0
        %4048 = vmatpush2.bf16.msra.mxu0 0
        %4049 = vmatprep.subr.bf16.mxu0 0
        %4050 = vmatpush2.bf16.msra.mxu0 0
        %4051 = vmatprep.subr.bf16.mxu0 0
        %4052 = vmatpush2.bf16.msra.mxu0 0
        %4053 = vmatprep.subr.bf16.mxu0 0
        %4054 = vmatpush2.bf16.msra.mxu0 0
        %4055 = vmatprep.subr.bf16.mxu0 0
        %4056 = vmatpush2.bf16.msra.mxu0 0
        %4057 = vmatprep.mubr.bf16.mxu0 0
        %4058 = vmatmul.mubr.bf16.gmra.mxu0 %v3970
        %v4059 = vpop.f32.mrf.mxu0
        %v4060 = vadd.f32 %v3975, %v4059
        %v4061 = vpop.f32.mrf.mxu0
        %v4062 = vpop.f32.mrf.mxu0
        %v4063 = vpop.f32.mrf.mxu0
        %4064 = vdwg.mxu0
        %v4065 = vld [vmem:[%s24] sm:$0x1]
        %v4066 = vld [vmem:[%s25] sm:$0x1]
        %v4067 = vadd.f32 %v2607, %v4060
        %4068 = vadd.xlane.f32.xlu0 %v4067
        %v4069 = vpop.xlane.xlu0 %4068
        %v4070 = vmul.f32 %v4069, %v2584
        %v4071 = vsub.f32 %v4067, %v4070
        %v4072 = vmul.f32 %v4071, %v4071
        %4073 = vadd.xlane.f32.xlu0 %v4072
        %v4074 = vpop.xlane.xlu0 %4073
        %v4075 = vmul.f32 %v4074, %v2584
        %v4076 = vadd.f32 %v4075, 1e-05
        %v4077 = vrsqrt.pop %v4076
        %v4078 = vmul.f32 %v4071, %v4077
        %v4080 = vlaneseq
        %v4081 = vshrl.u32 %v4080, 7
        %v4082 = vsub.s32 0, %v4081
        %v4083 = vrot.slane %v4065, %v4082
        %v4085 = vmul.f32 %v4078, %v4083
        %v4087 = vlaneseq
        %v4088 = vshrl.u32 %v4087, 7
        %v4089 = vsub.s32 0, %v4088
        %v4090 = vrot.slane %v4066, %v4089
        %v4092 = vadd.f32 %v4085, %v4090
        %v4093 = vld [vmem:[#allocation24] sm:$0xff]
        %v4094 = vld [vmem:[#allocation24 + $0x8] sm:$0xff]
        %v4095 = vld [vmem:[#allocation24 + $0x10] sm:$0xff]
        %v4096 = vld [vmem:[#allocation24 + $0x18] sm:$0xff]
        %v4097 = vld [vmem:[#allocation24 + $0x20] sm:$0xff]
        %v4098 = vld [vmem:[#allocation24 + $0x28] sm:$0xff]
        %v4099 = vld [vmem:[#allocation24 + $0x30] sm:$0xff]
        %v4100 = vld [vmem:[#allocation24 + $0x38] sm:$0xff]
        %v4101 = vld [vmem:[#allocation24 + $0x40] sm:$0xff]
        %v4102 = vld [vmem:[#allocation24 + $0x48] sm:$0xff]
        %v4103 = vld [vmem:[#allocation24 + $0x50] sm:$0xff]
        %v4104 = vld [vmem:[#allocation24 + $0x58] sm:$0xff]
        %v4105 = vld [vmem:[#allocation24 + $0x60] sm:$0xff]
        %v4106 = vld [vmem:[#allocation24 + $0x68] sm:$0xff]
        %v4107 = vld [vmem:[#allocation24 + $0x70] sm:$0xff]
        %v4108 = vld [vmem:[#allocation24 + $0x78] sm:$0xff]
        %v4109 = vld [vmem:[#allocation25] sm:$0x3]
        %v4110 = vld [vmem:[#allocation27] sm:$0xf]
        %v4111 = vld [vmem:[#allocation27 + $0x4] sm:$0xf]
        %v4112 = vld [vmem:[#allocation27 + $0x8] sm:$0xf]
        %v4113 = vld [vmem:[#allocation27 + $0xc] sm:$0xf]
        %v4114 = vld [vmem:[#allocation27 + $0x10] sm:$0xf]
        %v4115 = vld [vmem:[#allocation27 + $0x14] sm:$0xf]
        %v4116 = vld [vmem:[#allocation27 + $0x18] sm:$0xf]
        %v4117 = vld [vmem:[#allocation27 + $0x1c] sm:$0xf]
        %v4118 = vld [vmem:[#allocation27 + $0x20] sm:$0xf]
        %v4119 = vld [vmem:[#allocation27 + $0x24] sm:$0xf]
        %v4120 = vld [vmem:[#allocation27 + $0x28] sm:$0xf]
        %v4121 = vld [vmem:[#allocation27 + $0x2c] sm:$0xf]
        %v4122 = vld [vmem:[#allocation27 + $0x30] sm:$0xf]
        %v4123 = vld [vmem:[#allocation27 + $0x34] sm:$0xf]
        %v4124 = vld [vmem:[#allocation27 + $0x38] sm:$0xf]
        %v4125 = vld [vmem:[#allocation27 + $0x3c] sm:$0xf]
        %v4126 = vld [vmem:[#allocation27 + $0x40] sm:$0xf]
        %v4127 = vld [vmem:[#allocation27 + $0x44] sm:$0xf]
        %v4128 = vld [vmem:[#allocation27 + $0x48] sm:$0xf]
        %v4129 = vld [vmem:[#allocation27 + $0x4c] sm:$0xf]
        %v4130 = vld [vmem:[#allocation27 + $0x50] sm:$0xf]
        %v4131 = vld [vmem:[#allocation27 + $0x54] sm:$0xf]
        %v4132 = vld [vmem:[#allocation27 + $0x58] sm:$0xf]
        %v4133 = vld [vmem:[#allocation27 + $0x5c] sm:$0xf]
        %v4134 = vld [vmem:[#allocation27 + $0x60] sm:$0xf]
        %v4135 = vld [vmem:[#allocation27 + $0x64] sm:$0xf]
        %v4136 = vld [vmem:[#allocation27 + $0x68] sm:$0xf]
        %v4137 = vld [vmem:[#allocation27 + $0x6c] sm:$0xf]
        %v4138 = vld [vmem:[#allocation27 + $0x70] sm:$0xf]
        %v4139 = vld [vmem:[#allocation27 + $0x74] sm:$0xf]
        %v4140 = vld [vmem:[#allocation27 + $0x78] sm:$0xf]
        %v4141 = vld [vmem:[#allocation27 + $0x7c] sm:$0xf]
        %v4142 = vld [vmem:[#allocation28] sm:$0x1]
        %v4143 = vpack.c.bf16 %v4092, %v4092
        %v4145 = vlaneseq
        %v4146 = vshrl.u32 %v4145, 7
        %v4147 = vsub.s32 0, %v4146
        %v4148 = vrot.slane %v4109, %v4147
        %v4149 = vlaneseq
        %v4150 = vshrl.u32 %v4149, 7
        %v4151 = vsub.s32 1, %v4150
        %v4152 = vrot.slane %v4109, %v4151
        %v4171 = vunpack.c.l.b16 %v4093
        %v4172 = vunpack.c.h.b16 %v4093
        %v4173 = vunpack.c.l.b16 %v4094
        %v4174 = vunpack.c.h.b16 %v4094
        %v4175 = vunpack.c.l.b16 %v4095
        %v4176 = vunpack.c.h.b16 %v4095
        %v4177 = vunpack.c.l.b16 %v4096
        %v4178 = vunpack.c.h.b16 %v4096
        %v4179 = vunpack.c.l.b16 %v4097
        %v4180 = vunpack.c.h.b16 %v4097
        %v4181 = vunpack.c.l.b16 %v4098
        %v4182 = vunpack.c.h.b16 %v4098
        %v4183 = vunpack.c.l.b16 %v4099
        %v4184 = vunpack.c.h.b16 %v4099
        %v4185 = vunpack.c.l.b16 %v4100
        %v4186 = vunpack.c.h.b16 %v4100
        %v4187 = vunpack.c.l.b16 %v4101
        %v4188 = vunpack.c.h.b16 %v4101
        %v4189 = vunpack.c.l.b16 %v4102
        %v4190 = vunpack.c.h.b16 %v4102
        %v4191 = vunpack.c.l.b16 %v4103
        %v4192 = vunpack.c.h.b16 %v4103
        %v4193 = vunpack.c.l.b16 %v4104
        %v4194 = vunpack.c.h.b16 %v4104
        %v4195 = vunpack.c.l.b16 %v4105
        %v4196 = vunpack.c.h.b16 %v4105
        %v4197 = vunpack.c.l.b16 %v4106
        %v4198 = vunpack.c.h.b16 %v4106
        %v4199 = vunpack.c.l.b16 %v4107
        %v4200 = vunpack.c.h.b16 %v4107
        %v4201 = vunpack.c.l.b16 %v4108
        %v4202 = vunpack.c.h.b16 %v4108
        %v4203 = vpack.c.b16 %v4173, %v4171
        %v4204 = vpack.c.b16 %v4174, %v4172
        %v4205 = vpack.c.b16 %v4177, %v4175
        %v4206 = vpack.c.b16 %v4178, %v4176
        %v4207 = vpack.c.b16 %v4181, %v4179
        %v4208 = vpack.c.b16 %v4182, %v4180
        %v4209 = vpack.c.b16 %v4185, %v4183
        %v4210 = vpack.c.b16 %v4186, %v4184
        %v4211 = vpack.c.b16 %v4189, %v4187
        %v4212 = vpack.c.b16 %v4190, %v4188
        %v4213 = vpack.c.b16 %v4193, %v4191
        %v4214 = vpack.c.b16 %v4194, %v4192
        %v4215 = vpack.c.b16 %v4197, %v4195
        %v4216 = vpack.c.b16 %v4198, %v4196
        %v4217 = vpack.c.b16 %v4201, %v4199
        %v4218 = vpack.c.b16 %v4202, %v4200
        %4235 = vmatprep.subr.bf16.mxu0 %v4218
        %4236 = vmatpush1.bf16.msra.mxu0 %v4217
        %4237 = vmatprep.subr.bf16.mxu0 %v4216
        %4238 = vmatpush1.bf16.msra.mxu0 %v4215
        %4239 = vmatprep.subr.bf16.mxu0 %v4214
        %4240 = vmatpush1.bf16.msra.mxu0 %v4213
        %4241 = vmatprep.subr.bf16.mxu0 %v4212
        %4242 = vmatpush1.bf16.msra.mxu0 %v4211
        %4243 = vmatprep.subr.bf16.mxu0 %v4210
        %4244 = vmatpush1.bf16.msra.mxu0 %v4209
        %4245 = vmatprep.subr.bf16.mxu0 %v4208
        %4246 = vmatpush1.bf16.msra.mxu0 %v4207
        %4247 = vmatprep.subr.bf16.mxu0 %v4206
        %4248 = vmatpush1.bf16.msra.mxu0 %v4205
        %4249 = vmatprep.subr.bf16.mxu0 %v4204
        %4250 = vmatpush1.bf16.msra.mxu0 %v4203
        %4251 = vmatprep.subr.bf16.mxu0 0
        %4252 = vmatpush2.bf16.msra.mxu0 0
        %4253 = vmatprep.subr.bf16.mxu0 0
        %4254 = vmatpush2.bf16.msra.mxu0 0
        %4255 = vmatprep.subr.bf16.mxu0 0
        %4256 = vmatpush2.bf16.msra.mxu0 0
        %4257 = vmatprep.subr.bf16.mxu0 0
        %4258 = vmatpush2.bf16.msra.mxu0 0
        %4259 = vmatprep.subr.bf16.mxu0 0
        %4260 = vmatpush2.bf16.msra.mxu0 0
        %4261 = vmatprep.subr.bf16.mxu0 0
        %4262 = vmatpush2.bf16.msra.mxu0 0
        %4263 = vmatprep.subr.bf16.mxu0 0
        %4264 = vmatpush2.bf16.msra.mxu0 0
        %4265 = vmatprep.subr.bf16.mxu0 0
        %4266 = vmatpush2.bf16.msra.mxu0 0
        %4267 = vmatprep.mubr.bf16.mxu0 0
        %4268 = vmatmul.mubr.bf16.gmra.mxu0 %v4143
        %v4269 = vpop.f32.mrf.mxu0
        %v4270 = vadd.f32 %v4148, %v4269
        %v4271 = vpop.f32.mrf.mxu0
        %v4272 = vadd.f32 %v4152, %v4271
        %v4273 = vpop.f32.mrf.mxu0
        %v4274 = vpop.f32.mrf.mxu0
        %4275 = vdwg.mxu0
        %v4276 = vmax.f32 %v4270, 0.0
        %v4277 = vmax.f32 %v4272, 0.0
        %v4278 = vpack.c.bf16 %v4276, %v4276
        %v4279 = vpack.c.bf16 %v4277, %v4277
        %v4281 = vlaneseq
        %v4282 = vshrl.u32 %v4281, 7
        %v4283 = vsub.s32 0, %v4282
        %v4284 = vrot.slane %v4142, %v4283
        %v4318 = vunpack.c.l.b16 %v4110
        %v4319 = vunpack.c.l.b16 %v4111
        %v4320 = vunpack.c.l.b16 %v4112
        %v4321 = vunpack.c.l.b16 %v4113
        %v4322 = vunpack.c.l.b16 %v4114
        %v4323 = vunpack.c.l.b16 %v4115
        %v4324 = vunpack.c.l.b16 %v4116
        %v4325 = vunpack.c.l.b16 %v4117
        %v4326 = vunpack.c.l.b16 %v4118
        %v4327 = vunpack.c.l.b16 %v4119
        %v4328 = vunpack.c.l.b16 %v4120
        %v4329 = vunpack.c.l.b16 %v4121
        %v4330 = vunpack.c.l.b16 %v4122
        %v4331 = vunpack.c.l.b16 %v4123
        %v4332 = vunpack.c.l.b16 %v4124
        %v4333 = vunpack.c.l.b16 %v4125
        %v4334 = vunpack.c.l.b16 %v4126
        %v4335 = vunpack.c.l.b16 %v4127
        %v4336 = vunpack.c.l.b16 %v4128
        %v4337 = vunpack.c.l.b16 %v4129
        %v4338 = vunpack.c.l.b16 %v4130
        %v4339 = vunpack.c.l.b16 %v4131
        %v4340 = vunpack.c.l.b16 %v4132
        %v4341 = vunpack.c.l.b16 %v4133
        %v4342 = vunpack.c.l.b16 %v4134
        %v4343 = vunpack.c.l.b16 %v4135
        %v4344 = vunpack.c.l.b16 %v4136
        %v4345 = vunpack.c.l.b16 %v4137
        %v4346 = vunpack.c.l.b16 %v4138
        %v4347 = vunpack.c.l.b16 %v4139
        %v4348 = vunpack.c.l.b16 %v4140
        %v4349 = vunpack.c.l.b16 %v4141
        %v4350 = vpack.c.b16 %v4319, %v4318
        %v4351 = vpack.c.b16 %v4321, %v4320
        %v4352 = vpack.c.b16 %v4323, %v4322
        %v4353 = vpack.c.b16 %v4325, %v4324
        %v4354 = vpack.c.b16 %v4327, %v4326
        %v4355 = vpack.c.b16 %v4329, %v4328
        %v4356 = vpack.c.b16 %v4331, %v4330
        %v4357 = vpack.c.b16 %v4333, %v4332
        %v4358 = vpack.c.b16 %v4335, %v4334
        %v4359 = vpack.c.b16 %v4337, %v4336
        %v4360 = vpack.c.b16 %v4339, %v4338
        %v4361 = vpack.c.b16 %v4341, %v4340
        %v4362 = vpack.c.b16 %v4343, %v4342
        %v4363 = vpack.c.b16 %v4345, %v4344
        %v4364 = vpack.c.b16 %v4347, %v4346
        %v4365 = vpack.c.b16 %v4349, %v4348
        %4382 = vmatprep.subr.bf16.mxu0 0
        %4383 = vmatpush1.bf16.msra.mxu0 %v4357
        %4384 = vmatprep.subr.bf16.mxu0 0
        %4385 = vmatpush1.bf16.msra.mxu0 %v4356
        %4386 = vmatprep.subr.bf16.mxu0 0
        %4387 = vmatpush1.bf16.msra.mxu0 %v4355
        %4388 = vmatprep.subr.bf16.mxu0 0
        %4389 = vmatpush1.bf16.msra.mxu0 %v4354
        %4390 = vmatprep.subr.bf16.mxu0 0
        %4391 = vmatpush1.bf16.msra.mxu0 %v4353
        %4392 = vmatprep.subr.bf16.mxu0 0
        %4393 = vmatpush1.bf16.msra.mxu0 %v4352
        %4394 = vmatprep.subr.bf16.mxu0 0
        %4395 = vmatpush1.bf16.msra.mxu0 %v4351
        %4396 = vmatprep.subr.bf16.mxu0 0
        %4397 = vmatpush1.bf16.msra.mxu0 %v4350
        %4398 = vmatprep.subr.bf16.mxu0 0
        %4399 = vmatpush2.bf16.msra.mxu0 %v4365
        %4400 = vmatprep.subr.bf16.mxu0 0
        %4401 = vmatpush2.bf16.msra.mxu0 %v4364
        %4402 = vmatprep.subr.bf16.mxu0 0
        %4403 = vmatpush2.bf16.msra.mxu0 %v4363
        %4404 = vmatprep.subr.bf16.mxu0 0
        %4405 = vmatpush2.bf16.msra.mxu0 %v4362
        %4406 = vmatprep.subr.bf16.mxu0 0
        %4407 = vmatpush2.bf16.msra.mxu0 %v4361
        %4408 = vmatprep.subr.bf16.mxu0 0
        %4409 = vmatpush2.bf16.msra.mxu0 %v4360
        %4410 = vmatprep.subr.bf16.mxu0 0
        %4411 = vmatpush2.bf16.msra.mxu0 %v4359
        %4412 = vmatprep.subr.bf16.mxu0 0
        %4413 = vmatpush2.bf16.msra.mxu0 %v4358
        %4414 = vmatprep.mubr.bf16.mxu0 %v4279
        %4415 = vmatmul.mubr.bf16.gmra.mxu0 %v4278
        %v4416 = vpop.f32.mrf.mxu0
        %v4417 = vadd.f32 %v4284, %v4416
        %v4418 = vpop.f32.mrf.mxu0
        %v4419 = vpop.f32.mrf.mxu0
        %v4420 = vpop.f32.mrf.mxu0
        %4421 = vdwg.mxu0
        %v4422 = vld [vmem:[%s26] sm:$0x1]
        %v4423 = vld [vmem:[%s27] sm:$0x1]
        %v4424 = vadd.f32 %v4092, %v4417
        %4425 = vadd.xlane.f32.xlu0 %v4424
        %v4426 = vpop.xlane.xlu0 %4425
        %v4427 = vmul.f32 %v4426, %v2584
        %v4428 = vsub.f32 %v4424, %v4427
        %v4429 = vmul.f32 %v4428, %v4428
        %4430 = vadd.xlane.f32.xlu0 %v4429
        %v4431 = vpop.xlane.xlu0 %4430
        %v4432 = vmul.f32 %v4431, %v2584
        %v4433 = vadd.f32 %v4432, 1e-05
        %v4434 = vrsqrt.pop %v4433
        %v4435 = vmul.f32 %v4428, %v4434
        %v4437 = vlaneseq
        %v4438 = vshrl.u32 %v4437, 7
        %v4439 = vsub.s32 0, %v4438
        %v4440 = vrot.slane %v4422, %v4439
        %v4442 = vmul.f32 %v4435, %v4440
        %v4444 = vlaneseq
        %v4445 = vshrl.u32 %v4444, 7
        %v4446 = vsub.s32 0, %v4445
        %v4447 = vrot.slane %v4423, %v4446
        %v4449 = vadd.f32 %v4442, %v4447
        %4450 = vst [vmem:[%s1101] sm:$0xff] %v4449
        %p4451 = scmp.lt.s32.totalorder %s49, 1
        %s4452 = scalar_select %p4451, %s49, 1
        %s4453 = smul.addr %s4452, 8
        %s4454 = scalar_lea.vmem %s28, %s4453
        // Predicated region
        $region205: #{transformer_decoder_forward.2} parent=131 // pred_check
          %p4455 = pneg %p665
        $region206: #{transformer_decoder_forward.2} parent=131 // pred_check_branch
          %4457 = sbr.rel (%p4455) target = $region208
        $region207: #{transformer_decoder_forward.2} parent=131 // pred_region
          _
        $region208: #{transformer_decoder_forward.2} parent=131 // pred_fallthru
          _
      $region132: #{transformer_decoder_forward.2} parent=5 // pred_fallthru
        _
      %p4458 = scmp.le.s32.totalorder 2, %s44
      // Predicated region
      $region209: #{transformer_decoder_forward.2} parent=5 // pred_check
        %p4459 = pneg %p4458
      $region210: #{transformer_decoder_forward.2} parent=5 // pred_check_branch
        %4461 = sbr.rel (%p4459) target = $region212
      $region211: #{transformer_decoder_forward.2} parent=5 // pred_region
        %s4462 = ssub.s32 %s44, 2
        // Predicated region
        $region213: #{transformer_decoder_forward.2} parent=211 // pred_check
          %p4463 = pneg %p671
        $region214: #{transformer_decoder_forward.2} parent=211 // pred_check_branch
          %4465 = sbr.rel (%p4463) target = $region216
        $region215: #{transformer_decoder_forward.2} parent=211 // pred_region
          %p4466 = scmp.lt.s32.totalorder %s50, 1
          %s4467 = scalar_select %p4466, %s50, 1
          %s4468 = smul.addr %s4467, 8
          %s4469 = scalar_lea.vmem %s28, %s4468
        $region216: #{transformer_decoder_forward.2} parent=211 // pred_fallthru
          _
      $region212: #{transformer_decoder_forward.2} parent=5 // pred_fallthru
        _
    $region6: #{transformer_decoder_forward.2} parent=1 // loop_footer
      %s48 = sadd.s32 1, %s44
    $region7: #{transformer_decoder_forward.2} parent=1 // loop_footer_branch
      %43 = sbr.rel target = $region3
    $region8: #{transformer_decoder_forward.2} parent=1 // loop_exit
      _
    %4470 = vsyncpa [#allocation3], 1
    %s4471 = scalar_lea.sflag [#allocation3], 1
    %4472 = vsyncpa %s4471, 1
    %4473 = vsyncpa [#allocation5], 1
    %4474 = vsyncpa [#allocation8], 1
    %4475 = vsyncpa [#allocation11], 1
    %4476 = vsyncpa [#allocation14], 1
    %4477 = vsyncpa [#allocation17], 1
    %4478 = vsyncpa [#allocation20], 1
    %4479 = vsyncpa [#allocation23], 1
    %4480 = vsyncpa [#allocation26], 1
    %4481 = vsyncpa [#allocation29], 1

</llo_original>
